<compile_context>
chip_gen: v6e
topology: v6e:2x2x1
jax: 0.10.0
libtpu: 0.0.40
codegen_flags: <defaults>
</compile_context>

<pallas_src>
import functools

import jax
import jax.numpy as jnp
from jax import lax
from jax.experimental import pallas as pl
from jax.experimental.pallas import tpu as pltpu


# ---------------------------------------------------------------------------
# Single fused kernel: corr + CA -> towers (fused sep-conv + BN + ReLU)
#                      -> heads (block-diagonal 3x3 conv + bias)
# ---------------------------------------------------------------------------
def _fused_head_kernel(x_ref, z_ref, cmask_ref,
                       w1_ref, b1_ref, w2_ref, b2_ref,
                       wt_ref, ts_ref, tsh_ref, wh_ref, hb_ref,
                       out_ref, s_pad, t_pad, acc, *, H, W):
    # x_ref  : (1, NPAD, C+1)  padded-flat search feat + "ones" mask channel
    # z_ref  : (1, C+1, K)     BN-folded template (last row = rank-1 BN_x bias)
    # cmask  : (M, 1)          1 where (q mod Wp) < W, else 0 (garbage columns)
    # w1/b1, w2/b2             CA fc weights (K,K)/(1,K)
    # wt_ref : (9, K, CT)      fused separable-conv tower weights (cls|box)
    # ts/tsh : (1, CT)         folded tower BN scale / shift
    # wh_ref : (9, CT, CO)     block-diagonal head weights, zero-padded to CO
    # hb_ref : (1, CO)         head biases (first 7 lanes), zero-padded
    # out_ref: (1, M, CO)      lane-dense head output (valid cols j < W only)
    # s_pad  : VMEM (NPAD, K)  zero-padded corr*att slab (tower-conv input)
    # t_pad  : VMEM (NPAD, CT) zero-padded tower output slab (head-conv input)
    # acc    : VMEM (M, CT)    tower-conv accumulator
    Wp = W + 2
    M = H * Wp                      # rows computed per conv (padded-row stride)
    OFF = Wp + 1                    # flat index of image pixel (0,0) in the pad slab
    NPAD = s_pad.shape[0]           # (H+3)*(W+2): +1 extra bottom row keeps tap
    CT = t_pad.shape[1]             #   slices of length M in bounds
    CO = out_ref.shape[2]
    inv_hw = 1.0 / float(H * W)

    # ---- stage 1: pixel-wise correlation (BN folded) + channel attention ---
    corr = jnp.dot(x_ref[0], z_ref[0], preferred_element_type=jnp.float32)  # (NPAD,K)
    # pad rows of x (incl. the mask channel) are zero -> corr is 0 there, so a
    # plain column-sum over all NPAD rows equals the avg-pool over H*W pixels.
    pooled = jnp.sum(corr, axis=0, keepdims=True) * inv_hw                  # (1, K)
    hh = jnp.maximum(
        jnp.dot(pooled, w1_ref[...], preferred_element_type=jnp.float32)
        + b1_ref[...], 0.0)
    logits = jnp.dot(hh, w2_ref[...],
                     preferred_element_type=jnp.float32) + b2_ref[...]
    att = 1.0 / (1.0 + jnp.exp(-logits))                                    # sigmoid
    s_pad[...] = corr * att                                                 # pads stay 0

    # ---- stage 2: both towers = 9 contiguous-slice MXU matmuls -------------
    acc[...] = jnp.zeros_like(acc)
    for kh in range(3):
        for kw in range(3):
            acc[...] += jnp.dot(s_pad[pl.ds(kh * Wp + kw, M), :],
                                wt_ref[kh * 3 + kw],
                                preferred_element_type=jnp.float32)
    # BN + ReLU epilogue; zero the 2 garbage columns per image row, then drop
    # the masked slab at offset OFF so t_pad becomes the zero-padded head input.
    tower = jnp.maximum(acc[...] * ts_ref[...] + tsh_ref[...], 0.0) * cmask_ref[...]
    t_pad[pl.ds(0, OFF), :] = jnp.zeros((OFF, CT), jnp.float32)
    t_pad[pl.ds(OFF + M, NPAD - OFF - M), :] = jnp.zeros(
        (NPAD - OFF - M, CT), jnp.float32)
    t_pad[pl.ds(OFF, M), :] = tower

    # ---- stage 3: all heads = 9 lane-dense matmuls, accumulate into output -
    out_ref[0] = jnp.broadcast_to(hb_ref[...], (M, CO))
    for kh in range(3):
        for kw in range(3):
            out_ref[0] = out_ref[0] + jnp.dot(t_pad[pl.ds(kh * Wp + kw, M), :],
                                              wh_ref[kh * 3 + kw],
                                              preferred_element_type=jnp.float32)


# ---------------------------------------------------------------------------
# Full PW_FCOS_head forward (inference mode)
# ---------------------------------------------------------------------------
def pw_fcos_head_forward(search, kernel, p, *, stride=16, eps=1e-5):
    """search: (N, C, H, W); kernel: (N, C, Hz, Wz); NCHW in / NCHW out."""
    N, C, H, W = search.shape
    _, _, Hz, Wz = kernel.shape
    K = Hz * Wz                    # num_kernel = corr channels
    outch = p['cls_pw'].shape[0]
    CT = 2 * outch                 # [cls | box] tower channels
    CO = 128                       # lane-dense padded head-output channels
    Wp = W + 2
    NPAD = (H + 3) * Wp            # padded-flat rows ((1,2) row / (1,1) col pad)
    M = H * Wp                     # conv output rows (Wp-strided, 2 junk cols/row)

    def bn_fold(g, b, m, v):
        s = g / jnp.sqrt(v + eps)
        return s, b - m * s

    # --- stage-1 operands: BN folded into z; BN_x shift via augmented channel
    sx, bx = bn_fold(*p['bn_x'])
    sz, bz = bn_fold(*p['bn_z'])
    z_bn = kernel.reshape(N, C, K) * sz[None, :, None] + bz[None, :, None]
    corr_bias = jnp.einsum('c,nck->nk', bx, z_bn,
                           precision=lax.Precision.HIGHEST)       # (N, K)
    z_aug = jnp.concatenate([z_bn * sx[None, :, None],
                             corr_bias[:, None, :]], axis=1)      # (N, C+1, K)

    x_cl = jnp.transpose(search, (0, 2, 3, 1))                    # (N, H, W, C)
    x_aug = jnp.concatenate([x_cl, jnp.ones((N, H, W, 1), x_cl.dtype)], axis=-1)
    x_aug = jnp.pad(x_aug, ((0, 0), (1, 2), (1, 1), (0, 0))).reshape(N, NPAD, C + 1)

    colmask = (jnp.arange(M) % Wp < W).astype(jnp.float32).reshape(M, 1)

    # --- stage-2 weights: separable convs fused to effective 3x3, towers concat
    def sep_eff(dw, pw):  # dw (Cin,1,3,3), pw (Cout,Cin,1,1) -> (3,3,Cin,Cout)
        d = jnp.transpose(dw[:, 0], (1, 2, 0))
        q = jnp.transpose(pw[:, :, 0, 0], (1, 0))
        return d[:, :, :, None] * q[None, None, :, :]

    w_tow = jnp.concatenate(
        [sep_eff(p['cls_dw'], p['cls_pw']), sep_eff(p['box_dw'], p['box_pw'])],
        axis=-1).reshape(9, K, CT)
    s_cls, t_cls = bn_fold(*p['bn_cls'])
    s_box, t_box = bn_fold(*p['bn_box'])
    t_scale = jnp.concatenate([s_cls, s_box]).reshape(1, CT)
    t_shift = jnp.concatenate([t_cls, t_box]).reshape(1, CT)

    # --- stage-3 weights: block-diagonal heads, zero-padded to CO (lane-dense)
    w_head = jnp.zeros((3, 3, CT, CO), jnp.float32)
    w_head = w_head.at[:, :, :outch, 0:2].set(
        jnp.transpose(p['cls_pred_w'], (2, 3, 1, 0)))
    w_head = w_head.at[:, :, outch:, 2:6].set(
        jnp.transpose(p['bbox_pred_w'], (2, 3, 1, 0)))
    w_head = w_head.at[:, :, outch:, 6:7].set(
        jnp.transpose(p['cent_pred_w'], (2, 3, 1, 0)))
    w_head = w_head.reshape(9, CT, CO)
    h_bias = jnp.zeros((1, CO), jnp.float32).at[0, :7].set(
        jnp.concatenate([p['cls_pred_b'], p['bbox_pred_b'], p['cent_pred_b']]))

    out = pl.pallas_call(
        functools.partial(_fused_head_kernel, H=H, W=W),
        out_shape=jax.ShapeDtypeStruct((N, M, CO), jnp.float32),
        grid=(N,),
        in_specs=[
            pl.BlockSpec((1, NPAD, C + 1), lambda n: (n, 0, 0)),
            pl.BlockSpec((1, C + 1, K), lambda n: (n, 0, 0)),
            pl.BlockSpec((M, 1), lambda n: (0, 0)),
            pl.BlockSpec((K, K), lambda n: (0, 0)),
            pl.BlockSpec((1, K), lambda n: (0, 0)),
            pl.BlockSpec((K, K), lambda n: (0, 0)),
            pl.BlockSpec((1, K), lambda n: (0, 0)),
            pl.BlockSpec((9, K, CT), lambda n: (0, 0, 0)),
            pl.BlockSpec((1, CT), lambda n: (0, 0)),
            pl.BlockSpec((1, CT), lambda n: (0, 0)),
            pl.BlockSpec((9, CT, CO), lambda n: (0, 0, 0)),
            pl.BlockSpec((1, CO), lambda n: (0, 0)),
        ],
        out_specs=pl.BlockSpec((1, M, CO), lambda n: (n, 0, 0)),
        scratch_shapes=[
            pltpu.VMEM((NPAD, K), jnp.float32),    # corr*att padded slab
            pltpu.VMEM((NPAD, CT), jnp.float32),   # tower-output padded slab
            pltpu.VMEM((M, CT), jnp.float32),      # tower accumulator
        ],
        compiler_params=pltpu.CompilerParams(
            dimension_semantics=("parallel",)),
    )(x_aug, z_aug, colmask,
      jnp.transpose(p['ca_w1'][:, :, 0, 0]), p['ca_b1'].reshape(1, K),
      jnp.transpose(p['ca_w2'][:, :, 0, 0]), p['ca_b2'].reshape(1, K),
      w_tow, t_scale, t_shift, w_head, h_bias)

    # Drop the 2 junk columns per image row and the 121 zero-padded channels.
    heads = out.reshape(N, H, Wp, CO)[:, :, :W, :7]
    to_nchw = lambda t: jnp.transpose(t, (0, 3, 1, 2))
    cls = to_nchw(heads[..., 0:2])
    reg = stride * jax.nn.relu(to_nchw(heads[..., 2:6]))
    cent = to_nchw(heads[..., 6:7])
    return {'cls': cls, 'reg': reg, 'cent': cent}


# ---------------------------------------------------------------------------
# Pure-JAX reference (matches the PyTorch module, eval-mode BN)
# ---------------------------------------------------------------------------
def _reference(search, kernel, p, *, stride, eps=1e-5):
    P_HI = lax.Precision.HIGHEST

    def bn(x, g, b, m, v):
        return ((x - m[None, :, None, None]) /
                jnp.sqrt(v[None, :, None, None] + eps) *
                g[None, :, None, None] + b[None, :, None, None])

    z = bn(kernel, *p['bn_z'])
    x = bn(search, *p['bn_x'])
    N, C, H, W = x.shape

    # pixel_corr_mat
    z_mat = jnp.transpose(z.reshape(N, C, -1), (0, 2, 1))           # (N, K, C)
    x_mat = x.reshape(N, C, -1)                                     # (N, C, HW)
    corr = jnp.matmul(z_mat, x_mat, precision=P_HI).reshape(N, -1, H, W)

    # CAModule
    pooled = jnp.mean(corr, axis=(2, 3))                            # (N, K)
    h = jax.nn.relu(jnp.matmul(pooled, p['ca_w1'][:, :, 0, 0].T,
                               precision=P_HI) + p['ca_b1'])
    att = jax.nn.sigmoid(jnp.matmul(h, p['ca_w2'][:, :, 0, 0].T,
                                    precision=P_HI) + p['ca_b2'])
    s = corr * att[:, :, None, None]

    dn = ('NCHW', 'OIHW', 'NCHW')

    def sep_bn_relu(t, dw, pw, bn_p):
        c = t.shape[1]
        y = lax.conv_general_dilated(t, dw, (1, 1), [(1, 1), (1, 1)],
                                     dimension_numbers=dn,
                                     feature_group_count=c, precision=P_HI)
        y = lax.conv_general_dilated(y, pw, (1, 1), 'VALID',
                                     dimension_numbers=dn, precision=P_HI)
        return jax.nn.relu(bn(y, *bn_p))

    x_cls = sep_bn_relu(s, p['cls_dw'], p['cls_pw'], p['bn_cls'])
    x_reg = sep_bn_relu(s, p['box_dw'], p['box_pw'], p['bn_box'])

    def conv3_b(t, w, b):
        y = lax.conv_general_dilated(t, w, (1, 1), [(1, 1), (1, 1)],
                                     dimension_numbers=dn, precision=P_HI)
        return y + b[None, :, None, None]

    cls = conv3_b(x_cls, p['cls_pred_w'], p['cls_pred_b'])
    reg = stride * jax.nn.relu(conv3_b(x_reg, p['bbox_pred_w'], p['bbox_pred_b']))
    cent = conv3_b(x_reg, p['cent_pred_w'], p['cent_pred_b'])
    return {'cls': cls, 'reg': reg, 'cent': cent}


if __name__ == "__main__":
    # Small config consistent with the module: batch=2, inchannels=32,
    # search 16x16, template 8x8 -> num_kernel=64, outchannels=64,
    # towernum=1, kernel_sz=3, dilation=1 (padding=1), stride=16.
    N, C, Hx, Wx = 2, 32, 16, 16
    Hz = Wz = 8
    K = Hz * Wz           # num_kernel
    OUT = 64              # outchannels (small stand-in for 256)
    STRIDE = 16

    keys = iter(jax.random.split(jax.random.PRNGKey(0), 40))
    nrm = lambda shape, s=0.1: jax.random.normal(next(keys), shape, jnp.float32) * s
    pos = lambda shape: jax.random.uniform(next(keys), shape, jnp.float32, 0.5, 1.5)

    search = jax.random.normal(next(keys), (N, C, Hx, Wx), jnp.float32)
    kernel = jax.random.normal(next(keys), (N, C, Hz, Wz), jnp.float32)

    params = {
        # BatchNorm2d (eval): (gamma, beta, running_mean, running_var)
        'bn_x': (pos((C,)), nrm((C,)), nrm((C,)), pos((C,))),
        'bn_z': (pos((C,)), nrm((C,)), nrm((C,)), pos((C,))),
        # CAModule (reduction=1): 1x1 convs with bias
        'ca_w1': nrm((K, K, 1, 1)), 'ca_b1': nrm((K,)),
        'ca_w2': nrm((K, K, 1, 1)), 'ca_b2': nrm((K,)),
        # cls_tower: SeparableConv2d(K, OUT, 3, pad=1, bias=False) + BN
        'cls_dw': nrm((K, 1, 3, 3)), 'cls_pw': nrm((OUT, K, 1, 1)),
        'bn_cls': (pos((OUT,)), nrm((OUT,)), nrm((OUT,)), pos((OUT,))),
        # box_tower
        'box_dw': nrm((K, 1, 3, 3)), 'box_pw': nrm((OUT, K, 1, 1)),
        'bn_box': (pos((OUT,)), nrm((OUT,)), nrm((OUT,)), pos((OUT,))),
        # prediction heads (3x3, pad=1, bias=True)
        'cls_pred_w': nrm((2, OUT, 3, 3)), 'cls_pred_b': nrm((2,)),
        'bbox_pred_w': nrm((4, OUT, 3, 3)), 'bbox_pred_b': nrm((4,)),
        'cent_pred_w': nrm((1, OUT, 3, 3)), 'cent_pred_b': nrm((1,)),
    }

    fwd = jax.jit(functools.partial(pw_fcos_head_forward, stride=STRIDE))
    out = fwd(search, kernel, params)
    out = jax.block_until_ready(out)

    ref = _reference(search, kernel, params, stride=STRIDE)
    assert out['cls'].shape == (N, 2, Hx, Wx)
    assert out['reg'].shape == (N, 4, Hx, Wx)
    assert out['cent'].shape == (N, 1, Hx, Wx)
    for name in ('cls', 'reg', 'cent'):
        err = float(jnp.max(jnp.abs(out[name] - ref[name])))
        assert jnp.allclose(out[name], ref[name], atol=2e-3, rtol=2e-3), (name, err)

    print("KERNEL_OK")
</pallas_src>

<mosaic_0001>
module attributes {stable_mosaic.version = 11 : i64} {
  func.func @_fused_head_kernel(%arg0: i32, %arg1: memref<1x342x33xf32, #tpu.memory_space<vmem>>, %arg2: memref<1x33x64xf32, #tpu.memory_space<vmem>>, %arg3: memref<288x1xf32, #tpu.memory_space<vmem>>, %arg4: memref<64x64xf32, #tpu.memory_space<vmem>>, %arg5: memref<1x64xf32, #tpu.memory_space<vmem>>, %arg6: memref<64x64xf32, #tpu.memory_space<vmem>>, %arg7: memref<1x64xf32, #tpu.memory_space<vmem>>, %arg8: memref<9x64x128xf32, #tpu.memory_space<vmem>>, %arg9: memref<1x128xf32, #tpu.memory_space<vmem>>, %arg10: memref<1x128xf32, #tpu.memory_space<vmem>>, %arg11: memref<9x128x128xf32, #tpu.memory_space<vmem>>, %arg12: memref<1x128xf32, #tpu.memory_space<vmem>>, %arg13: memref<1x288x128xf32, #tpu.memory_space<vmem>>, %arg14: memref<342x64xf32, #tpu.memory_space<vmem>>, %arg15: memref<342x128xf32, #tpu.memory_space<vmem>>, %arg16: memref<288x128xf32, #tpu.memory_space<vmem>>) attributes {dimension_semantics = [#tpu.dimension_semantics<parallel>], iteration_bounds = array<i64: 2>, scalar_prefetch = 0 : i64, scratch_operands = 3 : i64, tpu.core_type = #tpu.core_type<tc>, window_params = [{transform_indices = @transform_0, window_bounds = array<i64: 1, 342, 33>}, {transform_indices = @transform_1, window_bounds = array<i64: 1, 33, 64>}, {pipeline_mode = #tpu.pipeline_mode<synchronous>, transform_indices = @transform_2, window_bounds = array<i64: 288, 1>}, {pipeline_mode = #tpu.pipeline_mode<synchronous>, transform_indices = @transform_3, window_bounds = array<i64: 64, 64>}, {pipeline_mode = #tpu.pipeline_mode<synchronous>, transform_indices = @transform_4, window_bounds = array<i64: 1, 64>}, {pipeline_mode = #tpu.pipeline_mode<synchronous>, transform_indices = @transform_5, window_bounds = array<i64: 64, 64>}, {pipeline_mode = #tpu.pipeline_mode<synchronous>, transform_indices = @transform_6, window_bounds = array<i64: 1, 64>}, {pipeline_mode = #tpu.pipeline_mode<synchronous>, transform_indices = @transform_7, window_bounds = array<i64: 9, 64, 128>}, {pipeline_mode = #tpu.pipeline_mode<synchronous>, transform_indices = @transform_8, window_bounds = array<i64: 1, 128>}, {pipeline_mode = #tpu.pipeline_mode<synchronous>, transform_indices = @transform_9, window_bounds = array<i64: 1, 128>}, {pipeline_mode = #tpu.pipeline_mode<synchronous>, transform_indices = @transform_10, window_bounds = array<i64: 9, 128, 128>}, {pipeline_mode = #tpu.pipeline_mode<synchronous>, transform_indices = @transform_11, window_bounds = array<i64: 1, 128>}, {transform_indices = @transform_12, window_bounds = array<i64: 1, 288, 128>}]} {
    %c0 = arith.constant 0 : index
    %c0_0 = arith.constant 0 : index
    %c0_1 = arith.constant 0 : index
    %0 = vector.load %arg1[%c0, %c0_0, %c0_1] : memref<1x342x33xf32, #tpu.memory_space<vmem>>, vector<1x342x33xf32>
    %1 = vector.shape_cast %0 : vector<1x342x33xf32> to vector<342x33xf32>
    %c0_2 = arith.constant 0 : index
    %c0_3 = arith.constant 0 : index
    %c0_4 = arith.constant 0 : index
    %2 = vector.load %arg2[%c0_2, %c0_3, %c0_4] : memref<1x33x64xf32, #tpu.memory_space<vmem>>, vector<1x33x64xf32>
    %3 = vector.shape_cast %2 : vector<1x33x64xf32> to vector<33x64xf32>
    %cst = arith.constant dense<0.000000e+00> : vector<342x64xf32>
    %4 = tpu.matmul %1, %3, %cst {dimension_numbers = #tpu.dot_dimension_numbers<[1], [0], [0], [1], [0, 0, 1, 1], [], []>} : vector<342x33xf32>, vector<33x64xf32>, vector<342x64xf32> -> vector<342x64xf32>
    %cst_5 = arith.constant dense<0.000000e+00> : vector<64xf32>
    %5 = vector.multi_reduction <add>, %4, %cst_5 [0] : vector<342x64xf32> to vector<64xf32>
    %6 = vector.shape_cast %5 : vector<64xf32> to vector<1x64xf32>
    %cst_6 = arith.constant 3.906250e-03 : f32
    %7 = vector.broadcast %cst_6 : f32 to vector<1x64xf32>
    %8 = arith.mulf %6, %7 : vector<1x64xf32>
    %c0_7 = arith.constant 0 : index
    %c0_8 = arith.constant 0 : index
    %9 = vector.load %arg4[%c0_7, %c0_8] : memref<64x64xf32, #tpu.memory_space<vmem>>, vector<64x64xf32>
    %cst_9 = arith.constant dense<0.000000e+00> : vector<1x64xf32>
    %10 = tpu.matmul %8, %9, %cst_9 {dimension_numbers = #tpu.dot_dimension_numbers<[1], [0], [0], [1], [0, 0, 1, 1], [], []>} : vector<1x64xf32>, vector<64x64xf32>, vector<1x64xf32> -> vector<1x64xf32>
    %c0_10 = arith.constant 0 : index
    %c0_11 = arith.constant 0 : index
    %11 = vector.load %arg5[%c0_10, %c0_11] : memref<1x64xf32, #tpu.memory_space<vmem>>, vector<1x64xf32>
    %12 = arith.addf %10, %11 : vector<1x64xf32>
    %cst_12 = arith.constant 0.000000e+00 : f32
    %13 = vector.broadcast %cst_12 : f32 to vector<1x64xf32>
    %14 = arith.maximumf %12, %13 : vector<1x64xf32>
    %c0_13 = arith.constant 0 : index
    %c0_14 = arith.constant 0 : index
    %15 = vector.load %arg6[%c0_13, %c0_14] : memref<64x64xf32, #tpu.memory_space<vmem>>, vector<64x64xf32>
    %cst_15 = arith.constant dense<0.000000e+00> : vector<1x64xf32>
    %16 = tpu.matmul %14, %15, %cst_15 {dimension_numbers = #tpu.dot_dimension_numbers<[1], [0], [0], [1], [0, 0, 1, 1], [], []>} : vector<1x64xf32>, vector<64x64xf32>, vector<1x64xf32> -> vector<1x64xf32>
    %c0_16 = arith.constant 0 : index
    %c0_17 = arith.constant 0 : index
    %17 = vector.load %arg7[%c0_16, %c0_17] : memref<1x64xf32, #tpu.memory_space<vmem>>, vector<1x64xf32>
    %18 = arith.addf %16, %17 : vector<1x64xf32>
    %cst_18 = arith.constant 0.000000e+00 : f32
    %19 = vector.broadcast %cst_18 : f32 to vector<1x64xf32>
    %20 = arith.subf %19, %18 : vector<1x64xf32>
    %21 = math.exp %20 : vector<1x64xf32>
    %cst_19 = arith.constant 1.000000e+00 : f32
    %22 = vector.broadcast %cst_19 : f32 to vector<1x64xf32>
    %23 = arith.addf %22, %21 : vector<1x64xf32>
    %cst_20 = arith.constant 1.000000e+00 : f32
    %24 = vector.broadcast %cst_20 : f32 to vector<1x64xf32>
    %25 = arith.divf %24, %23 : vector<1x64xf32>
    %26 = vector.broadcast %25 : vector<1x64xf32> to vector<342x64xf32>
    %27 = arith.mulf %4, %26 : vector<342x64xf32>
    %c0_21 = arith.constant 0 : index
    %c0_22 = arith.constant 0 : index
    %28 = vector.load %arg14[%c0_21, %c0_22] : memref<342x64xf32, #tpu.memory_space<vmem>>, vector<342x64xf32>
    tpu.vector_store %arg14[%c0_21, %c0_22], %27 {strides = array<i32>} : memref<342x64xf32, #tpu.memory_space<vmem>>, vector<342x64xf32>,
    %cst_23 = arith.constant 0.000000e+00 : f32
    %29 = vector.broadcast %cst_23 : f32 to vector<288x128xf32>
    %c0_24 = arith.constant 0 : index
    %c0_25 = arith.constant 0 : index
    %30 = vector.load %arg16[%c0_24, %c0_25] : memref<288x128xf32, #tpu.memory_space<vmem>>, vector<288x128xf32>
    tpu.vector_store %arg16[%c0_24, %c0_25], %29 {strides = array<i32>} : memref<288x128xf32, #tpu.memory_space<vmem>>, vector<288x128xf32>,
    %c0_26 = arith.constant 0 : index
    %c0_27 = arith.constant 0 : index
    %31 = vector.load %arg16[%c0_26, %c0_27] : memref<288x128xf32, #tpu.memory_space<vmem>>, vector<288x128xf32>
    %c0_28 = arith.constant 0 : index
    %c0_29 = arith.constant 0 : index
    %32 = vector.load %arg14[%c0_28, %c0_29] : memref<342x64xf32, #tpu.memory_space<vmem>>, vector<288x64xf32>
    %c0_30 = arith.constant 0 : index
    %c0_31 = arith.constant 0 : index
    %c0_32 = arith.constant 0 : index
    %33 = vector.load %arg8[%c0_30, %c0_31, %c0_32] : memref<9x64x128xf32, #tpu.memory_space<vmem>>, vector<1x64x128xf32>
    %34 = vector.shape_cast %33 : vector<1x64x128xf32> to vector<64x128xf32>
    %cst_33 = arith.constant dense<0.000000e+00> : vector<288x128xf32>
    %35 = tpu.matmul %32, %34, %cst_33 {dimension_numbers = #tpu.dot_dimension_numbers<[1], [0], [0], [1], [0, 0, 1, 1], [], []>} : vector<288x64xf32>, vector<64x128xf32>, vector<288x128xf32> -> vector<288x128xf32>
    %36 = arith.addf %31, %35 : vector<288x128xf32>
    %c0_34 = arith.constant 0 : index
    %c0_35 = arith.constant 0 : index
    %37 = vector.load %arg16[%c0_34, %c0_35] : memref<288x128xf32, #tpu.memory_space<vmem>>, vector<288x128xf32>
    tpu.vector_store %arg16[%c0_34, %c0_35], %36 {strides = array<i32>} : memref<288x128xf32, #tpu.memory_space<vmem>>, vector<288x128xf32>,
    %c0_36 = arith.constant 0 : index
    %c0_37 = arith.constant 0 : index
    %38 = vector.load %arg16[%c0_36, %c0_37] : memref<288x128xf32, #tpu.memory_space<vmem>>, vector<288x128xf32>
    %c1 = arith.constant 1 : index
    %c0_38 = arith.constant 0 : index
    %39 = vector.load %arg14[%c1, %c0_38] : memref<342x64xf32, #tpu.memory_space<vmem>>, vector<288x64xf32>
    %c1_39 = arith.constant 1 : index
    %c0_40 = arith.constant 0 : index
    %c0_41 = arith.constant 0 : index
    %40 = vector.load %arg8[%c1_39, %c0_40, %c0_41] : memref<9x64x128xf32, #tpu.memory_space<vmem>>, vector<1x64x128xf32>
    %41 = vector.shape_cast %40 : vector<1x64x128xf32> to vector<64x128xf32>
    %cst_42 = arith.constant dense<0.000000e+00> : vector<288x128xf32>
    %42 = tpu.matmul %39, %41, %cst_42 {dimension_numbers = #tpu.dot_dimension_numbers<[1], [0], [0], [1], [0, 0, 1, 1], [], []>} : vector<288x64xf32>, vector<64x128xf32>, vector<288x128xf32> -> vector<288x128xf32>
    %43 = arith.addf %38, %42 : vector<288x128xf32>
    %c0_43 = arith.constant 0 : index
    %c0_44 = arith.constant 0 : index
    %44 = vector.load %arg16[%c0_43, %c0_44] : memref<288x128xf32, #tpu.memory_space<vmem>>, vector<288x128xf32>
    tpu.vector_store %arg16[%c0_43, %c0_44], %43 {strides = array<i32>} : memref<288x128xf32, #tpu.memory_space<vmem>>, vector<288x128xf32>,
    %c0_45 = arith.constant 0 : index
    %c0_46 = arith.constant 0 : index
    %45 = vector.load %arg16[%c0_45, %c0_46] : memref<288x128xf32, #tpu.memory_space<vmem>>, vector<288x128xf32>
    %c2 = arith.constant 2 : index
    %c0_47 = arith.constant 0 : index
    %46 = vector.load %arg14[%c2, %c0_47] : memref<342x64xf32, #tpu.memory_space<vmem>>, vector<288x64xf32>
    %c2_48 = arith.constant 2 : index
    %c0_49 = arith.constant 0 : index
    %c0_50 = arith.constant 0 : index
    %47 = vector.load %arg8[%c2_48, %c0_49, %c0_50] : memref<9x64x128xf32, #tpu.memory_space<vmem>>, vector<1x64x128xf32>
    %48 = vector.shape_cast %47 : vector<1x64x128xf32> to vector<64x128xf32>
    %cst_51 = arith.constant dense<0.000000e+00> : vector<288x128xf32>
    %49 = tpu.matmul %46, %48, %cst_51 {dimension_numbers = #tpu.dot_dimension_numbers<[1], [0], [0], [1], [0, 0, 1, 1], [], []>} : vector<288x64xf32>, vector<64x128xf32>, vector<288x128xf32> -> vector<288x128xf32>
    %50 = arith.addf %45, %49 : vector<288x128xf32>
    %c0_52 = arith.constant 0 : index
    %c0_53 = arith.constant 0 : index
    %51 = vector.load %arg16[%c0_52, %c0_53] : memref<288x128xf32, #tpu.memory_space<vmem>>, vector<288x128xf32>
    tpu.vector_store %arg16[%c0_52, %c0_53], %50 {strides = array<i32>} : memref<288x128xf32, #tpu.memory_space<vmem>>, vector<288x128xf32>,
    %c0_54 = arith.constant 0 : index
    %c0_55 = arith.constant 0 : index
    %52 = vector.load %arg16[%c0_54, %c0_55] : memref<288x128xf32, #tpu.memory_space<vmem>>, vector<288x128xf32>
    %c18 = arith.constant 18 : index
    %c0_56 = arith.constant 0 : index
    %53 = vector.load %arg14[%c18, %c0_56] : memref<342x64xf32, #tpu.memory_space<vmem>>, vector<288x64xf32>
    %c3 = arith.constant 3 : index
    %c0_57 = arith.constant 0 : index
    %c0_58 = arith.constant 0 : index
    %54 = vector.load %arg8[%c3, %c0_57, %c0_58] : memref<9x64x128xf32, #tpu.memory_space<vmem>>, vector<1x64x128xf32>
    %55 = vector.shape_cast %54 : vector<1x64x128xf32> to vector<64x128xf32>
    %cst_59 = arith.constant dense<0.000000e+00> : vector<288x128xf32>
    %56 = tpu.matmul %53, %55, %cst_59 {dimension_numbers = #tpu.dot_dimension_numbers<[1], [0], [0], [1], [0, 0, 1, 1], [], []>} : vector<288x64xf32>, vector<64x128xf32>, vector<288x128xf32> -> vector<288x128xf32>
    %57 = arith.addf %52, %56 : vector<288x128xf32>
    %c0_60 = arith.constant 0 : index
    %c0_61 = arith.constant 0 : index
    %58 = vector.load %arg16[%c0_60, %c0_61] : memref<288x128xf32, #tpu.memory_space<vmem>>, vector<288x128xf32>
    tpu.vector_store %arg16[%c0_60, %c0_61], %57 {strides = array<i32>} : memref<288x128xf32, #tpu.memory_space<vmem>>, vector<288x128xf32>,
    %c0_62 = arith.constant 0 : index
    %c0_63 = arith.constant 0 : index
    %59 = vector.load %arg16[%c0_62, %c0_63] : memref<288x128xf32, #tpu.memory_space<vmem>>, vector<288x128xf32>
    %c19 = arith.constant 19 : index
    %c0_64 = arith.constant 0 : index
    %60 = vector.load %arg14[%c19, %c0_64] : memref<342x64xf32, #tpu.memory_space<vmem>>, vector<288x64xf32>
    %c4 = arith.constant 4 : index
    %c0_65 = arith.constant 0 : index
    %c0_66 = arith.constant 0 : index
    %61 = vector.load %arg8[%c4, %c0_65, %c0_66] : memref<9x64x128xf32, #tpu.memory_space<vmem>>, vector<1x64x128xf32>
    %62 = vector.shape_cast %61 : vector<1x64x128xf32> to vector<64x128xf32>
    %cst_67 = arith.constant dense<0.000000e+00> : vector<288x128xf32>
    %63 = tpu.matmul %60, %62, %cst_67 {dimension_numbers = #tpu.dot_dimension_numbers<[1], [0], [0], [1], [0, 0, 1, 1], [], []>} : vector<288x64xf32>, vector<64x128xf32>, vector<288x128xf32> -> vector<288x128xf32>
    %64 = arith.addf %59, %63 : vector<288x128xf32>
    %c0_68 = arith.constant 0 : index
    %c0_69 = arith.constant 0 : index
    %65 = vector.load %arg16[%c0_68, %c0_69] : memref<288x128xf32, #tpu.memory_space<vmem>>, vector<288x128xf32>
    tpu.vector_store %arg16[%c0_68, %c0_69], %64 {strides = array<i32>} : memref<288x128xf32, #tpu.memory_space<vmem>>, vector<288x128xf32>,
    %c0_70 = arith.constant 0 : index
    %c0_71 = arith.constant 0 : index
    %66 = vector.load %arg16[%c0_70, %c0_71] : memref<288x128xf32, #tpu.memory_space<vmem>>, vector<288x128xf32>
    %c20 = arith.constant 20 : index
    %c0_72 = arith.constant 0 : index
    %67 = vector.load %arg14[%c20, %c0_72] : memref<342x64xf32, #tpu.memory_space<vmem>>, vector<288x64xf32>
    %c5 = arith.constant 5 : index
    %c0_73 = arith.constant 0 : index
    %c0_74 = arith.constant 0 : index
    %68 = vector.load %arg8[%c5, %c0_73, %c0_74] : memref<9x64x128xf32, #tpu.memory_space<vmem>>, vector<1x64x128xf32>
    %69 = vector.shape_cast %68 : vector<1x64x128xf32> to vector<64x128xf32>
    %cst_75 = arith.constant dense<0.000000e+00> : vector<288x128xf32>
    %70 = tpu.matmul %67, %69, %cst_75 {dimension_numbers = #tpu.dot_dimension_numbers<[1], [0], [0], [1], [0, 0, 1, 1], [], []>} : vector<288x64xf32>, vector<64x128xf32>, vector<288x128xf32> -> vector<288x128xf32>
    %71 = arith.addf %66, %70 : vector<288x128xf32>
    %c0_76 = arith.constant 0 : index
    %c0_77 = arith.constant 0 : index
    %72 = vector.load %arg16[%c0_76, %c0_77] : memref<288x128xf32, #tpu.memory_space<vmem>>, vector<288x128xf32>
    tpu.vector_store %arg16[%c0_76, %c0_77], %71 {strides = array<i32>} : memref<288x128xf32, #tpu.memory_space<vmem>>, vector<288x128xf32>,
    %c0_78 = arith.constant 0 : index
    %c0_79 = arith.constant 0 : index
    %73 = vector.load %arg16[%c0_78, %c0_79] : memref<288x128xf32, #tpu.memory_space<vmem>>, vector<288x128xf32>
    %c36 = arith.constant 36 : index
    %c0_80 = arith.constant 0 : index
    %74 = vector.load %arg14[%c36, %c0_80] : memref<342x64xf32, #tpu.memory_space<vmem>>, vector<288x64xf32>
    %c6 = arith.constant 6 : index
    %c0_81 = arith.constant 0 : index
    %c0_82 = arith.constant 0 : index
    %75 = vector.load %arg8[%c6, %c0_81, %c0_82] : memref<9x64x128xf32, #tpu.memory_space<vmem>>, vector<1x64x128xf32>
    %76 = vector.shape_cast %75 : vector<1x64x128xf32> to vector<64x128xf32>
    %cst_83 = arith.constant dense<0.000000e+00> : vector<288x128xf32>
    %77 = tpu.matmul %74, %76, %cst_83 {dimension_numbers = #tpu.dot_dimension_numbers<[1], [0], [0], [1], [0, 0, 1, 1], [], []>} : vector<288x64xf32>, vector<64x128xf32>, vector<288x128xf32> -> vector<288x128xf32>
    %78 = arith.addf %73, %77 : vector<288x128xf32>
    %c0_84 = arith.constant 0 : index
    %c0_85 = arith.constant 0 : index
    %79 = vector.load %arg16[%c0_84, %c0_85] : memref<288x128xf32, #tpu.memory_space<vmem>>, vector<288x128xf32>
    tpu.vector_store %arg16[%c0_84, %c0_85], %78 {strides = array<i32>} : memref<288x128xf32, #tpu.memory_space<vmem>>, vector<288x128xf32>,
    %c0_86 = arith.constant 0 : index
    %c0_87 = arith.constant 0 : index
    %80 = vector.load %arg16[%c0_86, %c0_87] : memref<288x128xf32, #tpu.memory_space<vmem>>, vector<288x128xf32>
    %c37 = arith.constant 37 : index
    %c0_88 = arith.constant 0 : index
    %81 = vector.load %arg14[%c37, %c0_88] : memref<342x64xf32, #tpu.memory_space<vmem>>, vector<288x64xf32>
    %c7 = arith.constant 7 : index
    %c0_89 = arith.constant 0 : index
    %c0_90 = arith.constant 0 : index
    %82 = vector.load %arg8[%c7, %c0_89, %c0_90] : memref<9x64x128xf32, #tpu.memory_space<vmem>>, vector<1x64x128xf32>
    %83 = vector.shape_cast %82 : vector<1x64x128xf32> to vector<64x128xf32>
    %cst_91 = arith.constant dense<0.000000e+00> : vector<288x128xf32>
    %84 = tpu.matmul %81, %83, %cst_91 {dimension_numbers = #tpu.dot_dimension_numbers<[1], [0], [0], [1], [0, 0, 1, 1], [], []>} : vector<288x64xf32>, vector<64x128xf32>, vector<288x128xf32> -> vector<288x128xf32>
    %85 = arith.addf %80, %84 : vector<288x128xf32>
    %c0_92 = arith.constant 0 : index
    %c0_93 = arith.constant 0 : index
    %86 = vector.load %arg16[%c0_92, %c0_93] : memref<288x128xf32, #tpu.memory_space<vmem>>, vector<288x128xf32>
    tpu.vector_store %arg16[%c0_92, %c0_93], %85 {strides = array<i32>} : memref<288x128xf32, #tpu.memory_space<vmem>>, vector<288x128xf32>,
    %c0_94 = arith.constant 0 : index
    %c0_95 = arith.constant 0 : index
    %87 = vector.load %arg16[%c0_94, %c0_95] : memref<288x128xf32, #tpu.memory_space<vmem>>, vector<288x128xf32>
    %c38 = arith.constant 38 : index
    %c0_96 = arith.constant 0 : index
    %88 = vector.load %arg14[%c38, %c0_96] : memref<342x64xf32, #tpu.memory_space<vmem>>, vector<288x64xf32>
    %c8 = arith.constant 8 : index
    %c0_97 = arith.constant 0 : index
    %c0_98 = arith.constant 0 : index
    %89 = vector.load %arg8[%c8, %c0_97, %c0_98] : memref<9x64x128xf32, #tpu.memory_space<vmem>>, vector<1x64x128xf32>
    %90 = vector.shape_cast %89 : vector<1x64x128xf32> to vector<64x128xf32>
    %cst_99 = arith.constant dense<0.000000e+00> : vector<288x128xf32>
    %91 = tpu.matmul %88, %90, %cst_99 {dimension_numbers = #tpu.dot_dimension_numbers<[1], [0], [0], [1], [0, 0, 1, 1], [], []>} : vector<288x64xf32>, vector<64x128xf32>, vector<288x128xf32> -> vector<288x128xf32>
    %92 = arith.addf %87, %91 : vector<288x128xf32>
    %c0_100 = arith.constant 0 : index
    %c0_101 = arith.constant 0 : index
    %93 = vector.load %arg16[%c0_100, %c0_101] : memref<288x128xf32, #tpu.memory_space<vmem>>, vector<288x128xf32>
    tpu.vector_store %arg16[%c0_100, %c0_101], %92 {strides = array<i32>} : memref<288x128xf32, #tpu.memory_space<vmem>>, vector<288x128xf32>,
    %c0_102 = arith.constant 0 : index
    %c0_103 = arith.constant 0 : index
    %94 = vector.load %arg16[%c0_102, %c0_103] : memref<288x128xf32, #tpu.memory_space<vmem>>, vector<288x128xf32>
    %c0_104 = arith.constant 0 : index
    %c0_105 = arith.constant 0 : index
    %95 = vector.load %arg9[%c0_104, %c0_105] : memref<1x128xf32, #tpu.memory_space<vmem>>, vector<1x128xf32>
    %96 = vector.broadcast %95 : vector<1x128xf32> to vector<288x128xf32>
    %97 = arith.mulf %94, %96 : vector<288x128xf32>
    %c0_106 = arith.constant 0 : index
    %c0_107 = arith.constant 0 : index
    %98 = vector.load %arg10[%c0_106, %c0_107] : memref<1x128xf32, #tpu.memory_space<vmem>>, vector<1x128xf32>
    %99 = vector.broadcast %98 : vector<1x128xf32> to vector<288x128xf32>
    %100 = arith.addf %97, %99 : vector<288x128xf32>
    %cst_108 = arith.constant 0.000000e+00 : f32
    %101 = vector.broadcast %cst_108 : f32 to vector<288x128xf32>
    %102 = arith.maximumf %100, %101 : vector<288x128xf32>
    %c0_109 = arith.constant 0 : index
    %c0_110 = arith.constant 0 : index
    %103 = vector.load %arg3[%c0_109, %c0_110] : memref<288x1xf32, #tpu.memory_space<vmem>>, vector<288x1xf32>
    %104 = vector.broadcast %103 : vector<288x1xf32> to vector<288x128xf32>
    %105 = arith.mulf %102, %104 : vector<288x128xf32>
    %cst_111 = arith.constant 0.000000e+00 : f32
    %106 = vector.broadcast %cst_111 : f32 to vector<19x128xf32>
    %c0_112 = arith.constant 0 : index
    %c0_113 = arith.constant 0 : index
    %107 = vector.load %arg15[%c0_112, %c0_113] : memref<342x128xf32, #tpu.memory_space<vmem>>, vector<19x128xf32>
    tpu.vector_store %arg15[%c0_112, %c0_113], %106 {strides = array<i32>} : memref<342x128xf32, #tpu.memory_space<vmem>>, vector<19x128xf32>,
    %cst_114 = arith.constant 0.000000e+00 : f32
    %108 = vector.broadcast %cst_114 : f32 to vector<35x128xf32>
    %c307 = arith.constant 307 : index
    %c0_115 = arith.constant 0 : index
    %109 = vector.load %arg15[%c307, %c0_115] : memref<342x128xf32, #tpu.memory_space<vmem>>, vector<35x128xf32>
    tpu.vector_store %arg15[%c307, %c0_115], %108 {strides = array<i32>} : memref<342x128xf32, #tpu.memory_space<vmem>>, vector<35x128xf32>,
    %c19_116 = arith.constant 19 : index
    %c0_117 = arith.constant 0 : index
    %110 = vector.load %arg15[%c19_116, %c0_117] : memref<342x128xf32, #tpu.memory_space<vmem>>, vector<288x128xf32>
    tpu.vector_store %arg15[%c19_116, %c0_117], %105 {strides = array<i32>} : memref<342x128xf32, #tpu.memory_space<vmem>>, vector<288x128xf32>,
    %c0_118 = arith.constant 0 : index
    %c0_119 = arith.constant 0 : index
    %111 = vector.load %arg12[%c0_118, %c0_119] : memref<1x128xf32, #tpu.memory_space<vmem>>, vector<1x128xf32>
    %112 = vector.shape_cast %111 : vector<1x128xf32> to vector<1x128xf32>
    %113 = vector.broadcast %112 : vector<1x128xf32> to vector<288x128xf32>
    %c0_120 = arith.constant 0 : index
    %c0_121 = arith.constant 0 : index
    %c0_122 = arith.constant 0 : index
    %114 = vector.load %arg13[%c0_120, %c0_121, %c0_122] : memref<1x288x128xf32, #tpu.memory_space<vmem>>, vector<1x288x128xf32>
    %115 = vector.shape_cast %114 : vector<1x288x128xf32> to vector<288x128xf32>
    %116 = vector.shape_cast %113 : vector<288x128xf32> to vector<1x288x128xf32>
    tpu.vector_store %arg13[%c0_120, %c0_121, %c0_122], %116 {strides = array<i32>} : memref<1x288x128xf32, #tpu.memory_space<vmem>>, vector<1x288x128xf32>,
    %c0_123 = arith.constant 0 : index
    %c0_124 = arith.constant 0 : index
    %c0_125 = arith.constant 0 : index
    %117 = vector.load %arg13[%c0_123, %c0_124, %c0_125] : memref<1x288x128xf32, #tpu.memory_space<vmem>>, vector<1x288x128xf32>
    %118 = vector.shape_cast %117 : vector<1x288x128xf32> to vector<288x128xf32>
    %c0_126 = arith.constant 0 : index
    %c0_127 = arith.constant 0 : index
    %119 = vector.load %arg15[%c0_126, %c0_127] : memref<342x128xf32, #tpu.memory_space<vmem>>, vector<288x128xf32>
    %c0_128 = arith.constant 0 : index
    %c0_129 = arith.constant 0 : index
    %c0_130 = arith.constant 0 : index
    %120 = vector.load %arg11[%c0_128, %c0_129, %c0_130] : memref<9x128x128xf32, #tpu.memory_space<vmem>>, vector<1x128x128xf32>
    %121 = vector.shape_cast %120 : vector<1x128x128xf32> to vector<128x128xf32>
    %cst_131 = arith.constant dense<0.000000e+00> : vector<288x128xf32>
    %122 = tpu.matmul %119, %121, %cst_131 {dimension_numbers = #tpu.dot_dimension_numbers<[1], [0], [0], [1], [0, 0, 1, 1], [], []>} : vector<288x128xf32>, vector<128x128xf32>, vector<288x128xf32> -> vector<288x128xf32>
    %123 = arith.addf %118, %122 : vector<288x128xf32>
    %c0_132 = arith.constant 0 : index
    %c0_133 = arith.constant 0 : index
    %c0_134 = arith.constant 0 : index
    %124 = vector.load %arg13[%c0_132, %c0_133, %c0_134] : memref<1x288x128xf32, #tpu.memory_space<vmem>>, vector<1x288x128xf32>
    %125 = vector.shape_cast %124 : vector<1x288x128xf32> to vector<288x128xf32>
    %126 = vector.shape_cast %123 : vector<288x128xf32> to vector<1x288x128xf32>
    tpu.vector_store %arg13[%c0_132, %c0_133, %c0_134], %126 {strides = array<i32>} : memref<1x288x128xf32, #tpu.memory_space<vmem>>, vector<1x288x128xf32>,
    %c0_135 = arith.constant 0 : index
    %c0_136 = arith.constant 0 : index
    %c0_137 = arith.constant 0 : index
    %127 = vector.load %arg13[%c0_135, %c0_136, %c0_137] : memref<1x288x128xf32, #tpu.memory_space<vmem>>, vector<1x288x128xf32>
    %128 = vector.shape_cast %127 : vector<1x288x128xf32> to vector<288x128xf32>
    %c1_138 = arith.constant 1 : index
    %c0_139 = arith.constant 0 : index
    %129 = vector.load %arg15[%c1_138, %c0_139] : memref<342x128xf32, #tpu.memory_space<vmem>>, vector<288x128xf32>
    %c1_140 = arith.constant 1 : index
    %c0_141 = arith.constant 0 : index
    %c0_142 = arith.constant 0 : index
    %130 = vector.load %arg11[%c1_140, %c0_141, %c0_142] : memref<9x128x128xf32, #tpu.memory_space<vmem>>, vector<1x128x128xf32>
    %131 = vector.shape_cast %130 : vector<1x128x128xf32> to vector<128x128xf32>
    %cst_143 = arith.constant dense<0.000000e+00> : vector<288x128xf32>
    %132 = tpu.matmul %129, %131, %cst_143 {dimension_numbers = #tpu.dot_dimension_numbers<[1], [0], [0], [1], [0, 0, 1, 1], [], []>} : vector<288x128xf32>, vector<128x128xf32>, vector<288x128xf32> -> vector<288x128xf32>
    %133 = arith.addf %128, %132 : vector<288x128xf32>
    %c0_144 = arith.constant 0 : index
    %c0_145 = arith.constant 0 : index
    %c0_146 = arith.constant 0 : index
    %134 = vector.load %arg13[%c0_144, %c0_145, %c0_146] : memref<1x288x128xf32, #tpu.memory_space<vmem>>, vector<1x288x128xf32>
    %135 = vector.shape_cast %134 : vector<1x288x128xf32> to vector<288x128xf32>
    %136 = vector.shape_cast %133 : vector<288x128xf32> to vector<1x288x128xf32>
    tpu.vector_store %arg13[%c0_144, %c0_145, %c0_146], %136 {strides = array<i32>} : memref<1x288x128xf32, #tpu.memory_space<vmem>>, vector<1x288x128xf32>,
    %c0_147 = arith.constant 0 : index
    %c0_148 = arith.constant 0 : index
    %c0_149 = arith.constant 0 : index
    %137 = vector.load %arg13[%c0_147, %c0_148, %c0_149] : memref<1x288x128xf32, #tpu.memory_space<vmem>>, vector<1x288x128xf32>
    %138 = vector.shape_cast %137 : vector<1x288x128xf32> to vector<288x128xf32>
    %c2_150 = arith.constant 2 : index
    %c0_151 = arith.constant 0 : index
    %139 = vector.load %arg15[%c2_150, %c0_151] : memref<342x128xf32, #tpu.memory_space<vmem>>, vector<288x128xf32>
    %c2_152 = arith.constant 2 : index
    %c0_153 = arith.constant 0 : index
    %c0_154 = arith.constant 0 : index
    %140 = vector.load %arg11[%c2_152, %c0_153, %c0_154] : memref<9x128x128xf32, #tpu.memory_space<vmem>>, vector<1x128x128xf32>
    %141 = vector.shape_cast %140 : vector<1x128x128xf32> to vector<128x128xf32>
    %cst_155 = arith.constant dense<0.000000e+00> : vector<288x128xf32>
    %142 = tpu.matmul %139, %141, %cst_155 {dimension_numbers = #tpu.dot_dimension_numbers<[1], [0], [0], [1], [0, 0, 1, 1], [], []>} : vector<288x128xf32>, vector<128x128xf32>, vector<288x128xf32> -> vector<288x128xf32>
    %143 = arith.addf %138, %142 : vector<288x128xf32>
    %c0_156 = arith.constant 0 : index
    %c0_157 = arith.constant 0 : index
    %c0_158 = arith.constant 0 : index
    %144 = vector.load %arg13[%c0_156, %c0_157, %c0_158] : memref<1x288x128xf32, #tpu.memory_space<vmem>>, vector<1x288x128xf32>
    %145 = vector.shape_cast %144 : vector<1x288x128xf32> to vector<288x128xf32>
    %146 = vector.shape_cast %143 : vector<288x128xf32> to vector<1x288x128xf32>
    tpu.vector_store %arg13[%c0_156, %c0_157, %c0_158], %146 {strides = array<i32>} : memref<1x288x128xf32, #tpu.memory_space<vmem>>, vector<1x288x128xf32>,
    %c0_159 = arith.constant 0 : index
    %c0_160 = arith.constant 0 : index
    %c0_161 = arith.constant 0 : index
    %147 = vector.load %arg13[%c0_159, %c0_160, %c0_161] : memref<1x288x128xf32, #tpu.memory_space<vmem>>, vector<1x288x128xf32>
    %148 = vector.shape_cast %147 : vector<1x288x128xf32> to vector<288x128xf32>
    %c18_162 = arith.constant 18 : index
    %c0_163 = arith.constant 0 : index
    %149 = vector.load %arg15[%c18_162, %c0_163] : memref<342x128xf32, #tpu.memory_space<vmem>>, vector<288x128xf32>
    %c3_164 = arith.constant 3 : index
    %c0_165 = arith.constant 0 : index
    %c0_166 = arith.constant 0 : index
    %150 = vector.load %arg11[%c3_164, %c0_165, %c0_166] : memref<9x128x128xf32, #tpu.memory_space<vmem>>, vector<1x128x128xf32>
    %151 = vector.shape_cast %150 : vector<1x128x128xf32> to vector<128x128xf32>
    %cst_167 = arith.constant dense<0.000000e+00> : vector<288x128xf32>
    %152 = tpu.matmul %149, %151, %cst_167 {dimension_numbers = #tpu.dot_dimension_numbers<[1], [0], [0], [1], [0, 0, 1, 1], [], []>} : vector<288x128xf32>, vector<128x128xf32>, vector<288x128xf32> -> vector<288x128xf32>
    %153 = arith.addf %148, %152 : vector<288x128xf32>
    %c0_168 = arith.constant 0 : index
    %c0_169 = arith.constant 0 : index
    %c0_170 = arith.constant 0 : index
    %154 = vector.load %arg13[%c0_168, %c0_169, %c0_170] : memref<1x288x128xf32, #tpu.memory_space<vmem>>, vector<1x288x128xf32>
    %155 = vector.shape_cast %154 : vector<1x288x128xf32> to vector<288x128xf32>
    %156 = vector.shape_cast %153 : vector<288x128xf32> to vector<1x288x128xf32>
    tpu.vector_store %arg13[%c0_168, %c0_169, %c0_170], %156 {strides = array<i32>} : memref<1x288x128xf32, #tpu.memory_space<vmem>>, vector<1x288x128xf32>,
    %c0_171 = arith.constant 0 : index
    %c0_172 = arith.constant 0 : index
    %c0_173 = arith.constant 0 : index
    %157 = vector.load %arg13[%c0_171, %c0_172, %c0_173] : memref<1x288x128xf32, #tpu.memory_space<vmem>>, vector<1x288x128xf32>
    %158 = vector.shape_cast %157 : vector<1x288x128xf32> to vector<288x128xf32>
    %c19_174 = arith.constant 19 : index
    %c0_175 = arith.constant 0 : index
    %159 = vector.load %arg15[%c19_174, %c0_175] : memref<342x128xf32, #tpu.memory_space<vmem>>, vector<288x128xf32>
    %c4_176 = arith.constant 4 : index
    %c0_177 = arith.constant 0 : index
    %c0_178 = arith.constant 0 : index
    %160 = vector.load %arg11[%c4_176, %c0_177, %c0_178] : memref<9x128x128xf32, #tpu.memory_space<vmem>>, vector<1x128x128xf32>
    %161 = vector.shape_cast %160 : vector<1x128x128xf32> to vector<128x128xf32>
    %cst_179 = arith.constant dense<0.000000e+00> : vector<288x128xf32>
    %162 = tpu.matmul %159, %161, %cst_179 {dimension_numbers = #tpu.dot_dimension_numbers<[1], [0], [0], [1], [0, 0, 1, 1], [], []>} : vector<288x128xf32>, vector<128x128xf32>, vector<288x128xf32> -> vector<288x128xf32>
    %163 = arith.addf %158, %162 : vector<288x128xf32>
    %c0_180 = arith.constant 0 : index
    %c0_181 = arith.constant 0 : index
    %c0_182 = arith.constant 0 : index
    %164 = vector.load %arg13[%c0_180, %c0_181, %c0_182] : memref<1x288x128xf32, #tpu.memory_space<vmem>>, vector<1x288x128xf32>
    %165 = vector.shape_cast %164 : vector<1x288x128xf32> to vector<288x128xf32>
    %166 = vector.shape_cast %163 : vector<288x128xf32> to vector<1x288x128xf32>
    tpu.vector_store %arg13[%c0_180, %c0_181, %c0_182], %166 {strides = array<i32>} : memref<1x288x128xf32, #tpu.memory_space<vmem>>, vector<1x288x128xf32>,
    %c0_183 = arith.constant 0 : index
    %c0_184 = arith.constant 0 : index
    %c0_185 = arith.constant 0 : index
    %167 = vector.load %arg13[%c0_183, %c0_184, %c0_185] : memref<1x288x128xf32, #tpu.memory_space<vmem>>, vector<1x288x128xf32>
    %168 = vector.shape_cast %167 : vector<1x288x128xf32> to vector<288x128xf32>
    %c20_186 = arith.constant 20 : index
    %c0_187 = arith.constant 0 : index
    %169 = vector.load %arg15[%c20_186, %c0_187] : memref<342x128xf32, #tpu.memory_space<vmem>>, vector<288x128xf32>
    %c5_188 = arith.constant 5 : index
    %c0_189 = arith.constant 0 : index
    %c0_190 = arith.constant 0 : index
    %170 = vector.load %arg11[%c5_188, %c0_189, %c0_190] : memref<9x128x128xf32, #tpu.memory_space<vmem>>, vector<1x128x128xf32>
    %171 = vector.shape_cast %170 : vector<1x128x128xf32> to vector<128x128xf32>
    %cst_191 = arith.constant dense<0.000000e+00> : vector<288x128xf32>
    %172 = tpu.matmul %169, %171, %cst_191 {dimension_numbers = #tpu.dot_dimension_numbers<[1], [0], [0], [1], [0, 0, 1, 1], [], []>} : vector<288x128xf32>, vector<128x128xf32>, vector<288x128xf32> -> vector<288x128xf32>
    %173 = arith.addf %168, %172 : vector<288x128xf32>
    %c0_192 = arith.constant 0 : index
    %c0_193 = arith.constant 0 : index
    %c0_194 = arith.constant 0 : index
    %174 = vector.load %arg13[%c0_192, %c0_193, %c0_194] : memref<1x288x128xf32, #tpu.memory_space<vmem>>, vector<1x288x128xf32>
    %175 = vector.shape_cast %174 : vector<1x288x128xf32> to vector<288x128xf32>
    %176 = vector.shape_cast %173 : vector<288x128xf32> to vector<1x288x128xf32>
    tpu.vector_store %arg13[%c0_192, %c0_193, %c0_194], %176 {strides = array<i32>} : memref<1x288x128xf32, #tpu.memory_space<vmem>>, vector<1x288x128xf32>,
    %c0_195 = arith.constant 0 : index
    %c0_196 = arith.constant 0 : index
    %c0_197 = arith.constant 0 : index
    %177 = vector.load %arg13[%c0_195, %c0_196, %c0_197] : memref<1x288x128xf32, #tpu.memory_space<vmem>>, vector<1x288x128xf32>
    %178 = vector.shape_cast %177 : vector<1x288x128xf32> to vector<288x128xf32>
    %c36_198 = arith.constant 36 : index
    %c0_199 = arith.constant 0 : index
    %179 = vector.load %arg15[%c36_198, %c0_199] : memref<342x128xf32, #tpu.memory_space<vmem>>, vector<288x128xf32>
    %c6_200 = arith.constant 6 : index
    %c0_201 = arith.constant 0 : index
    %c0_202 = arith.constant 0 : index
    %180 = vector.load %arg11[%c6_200, %c0_201, %c0_202] : memref<9x128x128xf32, #tpu.memory_space<vmem>>, vector<1x128x128xf32>
    %181 = vector.shape_cast %180 : vector<1x128x128xf32> to vector<128x128xf32>
    %cst_203 = arith.constant dense<0.000000e+00> : vector<288x128xf32>
    %182 = tpu.matmul %179, %181, %cst_203 {dimension_numbers = #tpu.dot_dimension_numbers<[1], [0], [0], [1], [0, 0, 1, 1], [], []>} : vector<288x128xf32>, vector<128x128xf32>, vector<288x128xf32> -> vector<288x128xf32>
    %183 = arith.addf %178, %182 : vector<288x128xf32>
    %c0_204 = arith.constant 0 : index
    %c0_205 = arith.constant 0 : index
    %c0_206 = arith.constant 0 : index
    %184 = vector.load %arg13[%c0_204, %c0_205, %c0_206] : memref<1x288x128xf32, #tpu.memory_space<vmem>>, vector<1x288x128xf32>
    %185 = vector.shape_cast %184 : vector<1x288x128xf32> to vector<288x128xf32>
    %186 = vector.shape_cast %183 : vector<288x128xf32> to vector<1x288x128xf32>
    tpu.vector_store %arg13[%c0_204, %c0_205, %c0_206], %186 {strides = array<i32>} : memref<1x288x128xf32, #tpu.memory_space<vmem>>, vector<1x288x128xf32>,
    %c0_207 = arith.constant 0 : index
    %c0_208 = arith.constant 0 : index
    %c0_209 = arith.constant 0 : index
    %187 = vector.load %arg13[%c0_207, %c0_208, %c0_209] : memref<1x288x128xf32, #tpu.memory_space<vmem>>, vector<1x288x128xf32>
    %188 = vector.shape_cast %187 : vector<1x288x128xf32> to vector<288x128xf32>
    %c37_210 = arith.constant 37 : index
    %c0_211 = arith.constant 0 : index
    %189 = vector.load %arg15[%c37_210, %c0_211] : memref<342x128xf32, #tpu.memory_space<vmem>>, vector<288x128xf32>
    %c7_212 = arith.constant 7 : index
    %c0_213 = arith.constant 0 : index
    %c0_214 = arith.constant 0 : index
    %190 = vector.load %arg11[%c7_212, %c0_213, %c0_214] : memref<9x128x128xf32, #tpu.memory_space<vmem>>, vector<1x128x128xf32>
    %191 = vector.shape_cast %190 : vector<1x128x128xf32> to vector<128x128xf32>
    %cst_215 = arith.constant dense<0.000000e+00> : vector<288x128xf32>
    %192 = tpu.matmul %189, %191, %cst_215 {dimension_numbers = #tpu.dot_dimension_numbers<[1], [0], [0], [1], [0, 0, 1, 1], [], []>} : vector<288x128xf32>, vector<128x128xf32>, vector<288x128xf32> -> vector<288x128xf32>
    %193 = arith.addf %188, %192 : vector<288x128xf32>
    %c0_216 = arith.constant 0 : index
    %c0_217 = arith.constant 0 : index
    %c0_218 = arith.constant 0 : index
    %194 = vector.load %arg13[%c0_216, %c0_217, %c0_218] : memref<1x288x128xf32, #tpu.memory_space<vmem>>, vector<1x288x128xf32>
    %195 = vector.shape_cast %194 : vector<1x288x128xf32> to vector<288x128xf32>
    %196 = vector.shape_cast %193 : vector<288x128xf32> to vector<1x288x128xf32>
    tpu.vector_store %arg13[%c0_216, %c0_217, %c0_218], %196 {strides = array<i32>} : memref<1x288x128xf32, #tpu.memory_space<vmem>>, vector<1x288x128xf32>,
    %c0_219 = arith.constant 0 : index
    %c0_220 = arith.constant 0 : index
    %c0_221 = arith.constant 0 : index
    %197 = vector.load %arg13[%c0_219, %c0_220, %c0_221] : memref<1x288x128xf32, #tpu.memory_space<vmem>>, vector<1x288x128xf32>
    %198 = vector.shape_cast %197 : vector<1x288x128xf32> to vector<288x128xf32>
    %c38_222 = arith.constant 38 : index
    %c0_223 = arith.constant 0 : index
    %199 = vector.load %arg15[%c38_222, %c0_223] : memref<342x128xf32, #tpu.memory_space<vmem>>, vector<288x128xf32>
    %c8_224 = arith.constant 8 : index
    %c0_225 = arith.constant 0 : index
    %c0_226 = arith.constant 0 : index
    %200 = vector.load %arg11[%c8_224, %c0_225, %c0_226] : memref<9x128x128xf32, #tpu.memory_space<vmem>>, vector<1x128x128xf32>
    %201 = vector.shape_cast %200 : vector<1x128x128xf32> to vector<128x128xf32>
    %cst_227 = arith.constant dense<0.000000e+00> : vector<288x128xf32>
    %202 = tpu.matmul %199, %201, %cst_227 {dimension_numbers = #tpu.dot_dimension_numbers<[1], [0], [0], [1], [0, 0, 1, 1], [], []>} : vector<288x128xf32>, vector<128x128xf32>, vector<288x128xf32> -> vector<288x128xf32>
    %203 = arith.addf %198, %202 : vector<288x128xf32>
    %c0_228 = arith.constant 0 : index
    %c0_229 = arith.constant 0 : index
    %c0_230 = arith.constant 0 : index
    %204 = vector.load %arg13[%c0_228, %c0_229, %c0_230] : memref<1x288x128xf32, #tpu.memory_space<vmem>>, vector<1x288x128xf32>
    %205 = vector.shape_cast %204 : vector<1x288x128xf32> to vector<288x128xf32>
    %206 = vector.shape_cast %203 : vector<288x128xf32> to vector<1x288x128xf32>
    tpu.vector_store %arg13[%c0_228, %c0_229, %c0_230], %206 {strides = array<i32>} : memref<1x288x128xf32, #tpu.memory_space<vmem>>, vector<1x288x128xf32>,
    return
  }
  func.func @transform_0(%arg0: i32) -> (i32, i32, i32) {
    %c0_i32 = arith.constant 0 : i32
    %c0_i32_0 = arith.constant 0 : i32
    %c0_i32_1 = arith.constant 0 : i32
    return %arg0, %c0_i32, %c0_i32_0 : i32, i32, i32
  }
  func.func @transform_1(%arg0: i32) -> (i32, i32, i32) {
    %c0_i32 = arith.constant 0 : i32
    %c0_i32_0 = arith.constant 0 : i32
    %c0_i32_1 = arith.constant 0 : i32
    return %arg0, %c0_i32, %c0_i32_0 : i32, i32, i32
  }
  func.func @transform_2(%arg0: i32) -> (i32, i32) {
    %c0_i32 = arith.constant 0 : i32
    %c0_i32_0 = arith.constant 0 : i32
    %c0_i32_1 = arith.constant 0 : i32
    return %c0_i32, %c0_i32_0 : i32, i32
  }
  func.func @transform_3(%arg0: i32) -> (i32, i32) {
    %c0_i32 = arith.constant 0 : i32
    %c0_i32_0 = arith.constant 0 : i32
    %c0_i32_1 = arith.constant 0 : i32
    return %c0_i32, %c0_i32_0 : i32, i32
  }
  func.func @transform_4(%arg0: i32) -> (i32, i32) {
    %c0_i32 = arith.constant 0 : i32
    %c0_i32_0 = arith.constant 0 : i32
    %c0_i32_1 = arith.constant 0 : i32
    return %c0_i32, %c0_i32_0 : i32, i32
  }
  func.func @transform_5(%arg0: i32) -> (i32, i32) {
    %c0_i32 = arith.constant 0 : i32
    %c0_i32_0 = arith.constant 0 : i32
    %c0_i32_1 = arith.constant 0 : i32
    return %c0_i32, %c0_i32_0 : i32, i32
  }
  func.func @transform_6(%arg0: i32) -> (i32, i32) {
    %c0_i32 = arith.constant 0 : i32
    %c0_i32_0 = arith.constant 0 : i32
    %c0_i32_1 = arith.constant 0 : i32
    return %c0_i32, %c0_i32_0 : i32, i32
  }
  func.func @transform_7(%arg0: i32) -> (i32, i32, i32) {
    %c0_i32 = arith.constant 0 : i32
    %c0_i32_0 = arith.constant 0 : i32
    %c0_i32_1 = arith.constant 0 : i32
    %c0_i32_2 = arith.constant 0 : i32
    return %c0_i32, %c0_i32_0, %c0_i32_1 : i32, i32, i32
  }
  func.func @transform_8(%arg0: i32) -> (i32, i32) {
    %c0_i32 = arith.constant 0 : i32
    %c0_i32_0 = arith.constant 0 : i32
    %c0_i32_1 = arith.constant 0 : i32
    return %c0_i32, %c0_i32_0 : i32, i32
  }
  func.func @transform_9(%arg0: i32) -> (i32, i32) {
    %c0_i32 = arith.constant 0 : i32
    %c0_i32_0 = arith.constant 0 : i32
    %c0_i32_1 = arith.constant 0 : i32
    return %c0_i32, %c0_i32_0 : i32, i32
  }
  func.func @transform_10(%arg0: i32) -> (i32, i32, i32) {
    %c0_i32 = arith.constant 0 : i32
    %c0_i32_0 = arith.constant 0 : i32
    %c0_i32_1 = arith.constant 0 : i32
    %c0_i32_2 = arith.constant 0 : i32
    return %c0_i32, %c0_i32_0, %c0_i32_1 : i32, i32, i32
  }
  func.func @transform_11(%arg0: i32) -> (i32, i32) {
    %c0_i32 = arith.constant 0 : i32
    %c0_i32_0 = arith.constant 0 : i32
    %c0_i32_1 = arith.constant 0 : i32
    return %c0_i32, %c0_i32_0 : i32, i32
  }
  func.func @transform_12(%arg0: i32) -> (i32, i32, i32) {
    %c0_i32 = arith.constant 0 : i32
    %c0_i32_0 = arith.constant 0 : i32
    %c0_i32_1 = arith.constant 0 : i32
    return %arg0, %c0_i32, %c0_i32_0 : i32, i32, i32
  }
}

</mosaic_0001>

<llo_original>
// kernel: pw_fcos_head_forward.1
$region0: #{pw_fcos_head_forward.1}
  #allocation0 [shape = 'u32[]', space=smem, size = 0x4, offset = 0x4, fixed_abs, tag = 'smem constant byte address 0x4 - core index']
  #allocation1 [shape = 'u32[144,128]{1,0:T(1,128)}', space=vmem, size = 0x12000, scoped, tag = 'internal scratch']
  #allocation2 [shape = 'f32[342,64]{1,0:T(8,128)}', space=vmem, size = 0x2b000, scoped, tag = 'scratch operand']
  #allocation3 [shape = 'f32[342,128]{1,0:T(8,128)}', space=vmem, size = 0x2b000, scoped, tag = 'scratch operand']
  #allocation4 [shape = 'f32[288,128]{1,0:T(8,128)}', space=vmem, size = 0x24000, scoped, tag = 'scratch operand']
  %s0 = inlined_call_operand.vmem [shape: f32[2,342,33], index: 0, kind: input, shape index: {}]
  %s1 = inlined_call_operand.vmem [shape: f32[2,33,64], index: 1, kind: input, shape index: {}]
  %s2 = inlined_call_operand.vmem [shape: f32[288,1], index: 2, kind: input, shape index: {}]
  %s3 = inlined_call_operand.vmem [shape: f32[64,64], index: 3, kind: input, shape index: {}]
  %s4 = inlined_call_operand.vmem [shape: f32[1,64], index: 4, kind: input, shape index: {}]
  %s5 = inlined_call_operand.vmem [shape: f32[64,64], index: 5, kind: input, shape index: {}]
  %s6 = inlined_call_operand.vmem [shape: f32[1,64], index: 6, kind: input, shape index: {}]
  %s7 = inlined_call_operand.vmem [shape: f32[9,64,128], index: 7, kind: input, shape index: {}]
  %s8 = inlined_call_operand.vmem [shape: f32[1,128], index: 8, kind: input, shape index: {}]
  %s9 = inlined_call_operand.vmem [shape: f32[1,128], index: 9, kind: input, shape index: {}]
  %s10 = inlined_call_operand.vmem [shape: f32[9,128,128], index: 10, kind: input, shape index: {}]
  %s11 = inlined_call_operand.vmem [shape: f32[1,128], index: 11, kind: input, shape index: {}]
  %s12 = inlined_call_operand.vmem [shape: f32[2,288,128], index: 12, kind: output, shape index: {}]
  %s13 = sld [smem:[#allocation0]]
  $region81: #{pw_fcos_head_forward.1} parent=0
    _
  %s15 = ssub.s32 1, %s13
  %s16 = scalar_select 0, %s15, %s13
  loop: start=0, step=1, limit=4
  $region2: #{pw_fcos_head_forward.1} parent=0 // loop_pre_header
    _
  $region3: #{pw_fcos_head_forward.1} parent=0 // loop_header
    %s18 = sphi 0, %s22
    %p19 = scmp.ge.s32.totalorder %s18, 4
    %s28 = sphi 0, %s30
    %s31 = sphi 0, %s28
    %s32 = sphi 0, %s31
    %s48 = sphi 0, %s32
    %s54 = sphi 0, %s56
    %s57 = sphi 0, %s54
    %s58 = sphi 0, %s57
    %s74 = sphi 0, %s58
    %s78 = sphi 0, %s78
    %s80 = sphi 0, %s78
    %s81 = sphi 0, %s80
    %s95 = sphi 0, %s81
    %s99 = sphi 0, %s99
    %s101 = sphi 0, %s99
    %s102 = sphi 0, %s101
    %s116 = sphi 0, %s102
    %s120 = sphi 0, %s120
    %s122 = sphi 0, %s120
    %s123 = sphi 0, %s122
    %s137 = sphi 0, %s123
    %s141 = sphi 0, %s141
    %s143 = sphi 0, %s141
    %s144 = sphi 0, %s143
    %s158 = sphi 0, %s144
    %s162 = sphi 0, %s162
    %s164 = sphi 0, %s162
    %s165 = sphi 0, %s164
    %s179 = sphi 0, %s165
    %s183 = sphi 0, %s183
    %s185 = sphi 0, %s183
    %s186 = sphi 0, %s185
    %s200 = sphi 0, %s186
    %s204 = sphi 0, %s204
    %s206 = sphi 0, %s204
    %s207 = sphi 0, %s206
    %s221 = sphi 0, %s207
    %s225 = sphi 0, %s225
    %s227 = sphi 0, %s225
    %s228 = sphi 0, %s227
    %s242 = sphi 0, %s228
    %s246 = sphi 0, %s246
    %s248 = sphi 0, %s246
    %s249 = sphi 0, %s248
    %s263 = sphi 0, %s249
    %s267 = sphi 0, %s267
    %s269 = sphi 0, %s267
    %s270 = sphi 0, %s269
    %s284 = sphi 0, %s270
    %s290 = sphi 0, %s292
    %s293 = sphi 0, %s290
    %s294 = sphi 0, %s293
    %s310 = sphi 0, %s294
  $region4: #{pw_fcos_head_forward.1} parent=0 // loop_header_branch
    %21 = sbr.rel (%p19) target = $region8
  $region5: #{pw_fcos_head_forward.1} parent=0 // loop_body
    %s23 = ssub.s32 %s18, 1
    %s24 = ssub.s32 %s18, 2
    %s25 = sadd.s32 %s18, 1
    %s26 = ssub.s32 %s18, %s25
    %p27 = scmp.eq.s32.totalorder %s26, 0
    %s29 = sadd.s32 %s28, 1
    %s30 = scalar_select %p27, %s28, %s29
    %p33 = pneg %p27
    %p34 = scmp.eq.s32.totalorder %s18, 1
    %p35 = por %p33, %p34
    %p36 = scmp.ne.s32.totalorder %s28, %s31
    %p37 = scmp.eq.s32.totalorder %s18, 0
    %p38 = por %p36, %p37
    %p39 = scmp.ne.s32.totalorder %s28, %s31
    %p40 = scmp.eq.s32.totalorder %s23, 1
    %p41 = por %p39, %p40
    %p42 = scmp.ne.s32.totalorder %s31, %s32
    %p43 = scmp.eq.s32.totalorder %s23, 0
    %p44 = por %p42, %p43
    %p45 = scmp.ne.s32.totalorder %s31, %s32
    %p46 = scmp.eq.s32.totalorder %s24, 1
    %p47 = por %p45, %p46
    %p49 = scmp.ne.s32.totalorder %s32, %s48
    %p50 = scmp.eq.s32.totalorder %s24, 0
    %p51 = por %p49, %p50
    %s52 = ssub.s32 %s18, %s25
    %p53 = scmp.eq.s32.totalorder %s52, 0
    %s55 = sadd.s32 %s54, 1
    %s56 = scalar_select %p53, %s54, %s55
    %p59 = pneg %p53
    %p60 = scmp.eq.s32.totalorder %s18, 1
    %p61 = por %p59, %p60
    %p62 = scmp.ne.s32.totalorder %s54, %s57
    %p63 = scmp.eq.s32.totalorder %s18, 0
    %p64 = por %p62, %p63
    %p65 = scmp.ne.s32.totalorder %s54, %s57
    %p66 = scmp.eq.s32.totalorder %s23, 1
    %p67 = por %p65, %p66
    %p68 = scmp.ne.s32.totalorder %s57, %s58
    %p69 = scmp.eq.s32.totalorder %s23, 0
    %p70 = por %p68, %p69
    %p71 = scmp.ne.s32.totalorder %s57, %s58
    %p72 = scmp.eq.s32.totalorder %s24, 1
    %p73 = por %p71, %p72
    %p75 = scmp.ne.s32.totalorder %s58, %s74
    %p76 = scmp.eq.s32.totalorder %s24, 0
    %p77 = por %p75, %p76
    %s79 = sadd.s32 %s78, 1
    %p82 = scmp.eq.s32.totalorder %s18, 1
    %p83 = scmp.ne.s32.totalorder %s78, %s80
    %p84 = scmp.eq.s32.totalorder %s18, 0
    %p85 = por %p83, %p84
    %p86 = scmp.ne.s32.totalorder %s78, %s80
    %p87 = scmp.eq.s32.totalorder %s23, 1
    %p88 = por %p86, %p87
    %p89 = scmp.ne.s32.totalorder %s80, %s81
    %p90 = scmp.eq.s32.totalorder %s23, 0
    %p91 = por %p89, %p90
    %p92 = scmp.ne.s32.totalorder %s80, %s81
    %p93 = scmp.eq.s32.totalorder %s24, 1
    %p94 = por %p92, %p93
    %p96 = scmp.ne.s32.totalorder %s81, %s95
    %p97 = scmp.eq.s32.totalorder %s24, 0
    %p98 = por %p96, %p97
    %s100 = sadd.s32 %s99, 1
    %p103 = scmp.eq.s32.totalorder %s18, 1
    %p104 = scmp.ne.s32.totalorder %s99, %s101
    %p105 = scmp.eq.s32.totalorder %s18, 0
    %p106 = por %p104, %p105
    %p107 = scmp.ne.s32.totalorder %s99, %s101
    %p108 = scmp.eq.s32.totalorder %s23, 1
    %p109 = por %p107, %p108
    %p110 = scmp.ne.s32.totalorder %s101, %s102
    %p111 = scmp.eq.s32.totalorder %s23, 0
    %p112 = por %p110, %p111
    %p113 = scmp.ne.s32.totalorder %s101, %s102
    %p114 = scmp.eq.s32.totalorder %s24, 1
    %p115 = por %p113, %p114
    %p117 = scmp.ne.s32.totalorder %s102, %s116
    %p118 = scmp.eq.s32.totalorder %s24, 0
    %p119 = por %p117, %p118
    %s121 = sadd.s32 %s120, 1
    %p124 = scmp.eq.s32.totalorder %s18, 1
    %p125 = scmp.ne.s32.totalorder %s120, %s122
    %p126 = scmp.eq.s32.totalorder %s18, 0
    %p127 = por %p125, %p126
    %p128 = scmp.ne.s32.totalorder %s120, %s122
    %p129 = scmp.eq.s32.totalorder %s23, 1
    %p130 = por %p128, %p129
    %p131 = scmp.ne.s32.totalorder %s122, %s123
    %p132 = scmp.eq.s32.totalorder %s23, 0
    %p133 = por %p131, %p132
    %p134 = scmp.ne.s32.totalorder %s122, %s123
    %p135 = scmp.eq.s32.totalorder %s24, 1
    %p136 = por %p134, %p135
    %p138 = scmp.ne.s32.totalorder %s123, %s137
    %p139 = scmp.eq.s32.totalorder %s24, 0
    %p140 = por %p138, %p139
    %s142 = sadd.s32 %s141, 1
    %p145 = scmp.eq.s32.totalorder %s18, 1
    %p146 = scmp.ne.s32.totalorder %s141, %s143
    %p147 = scmp.eq.s32.totalorder %s18, 0
    %p148 = por %p146, %p147
    %p149 = scmp.ne.s32.totalorder %s141, %s143
    %p150 = scmp.eq.s32.totalorder %s23, 1
    %p151 = por %p149, %p150
    %p152 = scmp.ne.s32.totalorder %s143, %s144
    %p153 = scmp.eq.s32.totalorder %s23, 0
    %p154 = por %p152, %p153
    %p155 = scmp.ne.s32.totalorder %s143, %s144
    %p156 = scmp.eq.s32.totalorder %s24, 1
    %p157 = por %p155, %p156
    %p159 = scmp.ne.s32.totalorder %s144, %s158
    %p160 = scmp.eq.s32.totalorder %s24, 0
    %p161 = por %p159, %p160
    %s163 = sadd.s32 %s162, 1
    %p166 = scmp.eq.s32.totalorder %s18, 1
    %p167 = scmp.ne.s32.totalorder %s162, %s164
    %p168 = scmp.eq.s32.totalorder %s18, 0
    %p169 = por %p167, %p168
    %p170 = scmp.ne.s32.totalorder %s162, %s164
    %p171 = scmp.eq.s32.totalorder %s23, 1
    %p172 = por %p170, %p171
    %p173 = scmp.ne.s32.totalorder %s164, %s165
    %p174 = scmp.eq.s32.totalorder %s23, 0
    %p175 = por %p173, %p174
    %p176 = scmp.ne.s32.totalorder %s164, %s165
    %p177 = scmp.eq.s32.totalorder %s24, 1
    %p178 = por %p176, %p177
    %p180 = scmp.ne.s32.totalorder %s165, %s179
    %p181 = scmp.eq.s32.totalorder %s24, 0
    %p182 = por %p180, %p181
    %s184 = sadd.s32 %s183, 1
    %p187 = scmp.eq.s32.totalorder %s18, 1
    %p188 = scmp.ne.s32.totalorder %s183, %s185
    %p189 = scmp.eq.s32.totalorder %s18, 0
    %p190 = por %p188, %p189
    %p191 = scmp.ne.s32.totalorder %s183, %s185
    %p192 = scmp.eq.s32.totalorder %s23, 1
    %p193 = por %p191, %p192
    %p194 = scmp.ne.s32.totalorder %s185, %s186
    %p195 = scmp.eq.s32.totalorder %s23, 0
    %p196 = por %p194, %p195
    %p197 = scmp.ne.s32.totalorder %s185, %s186
    %p198 = scmp.eq.s32.totalorder %s24, 1
    %p199 = por %p197, %p198
    %p201 = scmp.ne.s32.totalorder %s186, %s200
    %p202 = scmp.eq.s32.totalorder %s24, 0
    %p203 = por %p201, %p202
    %s205 = sadd.s32 %s204, 1
    %p208 = scmp.eq.s32.totalorder %s18, 1
    %p209 = scmp.ne.s32.totalorder %s204, %s206
    %p210 = scmp.eq.s32.totalorder %s18, 0
    %p211 = por %p209, %p210
    %p212 = scmp.ne.s32.totalorder %s204, %s206
    %p213 = scmp.eq.s32.totalorder %s23, 1
    %p214 = por %p212, %p213
    %p215 = scmp.ne.s32.totalorder %s206, %s207
    %p216 = scmp.eq.s32.totalorder %s23, 0
    %p217 = por %p215, %p216
    %p218 = scmp.ne.s32.totalorder %s206, %s207
    %p219 = scmp.eq.s32.totalorder %s24, 1
    %p220 = por %p218, %p219
    %p222 = scmp.ne.s32.totalorder %s207, %s221
    %p223 = scmp.eq.s32.totalorder %s24, 0
    %p224 = por %p222, %p223
    %s226 = sadd.s32 %s225, 1
    %p229 = scmp.eq.s32.totalorder %s18, 1
    %p230 = scmp.ne.s32.totalorder %s225, %s227
    %p231 = scmp.eq.s32.totalorder %s18, 0
    %p232 = por %p230, %p231
    %p233 = scmp.ne.s32.totalorder %s225, %s227
    %p234 = scmp.eq.s32.totalorder %s23, 1
    %p235 = por %p233, %p234
    %p236 = scmp.ne.s32.totalorder %s227, %s228
    %p237 = scmp.eq.s32.totalorder %s23, 0
    %p238 = por %p236, %p237
    %p239 = scmp.ne.s32.totalorder %s227, %s228
    %p240 = scmp.eq.s32.totalorder %s24, 1
    %p241 = por %p239, %p240
    %p243 = scmp.ne.s32.totalorder %s228, %s242
    %p244 = scmp.eq.s32.totalorder %s24, 0
    %p245 = por %p243, %p244
    %s247 = sadd.s32 %s246, 1
    %p250 = scmp.eq.s32.totalorder %s18, 1
    %p251 = scmp.ne.s32.totalorder %s246, %s248
    %p252 = scmp.eq.s32.totalorder %s18, 0
    %p253 = por %p251, %p252
    %p254 = scmp.ne.s32.totalorder %s246, %s248
    %p255 = scmp.eq.s32.totalorder %s23, 1
    %p256 = por %p254, %p255
    %p257 = scmp.ne.s32.totalorder %s248, %s249
    %p258 = scmp.eq.s32.totalorder %s23, 0
    %p259 = por %p257, %p258
    %p260 = scmp.ne.s32.totalorder %s248, %s249
    %p261 = scmp.eq.s32.totalorder %s24, 1
    %p262 = por %p260, %p261
    %p264 = scmp.ne.s32.totalorder %s249, %s263
    %p265 = scmp.eq.s32.totalorder %s24, 0
    %p266 = por %p264, %p265
    %s268 = sadd.s32 %s267, 1
    %p271 = scmp.eq.s32.totalorder %s18, 1
    %p272 = scmp.ne.s32.totalorder %s267, %s269
    %p273 = scmp.eq.s32.totalorder %s18, 0
    %p274 = por %p272, %p273
    %p275 = scmp.ne.s32.totalorder %s267, %s269
    %p276 = scmp.eq.s32.totalorder %s23, 1
    %p277 = por %p275, %p276
    %p278 = scmp.ne.s32.totalorder %s269, %s270
    %p279 = scmp.eq.s32.totalorder %s23, 0
    %p280 = por %p278, %p279
    %p281 = scmp.ne.s32.totalorder %s269, %s270
    %p282 = scmp.eq.s32.totalorder %s24, 1
    %p283 = por %p281, %p282
    %p285 = scmp.ne.s32.totalorder %s270, %s284
    %p286 = scmp.eq.s32.totalorder %s24, 0
    %p287 = por %p285, %p286
    %s288 = ssub.s32 %s18, %s25
    %p289 = scmp.eq.s32.totalorder %s288, 0
    %s291 = sadd.s32 %s290, 1
    %s292 = scalar_select %p289, %s290, %s291
    %p295 = pneg %p289
    %p296 = scmp.eq.s32.totalorder %s18, 1
    %p297 = por %p295, %p296
    %p298 = scmp.ne.s32.totalorder %s290, %s293
    %p299 = scmp.eq.s32.totalorder %s18, 0
    %p300 = por %p298, %p299
    %p301 = scmp.ne.s32.totalorder %s290, %s293
    %p302 = scmp.eq.s32.totalorder %s23, 1
    %p303 = por %p301, %p302
    %p304 = scmp.ne.s32.totalorder %s293, %s294
    %p305 = scmp.eq.s32.totalorder %s23, 0
    %p306 = por %p304, %p305
    %p307 = scmp.ne.s32.totalorder %s293, %s294
    %p308 = scmp.eq.s32.totalorder %s24, 1
    %p309 = por %p307, %p308
    %p311 = scmp.ne.s32.totalorder %s294, %s310
    %p312 = scmp.eq.s32.totalorder %s24, 0
    %p313 = por %p311, %p312
    %p314 = scmp.le.s32.totalorder 1, %s18
    %p315 = scmp.lt.s32.totalorder %s18, 3
    %p316 = pnand %p314, %p315
    %p317 = pneg %p316
    // Predicated region
    $region9: #{pw_fcos_head_forward.1} parent=5 // pred_check
      _
    $region10: #{pw_fcos_head_forward.1} parent=5 // pred_check_branch
      %319 = sbr.rel (%p316) target = $region12
    $region11: #{pw_fcos_head_forward.1} parent=5 // pred_region
      %s320 = ssub.s32 %s18, 1
      // Predicated region
      $region13: #{pw_fcos_head_forward.1} parent=11 // pred_check
        %p321 = pneg %p91
      $region14: #{pw_fcos_head_forward.1} parent=11 // pred_check_branch
        %323 = sbr.rel (%p321) target = $region16
      $region15: #{pw_fcos_head_forward.1} parent=11 // pred_region
        _
      $region16: #{pw_fcos_head_forward.1} parent=11 // pred_fallthru
        _
      // Predicated region
      $region17: #{pw_fcos_head_forward.1} parent=11 // pred_check
        %p324 = pneg %p112
      $region18: #{pw_fcos_head_forward.1} parent=11 // pred_check_branch
        %326 = sbr.rel (%p324) target = $region20
      $region19: #{pw_fcos_head_forward.1} parent=11 // pred_region
        _
      $region20: #{pw_fcos_head_forward.1} parent=11 // pred_fallthru
        _
      // Predicated region
      $region21: #{pw_fcos_head_forward.1} parent=11 // pred_check
        %p327 = pneg %p133
      $region22: #{pw_fcos_head_forward.1} parent=11 // pred_check_branch
        %329 = sbr.rel (%p327) target = $region24
      $region23: #{pw_fcos_head_forward.1} parent=11 // pred_region
        _
      $region24: #{pw_fcos_head_forward.1} parent=11 // pred_fallthru
        _
      // Predicated region
      $region25: #{pw_fcos_head_forward.1} parent=11 // pred_check
        %p330 = pneg %p154
      $region26: #{pw_fcos_head_forward.1} parent=11 // pred_check_branch
        %332 = sbr.rel (%p330) target = $region28
      $region27: #{pw_fcos_head_forward.1} parent=11 // pred_region
        _
      $region28: #{pw_fcos_head_forward.1} parent=11 // pred_fallthru
        _
      // Predicated region
      $region29: #{pw_fcos_head_forward.1} parent=11 // pred_check
        %p333 = pneg %p175
      $region30: #{pw_fcos_head_forward.1} parent=11 // pred_check_branch
        %335 = sbr.rel (%p333) target = $region32
      $region31: #{pw_fcos_head_forward.1} parent=11 // pred_region
        _
      $region32: #{pw_fcos_head_forward.1} parent=11 // pred_fallthru
        _
      // Predicated region
      $region33: #{pw_fcos_head_forward.1} parent=11 // pred_check
        %p336 = pneg %p196
      $region34: #{pw_fcos_head_forward.1} parent=11 // pred_check_branch
        %338 = sbr.rel (%p336) target = $region36
      $region35: #{pw_fcos_head_forward.1} parent=11 // pred_region
        _
      $region36: #{pw_fcos_head_forward.1} parent=11 // pred_fallthru
        _
      // Predicated region
      $region37: #{pw_fcos_head_forward.1} parent=11 // pred_check
        %p339 = pneg %p217
      $region38: #{pw_fcos_head_forward.1} parent=11 // pred_check_branch
        %341 = sbr.rel (%p339) target = $region40
      $region39: #{pw_fcos_head_forward.1} parent=11 // pred_region
        _
      $region40: #{pw_fcos_head_forward.1} parent=11 // pred_fallthru
        _
      // Predicated region
      $region41: #{pw_fcos_head_forward.1} parent=11 // pred_check
        %p342 = pneg %p238
      $region42: #{pw_fcos_head_forward.1} parent=11 // pred_check_branch
        %344 = sbr.rel (%p342) target = $region44
      $region43: #{pw_fcos_head_forward.1} parent=11 // pred_region
        _
      $region44: #{pw_fcos_head_forward.1} parent=11 // pred_fallthru
        _
      // Predicated region
      $region45: #{pw_fcos_head_forward.1} parent=11 // pred_check
        %p345 = pneg %p259
      $region46: #{pw_fcos_head_forward.1} parent=11 // pred_check_branch
        %347 = sbr.rel (%p345) target = $region48
      $region47: #{pw_fcos_head_forward.1} parent=11 // pred_region
        _
      $region48: #{pw_fcos_head_forward.1} parent=11 // pred_fallthru
        _
      // Predicated region
      $region49: #{pw_fcos_head_forward.1} parent=11 // pred_check
        %p348 = pneg %p280
      $region50: #{pw_fcos_head_forward.1} parent=11 // pred_check_branch
        %350 = sbr.rel (%p348) target = $region52
      $region51: #{pw_fcos_head_forward.1} parent=11 // pred_region
        _
      $region52: #{pw_fcos_head_forward.1} parent=11 // pred_fallthru
        _
    $region12: #{pw_fcos_head_forward.1} parent=5 // pred_fallthru
      _
    %p351 = scmp.lt.s32.totalorder %s18, 2
    // Predicated region
    $region53: #{pw_fcos_head_forward.1} parent=5 // pred_check
      %p352 = pneg %p351
    $region54: #{pw_fcos_head_forward.1} parent=5 // pred_check_branch
      %354 = sbr.rel (%p352) target = $region56
    $region55: #{pw_fcos_head_forward.1} parent=5 // pred_region
      // Predicated region
      $region57: #{pw_fcos_head_forward.1} parent=55 // pred_check
        %p355 = pneg %p38
      $region58: #{pw_fcos_head_forward.1} parent=55 // pred_check_branch
        %357 = sbr.rel (%p355) target = $region60
      $region59: #{pw_fcos_head_forward.1} parent=55 // pred_region
        %p358 = scmp.lt.s32.totalorder %s18, 1
        %s359 = scalar_select %p358, %s18, 1
        %s360 = smul.addr %s359, 43
        %s361 = smul.addr %s360, 8
        %s362 = scalar_lea.vmem %s0, %s361
      $region60: #{pw_fcos_head_forward.1} parent=55 // pred_fallthru
        _
      // Predicated region
      $region61: #{pw_fcos_head_forward.1} parent=55 // pred_check
        %p363 = pneg %p64
      $region62: #{pw_fcos_head_forward.1} parent=55 // pred_check_branch
        %365 = sbr.rel (%p363) target = $region64
      $region63: #{pw_fcos_head_forward.1} parent=55 // pred_region
        %p366 = scmp.lt.s32.totalorder %s18, 1
        %s367 = scalar_select %p366, %s18, 1
        %s368 = smul.addr %s367, 5
        %s369 = smul.addr %s368, 8
        %s370 = scalar_lea.vmem %s1, %s369
      $region64: #{pw_fcos_head_forward.1} parent=55 // pred_fallthru
        _
    $region56: #{pw_fcos_head_forward.1} parent=5 // pred_fallthru
      _
    %p371 = scmp.le.s32.totalorder 1, %s18
    %p372 = scmp.lt.s32.totalorder %s18, 3
    %p373 = pnand %p371, %p372
    %p374 = pneg %p373
    // Predicated region
    $region65: #{pw_fcos_head_forward.1} parent=5 // pred_check
      _
    $region66: #{pw_fcos_head_forward.1} parent=5 // pred_check_branch
      %376 = sbr.rel (%p373) target = $region68
    $region67: #{pw_fcos_head_forward.1} parent=5 // pred_region
      %s377 = ssub.s32 %s18, 1
      %p378 = scmp.lt.s32.totalorder %s23, 1
      %s379 = scalar_select %p378, %s23, 1
      %s380 = smul.addr %s379, 43
      %s381 = smul.addr %s380, 8
      %s382 = scalar_lea.vmem %s0, %s381
      %p383 = pneg %p44
      %p384 = pneg %p41
      %p385 = scmp.lt.s32.totalorder %s23, 1
      %s386 = scalar_select %p385, %s23, 1
      %s387 = smul.addr %s386, 5
      %s388 = smul.addr %s387, 8
      %s389 = scalar_lea.vmem %s1, %s388
      %p390 = pneg %p70
      %p391 = pneg %p67
      %p392 = pneg %p91
      %p393 = pneg %p88
      %p394 = pneg %p112
      %p395 = pneg %p109
      %p396 = pneg %p133
      %p397 = pneg %p130
      %p398 = pneg %p154
      %p399 = pneg %p151
      %p400 = pneg %p175
      %p401 = pneg %p172
      %p402 = pneg %p196
      %p403 = pneg %p193
      %p404 = pneg %p217
      %p405 = pneg %p214
      %p406 = pneg %p238
      %p407 = pneg %p235
      %p408 = pneg %p259
      %p409 = pneg %p256
      %p410 = pneg %p280
      %p411 = pneg %p277
      %p412 = pneg %p306
      %p413 = pneg %p303
      %p414 = scmp.lt.s32.totalorder %s23, 1
      %s415 = scalar_select %p414, %s23, 1
      %s416 = smul.addr %s415, 36
      %s417 = smul.addr %s416, 8
      %s418 = scalar_lea.vmem %s12, %s417
      %p419 = scmp.lt.s32.totalorder %s23, 1
      %s420 = scalar_select %p419, %s23, 1
      %s421 = smul.addr %s420, 43
      %s422 = smul.addr %s421, 8
      %s423 = scalar_lea.vmem %s0, %s422
      %p424 = scmp.lt.s32.totalorder %s23, 1
      %s425 = scalar_select %p424, %s23, 1
      %s426 = smul.addr %s425, 5
      %s427 = smul.addr %s426, 8
      %s428 = scalar_lea.vmem %s1, %s427
      %p429 = scmp.lt.s32.totalorder %s23, 1
      %s430 = scalar_select %p429, %s23, 1
      %s431 = smul.addr %s430, 36
      %s432 = smul.addr %s431, 8
      %s433 = scalar_lea.vmem %s12, %s432
      %v434 = vld [vmem:[%s423] sm:$0xff]
      %v435 = vld [vmem:[%s423 + $0x8] sm:$0xff]
      %v436 = vld [vmem:[%s423 + $0x10] sm:$0xff]
      %v437 = vld [vmem:[%s423 + $0x18] sm:$0xff]
      %v438 = vld [vmem:[%s423 + $0x20] sm:$0xff]
      %v439 = vld [vmem:[%s423 + $0x28] sm:$0xff]
      %v440 = vld [vmem:[%s423 + $0x30] sm:$0xff]
      %v441 = vld [vmem:[%s423 + $0x38] sm:$0xff]
      %v442 = vld [vmem:[%s423 + $0x40] sm:$0xff]
      %v443 = vld [vmem:[%s423 + $0x48] sm:$0xff]
      %v444 = vld [vmem:[%s423 + $0x50] sm:$0xff]
      %v445 = vld [vmem:[%s423 + $0x58] sm:$0xff]
      %v446 = vld [vmem:[%s423 + $0x60] sm:$0xff]
      %v447 = vld [vmem:[%s423 + $0x68] sm:$0xff]
      %v448 = vld [vmem:[%s423 + $0x70] sm:$0xff]
      %v449 = vld [vmem:[%s423 + $0x78] sm:$0xff]
      %v450 = vld [vmem:[%s423 + $0x80] sm:$0xff]
      %v451 = vld [vmem:[%s423 + $0x88] sm:$0xff]
      %v452 = vld [vmem:[%s423 + $0x90] sm:$0xff]
      %v453 = vld [vmem:[%s423 + $0x98] sm:$0xff]
      %v454 = vld [vmem:[%s423 + $0xa0] sm:$0xff]
      %v455 = vld [vmem:[%s423 + $0xa8] sm:$0xff]
      %v456 = vld [vmem:[%s423 + $0xb0] sm:$0xff]
      %v457 = vld [vmem:[%s423 + $0xb8] sm:$0xff]
      %v458 = vld [vmem:[%s423 + $0xc0] sm:$0xff]
      %v459 = vld [vmem:[%s423 + $0xc8] sm:$0xff]
      %v460 = vld [vmem:[%s423 + $0xd0] sm:$0xff]
      %v461 = vld [vmem:[%s423 + $0xd8] sm:$0xff]
      %v462 = vld [vmem:[%s423 + $0xe0] sm:$0xff]
      %v463 = vld [vmem:[%s423 + $0xe8] sm:$0xff]
      %v464 = vld [vmem:[%s423 + $0xf0] sm:$0xff]
      %v465 = vld [vmem:[%s423 + $0xf8] sm:$0xff]
      %v466 = vld [vmem:[%s423 + $0x100] sm:$0xff]
      %v467 = vld [vmem:[%s423 + $0x108] sm:$0xff]
      %v468 = vld [vmem:[%s423 + $0x110] sm:$0xff]
      %v469 = vld [vmem:[%s423 + $0x118] sm:$0xff]
      %v470 = vld [vmem:[%s423 + $0x120] sm:$0xff]
      %v471 = vld [vmem:[%s423 + $0x128] sm:$0xff]
      %v472 = vld [vmem:[%s423 + $0x130] sm:$0xff]
      %v473 = vld [vmem:[%s423 + $0x138] sm:$0xff]
      %v474 = vld [vmem:[%s423 + $0x140] sm:$0xff]
      %v475 = vld [vmem:[%s423 + $0x148] sm:$0xff]
      %v476 = vld [vmem:[%s423 + $0x150] sm:$0x3f]
      %v477 = vld [vmem:[%s428] sm:$0xff]
      %v478 = vld [vmem:[%s428 + $0x8] sm:$0xff]
      %v479 = vld [vmem:[%s428 + $0x10] sm:$0xff]
      %v480 = vld [vmem:[%s428 + $0x18] sm:$0xff]
      %v481 = vld [vmem:[%s428 + $0x20] sm:$0x1]
      %vm482 = vcmask 269312
      %v484 = vsel %vm482, %v434, 0
      %v487 = vsel %vm482, %v435, 0
      %v490 = vsel %vm482, %v436, 0
      %v493 = vsel %vm482, %v437, 0
      %v496 = vsel %vm482, %v438, 0
      %v499 = vsel %vm482, %v439, 0
      %v502 = vsel %vm482, %v440, 0
      %v505 = vsel %vm482, %v441, 0
      %v508 = vsel %vm482, %v442, 0
      %v511 = vsel %vm482, %v443, 0
      %v514 = vsel %vm482, %v444, 0
      %v517 = vsel %vm482, %v445, 0
      %v520 = vsel %vm482, %v446, 0
      %v523 = vsel %vm482, %v447, 0
      %v526 = vsel %vm482, %v448, 0
      %v529 = vsel %vm482, %v449, 0
      %v532 = vsel %vm482, %v450, 0
      %v535 = vsel %vm482, %v451, 0
      %v538 = vsel %vm482, %v452, 0
      %v541 = vsel %vm482, %v453, 0
      %v544 = vsel %vm482, %v454, 0
      %v547 = vsel %vm482, %v455, 0
      %v550 = vsel %vm482, %v456, 0
      %v553 = vsel %vm482, %v457, 0
      %v556 = vsel %vm482, %v458, 0
      %v559 = vsel %vm482, %v459, 0
      %v562 = vsel %vm482, %v460, 0
      %v565 = vsel %vm482, %v461, 0
      %v568 = vsel %vm482, %v462, 0
      %v571 = vsel %vm482, %v463, 0
      %v574 = vsel %vm482, %v464, 0
      %v577 = vsel %vm482, %v465, 0
      %v580 = vsel %vm482, %v466, 0
      %v583 = vsel %vm482, %v467, 0
      %v586 = vsel %vm482, %v468, 0
      %v589 = vsel %vm482, %v469, 0
      %v592 = vsel %vm482, %v470, 0
      %v595 = vsel %vm482, %v471, 0
      %v598 = vsel %vm482, %v472, 0
      %v601 = vsel %vm482, %v473, 0
      %v604 = vsel %vm482, %v474, 0
      %v607 = vsel %vm482, %v475, 0
      %v610 = vsel %vm482, %v476, 0
      %vm612 = vcmask 1040384
      %v614 = vsel %vm612, %v481, 0
      %616 = vmatprep.subr.mxu0 0.0
      %617 = vmatpush1.msra.mxu0 0.0
      %618 = vmatprep.subr.mxu0 0.0
      %619 = vmatpush1.msra.mxu0 0.0
      %620 = vmatprep.subr.mxu0 0.0
      %621 = vmatpush1.msra.mxu0 0.0
      %622 = vmatprep.subr.mxu0 0.0
      %623 = vmatpush1.msra.mxu0 0.0
      %624 = vmatprep.subr.mxu0 0.0
      %625 = vmatpush1.msra.mxu0 0.0
      %626 = vmatprep.subr.mxu0 0.0
      %627 = vmatpush1.msra.mxu0 0.0
      %628 = vmatprep.subr.mxu0 0.0
      %629 = vmatpush1.msra.mxu0 0.0
      %630 = vmatprep.subr.mxu0 0.0
      %631 = vmatpush1.msra.mxu0 0.0
      %632 = vmatprep.subr.mxu0 0.0
      %633 = vmatpush1.msra.mxu0 0.0
      %634 = vmatprep.subr.mxu0 0.0
      %635 = vmatpush1.msra.mxu0 0.0
      %636 = vmatprep.subr.mxu0 0.0
      %637 = vmatpush1.msra.mxu0 0.0
      %638 = vmatprep.subr.mxu0 0.0
      %639 = vmatpush1.msra.mxu0 %v614
      %640 = vmatprep.subr.mxu0 0.0
      %641 = vmatpush1.msra.mxu0 %v480
      %642 = vmatprep.subr.mxu0 0.0
      %643 = vmatpush1.msra.mxu0 %v479
      %644 = vmatprep.subr.mxu0 0.0
      %645 = vmatpush1.msra.mxu0 %v478
      %646 = vmatprep.subr.mxu0 0.0
      %647 = vmatpush1.msra.mxu0 %v477
      %648 = vmatprep.subr.mxu0 0.0
      %649 = vmatpush2.msra.mxu0 0.0
      %650 = vmatprep.subr.mxu0 0.0
      %651 = vmatpush2.msra.mxu0 0.0
      %652 = vmatprep.subr.mxu0 0.0
      %653 = vmatpush2.msra.mxu0 0.0
      %654 = vmatprep.subr.mxu0 0.0
      %655 = vmatpush2.msra.mxu0 0.0
      %656 = vmatprep.subr.mxu0 0.0
      %657 = vmatpush2.msra.mxu0 0.0
      %658 = vmatprep.subr.mxu0 0.0
      %659 = vmatpush2.msra.mxu0 0.0
      %660 = vmatprep.subr.mxu0 0.0
      %661 = vmatpush2.msra.mxu0 0.0
      %662 = vmatprep.subr.mxu0 0.0
      %663 = vmatpush2.msra.mxu0 0.0
      %664 = vmatprep.subr.mxu0 0.0
      %665 = vmatpush2.msra.mxu0 0.0
      %666 = vmatprep.subr.mxu0 0.0
      %667 = vmatpush2.msra.mxu0 0.0
      %668 = vmatprep.subr.mxu0 0.0
      %669 = vmatpush2.msra.mxu0 0.0
      %670 = vmatprep.subr.mxu0 0.0
      %671 = vmatpush2.msra.mxu0 0.0
      %672 = vmatprep.subr.mxu0 0.0
      %673 = vmatpush2.msra.mxu0 0.0
      %674 = vmatprep.subr.mxu0 0.0
      %675 = vmatpush2.msra.mxu0 0.0
      %676 = vmatprep.subr.mxu0 0.0
      %677 = vmatpush2.msra.mxu0 0.0
      %678 = vmatprep.subr.mxu0 0.0
      %679 = vmatpush2.msra.mxu0 0.0
      %680 = vmatprep.mubr.f32.mxu0 0.0
      %681 = vmatmul.mubr.f32.gmra.mxu0 %v484
      %v682 = vpop.f32.mrf.mxu0
      %v683 = vadd.f32 0.0, %v682
      %v684 = vpop.f32.mrf.mxu0
      %685 = vmatprep.mubr.f32.mxu0 0.0
      %686 = vmatmul.mubr.f32.gmra.mxu0 %v487
      %v687 = vpop.f32.mrf.mxu0
      %v688 = vadd.f32 0.0, %v687
      %v689 = vpop.f32.mrf.mxu0
      %690 = vmatprep.mubr.f32.mxu0 0.0
      %691 = vmatmul.mubr.f32.gmra.mxu0 %v490
      %v692 = vpop.f32.mrf.mxu0
      %v693 = vadd.f32 0.0, %v692
      %v694 = vpop.f32.mrf.mxu0
      %695 = vmatprep.mubr.f32.mxu0 0.0
      %696 = vmatmul.mubr.f32.gmra.mxu0 %v493
      %v697 = vpop.f32.mrf.mxu0
      %v698 = vadd.f32 0.0, %v697
      %v699 = vpop.f32.mrf.mxu0
      %700 = vmatprep.mubr.f32.mxu0 0.0
      %701 = vmatmul.mubr.f32.gmra.mxu0 %v496
      %v702 = vpop.f32.mrf.mxu0
      %v703 = vadd.f32 0.0, %v702
      %v704 = vpop.f32.mrf.mxu0
      %705 = vmatprep.mubr.f32.mxu0 0.0
      %706 = vmatmul.mubr.f32.gmra.mxu0 %v499
      %v707 = vpop.f32.mrf.mxu0
      %v708 = vadd.f32 0.0, %v707
      %v709 = vpop.f32.mrf.mxu0
      %710 = vmatprep.mubr.f32.mxu0 0.0
      %711 = vmatmul.mubr.f32.gmra.mxu0 %v502
      %v712 = vpop.f32.mrf.mxu0
      %v713 = vadd.f32 0.0, %v712
      %v714 = vpop.f32.mrf.mxu0
      %715 = vmatprep.mubr.f32.mxu0 0.0
      %716 = vmatmul.mubr.f32.gmra.mxu0 %v505
      %v717 = vpop.f32.mrf.mxu0
      %v718 = vadd.f32 0.0, %v717
      %v719 = vpop.f32.mrf.mxu0
      %720 = vmatprep.mubr.f32.mxu0 0.0
      %721 = vmatmul.mubr.f32.gmra.mxu0 %v508
      %v722 = vpop.f32.mrf.mxu0
      %v723 = vadd.f32 0.0, %v722
      %v724 = vpop.f32.mrf.mxu0
      %725 = vmatprep.mubr.f32.mxu0 0.0
      %726 = vmatmul.mubr.f32.gmra.mxu0 %v511
      %v727 = vpop.f32.mrf.mxu0
      %v728 = vadd.f32 0.0, %v727
      %v729 = vpop.f32.mrf.mxu0
      %730 = vmatprep.mubr.f32.mxu0 0.0
      %731 = vmatmul.mubr.f32.gmra.mxu0 %v514
      %v732 = vpop.f32.mrf.mxu0
      %v733 = vadd.f32 0.0, %v732
      %v734 = vpop.f32.mrf.mxu0
      %735 = vmatprep.mubr.f32.mxu0 0.0
      %736 = vmatmul.mubr.f32.gmra.mxu0 %v517
      %v737 = vpop.f32.mrf.mxu0
      %v738 = vadd.f32 0.0, %v737
      %v739 = vpop.f32.mrf.mxu0
      %740 = vmatprep.mubr.f32.mxu0 0.0
      %741 = vmatmul.mubr.f32.gmra.mxu0 %v520
      %v742 = vpop.f32.mrf.mxu0
      %v743 = vadd.f32 0.0, %v742
      %v744 = vpop.f32.mrf.mxu0
      %745 = vmatprep.mubr.f32.mxu0 0.0
      %746 = vmatmul.mubr.f32.gmra.mxu0 %v523
      %v747 = vpop.f32.mrf.mxu0
      %v748 = vadd.f32 0.0, %v747
      %v749 = vpop.f32.mrf.mxu0
      %750 = vmatprep.mubr.f32.mxu0 0.0
      %751 = vmatmul.mubr.f32.gmra.mxu0 %v526
      %v752 = vpop.f32.mrf.mxu0
      %v753 = vadd.f32 0.0, %v752
      %v754 = vpop.f32.mrf.mxu0
      %755 = vmatprep.mubr.f32.mxu0 0.0
      %756 = vmatmul.mubr.f32.gmra.mxu0 %v529
      %v757 = vpop.f32.mrf.mxu0
      %v758 = vadd.f32 0.0, %v757
      %v759 = vpop.f32.mrf.mxu0
      %760 = vmatprep.mubr.f32.mxu0 0.0
      %761 = vmatmul.mubr.f32.gmra.mxu0 %v532
      %v762 = vpop.f32.mrf.mxu0
      %v763 = vadd.f32 0.0, %v762
      %v764 = vpop.f32.mrf.mxu0
      %765 = vmatprep.mubr.f32.mxu0 0.0
      %766 = vmatmul.mubr.f32.gmra.mxu0 %v535
      %v767 = vpop.f32.mrf.mxu0
      %v768 = vadd.f32 0.0, %v767
      %v769 = vpop.f32.mrf.mxu0
      %770 = vmatprep.mubr.f32.mxu0 0.0
      %771 = vmatmul.mubr.f32.gmra.mxu0 %v538
      %v772 = vpop.f32.mrf.mxu0
      %v773 = vadd.f32 0.0, %v772
      %v774 = vpop.f32.mrf.mxu0
      %775 = vmatprep.mubr.f32.mxu0 0.0
      %776 = vmatmul.mubr.f32.gmra.mxu0 %v541
      %v777 = vpop.f32.mrf.mxu0
      %v778 = vadd.f32 0.0, %v777
      %v779 = vpop.f32.mrf.mxu0
      %780 = vmatprep.mubr.f32.mxu0 0.0
      %781 = vmatmul.mubr.f32.gmra.mxu0 %v544
      %v782 = vpop.f32.mrf.mxu0
      %v783 = vadd.f32 0.0, %v782
      %v784 = vpop.f32.mrf.mxu0
      %785 = vmatprep.mubr.f32.mxu0 0.0
      %786 = vmatmul.mubr.f32.gmra.mxu0 %v547
      %v787 = vpop.f32.mrf.mxu0
      %v788 = vadd.f32 0.0, %v787
      %v789 = vpop.f32.mrf.mxu0
      %790 = vmatprep.mubr.f32.mxu0 0.0
      %791 = vmatmul.mubr.f32.gmra.mxu0 %v550
      %v792 = vpop.f32.mrf.mxu0
      %v793 = vadd.f32 0.0, %v792
      %v794 = vpop.f32.mrf.mxu0
      %795 = vmatprep.mubr.f32.mxu0 0.0
      %796 = vmatmul.mubr.f32.gmra.mxu0 %v553
      %v797 = vpop.f32.mrf.mxu0
      %v798 = vadd.f32 0.0, %v797
      %v799 = vpop.f32.mrf.mxu0
      %800 = vmatprep.mubr.f32.mxu0 0.0
      %801 = vmatmul.mubr.f32.gmra.mxu0 %v556
      %v802 = vpop.f32.mrf.mxu0
      %v803 = vadd.f32 0.0, %v802
      %v804 = vpop.f32.mrf.mxu0
      %805 = vmatprep.mubr.f32.mxu0 0.0
      %806 = vmatmul.mubr.f32.gmra.mxu0 %v559
      %v807 = vpop.f32.mrf.mxu0
      %v808 = vadd.f32 0.0, %v807
      %v809 = vpop.f32.mrf.mxu0
      %810 = vmatprep.mubr.f32.mxu0 0.0
      %811 = vmatmul.mubr.f32.gmra.mxu0 %v562
      %v812 = vpop.f32.mrf.mxu0
      %v813 = vadd.f32 0.0, %v812
      %v814 = vpop.f32.mrf.mxu0
      %815 = vmatprep.mubr.f32.mxu0 0.0
      %816 = vmatmul.mubr.f32.gmra.mxu0 %v565
      %v817 = vpop.f32.mrf.mxu0
      %v818 = vadd.f32 0.0, %v817
      %v819 = vpop.f32.mrf.mxu0
      %820 = vmatprep.mubr.f32.mxu0 0.0
      %821 = vmatmul.mubr.f32.gmra.mxu0 %v568
      %v822 = vpop.f32.mrf.mxu0
      %v823 = vadd.f32 0.0, %v822
      %v824 = vpop.f32.mrf.mxu0
      %825 = vmatprep.mubr.f32.mxu0 0.0
      %826 = vmatmul.mubr.f32.gmra.mxu0 %v571
      %v827 = vpop.f32.mrf.mxu0
      %v828 = vadd.f32 0.0, %v827
      %v829 = vpop.f32.mrf.mxu0
      %830 = vmatprep.mubr.f32.mxu0 0.0
      %831 = vmatmul.mubr.f32.gmra.mxu0 %v574
      %v832 = vpop.f32.mrf.mxu0
      %v833 = vadd.f32 0.0, %v832
      %v834 = vpop.f32.mrf.mxu0
      %835 = vmatprep.mubr.f32.mxu0 0.0
      %836 = vmatmul.mubr.f32.gmra.mxu0 %v577
      %v837 = vpop.f32.mrf.mxu0
      %v838 = vadd.f32 0.0, %v837
      %v839 = vpop.f32.mrf.mxu0
      %840 = vmatprep.mubr.f32.mxu0 0.0
      %841 = vmatmul.mubr.f32.gmra.mxu0 %v580
      %v842 = vpop.f32.mrf.mxu0
      %v843 = vadd.f32 0.0, %v842
      %v844 = vpop.f32.mrf.mxu0
      %845 = vmatprep.mubr.f32.mxu0 0.0
      %846 = vmatmul.mubr.f32.gmra.mxu0 %v583
      %v847 = vpop.f32.mrf.mxu0
      %v848 = vadd.f32 0.0, %v847
      %v849 = vpop.f32.mrf.mxu0
      %850 = vmatprep.mubr.f32.mxu0 0.0
      %851 = vmatmul.mubr.f32.gmra.mxu0 %v586
      %v852 = vpop.f32.mrf.mxu0
      %v853 = vadd.f32 0.0, %v852
      %v854 = vpop.f32.mrf.mxu0
      %855 = vmatprep.mubr.f32.mxu0 0.0
      %856 = vmatmul.mubr.f32.gmra.mxu0 %v589
      %v857 = vpop.f32.mrf.mxu0
      %v858 = vadd.f32 0.0, %v857
      %v859 = vpop.f32.mrf.mxu0
      %860 = vmatprep.mubr.f32.mxu0 0.0
      %861 = vmatmul.mubr.f32.gmra.mxu0 %v592
      %v862 = vpop.f32.mrf.mxu0
      %v863 = vadd.f32 0.0, %v862
      %v864 = vpop.f32.mrf.mxu0
      %865 = vmatprep.mubr.f32.mxu0 0.0
      %866 = vmatmul.mubr.f32.gmra.mxu0 %v595
      %v867 = vpop.f32.mrf.mxu0
      %v868 = vadd.f32 0.0, %v867
      %v869 = vpop.f32.mrf.mxu0
      %870 = vmatprep.mubr.f32.mxu0 0.0
      %871 = vmatmul.mubr.f32.gmra.mxu0 %v598
      %v872 = vpop.f32.mrf.mxu0
      %v873 = vadd.f32 0.0, %v872
      %v874 = vpop.f32.mrf.mxu0
      %875 = vmatprep.mubr.f32.mxu0 0.0
      %876 = vmatmul.mubr.f32.gmra.mxu0 %v601
      %v877 = vpop.f32.mrf.mxu0
      %v878 = vadd.f32 0.0, %v877
      %v879 = vpop.f32.mrf.mxu0
      %880 = vmatprep.mubr.f32.mxu0 0.0
      %881 = vmatmul.mubr.f32.gmra.mxu0 %v604
      %v882 = vpop.f32.mrf.mxu0
      %v883 = vadd.f32 0.0, %v882
      %v884 = vpop.f32.mrf.mxu0
      %885 = vmatprep.mubr.f32.mxu0 0.0
      %886 = vmatmul.mubr.f32.gmra.mxu0 %v607
      %v887 = vpop.f32.mrf.mxu0
      %v888 = vadd.f32 0.0, %v887
      %v889 = vpop.f32.mrf.mxu0
      %890 = vmatprep.mubr.f32.mxu0 0.0
      %891 = vmatmul.mubr.f32.gmra.mxu0 %v610
      %v892 = vpop.f32.mrf.mxu0
      %v893 = vadd.f32 0.0, %v892
      %v894 = vpop.f32.mrf.mxu0
      %895 = vdwg.mxu0
      %vm896 = vcmask 523264
      %v897 = vsel %vm896, %v683, 0.0
      %v898 = vsel %vm896, %v688, 0.0
      %v899 = vadd.f32 %v897, %v898
      %v900 = vsel %vm896, %v693, 0.0
      %v901 = vadd.f32 %v899, %v900
      %v902 = vsel %vm896, %v698, 0.0
      %v903 = vadd.f32 %v901, %v902
      %v904 = vsel %vm896, %v703, 0.0
      %v905 = vadd.f32 %v903, %v904
      %v906 = vsel %vm896, %v708, 0.0
      %v907 = vadd.f32 %v905, %v906
      %v908 = vsel %vm896, %v713, 0.0
      %v909 = vadd.f32 %v907, %v908
      %v910 = vsel %vm896, %v718, 0.0
      %v911 = vadd.f32 %v909, %v910
      %v912 = vsel %vm896, %v723, 0.0
      %v913 = vadd.f32 %v911, %v912
      %v914 = vsel %vm896, %v728, 0.0
      %v915 = vadd.f32 %v913, %v914
      %v916 = vsel %vm896, %v733, 0.0
      %v917 = vadd.f32 %v915, %v916
      %v918 = vsel %vm896, %v738, 0.0
      %v919 = vadd.f32 %v917, %v918
      %v920 = vsel %vm896, %v743, 0.0
      %v921 = vadd.f32 %v919, %v920
      %v922 = vsel %vm896, %v748, 0.0
      %v923 = vadd.f32 %v921, %v922
      %v924 = vsel %vm896, %v753, 0.0
      %v925 = vadd.f32 %v923, %v924
      %v926 = vsel %vm896, %v758, 0.0
      %v927 = vadd.f32 %v925, %v926
      %v928 = vsel %vm896, %v763, 0.0
      %v929 = vadd.f32 %v927, %v928
      %v930 = vsel %vm896, %v768, 0.0
      %v931 = vadd.f32 %v929, %v930
      %v932 = vsel %vm896, %v773, 0.0
      %v933 = vadd.f32 %v931, %v932
      %v934 = vsel %vm896, %v778, 0.0
      %v935 = vadd.f32 %v933, %v934
      %v936 = vsel %vm896, %v783, 0.0
      %v937 = vadd.f32 %v935, %v936
      %v938 = vsel %vm896, %v788, 0.0
      %v939 = vadd.f32 %v937, %v938
      %v940 = vsel %vm896, %v793, 0.0
      %v941 = vadd.f32 %v939, %v940
      %v942 = vsel %vm896, %v798, 0.0
      %v943 = vadd.f32 %v941, %v942
      %v944 = vsel %vm896, %v803, 0.0
      %v945 = vadd.f32 %v943, %v944
      %v946 = vsel %vm896, %v808, 0.0
      %v947 = vadd.f32 %v945, %v946
      %v948 = vsel %vm896, %v813, 0.0
      %v949 = vadd.f32 %v947, %v948
      %v950 = vsel %vm896, %v818, 0.0
      %v951 = vadd.f32 %v949, %v950
      %v952 = vsel %vm896, %v823, 0.0
      %v953 = vadd.f32 %v951, %v952
      %v954 = vsel %vm896, %v828, 0.0
      %v955 = vadd.f32 %v953, %v954
      %v956 = vsel %vm896, %v833, 0.0
      %v957 = vadd.f32 %v955, %v956
      %v958 = vsel %vm896, %v838, 0.0
      %v959 = vadd.f32 %v957, %v958
      %v960 = vsel %vm896, %v843, 0.0
      %v961 = vadd.f32 %v959, %v960
      %v962 = vsel %vm896, %v848, 0.0
      %v963 = vadd.f32 %v961, %v962
      %v964 = vsel %vm896, %v853, 0.0
      %v965 = vadd.f32 %v963, %v964
      %v966 = vsel %vm896, %v858, 0.0
      %v967 = vadd.f32 %v965, %v966
      %v968 = vsel %vm896, %v863, 0.0
      %v969 = vadd.f32 %v967, %v968
      %v970 = vsel %vm896, %v868, 0.0
      %v971 = vadd.f32 %v969, %v970
      %v972 = vsel %vm896, %v873, 0.0
      %v973 = vadd.f32 %v971, %v972
      %v974 = vsel %vm896, %v878, 0.0
      %v975 = vadd.f32 %v973, %v974
      %v976 = vsel %vm896, %v883, 0.0
      %v977 = vadd.f32 %v975, %v976
      %v978 = vsel %vm896, %v888, 0.0
      %v979 = vadd.f32 %v977, %v978
      %vm980 = vcmask 521216
      %v981 = vsel %vm980, %v893, 0.0
      %v982 = vadd.f32 %v979, %v981
      %v983 = vrot.slane %v982, 4
      %v984 = vadd.f32 %v982, %v983
      %v985 = vrot.slane %v984, 2
      %v986 = vadd.f32 %v984, %v985
      %v987 = vrot.slane %v986, 1
      %v988 = vadd.f32 %v986, %v987
      %v989 = vmul.f32 %v988, 0.00390625
      %v990 = vld [vmem:[%s3] sm:$0xff]
      %v991 = vld [vmem:[%s3 + $0x8] sm:$0xff]
      %v992 = vld [vmem:[%s3 + $0x10] sm:$0xff]
      %v993 = vld [vmem:[%s3 + $0x18] sm:$0xff]
      %v994 = vld [vmem:[%s3 + $0x20] sm:$0xff]
      %v995 = vld [vmem:[%s3 + $0x28] sm:$0xff]
      %v996 = vld [vmem:[%s3 + $0x30] sm:$0xff]
      %v997 = vld [vmem:[%s3 + $0x38] sm:$0xff]
      %v998 = vld [vmem:[%s4] sm:$0x1]
      %v1000 = vsel %vm896, %v989, 0
      %1002 = vmatprep.subr.mxu0 0.0
      %1003 = vmatpush1.msra.mxu0 0.0
      %1004 = vmatprep.subr.mxu0 0.0
      %1005 = vmatpush1.msra.mxu0 0.0
      %1006 = vmatprep.subr.mxu0 0.0
      %1007 = vmatpush1.msra.mxu0 0.0
      %1008 = vmatprep.subr.mxu0 0.0
      %1009 = vmatpush1.msra.mxu0 0.0
      %1010 = vmatprep.subr.mxu0 0.0
      %1011 = vmatpush1.msra.mxu0 0.0
      %1012 = vmatprep.subr.mxu0 0.0
      %1013 = vmatpush1.msra.mxu0 0.0
      %1014 = vmatprep.subr.mxu0 0.0
      %1015 = vmatpush1.msra.mxu0 0.0
      %1016 = vmatprep.subr.mxu0 0.0
      %1017 = vmatpush1.msra.mxu0 0.0
      %1018 = vmatprep.subr.mxu0 0.0
      %1019 = vmatpush1.msra.mxu0 %v997
      %1020 = vmatprep.subr.mxu0 0.0
      %1021 = vmatpush1.msra.mxu0 %v996
      %1022 = vmatprep.subr.mxu0 0.0
      %1023 = vmatpush1.msra.mxu0 %v995
      %1024 = vmatprep.subr.mxu0 0.0
      %1025 = vmatpush1.msra.mxu0 %v994
      %1026 = vmatprep.subr.mxu0 0.0
      %1027 = vmatpush1.msra.mxu0 %v993
      %1028 = vmatprep.subr.mxu0 0.0
      %1029 = vmatpush1.msra.mxu0 %v992
      %1030 = vmatprep.subr.mxu0 0.0
      %1031 = vmatpush1.msra.mxu0 %v991
      %1032 = vmatprep.subr.mxu0 0.0
      %1033 = vmatpush1.msra.mxu0 %v990
      %1034 = vmatprep.subr.mxu0 0.0
      %1035 = vmatpush2.msra.mxu0 0.0
      %1036 = vmatprep.subr.mxu0 0.0
      %1037 = vmatpush2.msra.mxu0 0.0
      %1038 = vmatprep.subr.mxu0 0.0
      %1039 = vmatpush2.msra.mxu0 0.0
      %1040 = vmatprep.subr.mxu0 0.0
      %1041 = vmatpush2.msra.mxu0 0.0
      %1042 = vmatprep.subr.mxu0 0.0
      %1043 = vmatpush2.msra.mxu0 0.0
      %1044 = vmatprep.subr.mxu0 0.0
      %1045 = vmatpush2.msra.mxu0 0.0
      %1046 = vmatprep.subr.mxu0 0.0
      %1047 = vmatpush2.msra.mxu0 0.0
      %1048 = vmatprep.subr.mxu0 0.0
      %1049 = vmatpush2.msra.mxu0 0.0
      %1050 = vmatprep.subr.mxu0 0.0
      %1051 = vmatpush2.msra.mxu0 0.0
      %1052 = vmatprep.subr.mxu0 0.0
      %1053 = vmatpush2.msra.mxu0 0.0
      %1054 = vmatprep.subr.mxu0 0.0
      %1055 = vmatpush2.msra.mxu0 0.0
      %1056 = vmatprep.subr.mxu0 0.0
      %1057 = vmatpush2.msra.mxu0 0.0
      %1058 = vmatprep.subr.mxu0 0.0
      %1059 = vmatpush2.msra.mxu0 0.0
      %1060 = vmatprep.subr.mxu0 0.0
      %1061 = vmatpush2.msra.mxu0 0.0
      %1062 = vmatprep.subr.mxu0 0.0
      %1063 = vmatpush2.msra.mxu0 0.0
      %1064 = vmatprep.subr.mxu0 0.0
      %1065 = vmatpush2.msra.mxu0 0.0
      %1066 = vmatprep.mubr.f32.mxu0 0.0
      %1067 = vmatmul.mubr.f32.gmra.mxu0 %v1000
      %v1068 = vpop.f32.mrf.mxu0
      %v1069 = vadd.f32 %v998, %v1068
      %v1070 = vpop.f32.mrf.mxu0
      %1071 = vdwg.mxu0
      %v1072 = vmax.f32 %v1069, 0.0
      %v1073 = vld [vmem:[%s5] sm:$0xff]
      %v1074 = vld [vmem:[%s5 + $0x8] sm:$0xff]
      %v1075 = vld [vmem:[%s5 + $0x10] sm:$0xff]
      %v1076 = vld [vmem:[%s5 + $0x18] sm:$0xff]
      %v1077 = vld [vmem:[%s5 + $0x20] sm:$0xff]
      %v1078 = vld [vmem:[%s5 + $0x28] sm:$0xff]
      %v1079 = vld [vmem:[%s5 + $0x30] sm:$0xff]
      %v1080 = vld [vmem:[%s5 + $0x38] sm:$0xff]
      %v1081 = vld [vmem:[%s6] sm:$0x1]
      %v1083 = vsel %vm896, %v1072, 0
      %1085 = vmatprep.subr.mxu0 0.0
      %1086 = vmatpush1.msra.mxu0 0.0
      %1087 = vmatprep.subr.mxu0 0.0
      %1088 = vmatpush1.msra.mxu0 0.0
      %1089 = vmatprep.subr.mxu0 0.0
      %1090 = vmatpush1.msra.mxu0 0.0
      %1091 = vmatprep.subr.mxu0 0.0
      %1092 = vmatpush1.msra.mxu0 0.0
      %1093 = vmatprep.subr.mxu0 0.0
      %1094 = vmatpush1.msra.mxu0 0.0
      %1095 = vmatprep.subr.mxu0 0.0
      %1096 = vmatpush1.msra.mxu0 0.0
      %1097 = vmatprep.subr.mxu0 0.0
      %1098 = vmatpush1.msra.mxu0 0.0
      %1099 = vmatprep.subr.mxu0 0.0
      %1100 = vmatpush1.msra.mxu0 0.0
      %1101 = vmatprep.subr.mxu0 0.0
      %1102 = vmatpush1.msra.mxu0 %v1080
      %1103 = vmatprep.subr.mxu0 0.0
      %1104 = vmatpush1.msra.mxu0 %v1079
      %1105 = vmatprep.subr.mxu0 0.0
      %1106 = vmatpush1.msra.mxu0 %v1078
      %1107 = vmatprep.subr.mxu0 0.0
      %1108 = vmatpush1.msra.mxu0 %v1077
      %1109 = vmatprep.subr.mxu0 0.0
      %1110 = vmatpush1.msra.mxu0 %v1076
      %1111 = vmatprep.subr.mxu0 0.0
      %1112 = vmatpush1.msra.mxu0 %v1075
      %1113 = vmatprep.subr.mxu0 0.0
      %1114 = vmatpush1.msra.mxu0 %v1074
      %1115 = vmatprep.subr.mxu0 0.0
      %1116 = vmatpush1.msra.mxu0 %v1073
      %1117 = vmatprep.subr.mxu0 0.0
      %1118 = vmatpush2.msra.mxu0 0.0
      %1119 = vmatprep.subr.mxu0 0.0
      %1120 = vmatpush2.msra.mxu0 0.0
      %1121 = vmatprep.subr.mxu0 0.0
      %1122 = vmatpush2.msra.mxu0 0.0
      %1123 = vmatprep.subr.mxu0 0.0
      %1124 = vmatpush2.msra.mxu0 0.0
      %1125 = vmatprep.subr.mxu0 0.0
      %1126 = vmatpush2.msra.mxu0 0.0
      %1127 = vmatprep.subr.mxu0 0.0
      %1128 = vmatpush2.msra.mxu0 0.0
      %1129 = vmatprep.subr.mxu0 0.0
      %1130 = vmatpush2.msra.mxu0 0.0
      %1131 = vmatprep.subr.mxu0 0.0
      %1132 = vmatpush2.msra.mxu0 0.0
      %1133 = vmatprep.subr.mxu0 0.0
      %1134 = vmatpush2.msra.mxu0 0.0
      %1135 = vmatprep.subr.mxu0 0.0
      %1136 = vmatpush2.msra.mxu0 0.0
      %1137 = vmatprep.subr.mxu0 0.0
      %1138 = vmatpush2.msra.mxu0 0.0
      %1139 = vmatprep.subr.mxu0 0.0
      %1140 = vmatpush2.msra.mxu0 0.0
      %1141 = vmatprep.subr.mxu0 0.0
      %1142 = vmatpush2.msra.mxu0 0.0
      %1143 = vmatprep.subr.mxu0 0.0
      %1144 = vmatpush2.msra.mxu0 0.0
      %1145 = vmatprep.subr.mxu0 0.0
      %1146 = vmatpush2.msra.mxu0 0.0
      %1147 = vmatprep.subr.mxu0 0.0
      %1148 = vmatpush2.msra.mxu0 0.0
      %1149 = vmatprep.mubr.f32.mxu0 0.0
      %1150 = vmatmul.mubr.f32.gmra.mxu0 %v1083
      %v1151 = vpop.f32.mrf.mxu0
      %v1152 = vadd.f32 %v1081, %v1151
      %v1153 = vpop.f32.mrf.mxu0
      %1154 = vdwg.mxu0
      %v1155 = vsub.f32 0.0, %v1152
      %v1156 = vmul.f32 %v1155, 1.442695
      %v1157 = vpow.pop %v1156
      %v1158 = vadd.f32 %v1157, 1.0
      %v1159 = vrcp.pop %v1158
      %v1160 = vmul.f32 1.0, %v1159
      %v1161 = vlaneseq
      %v1162 = vshrl.u32 %v1161, 7
      %v1163 = vsub.s32 0, %v1162
      %v1164 = vrot.slane %v1160, %v1163
      %v1165 = vmul.f32 %v683, %v1164
      %v1166 = vmul.f32 %v688, %v1164
      %v1167 = vmul.f32 %v693, %v1164
      %v1168 = vmul.f32 %v698, %v1164
      %v1169 = vmul.f32 %v703, %v1164
      %v1170 = vmul.f32 %v708, %v1164
      %v1171 = vmul.f32 %v713, %v1164
      %v1172 = vmul.f32 %v718, %v1164
      %v1173 = vmul.f32 %v723, %v1164
      %v1174 = vmul.f32 %v728, %v1164
      %v1175 = vmul.f32 %v733, %v1164
      %v1176 = vmul.f32 %v738, %v1164
      %v1177 = vmul.f32 %v743, %v1164
      %v1178 = vmul.f32 %v748, %v1164
      %v1179 = vmul.f32 %v753, %v1164
      %v1180 = vmul.f32 %v758, %v1164
      %v1181 = vmul.f32 %v763, %v1164
      %v1182 = vmul.f32 %v768, %v1164
      %v1183 = vmul.f32 %v773, %v1164
      %v1184 = vmul.f32 %v778, %v1164
      %v1185 = vmul.f32 %v783, %v1164
      %v1186 = vmul.f32 %v788, %v1164
      %v1187 = vmul.f32 %v793, %v1164
      %v1188 = vmul.f32 %v798, %v1164
      %v1189 = vmul.f32 %v803, %v1164
      %v1190 = vmul.f32 %v808, %v1164
      %v1191 = vmul.f32 %v813, %v1164
      %v1192 = vmul.f32 %v818, %v1164
      %v1193 = vmul.f32 %v823, %v1164
      %v1194 = vmul.f32 %v828, %v1164
      %v1195 = vmul.f32 %v833, %v1164
      %v1196 = vmul.f32 %v838, %v1164
      %v1197 = vmul.f32 %v843, %v1164
      %v1198 = vmul.f32 %v848, %v1164
      %v1199 = vmul.f32 %v853, %v1164
      %v1200 = vmul.f32 %v858, %v1164
      %v1201 = vmul.f32 %v863, %v1164
      %v1202 = vmul.f32 %v868, %v1164
      %v1203 = vmul.f32 %v873, %v1164
      %v1204 = vmul.f32 %v878, %v1164
      %v1205 = vmul.f32 %v883, %v1164
      %v1206 = vmul.f32 %v888, %v1164
      %v1207 = vmul.f32 %v893, %v1164
      %1208 = vst.msk [vmem:[#allocation2] sm:$0xff] %vm896, %v1165
      %1209 = vst.msk [vmem:[#allocation2 + $0x8] sm:$0xff] %vm896, %v1166
      %1210 = vst.msk [vmem:[#allocation2 + $0x10] sm:$0xff] %vm896, %v1167
      %1211 = vst.msk [vmem:[#allocation2 + $0x18] sm:$0xff] %vm896, %v1168
      %1212 = vst.msk [vmem:[#allocation2 + $0x20] sm:$0xff] %vm896, %v1169
      %1213 = vst.msk [vmem:[#allocation2 + $0x28] sm:$0xff] %vm896, %v1170
      %1214 = vst.msk [vmem:[#allocation2 + $0x30] sm:$0xff] %vm896, %v1171
      %1215 = vst.msk [vmem:[#allocation2 + $0x38] sm:$0xff] %vm896, %v1172
      %1216 = vst.msk [vmem:[#allocation2 + $0x40] sm:$0xff] %vm896, %v1173
      %1217 = vst.msk [vmem:[#allocation2 + $0x48] sm:$0xff] %vm896, %v1174
      %1218 = vst.msk [vmem:[#allocation2 + $0x50] sm:$0xff] %vm896, %v1175
      %1219 = vst.msk [vmem:[#allocation2 + $0x58] sm:$0xff] %vm896, %v1176
      %1220 = vst.msk [vmem:[#allocation2 + $0x60] sm:$0xff] %vm896, %v1177
      %1221 = vst.msk [vmem:[#allocation2 + $0x68] sm:$0xff] %vm896, %v1178
      %1222 = vst.msk [vmem:[#allocation2 + $0x70] sm:$0xff] %vm896, %v1179
      %1223 = vst.msk [vmem:[#allocation2 + $0x78] sm:$0xff] %vm896, %v1180
      %1224 = vst.msk [vmem:[#allocation2 + $0x80] sm:$0xff] %vm896, %v1181
      %1225 = vst.msk [vmem:[#allocation2 + $0x88] sm:$0xff] %vm896, %v1182
      %1226 = vst.msk [vmem:[#allocation2 + $0x90] sm:$0xff] %vm896, %v1183
      %1227 = vst.msk [vmem:[#allocation2 + $0x98] sm:$0xff] %vm896, %v1184
      %1228 = vst.msk [vmem:[#allocation2 + $0xa0] sm:$0xff] %vm896, %v1185
      %1229 = vst.msk [vmem:[#allocation2 + $0xa8] sm:$0xff] %vm896, %v1186
      %1230 = vst.msk [vmem:[#allocation2 + $0xb0] sm:$0xff] %vm896, %v1187
      %1231 = vst.msk [vmem:[#allocation2 + $0xb8] sm:$0xff] %vm896, %v1188
      %1232 = vst.msk [vmem:[#allocation2 + $0xc0] sm:$0xff] %vm896, %v1189
      %1233 = vst.msk [vmem:[#allocation2 + $0xc8] sm:$0xff] %vm896, %v1190
      %1234 = vst.msk [vmem:[#allocation2 + $0xd0] sm:$0xff] %vm896, %v1191
      %1235 = vst.msk [vmem:[#allocation2 + $0xd8] sm:$0xff] %vm896, %v1192
      %1236 = vst.msk [vmem:[#allocation2 + $0xe0] sm:$0xff] %vm896, %v1193
      %1237 = vst.msk [vmem:[#allocation2 + $0xe8] sm:$0xff] %vm896, %v1194
      %1238 = vst.msk [vmem:[#allocation2 + $0xf0] sm:$0xff] %vm896, %v1195
      %1239 = vst.msk [vmem:[#allocation2 + $0xf8] sm:$0xff] %vm896, %v1196
      %1240 = vst.msk [vmem:[#allocation2 + $0x100] sm:$0xff] %vm896, %v1197
      %1241 = vst.msk [vmem:[#allocation2 + $0x108] sm:$0xff] %vm896, %v1198
      %1242 = vst.msk [vmem:[#allocation2 + $0x110] sm:$0xff] %vm896, %v1199
      %1243 = vst.msk [vmem:[#allocation2 + $0x118] sm:$0xff] %vm896, %v1200
      %1244 = vst.msk [vmem:[#allocation2 + $0x120] sm:$0xff] %vm896, %v1201
      %1245 = vst.msk [vmem:[#allocation2 + $0x128] sm:$0xff] %vm896, %v1202
      %1246 = vst.msk [vmem:[#allocation2 + $0x130] sm:$0xff] %vm896, %v1203
      %1247 = vst.msk [vmem:[#allocation2 + $0x138] sm:$0xff] %vm896, %v1204
      %1248 = vst.msk [vmem:[#allocation2 + $0x140] sm:$0xff] %vm896, %v1205
      %1249 = vst.msk [vmem:[#allocation2 + $0x148] sm:$0xff] %vm896, %v1206
      %1250 = vst.msk [vmem:[#allocation2 + $0x150] sm:$0x3f] %vm980, %v1207
      %1251 = vst [vmem:[#allocation4] sm:$0xff] 0.0
      %1252 = vst [vmem:[#allocation4 + $0x8] sm:$0xff] 0.0
      %1253 = vst [vmem:[#allocation4 + $0x10] sm:$0xff] 0.0
      %1254 = vst [vmem:[#allocation4 + $0x18] sm:$0xff] 0.0
      %1255 = vst [vmem:[#allocation4 + $0x20] sm:$0xff] 0.0
      %1256 = vst [vmem:[#allocation4 + $0x28] sm:$0xff] 0.0
      %1257 = vst [vmem:[#allocation4 + $0x30] sm:$0xff] 0.0
      %1258 = vst [vmem:[#allocation4 + $0x38] sm:$0xff] 0.0
      %1259 = vst [vmem:[#allocation4 + $0x40] sm:$0xff] 0.0
      %1260 = vst [vmem:[#allocation4 + $0x48] sm:$0xff] 0.0
      %1261 = vst [vmem:[#allocation4 + $0x50] sm:$0xff] 0.0
      %1262 = vst [vmem:[#allocation4 + $0x58] sm:$0xff] 0.0
      %1263 = vst [vmem:[#allocation4 + $0x60] sm:$0xff] 0.0
      %1264 = vst [vmem:[#allocation4 + $0x68] sm:$0xff] 0.0
      %1265 = vst [vmem:[#allocation4 + $0x70] sm:$0xff] 0.0
      %1266 = vst [vmem:[#allocation4 + $0x78] sm:$0xff] 0.0
      %1267 = vst [vmem:[#allocation4 + $0x80] sm:$0xff] 0.0
      %1268 = vst [vmem:[#allocation4 + $0x88] sm:$0xff] 0.0
      %1269 = vst [vmem:[#allocation4 + $0x90] sm:$0xff] 0.0
      %1270 = vst [vmem:[#allocation4 + $0x98] sm:$0xff] 0.0
      %1271 = vst [vmem:[#allocation4 + $0xa0] sm:$0xff] 0.0
      %1272 = vst [vmem:[#allocation4 + $0xa8] sm:$0xff] 0.0
      %1273 = vst [vmem:[#allocation4 + $0xb0] sm:$0xff] 0.0
      %1274 = vst [vmem:[#allocation4 + $0xb8] sm:$0xff] 0.0
      %1275 = vst [vmem:[#allocation4 + $0xc0] sm:$0xff] 0.0
      %1276 = vst [vmem:[#allocation4 + $0xc8] sm:$0xff] 0.0
      %1277 = vst [vmem:[#allocation4 + $0xd0] sm:$0xff] 0.0
      %1278 = vst [vmem:[#allocation4 + $0xd8] sm:$0xff] 0.0
      %1279 = vst [vmem:[#allocation4 + $0xe0] sm:$0xff] 0.0
      %1280 = vst [vmem:[#allocation4 + $0xe8] sm:$0xff] 0.0
      %1281 = vst [vmem:[#allocation4 + $0xf0] sm:$0xff] 0.0
      %1282 = vst [vmem:[#allocation4 + $0xf8] sm:$0xff] 0.0
      %1283 = vst [vmem:[#allocation4 + $0x100] sm:$0xff] 0.0
      %1284 = vst [vmem:[#allocation4 + $0x108] sm:$0xff] 0.0
      %1285 = vst [vmem:[#allocation4 + $0x110] sm:$0xff] 0.0
      %1286 = vst [vmem:[#allocation4 + $0x118] sm:$0xff] 0.0
      %v1287 = vld [vmem:[#allocation4] sm:$0xff]
      %v1288 = vld [vmem:[#allocation4 + $0x8] sm:$0xff]
      %v1289 = vld [vmem:[#allocation4 + $0x10] sm:$0xff]
      %v1290 = vld [vmem:[#allocation4 + $0x18] sm:$0xff]
      %v1291 = vld [vmem:[#allocation4 + $0x20] sm:$0xff]
      %v1292 = vld [vmem:[#allocation4 + $0x28] sm:$0xff]
      %v1293 = vld [vmem:[#allocation4 + $0x30] sm:$0xff]
      %v1294 = vld [vmem:[#allocation4 + $0x38] sm:$0xff]
      %v1295 = vld [vmem:[#allocation4 + $0x40] sm:$0xff]
      %v1296 = vld [vmem:[#allocation4 + $0x48] sm:$0xff]
      %v1297 = vld [vmem:[#allocation4 + $0x50] sm:$0xff]
      %v1298 = vld [vmem:[#allocation4 + $0x58] sm:$0xff]
      %v1299 = vld [vmem:[#allocation4 + $0x60] sm:$0xff]
      %v1300 = vld [vmem:[#allocation4 + $0x68] sm:$0xff]
      %v1301 = vld [vmem:[#allocation4 + $0x70] sm:$0xff]
      %v1302 = vld [vmem:[#allocation4 + $0x78] sm:$0xff]
      %v1303 = vld [vmem:[#allocation4 + $0x80] sm:$0xff]
      %v1304 = vld [vmem:[#allocation4 + $0x88] sm:$0xff]
      %v1305 = vld [vmem:[#allocation4 + $0x90] sm:$0xff]
      %v1306 = vld [vmem:[#allocation4 + $0x98] sm:$0xff]
      %v1307 = vld [vmem:[#allocation4 + $0xa0] sm:$0xff]
      %v1308 = vld [vmem:[#allocation4 + $0xa8] sm:$0xff]
      %v1309 = vld [vmem:[#allocation4 + $0xb0] sm:$0xff]
      %v1310 = vld [vmem:[#allocation4 + $0xb8] sm:$0xff]
      %v1311 = vld [vmem:[#allocation4 + $0xc0] sm:$0xff]
      %v1312 = vld [vmem:[#allocation4 + $0xc8] sm:$0xff]
      %v1313 = vld [vmem:[#allocation4 + $0xd0] sm:$0xff]
      %v1314 = vld [vmem:[#allocation4 + $0xd8] sm:$0xff]
      %v1315 = vld [vmem:[#allocation4 + $0xe0] sm:$0xff]
      %v1316 = vld [vmem:[#allocation4 + $0xe8] sm:$0xff]
      %v1317 = vld [vmem:[#allocation4 + $0xf0] sm:$0xff]
      %v1318 = vld [vmem:[#allocation4 + $0xf8] sm:$0xff]
      %v1319 = vld [vmem:[#allocation4 + $0x100] sm:$0xff]
      %v1320 = vld [vmem:[#allocation4 + $0x108] sm:$0xff]
      %v1321 = vld [vmem:[#allocation4 + $0x110] sm:$0xff]
      %v1322 = vld [vmem:[#allocation4 + $0x118] sm:$0xff]
      %v1323 = vld [vmem:[#allocation2] sm:$0xff]
      %v1324 = vld [vmem:[#allocation2 + $0x8] sm:$0xff]
      %v1325 = vld [vmem:[#allocation2 + $0x10] sm:$0xff]
      %v1326 = vld [vmem:[#allocation2 + $0x18] sm:$0xff]
      %v1327 = vld [vmem:[#allocation2 + $0x20] sm:$0xff]
      %v1328 = vld [vmem:[#allocation2 + $0x28] sm:$0xff]
      %v1329 = vld [vmem:[#allocation2 + $0x30] sm:$0xff]
      %v1330 = vld [vmem:[#allocation2 + $0x38] sm:$0xff]
      %v1331 = vld [vmem:[#allocation2 + $0x40] sm:$0xff]
      %v1332 = vld [vmem:[#allocation2 + $0x48] sm:$0xff]
      %v1333 = vld [vmem:[#allocation2 + $0x50] sm:$0xff]
      %v1334 = vld [vmem:[#allocation2 + $0x58] sm:$0xff]
      %v1335 = vld [vmem:[#allocation2 + $0x60] sm:$0xff]
      %v1336 = vld [vmem:[#allocation2 + $0x68] sm:$0xff]
      %v1337 = vld [vmem:[#allocation2 + $0x70] sm:$0xff]
      %v1338 = vld [vmem:[#allocation2 + $0x78] sm:$0xff]
      %v1339 = vld [vmem:[#allocation2 + $0x80] sm:$0xff]
      %v1340 = vld [vmem:[#allocation2 + $0x88] sm:$0xff]
      %v1341 = vld [vmem:[#allocation2 + $0x90] sm:$0xff]
      %v1342 = vld [vmem:[#allocation2 + $0x98] sm:$0xff]
      %v1343 = vld [vmem:[#allocation2 + $0xa0] sm:$0xff]
      %v1344 = vld [vmem:[#allocation2 + $0xa8] sm:$0xff]
      %v1345 = vld [vmem:[#allocation2 + $0xb0] sm:$0xff]
      %v1346 = vld [vmem:[#allocation2 + $0xb8] sm:$0xff]
      %v1347 = vld [vmem:[#allocation2 + $0xc0] sm:$0xff]
      %v1348 = vld [vmem:[#allocation2 + $0xc8] sm:$0xff]
      %v1349 = vld [vmem:[#allocation2 + $0xd0] sm:$0xff]
      %v1350 = vld [vmem:[#allocation2 + $0xd8] sm:$0xff]
      %v1351 = vld [vmem:[#allocation2 + $0xe0] sm:$0xff]
      %v1352 = vld [vmem:[#allocation2 + $0xe8] sm:$0xff]
      %v1353 = vld [vmem:[#allocation2 + $0xf0] sm:$0xff]
      %v1354 = vld [vmem:[#allocation2 + $0xf8] sm:$0xff]
      %v1355 = vld [vmem:[#allocation2 + $0x100] sm:$0xff]
      %v1356 = vld [vmem:[#allocation2 + $0x108] sm:$0xff]
      %v1357 = vld [vmem:[#allocation2 + $0x110] sm:$0xff]
      %v1358 = vld [vmem:[#allocation2 + $0x118] sm:$0xff]
      %v1359 = vld [vmem:[%s7] sm:$0xff]
      %v1360 = vld [vmem:[%s7 + $0x8] sm:$0xff]
      %v1361 = vld [vmem:[%s7 + $0x10] sm:$0xff]
      %v1362 = vld [vmem:[%s7 + $0x18] sm:$0xff]
      %v1363 = vld [vmem:[%s7 + $0x20] sm:$0xff]
      %v1364 = vld [vmem:[%s7 + $0x28] sm:$0xff]
      %v1365 = vld [vmem:[%s7 + $0x30] sm:$0xff]
      %v1366 = vld [vmem:[%s7 + $0x38] sm:$0xff]
      %v1368 = vsel %vm896, %v1323, 0
      %v1371 = vsel %vm896, %v1324, 0
      %v1374 = vsel %vm896, %v1325, 0
      %v1377 = vsel %vm896, %v1326, 0
      %v1380 = vsel %vm896, %v1327, 0
      %v1383 = vsel %vm896, %v1328, 0
      %v1386 = vsel %vm896, %v1329, 0
      %v1389 = vsel %vm896, %v1330, 0
      %v1392 = vsel %vm896, %v1331, 0
      %v1395 = vsel %vm896, %v1332, 0
      %v1398 = vsel %vm896, %v1333, 0
      %v1401 = vsel %vm896, %v1334, 0
      %v1404 = vsel %vm896, %v1335, 0
      %v1407 = vsel %vm896, %v1336, 0
      %v1410 = vsel %vm896, %v1337, 0
      %v1413 = vsel %vm896, %v1338, 0
      %v1416 = vsel %vm896, %v1339, 0
      %v1419 = vsel %vm896, %v1340, 0
      %v1422 = vsel %vm896, %v1341, 0
      %v1425 = vsel %vm896, %v1342, 0
      %v1428 = vsel %vm896, %v1343, 0
      %v1431 = vsel %vm896, %v1344, 0
      %v1434 = vsel %vm896, %v1345, 0
      %v1437 = vsel %vm896, %v1346, 0
      %v1440 = vsel %vm896, %v1347, 0
      %v1443 = vsel %vm896, %v1348, 0
      %v1446 = vsel %vm896, %v1349, 0
      %v1449 = vsel %vm896, %v1350, 0
      %v1452 = vsel %vm896, %v1351, 0
      %v1455 = vsel %vm896, %v1352, 0
      %v1458 = vsel %vm896, %v1353, 0
      %v1461 = vsel %vm896, %v1354, 0
      %v1464 = vsel %vm896, %v1355, 0
      %v1467 = vsel %vm896, %v1356, 0
      %v1470 = vsel %vm896, %v1357, 0
      %v1473 = vsel %vm896, %v1358, 0
      %1475 = vmatprep.subr.mxu0 0.0
      %1476 = vmatpush1.msra.mxu0 0.0
      %1477 = vmatprep.subr.mxu0 0.0
      %1478 = vmatpush1.msra.mxu0 0.0
      %1479 = vmatprep.subr.mxu0 0.0
      %1480 = vmatpush1.msra.mxu0 0.0
      %1481 = vmatprep.subr.mxu0 0.0
      %1482 = vmatpush1.msra.mxu0 0.0
      %1483 = vmatprep.subr.mxu0 0.0
      %1484 = vmatpush1.msra.mxu0 0.0
      %1485 = vmatprep.subr.mxu0 0.0
      %1486 = vmatpush1.msra.mxu0 0.0
      %1487 = vmatprep.subr.mxu0 0.0
      %1488 = vmatpush1.msra.mxu0 0.0
      %1489 = vmatprep.subr.mxu0 0.0
      %1490 = vmatpush1.msra.mxu0 0.0
      %1491 = vmatprep.subr.mxu0 0.0
      %1492 = vmatpush1.msra.mxu0 %v1366
      %1493 = vmatprep.subr.mxu0 0.0
      %1494 = vmatpush1.msra.mxu0 %v1365
      %1495 = vmatprep.subr.mxu0 0.0
      %1496 = vmatpush1.msra.mxu0 %v1364
      %1497 = vmatprep.subr.mxu0 0.0
      %1498 = vmatpush1.msra.mxu0 %v1363
      %1499 = vmatprep.subr.mxu0 0.0
      %1500 = vmatpush1.msra.mxu0 %v1362
      %1501 = vmatprep.subr.mxu0 0.0
      %1502 = vmatpush1.msra.mxu0 %v1361
      %1503 = vmatprep.subr.mxu0 0.0
      %1504 = vmatpush1.msra.mxu0 %v1360
      %1505 = vmatprep.subr.mxu0 0.0
      %1506 = vmatpush1.msra.mxu0 %v1359
      %1507 = vmatprep.subr.mxu0 0.0
      %1508 = vmatpush2.msra.mxu0 0.0
      %1509 = vmatprep.subr.mxu0 0.0
      %1510 = vmatpush2.msra.mxu0 0.0
      %1511 = vmatprep.subr.mxu0 0.0
      %1512 = vmatpush2.msra.mxu0 0.0
      %1513 = vmatprep.subr.mxu0 0.0
      %1514 = vmatpush2.msra.mxu0 0.0
      %1515 = vmatprep.subr.mxu0 0.0
      %1516 = vmatpush2.msra.mxu0 0.0
      %1517 = vmatprep.subr.mxu0 0.0
      %1518 = vmatpush2.msra.mxu0 0.0
      %1519 = vmatprep.subr.mxu0 0.0
      %1520 = vmatpush2.msra.mxu0 0.0
      %1521 = vmatprep.subr.mxu0 0.0
      %1522 = vmatpush2.msra.mxu0 0.0
      %1523 = vmatprep.subr.mxu0 0.0
      %1524 = vmatpush2.msra.mxu0 0.0
      %1525 = vmatprep.subr.mxu0 0.0
      %1526 = vmatpush2.msra.mxu0 0.0
      %1527 = vmatprep.subr.mxu0 0.0
      %1528 = vmatpush2.msra.mxu0 0.0
      %1529 = vmatprep.subr.mxu0 0.0
      %1530 = vmatpush2.msra.mxu0 0.0
      %1531 = vmatprep.subr.mxu0 0.0
      %1532 = vmatpush2.msra.mxu0 0.0
      %1533 = vmatprep.subr.mxu0 0.0
      %1534 = vmatpush2.msra.mxu0 0.0
      %1535 = vmatprep.subr.mxu0 0.0
      %1536 = vmatpush2.msra.mxu0 0.0
      %1537 = vmatprep.subr.mxu0 0.0
      %1538 = vmatpush2.msra.mxu0 0.0
      %1539 = vmatprep.mubr.f32.mxu0 0.0
      %1540 = vmatmul.mubr.f32.gmra.mxu0 %v1368
      %v1541 = vpop.f32.mrf.mxu0
      %v1542 = vadd.f32 0.0, %v1541
      %v1543 = vpop.f32.mrf.mxu0
      %1544 = vmatprep.mubr.f32.mxu0 0.0
      %1545 = vmatmul.mubr.f32.gmra.mxu0 %v1371
      %v1546 = vpop.f32.mrf.mxu0
      %v1547 = vadd.f32 0.0, %v1546
      %v1548 = vpop.f32.mrf.mxu0
      %1549 = vmatprep.mubr.f32.mxu0 0.0
      %1550 = vmatmul.mubr.f32.gmra.mxu0 %v1374
      %v1551 = vpop.f32.mrf.mxu0
      %v1552 = vadd.f32 0.0, %v1551
      %v1553 = vpop.f32.mrf.mxu0
      %1554 = vmatprep.mubr.f32.mxu0 0.0
      %1555 = vmatmul.mubr.f32.gmra.mxu0 %v1377
      %v1556 = vpop.f32.mrf.mxu0
      %v1557 = vadd.f32 0.0, %v1556
      %v1558 = vpop.f32.mrf.mxu0
      %1559 = vmatprep.mubr.f32.mxu0 0.0
      %1560 = vmatmul.mubr.f32.gmra.mxu0 %v1380
      %v1561 = vpop.f32.mrf.mxu0
      %v1562 = vadd.f32 0.0, %v1561
      %v1563 = vpop.f32.mrf.mxu0
      %1564 = vmatprep.mubr.f32.mxu0 0.0
      %1565 = vmatmul.mubr.f32.gmra.mxu0 %v1383
      %v1566 = vpop.f32.mrf.mxu0
      %v1567 = vadd.f32 0.0, %v1566
      %v1568 = vpop.f32.mrf.mxu0
      %1569 = vmatprep.mubr.f32.mxu0 0.0
      %1570 = vmatmul.mubr.f32.gmra.mxu0 %v1386
      %v1571 = vpop.f32.mrf.mxu0
      %v1572 = vadd.f32 0.0, %v1571
      %v1573 = vpop.f32.mrf.mxu0
      %1574 = vmatprep.mubr.f32.mxu0 0.0
      %1575 = vmatmul.mubr.f32.gmra.mxu0 %v1389
      %v1576 = vpop.f32.mrf.mxu0
      %v1577 = vadd.f32 0.0, %v1576
      %v1578 = vpop.f32.mrf.mxu0
      %1579 = vmatprep.mubr.f32.mxu0 0.0
      %1580 = vmatmul.mubr.f32.gmra.mxu0 %v1392
      %v1581 = vpop.f32.mrf.mxu0
      %v1582 = vadd.f32 0.0, %v1581
      %v1583 = vpop.f32.mrf.mxu0
      %1584 = vmatprep.mubr.f32.mxu0 0.0
      %1585 = vmatmul.mubr.f32.gmra.mxu0 %v1395
      %v1586 = vpop.f32.mrf.mxu0
      %v1587 = vadd.f32 0.0, %v1586
      %v1588 = vpop.f32.mrf.mxu0
      %1589 = vmatprep.mubr.f32.mxu0 0.0
      %1590 = vmatmul.mubr.f32.gmra.mxu0 %v1398
      %v1591 = vpop.f32.mrf.mxu0
      %v1592 = vadd.f32 0.0, %v1591
      %v1593 = vpop.f32.mrf.mxu0
      %1594 = vmatprep.mubr.f32.mxu0 0.0
      %1595 = vmatmul.mubr.f32.gmra.mxu0 %v1401
      %v1596 = vpop.f32.mrf.mxu0
      %v1597 = vadd.f32 0.0, %v1596
      %v1598 = vpop.f32.mrf.mxu0
      %1599 = vmatprep.mubr.f32.mxu0 0.0
      %1600 = vmatmul.mubr.f32.gmra.mxu0 %v1404
      %v1601 = vpop.f32.mrf.mxu0
      %v1602 = vadd.f32 0.0, %v1601
      %v1603 = vpop.f32.mrf.mxu0
      %1604 = vmatprep.mubr.f32.mxu0 0.0
      %1605 = vmatmul.mubr.f32.gmra.mxu0 %v1407
      %v1606 = vpop.f32.mrf.mxu0
      %v1607 = vadd.f32 0.0, %v1606
      %v1608 = vpop.f32.mrf.mxu0
      %1609 = vmatprep.mubr.f32.mxu0 0.0
      %1610 = vmatmul.mubr.f32.gmra.mxu0 %v1410
      %v1611 = vpop.f32.mrf.mxu0
      %v1612 = vadd.f32 0.0, %v1611
      %v1613 = vpop.f32.mrf.mxu0
      %1614 = vmatprep.mubr.f32.mxu0 0.0
      %1615 = vmatmul.mubr.f32.gmra.mxu0 %v1413
      %v1616 = vpop.f32.mrf.mxu0
      %v1617 = vadd.f32 0.0, %v1616
      %v1618 = vpop.f32.mrf.mxu0
      %1619 = vmatprep.mubr.f32.mxu0 0.0
      %1620 = vmatmul.mubr.f32.gmra.mxu0 %v1416
      %v1621 = vpop.f32.mrf.mxu0
      %v1622 = vadd.f32 0.0, %v1621
      %v1623 = vpop.f32.mrf.mxu0
      %1624 = vmatprep.mubr.f32.mxu0 0.0
      %1625 = vmatmul.mubr.f32.gmra.mxu0 %v1419
      %v1626 = vpop.f32.mrf.mxu0
      %v1627 = vadd.f32 0.0, %v1626
      %v1628 = vpop.f32.mrf.mxu0
      %1629 = vmatprep.mubr.f32.mxu0 0.0
      %1630 = vmatmul.mubr.f32.gmra.mxu0 %v1422
      %v1631 = vpop.f32.mrf.mxu0
      %v1632 = vadd.f32 0.0, %v1631
      %v1633 = vpop.f32.mrf.mxu0
      %1634 = vmatprep.mubr.f32.mxu0 0.0
      %1635 = vmatmul.mubr.f32.gmra.mxu0 %v1425
      %v1636 = vpop.f32.mrf.mxu0
      %v1637 = vadd.f32 0.0, %v1636
      %v1638 = vpop.f32.mrf.mxu0
      %1639 = vmatprep.mubr.f32.mxu0 0.0
      %1640 = vmatmul.mubr.f32.gmra.mxu0 %v1428
      %v1641 = vpop.f32.mrf.mxu0
      %v1642 = vadd.f32 0.0, %v1641
      %v1643 = vpop.f32.mrf.mxu0
      %1644 = vmatprep.mubr.f32.mxu0 0.0
      %1645 = vmatmul.mubr.f32.gmra.mxu0 %v1431
      %v1646 = vpop.f32.mrf.mxu0
      %v1647 = vadd.f32 0.0, %v1646
      %v1648 = vpop.f32.mrf.mxu0
      %1649 = vmatprep.mubr.f32.mxu0 0.0
      %1650 = vmatmul.mubr.f32.gmra.mxu0 %v1434
      %v1651 = vpop.f32.mrf.mxu0
      %v1652 = vadd.f32 0.0, %v1651
      %v1653 = vpop.f32.mrf.mxu0
      %1654 = vmatprep.mubr.f32.mxu0 0.0
      %1655 = vmatmul.mubr.f32.gmra.mxu0 %v1437
      %v1656 = vpop.f32.mrf.mxu0
      %v1657 = vadd.f32 0.0, %v1656
      %v1658 = vpop.f32.mrf.mxu0
      %1659 = vmatprep.mubr.f32.mxu0 0.0
      %1660 = vmatmul.mubr.f32.gmra.mxu0 %v1440
      %v1661 = vpop.f32.mrf.mxu0
      %v1662 = vadd.f32 0.0, %v1661
      %v1663 = vpop.f32.mrf.mxu0
      %1664 = vmatprep.mubr.f32.mxu0 0.0
      %1665 = vmatmul.mubr.f32.gmra.mxu0 %v1443
      %v1666 = vpop.f32.mrf.mxu0
      %v1667 = vadd.f32 0.0, %v1666
      %v1668 = vpop.f32.mrf.mxu0
      %1669 = vmatprep.mubr.f32.mxu0 0.0
      %1670 = vmatmul.mubr.f32.gmra.mxu0 %v1446
      %v1671 = vpop.f32.mrf.mxu0
      %v1672 = vadd.f32 0.0, %v1671
      %v1673 = vpop.f32.mrf.mxu0
      %1674 = vmatprep.mubr.f32.mxu0 0.0
      %1675 = vmatmul.mubr.f32.gmra.mxu0 %v1449
      %v1676 = vpop.f32.mrf.mxu0
      %v1677 = vadd.f32 0.0, %v1676
      %v1678 = vpop.f32.mrf.mxu0
      %1679 = vmatprep.mubr.f32.mxu0 0.0
      %1680 = vmatmul.mubr.f32.gmra.mxu0 %v1452
      %v1681 = vpop.f32.mrf.mxu0
      %v1682 = vadd.f32 0.0, %v1681
      %v1683 = vpop.f32.mrf.mxu0
      %1684 = vmatprep.mubr.f32.mxu0 0.0
      %1685 = vmatmul.mubr.f32.gmra.mxu0 %v1455
      %v1686 = vpop.f32.mrf.mxu0
      %v1687 = vadd.f32 0.0, %v1686
      %v1688 = vpop.f32.mrf.mxu0
      %1689 = vmatprep.mubr.f32.mxu0 0.0
      %1690 = vmatmul.mubr.f32.gmra.mxu0 %v1458
      %v1691 = vpop.f32.mrf.mxu0
      %v1692 = vadd.f32 0.0, %v1691
      %v1693 = vpop.f32.mrf.mxu0
      %1694 = vmatprep.mubr.f32.mxu0 0.0
      %1695 = vmatmul.mubr.f32.gmra.mxu0 %v1461
      %v1696 = vpop.f32.mrf.mxu0
      %v1697 = vadd.f32 0.0, %v1696
      %v1698 = vpop.f32.mrf.mxu0
      %1699 = vmatprep.mubr.f32.mxu0 0.0
      %1700 = vmatmul.mubr.f32.gmra.mxu0 %v1464
      %v1701 = vpop.f32.mrf.mxu0
      %v1702 = vadd.f32 0.0, %v1701
      %v1703 = vpop.f32.mrf.mxu0
      %1704 = vmatprep.mubr.f32.mxu0 0.0
      %1705 = vmatmul.mubr.f32.gmra.mxu0 %v1467
      %v1706 = vpop.f32.mrf.mxu0
      %v1707 = vadd.f32 0.0, %v1706
      %v1708 = vpop.f32.mrf.mxu0
      %1709 = vmatprep.mubr.f32.mxu0 0.0
      %1710 = vmatmul.mubr.f32.gmra.mxu0 %v1470
      %v1711 = vpop.f32.mrf.mxu0
      %v1712 = vadd.f32 0.0, %v1711
      %v1713 = vpop.f32.mrf.mxu0
      %1714 = vmatprep.mubr.f32.mxu0 0.0
      %1715 = vmatmul.mubr.f32.gmra.mxu0 %v1473
      %v1716 = vpop.f32.mrf.mxu0
      %v1717 = vadd.f32 0.0, %v1716
      %v1718 = vpop.f32.mrf.mxu0
      %1719 = vdwg.mxu0
      %v1720 = vadd.f32 %v1287, %v1542
      %v1721 = vadd.f32 %v1288, %v1547
      %v1722 = vadd.f32 %v1289, %v1552
      %v1723 = vadd.f32 %v1290, %v1557
      %v1724 = vadd.f32 %v1291, %v1562
      %v1725 = vadd.f32 %v1292, %v1567
      %v1726 = vadd.f32 %v1293, %v1572
      %v1727 = vadd.f32 %v1294, %v1577
      %v1728 = vadd.f32 %v1295, %v1582
      %v1729 = vadd.f32 %v1296, %v1587
      %v1730 = vadd.f32 %v1297, %v1592
      %v1731 = vadd.f32 %v1298, %v1597
      %v1732 = vadd.f32 %v1299, %v1602
      %v1733 = vadd.f32 %v1300, %v1607
      %v1734 = vadd.f32 %v1301, %v1612
      %v1735 = vadd.f32 %v1302, %v1617
      %v1736 = vadd.f32 %v1303, %v1622
      %v1737 = vadd.f32 %v1304, %v1627
      %v1738 = vadd.f32 %v1305, %v1632
      %v1739 = vadd.f32 %v1306, %v1637
      %v1740 = vadd.f32 %v1307, %v1642
      %v1741 = vadd.f32 %v1308, %v1647
      %v1742 = vadd.f32 %v1309, %v1652
      %v1743 = vadd.f32 %v1310, %v1657
      %v1744 = vadd.f32 %v1311, %v1662
      %v1745 = vadd.f32 %v1312, %v1667
      %v1746 = vadd.f32 %v1313, %v1672
      %v1747 = vadd.f32 %v1314, %v1677
      %v1748 = vadd.f32 %v1315, %v1682
      %v1749 = vadd.f32 %v1316, %v1687
      %v1750 = vadd.f32 %v1317, %v1692
      %v1751 = vadd.f32 %v1318, %v1697
      %v1752 = vadd.f32 %v1319, %v1702
      %v1753 = vadd.f32 %v1320, %v1707
      %v1754 = vadd.f32 %v1321, %v1712
      %v1755 = vadd.f32 %v1322, %v1717
      %1756 = vst [vmem:[#allocation4] sm:$0xff] %v1720
      %1757 = vst [vmem:[#allocation4 + $0x8] sm:$0xff] %v1721
      %1758 = vst [vmem:[#allocation4 + $0x10] sm:$0xff] %v1722
      %1759 = vst [vmem:[#allocation4 + $0x18] sm:$0xff] %v1723
      %1760 = vst [vmem:[#allocation4 + $0x20] sm:$0xff] %v1724
      %1761 = vst [vmem:[#allocation4 + $0x28] sm:$0xff] %v1725
      %1762 = vst [vmem:[#allocation4 + $0x30] sm:$0xff] %v1726
      %1763 = vst [vmem:[#allocation4 + $0x38] sm:$0xff] %v1727
      %1764 = vst [vmem:[#allocation4 + $0x40] sm:$0xff] %v1728
      %1765 = vst [vmem:[#allocation4 + $0x48] sm:$0xff] %v1729
      %1766 = vst [vmem:[#allocation4 + $0x50] sm:$0xff] %v1730
      %1767 = vst [vmem:[#allocation4 + $0x58] sm:$0xff] %v1731
      %1768 = vst [vmem:[#allocation4 + $0x60] sm:$0xff] %v1732
      %1769 = vst [vmem:[#allocation4 + $0x68] sm:$0xff] %v1733
      %1770 = vst [vmem:[#allocation4 + $0x70] sm:$0xff] %v1734
      %1771 = vst [vmem:[#allocation4 + $0x78] sm:$0xff] %v1735
      %1772 = vst [vmem:[#allocation4 + $0x80] sm:$0xff] %v1736
      %1773 = vst [vmem:[#allocation4 + $0x88] sm:$0xff] %v1737
      %1774 = vst [vmem:[#allocation4 + $0x90] sm:$0xff] %v1738
      %1775 = vst [vmem:[#allocation4 + $0x98] sm:$0xff] %v1739
      %1776 = vst [vmem:[#allocation4 + $0xa0] sm:$0xff] %v1740
      %1777 = vst [vmem:[#allocation4 + $0xa8] sm:$0xff] %v1741
      %1778 = vst [vmem:[#allocation4 + $0xb0] sm:$0xff] %v1742
      %1779 = vst [vmem:[#allocation4 + $0xb8] sm:$0xff] %v1743
      %1780 = vst [vmem:[#allocation4 + $0xc0] sm:$0xff] %v1744
      %1781 = vst [vmem:[#allocation4 + $0xc8] sm:$0xff] %v1745
      %1782 = vst [vmem:[#allocation4 + $0xd0] sm:$0xff] %v1746
      %1783 = vst [vmem:[#allocation4 + $0xd8] sm:$0xff] %v1747
      %1784 = vst [vmem:[#allocation4 + $0xe0] sm:$0xff] %v1748
      %1785 = vst [vmem:[#allocation4 + $0xe8] sm:$0xff] %v1749
      %1786 = vst [vmem:[#allocation4 + $0xf0] sm:$0xff] %v1750
      %1787 = vst [vmem:[#allocation4 + $0xf8] sm:$0xff] %v1751
      %1788 = vst [vmem:[#allocation4 + $0x100] sm:$0xff] %v1752
      %1789 = vst [vmem:[#allocation4 + $0x108] sm:$0xff] %v1753
      %1790 = vst [vmem:[#allocation4 + $0x110] sm:$0xff] %v1754
      %1791 = vst [vmem:[#allocation4 + $0x118] sm:$0xff] %v1755
      %v1792 = vld [vmem:[#allocation4] sm:$0xff]
      %v1793 = vld [vmem:[#allocation4 + $0x8] sm:$0xff]
      %v1794 = vld [vmem:[#allocation4 + $0x10] sm:$0xff]
      %v1795 = vld [vmem:[#allocation4 + $0x18] sm:$0xff]
      %v1796 = vld [vmem:[#allocation4 + $0x20] sm:$0xff]
      %v1797 = vld [vmem:[#allocation4 + $0x28] sm:$0xff]
      %v1798 = vld [vmem:[#allocation4 + $0x30] sm:$0xff]
      %v1799 = vld [vmem:[#allocation4 + $0x38] sm:$0xff]
      %v1800 = vld [vmem:[#allocation4 + $0x40] sm:$0xff]
      %v1801 = vld [vmem:[#allocation4 + $0x48] sm:$0xff]
      %v1802 = vld [vmem:[#allocation4 + $0x50] sm:$0xff]
      %v1803 = vld [vmem:[#allocation4 + $0x58] sm:$0xff]
      %v1804 = vld [vmem:[#allocation4 + $0x60] sm:$0xff]
      %v1805 = vld [vmem:[#allocation4 + $0x68] sm:$0xff]
      %v1806 = vld [vmem:[#allocation4 + $0x70] sm:$0xff]
      %v1807 = vld [vmem:[#allocation4 + $0x78] sm:$0xff]
      %v1808 = vld [vmem:[#allocation4 + $0x80] sm:$0xff]
      %v1809 = vld [vmem:[#allocation4 + $0x88] sm:$0xff]
      %v1810 = vld [vmem:[#allocation4 + $0x90] sm:$0xff]
      %v1811 = vld [vmem:[#allocation4 + $0x98] sm:$0xff]
      %v1812 = vld [vmem:[#allocation4 + $0xa0] sm:$0xff]
      %v1813 = vld [vmem:[#allocation4 + $0xa8] sm:$0xff]
      %v1814 = vld [vmem:[#allocation4 + $0xb0] sm:$0xff]
      %v1815 = vld [vmem:[#allocation4 + $0xb8] sm:$0xff]
      %v1816 = vld [vmem:[#allocation4 + $0xc0] sm:$0xff]
      %v1817 = vld [vmem:[#allocation4 + $0xc8] sm:$0xff]
      %v1818 = vld [vmem:[#allocation4 + $0xd0] sm:$0xff]
      %v1819 = vld [vmem:[#allocation4 + $0xd8] sm:$0xff]
      %v1820 = vld [vmem:[#allocation4 + $0xe0] sm:$0xff]
      %v1821 = vld [vmem:[#allocation4 + $0xe8] sm:$0xff]
      %v1822 = vld [vmem:[#allocation4 + $0xf0] sm:$0xff]
      %v1823 = vld [vmem:[#allocation4 + $0xf8] sm:$0xff]
      %v1824 = vld [vmem:[#allocation4 + $0x100] sm:$0xff]
      %v1825 = vld [vmem:[#allocation4 + $0x108] sm:$0xff]
      %v1826 = vld [vmem:[#allocation4 + $0x110] sm:$0xff]
      %v1827 = vld [vmem:[#allocation4 + $0x118] sm:$0xff]
      %v1828 = vld [vmem:[#allocation2 + $0x1] sm:$0xff]
      %v1829 = vld [vmem:[#allocation2 + $0x9] sm:$0xff]
      %v1830 = vld [vmem:[#allocation2 + $0x11] sm:$0xff]
      %v1831 = vld [vmem:[#allocation2 + $0x19] sm:$0xff]
      %v1832 = vld [vmem:[#allocation2 + $0x21] sm:$0xff]
      %v1833 = vld [vmem:[#allocation2 + $0x29] sm:$0xff]
      %v1834 = vld [vmem:[#allocation2 + $0x31] sm:$0xff]
      %v1835 = vld [vmem:[#allocation2 + $0x39] sm:$0xff]
      %v1836 = vld [vmem:[#allocation2 + $0x41] sm:$0xff]
      %v1837 = vld [vmem:[#allocation2 + $0x49] sm:$0xff]
      %v1838 = vld [vmem:[#allocation2 + $0x51] sm:$0xff]
      %v1839 = vld [vmem:[#allocation2 + $0x59] sm:$0xff]
      %v1840 = vld [vmem:[#allocation2 + $0x61] sm:$0xff]
      %v1841 = vld [vmem:[#allocation2 + $0x69] sm:$0xff]
      %v1842 = vld [vmem:[#allocation2 + $0x71] sm:$0xff]
      %v1843 = vld [vmem:[#allocation2 + $0x79] sm:$0xff]
      %v1844 = vld [vmem:[#allocation2 + $0x81] sm:$0xff]
      %v1845 = vld [vmem:[#allocation2 + $0x89] sm:$0xff]
      %v1846 = vld [vmem:[#allocation2 + $0x91] sm:$0xff]
      %v1847 = vld [vmem:[#allocation2 + $0x99] sm:$0xff]
      %v1848 = vld [vmem:[#allocation2 + $0xa1] sm:$0xff]
      %v1849 = vld [vmem:[#allocation2 + $0xa9] sm:$0xff]
      %v1850 = vld [vmem:[#allocation2 + $0xb1] sm:$0xff]
      %v1851 = vld [vmem:[#allocation2 + $0xb9] sm:$0xff]
      %v1852 = vld [vmem:[#allocation2 + $0xc1] sm:$0xff]
      %v1853 = vld [vmem:[#allocation2 + $0xc9] sm:$0xff]
      %v1854 = vld [vmem:[#allocation2 + $0xd1] sm:$0xff]
      %v1855 = vld [vmem:[#allocation2 + $0xd9] sm:$0xff]
      %v1856 = vld [vmem:[#allocation2 + $0xe1] sm:$0xff]
      %v1857 = vld [vmem:[#allocation2 + $0xe9] sm:$0xff]
      %v1858 = vld [vmem:[#allocation2 + $0xf1] sm:$0xff]
      %v1859 = vld [vmem:[#allocation2 + $0xf9] sm:$0xff]
      %v1860 = vld [vmem:[#allocation2 + $0x101] sm:$0xff]
      %v1861 = vld [vmem:[#allocation2 + $0x109] sm:$0xff]
      %v1862 = vld [vmem:[#allocation2 + $0x111] sm:$0xff]
      %v1863 = vld [vmem:[#allocation2 + $0x119] sm:$0xff]
      %s1864 = scalar_lea.vmem %s7, 64
      %v1865 = vld [vmem:[%s1864] sm:$0xff]
      %v1866 = vld [vmem:[%s1864 + $0x8] sm:$0xff]
      %v1867 = vld [vmem:[%s1864 + $0x10] sm:$0xff]
      %v1868 = vld [vmem:[%s1864 + $0x18] sm:$0xff]
      %v1869 = vld [vmem:[%s1864 + $0x20] sm:$0xff]
      %v1870 = vld [vmem:[%s1864 + $0x28] sm:$0xff]
      %v1871 = vld [vmem:[%s1864 + $0x30] sm:$0xff]
      %v1872 = vld [vmem:[%s1864 + $0x38] sm:$0xff]
      %v1874 = vsel %vm896, %v1828, 0
      %v1877 = vsel %vm896, %v1829, 0
      %v1880 = vsel %vm896, %v1830, 0
      %v1883 = vsel %vm896, %v1831, 0
      %v1886 = vsel %vm896, %v1832, 0
      %v1889 = vsel %vm896, %v1833, 0
      %v1892 = vsel %vm896, %v1834, 0
      %v1895 = vsel %vm896, %v1835, 0
      %v1898 = vsel %vm896, %v1836, 0
      %v1901 = vsel %vm896, %v1837, 0
      %v1904 = vsel %vm896, %v1838, 0
      %v1907 = vsel %vm896, %v1839, 0
      %v1910 = vsel %vm896, %v1840, 0
      %v1913 = vsel %vm896, %v1841, 0
      %v1916 = vsel %vm896, %v1842, 0
      %v1919 = vsel %vm896, %v1843, 0
      %v1922 = vsel %vm896, %v1844, 0
      %v1925 = vsel %vm896, %v1845, 0
      %v1928 = vsel %vm896, %v1846, 0
      %v1931 = vsel %vm896, %v1847, 0
      %v1934 = vsel %vm896, %v1848, 0
      %v1937 = vsel %vm896, %v1849, 0
      %v1940 = vsel %vm896, %v1850, 0
      %v1943 = vsel %vm896, %v1851, 0
      %v1946 = vsel %vm896, %v1852, 0
      %v1949 = vsel %vm896, %v1853, 0
      %v1952 = vsel %vm896, %v1854, 0
      %v1955 = vsel %vm896, %v1855, 0
      %v1958 = vsel %vm896, %v1856, 0
      %v1961 = vsel %vm896, %v1857, 0
      %v1964 = vsel %vm896, %v1858, 0
      %v1967 = vsel %vm896, %v1859, 0
      %v1970 = vsel %vm896, %v1860, 0
      %v1973 = vsel %vm896, %v1861, 0
      %v1976 = vsel %vm896, %v1862, 0
      %v1979 = vsel %vm896, %v1863, 0
      %1981 = vmatprep.subr.mxu0 0.0
      %1982 = vmatpush1.msra.mxu0 0.0
      %1983 = vmatprep.subr.mxu0 0.0
      %1984 = vmatpush1.msra.mxu0 0.0
      %1985 = vmatprep.subr.mxu0 0.0
      %1986 = vmatpush1.msra.mxu0 0.0
      %1987 = vmatprep.subr.mxu0 0.0
      %1988 = vmatpush1.msra.mxu0 0.0
      %1989 = vmatprep.subr.mxu0 0.0
      %1990 = vmatpush1.msra.mxu0 0.0
      %1991 = vmatprep.subr.mxu0 0.0
      %1992 = vmatpush1.msra.mxu0 0.0
      %1993 = vmatprep.subr.mxu0 0.0
      %1994 = vmatpush1.msra.mxu0 0.0
      %1995 = vmatprep.subr.mxu0 0.0
      %1996 = vmatpush1.msra.mxu0 0.0
      %1997 = vmatprep.subr.mxu0 0.0
      %1998 = vmatpush1.msra.mxu0 %v1872
      %1999 = vmatprep.subr.mxu0 0.0
      %2000 = vmatpush1.msra.mxu0 %v1871
      %2001 = vmatprep.subr.mxu0 0.0
      %2002 = vmatpush1.msra.mxu0 %v1870
      %2003 = vmatprep.subr.mxu0 0.0
      %2004 = vmatpush1.msra.mxu0 %v1869
      %2005 = vmatprep.subr.mxu0 0.0
      %2006 = vmatpush1.msra.mxu0 %v1868
      %2007 = vmatprep.subr.mxu0 0.0
      %2008 = vmatpush1.msra.mxu0 %v1867
      %2009 = vmatprep.subr.mxu0 0.0
      %2010 = vmatpush1.msra.mxu0 %v1866
      %2011 = vmatprep.subr.mxu0 0.0
      %2012 = vmatpush1.msra.mxu0 %v1865
      %2013 = vmatprep.subr.mxu0 0.0
      %2014 = vmatpush2.msra.mxu0 0.0
      %2015 = vmatprep.subr.mxu0 0.0
      %2016 = vmatpush2.msra.mxu0 0.0
      %2017 = vmatprep.subr.mxu0 0.0
      %2018 = vmatpush2.msra.mxu0 0.0
      %2019 = vmatprep.subr.mxu0 0.0
      %2020 = vmatpush2.msra.mxu0 0.0
      %2021 = vmatprep.subr.mxu0 0.0
      %2022 = vmatpush2.msra.mxu0 0.0
      %2023 = vmatprep.subr.mxu0 0.0
      %2024 = vmatpush2.msra.mxu0 0.0
      %2025 = vmatprep.subr.mxu0 0.0
      %2026 = vmatpush2.msra.mxu0 0.0
      %2027 = vmatprep.subr.mxu0 0.0
      %2028 = vmatpush2.msra.mxu0 0.0
      %2029 = vmatprep.subr.mxu0 0.0
      %2030 = vmatpush2.msra.mxu0 0.0
      %2031 = vmatprep.subr.mxu0 0.0
      %2032 = vmatpush2.msra.mxu0 0.0
      %2033 = vmatprep.subr.mxu0 0.0
      %2034 = vmatpush2.msra.mxu0 0.0
      %2035 = vmatprep.subr.mxu0 0.0
      %2036 = vmatpush2.msra.mxu0 0.0
      %2037 = vmatprep.subr.mxu0 0.0
      %2038 = vmatpush2.msra.mxu0 0.0
      %2039 = vmatprep.subr.mxu0 0.0
      %2040 = vmatpush2.msra.mxu0 0.0
      %2041 = vmatprep.subr.mxu0 0.0
      %2042 = vmatpush2.msra.mxu0 0.0
      %2043 = vmatprep.subr.mxu0 0.0
      %2044 = vmatpush2.msra.mxu0 0.0
      %2045 = vmatprep.mubr.f32.mxu0 0.0
      %2046 = vmatmul.mubr.f32.gmra.mxu0 %v1874
      %v2047 = vpop.f32.mrf.mxu0
      %v2048 = vadd.f32 0.0, %v2047
      %v2049 = vpop.f32.mrf.mxu0
      %2050 = vmatprep.mubr.f32.mxu0 0.0
      %2051 = vmatmul.mubr.f32.gmra.mxu0 %v1877
      %v2052 = vpop.f32.mrf.mxu0
      %v2053 = vadd.f32 0.0, %v2052
      %v2054 = vpop.f32.mrf.mxu0
      %2055 = vmatprep.mubr.f32.mxu0 0.0
      %2056 = vmatmul.mubr.f32.gmra.mxu0 %v1880
      %v2057 = vpop.f32.mrf.mxu0
      %v2058 = vadd.f32 0.0, %v2057
      %v2059 = vpop.f32.mrf.mxu0
      %2060 = vmatprep.mubr.f32.mxu0 0.0
      %2061 = vmatmul.mubr.f32.gmra.mxu0 %v1883
      %v2062 = vpop.f32.mrf.mxu0
      %v2063 = vadd.f32 0.0, %v2062
      %v2064 = vpop.f32.mrf.mxu0
      %2065 = vmatprep.mubr.f32.mxu0 0.0
      %2066 = vmatmul.mubr.f32.gmra.mxu0 %v1886
      %v2067 = vpop.f32.mrf.mxu0
      %v2068 = vadd.f32 0.0, %v2067
      %v2069 = vpop.f32.mrf.mxu0
      %2070 = vmatprep.mubr.f32.mxu0 0.0
      %2071 = vmatmul.mubr.f32.gmra.mxu0 %v1889
      %v2072 = vpop.f32.mrf.mxu0
      %v2073 = vadd.f32 0.0, %v2072
      %v2074 = vpop.f32.mrf.mxu0
      %2075 = vmatprep.mubr.f32.mxu0 0.0
      %2076 = vmatmul.mubr.f32.gmra.mxu0 %v1892
      %v2077 = vpop.f32.mrf.mxu0
      %v2078 = vadd.f32 0.0, %v2077
      %v2079 = vpop.f32.mrf.mxu0
      %2080 = vmatprep.mubr.f32.mxu0 0.0
      %2081 = vmatmul.mubr.f32.gmra.mxu0 %v1895
      %v2082 = vpop.f32.mrf.mxu0
      %v2083 = vadd.f32 0.0, %v2082
      %v2084 = vpop.f32.mrf.mxu0
      %2085 = vmatprep.mubr.f32.mxu0 0.0
      %2086 = vmatmul.mubr.f32.gmra.mxu0 %v1898
      %v2087 = vpop.f32.mrf.mxu0
      %v2088 = vadd.f32 0.0, %v2087
      %v2089 = vpop.f32.mrf.mxu0
      %2090 = vmatprep.mubr.f32.mxu0 0.0
      %2091 = vmatmul.mubr.f32.gmra.mxu0 %v1901
      %v2092 = vpop.f32.mrf.mxu0
      %v2093 = vadd.f32 0.0, %v2092
      %v2094 = vpop.f32.mrf.mxu0
      %2095 = vmatprep.mubr.f32.mxu0 0.0
      %2096 = vmatmul.mubr.f32.gmra.mxu0 %v1904
      %v2097 = vpop.f32.mrf.mxu0
      %v2098 = vadd.f32 0.0, %v2097
      %v2099 = vpop.f32.mrf.mxu0
      %2100 = vmatprep.mubr.f32.mxu0 0.0
      %2101 = vmatmul.mubr.f32.gmra.mxu0 %v1907
      %v2102 = vpop.f32.mrf.mxu0
      %v2103 = vadd.f32 0.0, %v2102
      %v2104 = vpop.f32.mrf.mxu0
      %2105 = vmatprep.mubr.f32.mxu0 0.0
      %2106 = vmatmul.mubr.f32.gmra.mxu0 %v1910
      %v2107 = vpop.f32.mrf.mxu0
      %v2108 = vadd.f32 0.0, %v2107
      %v2109 = vpop.f32.mrf.mxu0
      %2110 = vmatprep.mubr.f32.mxu0 0.0
      %2111 = vmatmul.mubr.f32.gmra.mxu0 %v1913
      %v2112 = vpop.f32.mrf.mxu0
      %v2113 = vadd.f32 0.0, %v2112
      %v2114 = vpop.f32.mrf.mxu0
      %2115 = vmatprep.mubr.f32.mxu0 0.0
      %2116 = vmatmul.mubr.f32.gmra.mxu0 %v1916
      %v2117 = vpop.f32.mrf.mxu0
      %v2118 = vadd.f32 0.0, %v2117
      %v2119 = vpop.f32.mrf.mxu0
      %2120 = vmatprep.mubr.f32.mxu0 0.0
      %2121 = vmatmul.mubr.f32.gmra.mxu0 %v1919
      %v2122 = vpop.f32.mrf.mxu0
      %v2123 = vadd.f32 0.0, %v2122
      %v2124 = vpop.f32.mrf.mxu0
      %2125 = vmatprep.mubr.f32.mxu0 0.0
      %2126 = vmatmul.mubr.f32.gmra.mxu0 %v1922
      %v2127 = vpop.f32.mrf.mxu0
      %v2128 = vadd.f32 0.0, %v2127
      %v2129 = vpop.f32.mrf.mxu0
      %2130 = vmatprep.mubr.f32.mxu0 0.0
      %2131 = vmatmul.mubr.f32.gmra.mxu0 %v1925
      %v2132 = vpop.f32.mrf.mxu0
      %v2133 = vadd.f32 0.0, %v2132
      %v2134 = vpop.f32.mrf.mxu0
      %2135 = vmatprep.mubr.f32.mxu0 0.0
      %2136 = vmatmul.mubr.f32.gmra.mxu0 %v1928
      %v2137 = vpop.f32.mrf.mxu0
      %v2138 = vadd.f32 0.0, %v2137
      %v2139 = vpop.f32.mrf.mxu0
      %2140 = vmatprep.mubr.f32.mxu0 0.0
      %2141 = vmatmul.mubr.f32.gmra.mxu0 %v1931
      %v2142 = vpop.f32.mrf.mxu0
      %v2143 = vadd.f32 0.0, %v2142
      %v2144 = vpop.f32.mrf.mxu0
      %2145 = vmatprep.mubr.f32.mxu0 0.0
      %2146 = vmatmul.mubr.f32.gmra.mxu0 %v1934
      %v2147 = vpop.f32.mrf.mxu0
      %v2148 = vadd.f32 0.0, %v2147
      %v2149 = vpop.f32.mrf.mxu0
      %2150 = vmatprep.mubr.f32.mxu0 0.0
      %2151 = vmatmul.mubr.f32.gmra.mxu0 %v1937
      %v2152 = vpop.f32.mrf.mxu0
      %v2153 = vadd.f32 0.0, %v2152
      %v2154 = vpop.f32.mrf.mxu0
      %2155 = vmatprep.mubr.f32.mxu0 0.0
      %2156 = vmatmul.mubr.f32.gmra.mxu0 %v1940
      %v2157 = vpop.f32.mrf.mxu0
      %v2158 = vadd.f32 0.0, %v2157
      %v2159 = vpop.f32.mrf.mxu0
      %2160 = vmatprep.mubr.f32.mxu0 0.0
      %2161 = vmatmul.mubr.f32.gmra.mxu0 %v1943
      %v2162 = vpop.f32.mrf.mxu0
      %v2163 = vadd.f32 0.0, %v2162
      %v2164 = vpop.f32.mrf.mxu0
      %2165 = vmatprep.mubr.f32.mxu0 0.0
      %2166 = vmatmul.mubr.f32.gmra.mxu0 %v1946
      %v2167 = vpop.f32.mrf.mxu0
      %v2168 = vadd.f32 0.0, %v2167
      %v2169 = vpop.f32.mrf.mxu0
      %2170 = vmatprep.mubr.f32.mxu0 0.0
      %2171 = vmatmul.mubr.f32.gmra.mxu0 %v1949
      %v2172 = vpop.f32.mrf.mxu0
      %v2173 = vadd.f32 0.0, %v2172
      %v2174 = vpop.f32.mrf.mxu0
      %2175 = vmatprep.mubr.f32.mxu0 0.0
      %2176 = vmatmul.mubr.f32.gmra.mxu0 %v1952
      %v2177 = vpop.f32.mrf.mxu0
      %v2178 = vadd.f32 0.0, %v2177
      %v2179 = vpop.f32.mrf.mxu0
      %2180 = vmatprep.mubr.f32.mxu0 0.0
      %2181 = vmatmul.mubr.f32.gmra.mxu0 %v1955
      %v2182 = vpop.f32.mrf.mxu0
      %v2183 = vadd.f32 0.0, %v2182
      %v2184 = vpop.f32.mrf.mxu0
      %2185 = vmatprep.mubr.f32.mxu0 0.0
      %2186 = vmatmul.mubr.f32.gmra.mxu0 %v1958
      %v2187 = vpop.f32.mrf.mxu0
      %v2188 = vadd.f32 0.0, %v2187
      %v2189 = vpop.f32.mrf.mxu0
      %2190 = vmatprep.mubr.f32.mxu0 0.0
      %2191 = vmatmul.mubr.f32.gmra.mxu0 %v1961
      %v2192 = vpop.f32.mrf.mxu0
      %v2193 = vadd.f32 0.0, %v2192
      %v2194 = vpop.f32.mrf.mxu0
      %2195 = vmatprep.mubr.f32.mxu0 0.0
      %2196 = vmatmul.mubr.f32.gmra.mxu0 %v1964
      %v2197 = vpop.f32.mrf.mxu0
      %v2198 = vadd.f32 0.0, %v2197
      %v2199 = vpop.f32.mrf.mxu0
      %2200 = vmatprep.mubr.f32.mxu0 0.0
      %2201 = vmatmul.mubr.f32.gmra.mxu0 %v1967
      %v2202 = vpop.f32.mrf.mxu0
      %v2203 = vadd.f32 0.0, %v2202
      %v2204 = vpop.f32.mrf.mxu0
      %2205 = vmatprep.mubr.f32.mxu0 0.0
      %2206 = vmatmul.mubr.f32.gmra.mxu0 %v1970
      %v2207 = vpop.f32.mrf.mxu0
      %v2208 = vadd.f32 0.0, %v2207
      %v2209 = vpop.f32.mrf.mxu0
      %2210 = vmatprep.mubr.f32.mxu0 0.0
      %2211 = vmatmul.mubr.f32.gmra.mxu0 %v1973
      %v2212 = vpop.f32.mrf.mxu0
      %v2213 = vadd.f32 0.0, %v2212
      %v2214 = vpop.f32.mrf.mxu0
      %2215 = vmatprep.mubr.f32.mxu0 0.0
      %2216 = vmatmul.mubr.f32.gmra.mxu0 %v1976
      %v2217 = vpop.f32.mrf.mxu0
      %v2218 = vadd.f32 0.0, %v2217
      %v2219 = vpop.f32.mrf.mxu0
      %2220 = vmatprep.mubr.f32.mxu0 0.0
      %2221 = vmatmul.mubr.f32.gmra.mxu0 %v1979
      %v2222 = vpop.f32.mrf.mxu0
      %v2223 = vadd.f32 0.0, %v2222
      %v2224 = vpop.f32.mrf.mxu0
      %2225 = vdwg.mxu0
      %v2226 = vadd.f32 %v1792, %v2048
      %v2227 = vadd.f32 %v1793, %v2053
      %v2228 = vadd.f32 %v1794, %v2058
      %v2229 = vadd.f32 %v1795, %v2063
      %v2230 = vadd.f32 %v1796, %v2068
      %v2231 = vadd.f32 %v1797, %v2073
      %v2232 = vadd.f32 %v1798, %v2078
      %v2233 = vadd.f32 %v1799, %v2083
      %v2234 = vadd.f32 %v1800, %v2088
      %v2235 = vadd.f32 %v1801, %v2093
      %v2236 = vadd.f32 %v1802, %v2098
      %v2237 = vadd.f32 %v1803, %v2103
      %v2238 = vadd.f32 %v1804, %v2108
      %v2239 = vadd.f32 %v1805, %v2113
      %v2240 = vadd.f32 %v1806, %v2118
      %v2241 = vadd.f32 %v1807, %v2123
      %v2242 = vadd.f32 %v1808, %v2128
      %v2243 = vadd.f32 %v1809, %v2133
      %v2244 = vadd.f32 %v1810, %v2138
      %v2245 = vadd.f32 %v1811, %v2143
      %v2246 = vadd.f32 %v1812, %v2148
      %v2247 = vadd.f32 %v1813, %v2153
      %v2248 = vadd.f32 %v1814, %v2158
      %v2249 = vadd.f32 %v1815, %v2163
      %v2250 = vadd.f32 %v1816, %v2168
      %v2251 = vadd.f32 %v1817, %v2173
      %v2252 = vadd.f32 %v1818, %v2178
      %v2253 = vadd.f32 %v1819, %v2183
      %v2254 = vadd.f32 %v1820, %v2188
      %v2255 = vadd.f32 %v1821, %v2193
      %v2256 = vadd.f32 %v1822, %v2198
      %v2257 = vadd.f32 %v1823, %v2203
      %v2258 = vadd.f32 %v1824, %v2208
      %v2259 = vadd.f32 %v1825, %v2213
      %v2260 = vadd.f32 %v1826, %v2218
      %v2261 = vadd.f32 %v1827, %v2223
      %2262 = vst [vmem:[#allocation4] sm:$0xff] %v2226
      %2263 = vst [vmem:[#allocation4 + $0x8] sm:$0xff] %v2227
      %2264 = vst [vmem:[#allocation4 + $0x10] sm:$0xff] %v2228
      %2265 = vst [vmem:[#allocation4 + $0x18] sm:$0xff] %v2229
      %2266 = vst [vmem:[#allocation4 + $0x20] sm:$0xff] %v2230
      %2267 = vst [vmem:[#allocation4 + $0x28] sm:$0xff] %v2231
      %2268 = vst [vmem:[#allocation4 + $0x30] sm:$0xff] %v2232
      %2269 = vst [vmem:[#allocation4 + $0x38] sm:$0xff] %v2233
      %2270 = vst [vmem:[#allocation4 + $0x40] sm:$0xff] %v2234
      %2271 = vst [vmem:[#allocation4 + $0x48] sm:$0xff] %v2235
      %2272 = vst [vmem:[#allocation4 + $0x50] sm:$0xff] %v2236
      %2273 = vst [vmem:[#allocation4 + $0x58] sm:$0xff] %v2237
      %2274 = vst [vmem:[#allocation4 + $0x60] sm:$0xff] %v2238
      %2275 = vst [vmem:[#allocation4 + $0x68] sm:$0xff] %v2239
      %2276 = vst [vmem:[#allocation4 + $0x70] sm:$0xff] %v2240
      %2277 = vst [vmem:[#allocation4 + $0x78] sm:$0xff] %v2241
      %2278 = vst [vmem:[#allocation4 + $0x80] sm:$0xff] %v2242
      %2279 = vst [vmem:[#allocation4 + $0x88] sm:$0xff] %v2243
      %2280 = vst [vmem:[#allocation4 + $0x90] sm:$0xff] %v2244
      %2281 = vst [vmem:[#allocation4 + $0x98] sm:$0xff] %v2245
      %2282 = vst [vmem:[#allocation4 + $0xa0] sm:$0xff] %v2246
      %2283 = vst [vmem:[#allocation4 + $0xa8] sm:$0xff] %v2247
      %2284 = vst [vmem:[#allocation4 + $0xb0] sm:$0xff] %v2248
      %2285 = vst [vmem:[#allocation4 + $0xb8] sm:$0xff] %v2249
      %2286 = vst [vmem:[#allocation4 + $0xc0] sm:$0xff] %v2250
      %2287 = vst [vmem:[#allocation4 + $0xc8] sm:$0xff] %v2251
      %2288 = vst [vmem:[#allocation4 + $0xd0] sm:$0xff] %v2252
      %2289 = vst [vmem:[#allocation4 + $0xd8] sm:$0xff] %v2253
      %2290 = vst [vmem:[#allocation4 + $0xe0] sm:$0xff] %v2254
      %2291 = vst [vmem:[#allocation4 + $0xe8] sm:$0xff] %v2255
      %2292 = vst [vmem:[#allocation4 + $0xf0] sm:$0xff] %v2256
      %2293 = vst [vmem:[#allocation4 + $0xf8] sm:$0xff] %v2257
      %2294 = vst [vmem:[#allocation4 + $0x100] sm:$0xff] %v2258
      %2295 = vst [vmem:[#allocation4 + $0x108] sm:$0xff] %v2259
      %2296 = vst [vmem:[#allocation4 + $0x110] sm:$0xff] %v2260
      %2297 = vst [vmem:[#allocation4 + $0x118] sm:$0xff] %v2261
      %v2298 = vld [vmem:[#allocation4] sm:$0xff]
      %v2299 = vld [vmem:[#allocation4 + $0x8] sm:$0xff]
      %v2300 = vld [vmem:[#allocation4 + $0x10] sm:$0xff]
      %v2301 = vld [vmem:[#allocation4 + $0x18] sm:$0xff]
      %v2302 = vld [vmem:[#allocation4 + $0x20] sm:$0xff]
      %v2303 = vld [vmem:[#allocation4 + $0x28] sm:$0xff]
      %v2304 = vld [vmem:[#allocation4 + $0x30] sm:$0xff]
      %v2305 = vld [vmem:[#allocation4 + $0x38] sm:$0xff]
      %v2306 = vld [vmem:[#allocation4 + $0x40] sm:$0xff]
      %v2307 = vld [vmem:[#allocation4 + $0x48] sm:$0xff]
      %v2308 = vld [vmem:[#allocation4 + $0x50] sm:$0xff]
      %v2309 = vld [vmem:[#allocation4 + $0x58] sm:$0xff]
      %v2310 = vld [vmem:[#allocation4 + $0x60] sm:$0xff]
      %v2311 = vld [vmem:[#allocation4 + $0x68] sm:$0xff]
      %v2312 = vld [vmem:[#allocation4 + $0x70] sm:$0xff]
      %v2313 = vld [vmem:[#allocation4 + $0x78] sm:$0xff]
      %v2314 = vld [vmem:[#allocation4 + $0x80] sm:$0xff]
      %v2315 = vld [vmem:[#allocation4 + $0x88] sm:$0xff]
      %v2316 = vld [vmem:[#allocation4 + $0x90] sm:$0xff]
      %v2317 = vld [vmem:[#allocation4 + $0x98] sm:$0xff]
      %v2318 = vld [vmem:[#allocation4 + $0xa0] sm:$0xff]
      %v2319 = vld [vmem:[#allocation4 + $0xa8] sm:$0xff]
      %v2320 = vld [vmem:[#allocation4 + $0xb0] sm:$0xff]
      %v2321 = vld [vmem:[#allocation4 + $0xb8] sm:$0xff]
      %v2322 = vld [vmem:[#allocation4 + $0xc0] sm:$0xff]
      %v2323 = vld [vmem:[#allocation4 + $0xc8] sm:$0xff]
      %v2324 = vld [vmem:[#allocation4 + $0xd0] sm:$0xff]
      %v2325 = vld [vmem:[#allocation4 + $0xd8] sm:$0xff]
      %v2326 = vld [vmem:[#allocation4 + $0xe0] sm:$0xff]
      %v2327 = vld [vmem:[#allocation4 + $0xe8] sm:$0xff]
      %v2328 = vld [vmem:[#allocation4 + $0xf0] sm:$0xff]
      %v2329 = vld [vmem:[#allocation4 + $0xf8] sm:$0xff]
      %v2330 = vld [vmem:[#allocation4 + $0x100] sm:$0xff]
      %v2331 = vld [vmem:[#allocation4 + $0x108] sm:$0xff]
      %v2332 = vld [vmem:[#allocation4 + $0x110] sm:$0xff]
      %v2333 = vld [vmem:[#allocation4 + $0x118] sm:$0xff]
      %v2334 = vld [vmem:[#allocation2 + $0x2] sm:$0xff]
      %v2335 = vld [vmem:[#allocation2 + $0xa] sm:$0xff]
      %v2336 = vld [vmem:[#allocation2 + $0x12] sm:$0xff]
      %v2337 = vld [vmem:[#allocation2 + $0x1a] sm:$0xff]
      %v2338 = vld [vmem:[#allocation2 + $0x22] sm:$0xff]
      %v2339 = vld [vmem:[#allocation2 + $0x2a] sm:$0xff]
      %v2340 = vld [vmem:[#allocation2 + $0x32] sm:$0xff]
      %v2341 = vld [vmem:[#allocation2 + $0x3a] sm:$0xff]
      %v2342 = vld [vmem:[#allocation2 + $0x42] sm:$0xff]
      %v2343 = vld [vmem:[#allocation2 + $0x4a] sm:$0xff]
      %v2344 = vld [vmem:[#allocation2 + $0x52] sm:$0xff]
      %v2345 = vld [vmem:[#allocation2 + $0x5a] sm:$0xff]
      %v2346 = vld [vmem:[#allocation2 + $0x62] sm:$0xff]
      %v2347 = vld [vmem:[#allocation2 + $0x6a] sm:$0xff]
      %v2348 = vld [vmem:[#allocation2 + $0x72] sm:$0xff]
      %v2349 = vld [vmem:[#allocation2 + $0x7a] sm:$0xff]
      %v2350 = vld [vmem:[#allocation2 + $0x82] sm:$0xff]
      %v2351 = vld [vmem:[#allocation2 + $0x8a] sm:$0xff]
      %v2352 = vld [vmem:[#allocation2 + $0x92] sm:$0xff]
      %v2353 = vld [vmem:[#allocation2 + $0x9a] sm:$0xff]
      %v2354 = vld [vmem:[#allocation2 + $0xa2] sm:$0xff]
      %v2355 = vld [vmem:[#allocation2 + $0xaa] sm:$0xff]
      %v2356 = vld [vmem:[#allocation2 + $0xb2] sm:$0xff]
      %v2357 = vld [vmem:[#allocation2 + $0xba] sm:$0xff]
      %v2358 = vld [vmem:[#allocation2 + $0xc2] sm:$0xff]
      %v2359 = vld [vmem:[#allocation2 + $0xca] sm:$0xff]
      %v2360 = vld [vmem:[#allocation2 + $0xd2] sm:$0xff]
      %v2361 = vld [vmem:[#allocation2 + $0xda] sm:$0xff]
      %v2362 = vld [vmem:[#allocation2 + $0xe2] sm:$0xff]
      %v2363 = vld [vmem:[#allocation2 + $0xea] sm:$0xff]
      %v2364 = vld [vmem:[#allocation2 + $0xf2] sm:$0xff]
      %v2365 = vld [vmem:[#allocation2 + $0xfa] sm:$0xff]
      %v2366 = vld [vmem:[#allocation2 + $0x102] sm:$0xff]
      %v2367 = vld [vmem:[#allocation2 + $0x10a] sm:$0xff]
      %v2368 = vld [vmem:[#allocation2 + $0x112] sm:$0xff]
      %v2369 = vld [vmem:[#allocation2 + $0x11a] sm:$0xff]
      %s2370 = scalar_lea.vmem %s7, 128
      %v2371 = vld [vmem:[%s2370] sm:$0xff]
      %v2372 = vld [vmem:[%s2370 + $0x8] sm:$0xff]
      %v2373 = vld [vmem:[%s2370 + $0x10] sm:$0xff]
      %v2374 = vld [vmem:[%s2370 + $0x18] sm:$0xff]
      %v2375 = vld [vmem:[%s2370 + $0x20] sm:$0xff]
      %v2376 = vld [vmem:[%s2370 + $0x28] sm:$0xff]
      %v2377 = vld [vmem:[%s2370 + $0x30] sm:$0xff]
      %v2378 = vld [vmem:[%s2370 + $0x38] sm:$0xff]
      %v2380 = vsel %vm896, %v2334, 0
      %v2383 = vsel %vm896, %v2335, 0
      %v2386 = vsel %vm896, %v2336, 0
      %v2389 = vsel %vm896, %v2337, 0
      %v2392 = vsel %vm896, %v2338, 0
      %v2395 = vsel %vm896, %v2339, 0
      %v2398 = vsel %vm896, %v2340, 0
      %v2401 = vsel %vm896, %v2341, 0
      %v2404 = vsel %vm896, %v2342, 0
      %v2407 = vsel %vm896, %v2343, 0
      %v2410 = vsel %vm896, %v2344, 0
      %v2413 = vsel %vm896, %v2345, 0
      %v2416 = vsel %vm896, %v2346, 0
      %v2419 = vsel %vm896, %v2347, 0
      %v2422 = vsel %vm896, %v2348, 0
      %v2425 = vsel %vm896, %v2349, 0
      %v2428 = vsel %vm896, %v2350, 0
      %v2431 = vsel %vm896, %v2351, 0
      %v2434 = vsel %vm896, %v2352, 0
      %v2437 = vsel %vm896, %v2353, 0
      %v2440 = vsel %vm896, %v2354, 0
      %v2443 = vsel %vm896, %v2355, 0
      %v2446 = vsel %vm896, %v2356, 0
      %v2449 = vsel %vm896, %v2357, 0
      %v2452 = vsel %vm896, %v2358, 0
      %v2455 = vsel %vm896, %v2359, 0
      %v2458 = vsel %vm896, %v2360, 0
      %v2461 = vsel %vm896, %v2361, 0
      %v2464 = vsel %vm896, %v2362, 0
      %v2467 = vsel %vm896, %v2363, 0
      %v2470 = vsel %vm896, %v2364, 0
      %v2473 = vsel %vm896, %v2365, 0
      %v2476 = vsel %vm896, %v2366, 0
      %v2479 = vsel %vm896, %v2367, 0
      %v2482 = vsel %vm896, %v2368, 0
      %v2485 = vsel %vm896, %v2369, 0
      %2487 = vmatprep.subr.mxu0 0.0
      %2488 = vmatpush1.msra.mxu0 0.0
      %2489 = vmatprep.subr.mxu0 0.0
      %2490 = vmatpush1.msra.mxu0 0.0
      %2491 = vmatprep.subr.mxu0 0.0
      %2492 = vmatpush1.msra.mxu0 0.0
      %2493 = vmatprep.subr.mxu0 0.0
      %2494 = vmatpush1.msra.mxu0 0.0
      %2495 = vmatprep.subr.mxu0 0.0
      %2496 = vmatpush1.msra.mxu0 0.0
      %2497 = vmatprep.subr.mxu0 0.0
      %2498 = vmatpush1.msra.mxu0 0.0
      %2499 = vmatprep.subr.mxu0 0.0
      %2500 = vmatpush1.msra.mxu0 0.0
      %2501 = vmatprep.subr.mxu0 0.0
      %2502 = vmatpush1.msra.mxu0 0.0
      %2503 = vmatprep.subr.mxu0 0.0
      %2504 = vmatpush1.msra.mxu0 %v2378
      %2505 = vmatprep.subr.mxu0 0.0
      %2506 = vmatpush1.msra.mxu0 %v2377
      %2507 = vmatprep.subr.mxu0 0.0
      %2508 = vmatpush1.msra.mxu0 %v2376
      %2509 = vmatprep.subr.mxu0 0.0
      %2510 = vmatpush1.msra.mxu0 %v2375
      %2511 = vmatprep.subr.mxu0 0.0
      %2512 = vmatpush1.msra.mxu0 %v2374
      %2513 = vmatprep.subr.mxu0 0.0
      %2514 = vmatpush1.msra.mxu0 %v2373
      %2515 = vmatprep.subr.mxu0 0.0
      %2516 = vmatpush1.msra.mxu0 %v2372
      %2517 = vmatprep.subr.mxu0 0.0
      %2518 = vmatpush1.msra.mxu0 %v2371
      %2519 = vmatprep.subr.mxu0 0.0
      %2520 = vmatpush2.msra.mxu0 0.0
      %2521 = vmatprep.subr.mxu0 0.0
      %2522 = vmatpush2.msra.mxu0 0.0
      %2523 = vmatprep.subr.mxu0 0.0
      %2524 = vmatpush2.msra.mxu0 0.0
      %2525 = vmatprep.subr.mxu0 0.0
      %2526 = vmatpush2.msra.mxu0 0.0
      %2527 = vmatprep.subr.mxu0 0.0
      %2528 = vmatpush2.msra.mxu0 0.0
      %2529 = vmatprep.subr.mxu0 0.0
      %2530 = vmatpush2.msra.mxu0 0.0
      %2531 = vmatprep.subr.mxu0 0.0
      %2532 = vmatpush2.msra.mxu0 0.0
      %2533 = vmatprep.subr.mxu0 0.0
      %2534 = vmatpush2.msra.mxu0 0.0
      %2535 = vmatprep.subr.mxu0 0.0
      %2536 = vmatpush2.msra.mxu0 0.0
      %2537 = vmatprep.subr.mxu0 0.0
      %2538 = vmatpush2.msra.mxu0 0.0
      %2539 = vmatprep.subr.mxu0 0.0
      %2540 = vmatpush2.msra.mxu0 0.0
      %2541 = vmatprep.subr.mxu0 0.0
      %2542 = vmatpush2.msra.mxu0 0.0
      %2543 = vmatprep.subr.mxu0 0.0
      %2544 = vmatpush2.msra.mxu0 0.0
      %2545 = vmatprep.subr.mxu0 0.0
      %2546 = vmatpush2.msra.mxu0 0.0
      %2547 = vmatprep.subr.mxu0 0.0
      %2548 = vmatpush2.msra.mxu0 0.0
      %2549 = vmatprep.subr.mxu0 0.0
      %2550 = vmatpush2.msra.mxu0 0.0
      %2551 = vmatprep.mubr.f32.mxu0 0.0
      %2552 = vmatmul.mubr.f32.gmra.mxu0 %v2380
      %v2553 = vpop.f32.mrf.mxu0
      %v2554 = vadd.f32 0.0, %v2553
      %v2555 = vpop.f32.mrf.mxu0
      %2556 = vmatprep.mubr.f32.mxu0 0.0
      %2557 = vmatmul.mubr.f32.gmra.mxu0 %v2383
      %v2558 = vpop.f32.mrf.mxu0
      %v2559 = vadd.f32 0.0, %v2558
      %v2560 = vpop.f32.mrf.mxu0
      %2561 = vmatprep.mubr.f32.mxu0 0.0
      %2562 = vmatmul.mubr.f32.gmra.mxu0 %v2386
      %v2563 = vpop.f32.mrf.mxu0
      %v2564 = vadd.f32 0.0, %v2563
      %v2565 = vpop.f32.mrf.mxu0
      %2566 = vmatprep.mubr.f32.mxu0 0.0
      %2567 = vmatmul.mubr.f32.gmra.mxu0 %v2389
      %v2568 = vpop.f32.mrf.mxu0
      %v2569 = vadd.f32 0.0, %v2568
      %v2570 = vpop.f32.mrf.mxu0
      %2571 = vmatprep.mubr.f32.mxu0 0.0
      %2572 = vmatmul.mubr.f32.gmra.mxu0 %v2392
      %v2573 = vpop.f32.mrf.mxu0
      %v2574 = vadd.f32 0.0, %v2573
      %v2575 = vpop.f32.mrf.mxu0
      %2576 = vmatprep.mubr.f32.mxu0 0.0
      %2577 = vmatmul.mubr.f32.gmra.mxu0 %v2395
      %v2578 = vpop.f32.mrf.mxu0
      %v2579 = vadd.f32 0.0, %v2578
      %v2580 = vpop.f32.mrf.mxu0
      %2581 = vmatprep.mubr.f32.mxu0 0.0
      %2582 = vmatmul.mubr.f32.gmra.mxu0 %v2398
      %v2583 = vpop.f32.mrf.mxu0
      %v2584 = vadd.f32 0.0, %v2583
      %v2585 = vpop.f32.mrf.mxu0
      %2586 = vmatprep.mubr.f32.mxu0 0.0
      %2587 = vmatmul.mubr.f32.gmra.mxu0 %v2401
      %v2588 = vpop.f32.mrf.mxu0
      %v2589 = vadd.f32 0.0, %v2588
      %v2590 = vpop.f32.mrf.mxu0
      %2591 = vmatprep.mubr.f32.mxu0 0.0
      %2592 = vmatmul.mubr.f32.gmra.mxu0 %v2404
      %v2593 = vpop.f32.mrf.mxu0
      %v2594 = vadd.f32 0.0, %v2593
      %v2595 = vpop.f32.mrf.mxu0
      %2596 = vmatprep.mubr.f32.mxu0 0.0
      %2597 = vmatmul.mubr.f32.gmra.mxu0 %v2407
      %v2598 = vpop.f32.mrf.mxu0
      %v2599 = vadd.f32 0.0, %v2598
      %v2600 = vpop.f32.mrf.mxu0
      %2601 = vmatprep.mubr.f32.mxu0 0.0
      %2602 = vmatmul.mubr.f32.gmra.mxu0 %v2410
      %v2603 = vpop.f32.mrf.mxu0
      %v2604 = vadd.f32 0.0, %v2603
      %v2605 = vpop.f32.mrf.mxu0
      %2606 = vmatprep.mubr.f32.mxu0 0.0
      %2607 = vmatmul.mubr.f32.gmra.mxu0 %v2413
      %v2608 = vpop.f32.mrf.mxu0
      %v2609 = vadd.f32 0.0, %v2608
      %v2610 = vpop.f32.mrf.mxu0
      %2611 = vmatprep.mubr.f32.mxu0 0.0
      %2612 = vmatmul.mubr.f32.gmra.mxu0 %v2416
      %v2613 = vpop.f32.mrf.mxu0
      %v2614 = vadd.f32 0.0, %v2613
      %v2615 = vpop.f32.mrf.mxu0
      %2616 = vmatprep.mubr.f32.mxu0 0.0
      %2617 = vmatmul.mubr.f32.gmra.mxu0 %v2419
      %v2618 = vpop.f32.mrf.mxu0
      %v2619 = vadd.f32 0.0, %v2618
      %v2620 = vpop.f32.mrf.mxu0
      %2621 = vmatprep.mubr.f32.mxu0 0.0
      %2622 = vmatmul.mubr.f32.gmra.mxu0 %v2422
      %v2623 = vpop.f32.mrf.mxu0
      %v2624 = vadd.f32 0.0, %v2623
      %v2625 = vpop.f32.mrf.mxu0
      %2626 = vmatprep.mubr.f32.mxu0 0.0
      %2627 = vmatmul.mubr.f32.gmra.mxu0 %v2425
      %v2628 = vpop.f32.mrf.mxu0
      %v2629 = vadd.f32 0.0, %v2628
      %v2630 = vpop.f32.mrf.mxu0
      %2631 = vmatprep.mubr.f32.mxu0 0.0
      %2632 = vmatmul.mubr.f32.gmra.mxu0 %v2428
      %v2633 = vpop.f32.mrf.mxu0
      %v2634 = vadd.f32 0.0, %v2633
      %v2635 = vpop.f32.mrf.mxu0
      %2636 = vmatprep.mubr.f32.mxu0 0.0
      %2637 = vmatmul.mubr.f32.gmra.mxu0 %v2431
      %v2638 = vpop.f32.mrf.mxu0
      %v2639 = vadd.f32 0.0, %v2638
      %v2640 = vpop.f32.mrf.mxu0
      %2641 = vmatprep.mubr.f32.mxu0 0.0
      %2642 = vmatmul.mubr.f32.gmra.mxu0 %v2434
      %v2643 = vpop.f32.mrf.mxu0
      %v2644 = vadd.f32 0.0, %v2643
      %v2645 = vpop.f32.mrf.mxu0
      %2646 = vmatprep.mubr.f32.mxu0 0.0
      %2647 = vmatmul.mubr.f32.gmra.mxu0 %v2437
      %v2648 = vpop.f32.mrf.mxu0
      %v2649 = vadd.f32 0.0, %v2648
      %v2650 = vpop.f32.mrf.mxu0
      %2651 = vmatprep.mubr.f32.mxu0 0.0
      %2652 = vmatmul.mubr.f32.gmra.mxu0 %v2440
      %v2653 = vpop.f32.mrf.mxu0
      %v2654 = vadd.f32 0.0, %v2653
      %v2655 = vpop.f32.mrf.mxu0
      %2656 = vmatprep.mubr.f32.mxu0 0.0
      %2657 = vmatmul.mubr.f32.gmra.mxu0 %v2443
      %v2658 = vpop.f32.mrf.mxu0
      %v2659 = vadd.f32 0.0, %v2658
      %v2660 = vpop.f32.mrf.mxu0
      %2661 = vmatprep.mubr.f32.mxu0 0.0
      %2662 = vmatmul.mubr.f32.gmra.mxu0 %v2446
      %v2663 = vpop.f32.mrf.mxu0
      %v2664 = vadd.f32 0.0, %v2663
      %v2665 = vpop.f32.mrf.mxu0
      %2666 = vmatprep.mubr.f32.mxu0 0.0
      %2667 = vmatmul.mubr.f32.gmra.mxu0 %v2449
      %v2668 = vpop.f32.mrf.mxu0
      %v2669 = vadd.f32 0.0, %v2668
      %v2670 = vpop.f32.mrf.mxu0
      %2671 = vmatprep.mubr.f32.mxu0 0.0
      %2672 = vmatmul.mubr.f32.gmra.mxu0 %v2452
      %v2673 = vpop.f32.mrf.mxu0
      %v2674 = vadd.f32 0.0, %v2673
      %v2675 = vpop.f32.mrf.mxu0
      %2676 = vmatprep.mubr.f32.mxu0 0.0
      %2677 = vmatmul.mubr.f32.gmra.mxu0 %v2455
      %v2678 = vpop.f32.mrf.mxu0
      %v2679 = vadd.f32 0.0, %v2678
      %v2680 = vpop.f32.mrf.mxu0
      %2681 = vmatprep.mubr.f32.mxu0 0.0
      %2682 = vmatmul.mubr.f32.gmra.mxu0 %v2458
      %v2683 = vpop.f32.mrf.mxu0
      %v2684 = vadd.f32 0.0, %v2683
      %v2685 = vpop.f32.mrf.mxu0
      %2686 = vmatprep.mubr.f32.mxu0 0.0
      %2687 = vmatmul.mubr.f32.gmra.mxu0 %v2461
      %v2688 = vpop.f32.mrf.mxu0
      %v2689 = vadd.f32 0.0, %v2688
      %v2690 = vpop.f32.mrf.mxu0
      %2691 = vmatprep.mubr.f32.mxu0 0.0
      %2692 = vmatmul.mubr.f32.gmra.mxu0 %v2464
      %v2693 = vpop.f32.mrf.mxu0
      %v2694 = vadd.f32 0.0, %v2693
      %v2695 = vpop.f32.mrf.mxu0
      %2696 = vmatprep.mubr.f32.mxu0 0.0
      %2697 = vmatmul.mubr.f32.gmra.mxu0 %v2467
      %v2698 = vpop.f32.mrf.mxu0
      %v2699 = vadd.f32 0.0, %v2698
      %v2700 = vpop.f32.mrf.mxu0
      %2701 = vmatprep.mubr.f32.mxu0 0.0
      %2702 = vmatmul.mubr.f32.gmra.mxu0 %v2470
      %v2703 = vpop.f32.mrf.mxu0
      %v2704 = vadd.f32 0.0, %v2703
      %v2705 = vpop.f32.mrf.mxu0
      %2706 = vmatprep.mubr.f32.mxu0 0.0
      %2707 = vmatmul.mubr.f32.gmra.mxu0 %v2473
      %v2708 = vpop.f32.mrf.mxu0
      %v2709 = vadd.f32 0.0, %v2708
      %v2710 = vpop.f32.mrf.mxu0
      %2711 = vmatprep.mubr.f32.mxu0 0.0
      %2712 = vmatmul.mubr.f32.gmra.mxu0 %v2476
      %v2713 = vpop.f32.mrf.mxu0
      %v2714 = vadd.f32 0.0, %v2713
      %v2715 = vpop.f32.mrf.mxu0
      %2716 = vmatprep.mubr.f32.mxu0 0.0
      %2717 = vmatmul.mubr.f32.gmra.mxu0 %v2479
      %v2718 = vpop.f32.mrf.mxu0
      %v2719 = vadd.f32 0.0, %v2718
      %v2720 = vpop.f32.mrf.mxu0
      %2721 = vmatprep.mubr.f32.mxu0 0.0
      %2722 = vmatmul.mubr.f32.gmra.mxu0 %v2482
      %v2723 = vpop.f32.mrf.mxu0
      %v2724 = vadd.f32 0.0, %v2723
      %v2725 = vpop.f32.mrf.mxu0
      %2726 = vmatprep.mubr.f32.mxu0 0.0
      %2727 = vmatmul.mubr.f32.gmra.mxu0 %v2485
      %v2728 = vpop.f32.mrf.mxu0
      %v2729 = vadd.f32 0.0, %v2728
      %v2730 = vpop.f32.mrf.mxu0
      %2731 = vdwg.mxu0
      %v2732 = vadd.f32 %v2298, %v2554
      %v2733 = vadd.f32 %v2299, %v2559
      %v2734 = vadd.f32 %v2300, %v2564
      %v2735 = vadd.f32 %v2301, %v2569
      %v2736 = vadd.f32 %v2302, %v2574
      %v2737 = vadd.f32 %v2303, %v2579
      %v2738 = vadd.f32 %v2304, %v2584
      %v2739 = vadd.f32 %v2305, %v2589
      %v2740 = vadd.f32 %v2306, %v2594
      %v2741 = vadd.f32 %v2307, %v2599
      %v2742 = vadd.f32 %v2308, %v2604
      %v2743 = vadd.f32 %v2309, %v2609
      %v2744 = vadd.f32 %v2310, %v2614
      %v2745 = vadd.f32 %v2311, %v2619
      %v2746 = vadd.f32 %v2312, %v2624
      %v2747 = vadd.f32 %v2313, %v2629
      %v2748 = vadd.f32 %v2314, %v2634
      %v2749 = vadd.f32 %v2315, %v2639
      %v2750 = vadd.f32 %v2316, %v2644
      %v2751 = vadd.f32 %v2317, %v2649
      %v2752 = vadd.f32 %v2318, %v2654
      %v2753 = vadd.f32 %v2319, %v2659
      %v2754 = vadd.f32 %v2320, %v2664
      %v2755 = vadd.f32 %v2321, %v2669
      %v2756 = vadd.f32 %v2322, %v2674
      %v2757 = vadd.f32 %v2323, %v2679
      %v2758 = vadd.f32 %v2324, %v2684
      %v2759 = vadd.f32 %v2325, %v2689
      %v2760 = vadd.f32 %v2326, %v2694
      %v2761 = vadd.f32 %v2327, %v2699
      %v2762 = vadd.f32 %v2328, %v2704
      %v2763 = vadd.f32 %v2329, %v2709
      %v2764 = vadd.f32 %v2330, %v2714
      %v2765 = vadd.f32 %v2331, %v2719
      %v2766 = vadd.f32 %v2332, %v2724
      %v2767 = vadd.f32 %v2333, %v2729
      %2768 = vst [vmem:[#allocation4] sm:$0xff] %v2732
      %2769 = vst [vmem:[#allocation4 + $0x8] sm:$0xff] %v2733
      %2770 = vst [vmem:[#allocation4 + $0x10] sm:$0xff] %v2734
      %2771 = vst [vmem:[#allocation4 + $0x18] sm:$0xff] %v2735
      %2772 = vst [vmem:[#allocation4 + $0x20] sm:$0xff] %v2736
      %2773 = vst [vmem:[#allocation4 + $0x28] sm:$0xff] %v2737
      %2774 = vst [vmem:[#allocation4 + $0x30] sm:$0xff] %v2738
      %2775 = vst [vmem:[#allocation4 + $0x38] sm:$0xff] %v2739
      %2776 = vst [vmem:[#allocation4 + $0x40] sm:$0xff] %v2740
      %2777 = vst [vmem:[#allocation4 + $0x48] sm:$0xff] %v2741
      %2778 = vst [vmem:[#allocation4 + $0x50] sm:$0xff] %v2742
      %2779 = vst [vmem:[#allocation4 + $0x58] sm:$0xff] %v2743
      %2780 = vst [vmem:[#allocation4 + $0x60] sm:$0xff] %v2744
      %2781 = vst [vmem:[#allocation4 + $0x68] sm:$0xff] %v2745
      %2782 = vst [vmem:[#allocation4 + $0x70] sm:$0xff] %v2746
      %2783 = vst [vmem:[#allocation4 + $0x78] sm:$0xff] %v2747
      %2784 = vst [vmem:[#allocation4 + $0x80] sm:$0xff] %v2748
      %2785 = vst [vmem:[#allocation4 + $0x88] sm:$0xff] %v2749
      %2786 = vst [vmem:[#allocation4 + $0x90] sm:$0xff] %v2750
      %2787 = vst [vmem:[#allocation4 + $0x98] sm:$0xff] %v2751
      %2788 = vst [vmem:[#allocation4 + $0xa0] sm:$0xff] %v2752
      %2789 = vst [vmem:[#allocation4 + $0xa8] sm:$0xff] %v2753
      %2790 = vst [vmem:[#allocation4 + $0xb0] sm:$0xff] %v2754
      %2791 = vst [vmem:[#allocation4 + $0xb8] sm:$0xff] %v2755
      %2792 = vst [vmem:[#allocation4 + $0xc0] sm:$0xff] %v2756
      %2793 = vst [vmem:[#allocation4 + $0xc8] sm:$0xff] %v2757
      %2794 = vst [vmem:[#allocation4 + $0xd0] sm:$0xff] %v2758
      %2795 = vst [vmem:[#allocation4 + $0xd8] sm:$0xff] %v2759
      %2796 = vst [vmem:[#allocation4 + $0xe0] sm:$0xff] %v2760
      %2797 = vst [vmem:[#allocation4 + $0xe8] sm:$0xff] %v2761
      %2798 = vst [vmem:[#allocation4 + $0xf0] sm:$0xff] %v2762
      %2799 = vst [vmem:[#allocation4 + $0xf8] sm:$0xff] %v2763
      %2800 = vst [vmem:[#allocation4 + $0x100] sm:$0xff] %v2764
      %2801 = vst [vmem:[#allocation4 + $0x108] sm:$0xff] %v2765
      %2802 = vst [vmem:[#allocation4 + $0x110] sm:$0xff] %v2766
      %2803 = vst [vmem:[#allocation4 + $0x118] sm:$0xff] %v2767
      %v2804 = vld [vmem:[#allocation4] sm:$0xff]
      %v2805 = vld [vmem:[#allocation4 + $0x8] sm:$0xff]
      %v2806 = vld [vmem:[#allocation4 + $0x10] sm:$0xff]
      %v2807 = vld [vmem:[#allocation4 + $0x18] sm:$0xff]
      %v2808 = vld [vmem:[#allocation4 + $0x20] sm:$0xff]
      %v2809 = vld [vmem:[#allocation4 + $0x28] sm:$0xff]
      %v2810 = vld [vmem:[#allocation4 + $0x30] sm:$0xff]
      %v2811 = vld [vmem:[#allocation4 + $0x38] sm:$0xff]
      %v2812 = vld [vmem:[#allocation4 + $0x40] sm:$0xff]
      %v2813 = vld [vmem:[#allocation4 + $0x48] sm:$0xff]
      %v2814 = vld [vmem:[#allocation4 + $0x50] sm:$0xff]
      %v2815 = vld [vmem:[#allocation4 + $0x58] sm:$0xff]
      %v2816 = vld [vmem:[#allocation4 + $0x60] sm:$0xff]
      %v2817 = vld [vmem:[#allocation4 + $0x68] sm:$0xff]
      %v2818 = vld [vmem:[#allocation4 + $0x70] sm:$0xff]
      %v2819 = vld [vmem:[#allocation4 + $0x78] sm:$0xff]
      %v2820 = vld [vmem:[#allocation4 + $0x80] sm:$0xff]
      %v2821 = vld [vmem:[#allocation4 + $0x88] sm:$0xff]
      %v2822 = vld [vmem:[#allocation4 + $0x90] sm:$0xff]
      %v2823 = vld [vmem:[#allocation4 + $0x98] sm:$0xff]
      %v2824 = vld [vmem:[#allocation4 + $0xa0] sm:$0xff]
      %v2825 = vld [vmem:[#allocation4 + $0xa8] sm:$0xff]
      %v2826 = vld [vmem:[#allocation4 + $0xb0] sm:$0xff]
      %v2827 = vld [vmem:[#allocation4 + $0xb8] sm:$0xff]
      %v2828 = vld [vmem:[#allocation4 + $0xc0] sm:$0xff]
      %v2829 = vld [vmem:[#allocation4 + $0xc8] sm:$0xff]
      %v2830 = vld [vmem:[#allocation4 + $0xd0] sm:$0xff]
      %v2831 = vld [vmem:[#allocation4 + $0xd8] sm:$0xff]
      %v2832 = vld [vmem:[#allocation4 + $0xe0] sm:$0xff]
      %v2833 = vld [vmem:[#allocation4 + $0xe8] sm:$0xff]
      %v2834 = vld [vmem:[#allocation4 + $0xf0] sm:$0xff]
      %v2835 = vld [vmem:[#allocation4 + $0xf8] sm:$0xff]
      %v2836 = vld [vmem:[#allocation4 + $0x100] sm:$0xff]
      %v2837 = vld [vmem:[#allocation4 + $0x108] sm:$0xff]
      %v2838 = vld [vmem:[#allocation4 + $0x110] sm:$0xff]
      %v2839 = vld [vmem:[#allocation4 + $0x118] sm:$0xff]
      %v2840 = vld [vmem:[#allocation2 + $0x12] sm:$0xff]
      %v2841 = vld [vmem:[#allocation2 + $0x1a] sm:$0xff]
      %v2842 = vld [vmem:[#allocation2 + $0x22] sm:$0xff]
      %v2843 = vld [vmem:[#allocation2 + $0x2a] sm:$0xff]
      %v2844 = vld [vmem:[#allocation2 + $0x32] sm:$0xff]
      %v2845 = vld [vmem:[#allocation2 + $0x3a] sm:$0xff]
      %v2846 = vld [vmem:[#allocation2 + $0x42] sm:$0xff]
      %v2847 = vld [vmem:[#allocation2 + $0x4a] sm:$0xff]
      %v2848 = vld [vmem:[#allocation2 + $0x52] sm:$0xff]
      %v2849 = vld [vmem:[#allocation2 + $0x5a] sm:$0xff]
      %v2850 = vld [vmem:[#allocation2 + $0x62] sm:$0xff]
      %v2851 = vld [vmem:[#allocation2 + $0x6a] sm:$0xff]
      %v2852 = vld [vmem:[#allocation2 + $0x72] sm:$0xff]
      %v2853 = vld [vmem:[#allocation2 + $0x7a] sm:$0xff]
      %v2854 = vld [vmem:[#allocation2 + $0x82] sm:$0xff]
      %v2855 = vld [vmem:[#allocation2 + $0x8a] sm:$0xff]
      %v2856 = vld [vmem:[#allocation2 + $0x92] sm:$0xff]
      %v2857 = vld [vmem:[#allocation2 + $0x9a] sm:$0xff]
      %v2858 = vld [vmem:[#allocation2 + $0xa2] sm:$0xff]
      %v2859 = vld [vmem:[#allocation2 + $0xaa] sm:$0xff]
      %v2860 = vld [vmem:[#allocation2 + $0xb2] sm:$0xff]
      %v2861 = vld [vmem:[#allocation2 + $0xba] sm:$0xff]
      %v2862 = vld [vmem:[#allocation2 + $0xc2] sm:$0xff]
      %v2863 = vld [vmem:[#allocation2 + $0xca] sm:$0xff]
      %v2864 = vld [vmem:[#allocation2 + $0xd2] sm:$0xff]
      %v2865 = vld [vmem:[#allocation2 + $0xda] sm:$0xff]
      %v2866 = vld [vmem:[#allocation2 + $0xe2] sm:$0xff]
      %v2867 = vld [vmem:[#allocation2 + $0xea] sm:$0xff]
      %v2868 = vld [vmem:[#allocation2 + $0xf2] sm:$0xff]
      %v2869 = vld [vmem:[#allocation2 + $0xfa] sm:$0xff]
      %v2870 = vld [vmem:[#allocation2 + $0x102] sm:$0xff]
      %v2871 = vld [vmem:[#allocation2 + $0x10a] sm:$0xff]
      %v2872 = vld [vmem:[#allocation2 + $0x112] sm:$0xff]
      %v2873 = vld [vmem:[#allocation2 + $0x11a] sm:$0xff]
      %v2874 = vld [vmem:[#allocation2 + $0x122] sm:$0xff]
      %v2875 = vld [vmem:[#allocation2 + $0x12a] sm:$0xff]
      %s2876 = scalar_lea.vmem %s7, 192
      %v2877 = vld [vmem:[%s2876] sm:$0xff]
      %v2878 = vld [vmem:[%s2876 + $0x8] sm:$0xff]
      %v2879 = vld [vmem:[%s2876 + $0x10] sm:$0xff]
      %v2880 = vld [vmem:[%s2876 + $0x18] sm:$0xff]
      %v2881 = vld [vmem:[%s2876 + $0x20] sm:$0xff]
      %v2882 = vld [vmem:[%s2876 + $0x28] sm:$0xff]
      %v2883 = vld [vmem:[%s2876 + $0x30] sm:$0xff]
      %v2884 = vld [vmem:[%s2876 + $0x38] sm:$0xff]
      %v2886 = vsel %vm896, %v2840, 0
      %v2889 = vsel %vm896, %v2841, 0
      %v2892 = vsel %vm896, %v2842, 0
      %v2895 = vsel %vm896, %v2843, 0
      %v2898 = vsel %vm896, %v2844, 0
      %v2901 = vsel %vm896, %v2845, 0
      %v2904 = vsel %vm896, %v2846, 0
      %v2907 = vsel %vm896, %v2847, 0
      %v2910 = vsel %vm896, %v2848, 0
      %v2913 = vsel %vm896, %v2849, 0
      %v2916 = vsel %vm896, %v2850, 0
      %v2919 = vsel %vm896, %v2851, 0
      %v2922 = vsel %vm896, %v2852, 0
      %v2925 = vsel %vm896, %v2853, 0
      %v2928 = vsel %vm896, %v2854, 0
      %v2931 = vsel %vm896, %v2855, 0
      %v2934 = vsel %vm896, %v2856, 0
      %v2937 = vsel %vm896, %v2857, 0
      %v2940 = vsel %vm896, %v2858, 0
      %v2943 = vsel %vm896, %v2859, 0
      %v2946 = vsel %vm896, %v2860, 0
      %v2949 = vsel %vm896, %v2861, 0
      %v2952 = vsel %vm896, %v2862, 0
      %v2955 = vsel %vm896, %v2863, 0
      %v2958 = vsel %vm896, %v2864, 0
      %v2961 = vsel %vm896, %v2865, 0
      %v2964 = vsel %vm896, %v2866, 0
      %v2967 = vsel %vm896, %v2867, 0
      %v2970 = vsel %vm896, %v2868, 0
      %v2973 = vsel %vm896, %v2869, 0
      %v2976 = vsel %vm896, %v2870, 0
      %v2979 = vsel %vm896, %v2871, 0
      %v2982 = vsel %vm896, %v2872, 0
      %v2985 = vsel %vm896, %v2873, 0
      %v2988 = vsel %vm896, %v2874, 0
      %v2991 = vsel %vm896, %v2875, 0
      %2993 = vmatprep.subr.mxu0 0.0
      %2994 = vmatpush1.msra.mxu0 0.0
      %2995 = vmatprep.subr.mxu0 0.0
      %2996 = vmatpush1.msra.mxu0 0.0
      %2997 = vmatprep.subr.mxu0 0.0
      %2998 = vmatpush1.msra.mxu0 0.0
      %2999 = vmatprep.subr.mxu0 0.0
      %3000 = vmatpush1.msra.mxu0 0.0
      %3001 = vmatprep.subr.mxu0 0.0
      %3002 = vmatpush1.msra.mxu0 0.0
      %3003 = vmatprep.subr.mxu0 0.0
      %3004 = vmatpush1.msra.mxu0 0.0
      %3005 = vmatprep.subr.mxu0 0.0
      %3006 = vmatpush1.msra.mxu0 0.0
      %3007 = vmatprep.subr.mxu0 0.0
      %3008 = vmatpush1.msra.mxu0 0.0
      %3009 = vmatprep.subr.mxu0 0.0
      %3010 = vmatpush1.msra.mxu0 %v2884
      %3011 = vmatprep.subr.mxu0 0.0
      %3012 = vmatpush1.msra.mxu0 %v2883
      %3013 = vmatprep.subr.mxu0 0.0
      %3014 = vmatpush1.msra.mxu0 %v2882
      %3015 = vmatprep.subr.mxu0 0.0
      %3016 = vmatpush1.msra.mxu0 %v2881
      %3017 = vmatprep.subr.mxu0 0.0
      %3018 = vmatpush1.msra.mxu0 %v2880
      %3019 = vmatprep.subr.mxu0 0.0
      %3020 = vmatpush1.msra.mxu0 %v2879
      %3021 = vmatprep.subr.mxu0 0.0
      %3022 = vmatpush1.msra.mxu0 %v2878
      %3023 = vmatprep.subr.mxu0 0.0
      %3024 = vmatpush1.msra.mxu0 %v2877
      %3025 = vmatprep.subr.mxu0 0.0
      %3026 = vmatpush2.msra.mxu0 0.0
      %3027 = vmatprep.subr.mxu0 0.0
      %3028 = vmatpush2.msra.mxu0 0.0
      %3029 = vmatprep.subr.mxu0 0.0
      %3030 = vmatpush2.msra.mxu0 0.0
      %3031 = vmatprep.subr.mxu0 0.0
      %3032 = vmatpush2.msra.mxu0 0.0
      %3033 = vmatprep.subr.mxu0 0.0
      %3034 = vmatpush2.msra.mxu0 0.0
      %3035 = vmatprep.subr.mxu0 0.0
      %3036 = vmatpush2.msra.mxu0 0.0
      %3037 = vmatprep.subr.mxu0 0.0
      %3038 = vmatpush2.msra.mxu0 0.0
      %3039 = vmatprep.subr.mxu0 0.0
      %3040 = vmatpush2.msra.mxu0 0.0
      %3041 = vmatprep.subr.mxu0 0.0
      %3042 = vmatpush2.msra.mxu0 0.0
      %3043 = vmatprep.subr.mxu0 0.0
      %3044 = vmatpush2.msra.mxu0 0.0
      %3045 = vmatprep.subr.mxu0 0.0
      %3046 = vmatpush2.msra.mxu0 0.0
      %3047 = vmatprep.subr.mxu0 0.0
      %3048 = vmatpush2.msra.mxu0 0.0
      %3049 = vmatprep.subr.mxu0 0.0
      %3050 = vmatpush2.msra.mxu0 0.0
      %3051 = vmatprep.subr.mxu0 0.0
      %3052 = vmatpush2.msra.mxu0 0.0
      %3053 = vmatprep.subr.mxu0 0.0
      %3054 = vmatpush2.msra.mxu0 0.0
      %3055 = vmatprep.subr.mxu0 0.0
      %3056 = vmatpush2.msra.mxu0 0.0
      %3057 = vmatprep.mubr.f32.mxu0 0.0
      %3058 = vmatmul.mubr.f32.gmra.mxu0 %v2886
      %v3059 = vpop.f32.mrf.mxu0
      %v3060 = vadd.f32 0.0, %v3059
      %v3061 = vpop.f32.mrf.mxu0
      %3062 = vmatprep.mubr.f32.mxu0 0.0
      %3063 = vmatmul.mubr.f32.gmra.mxu0 %v2889
      %v3064 = vpop.f32.mrf.mxu0
      %v3065 = vadd.f32 0.0, %v3064
      %v3066 = vpop.f32.mrf.mxu0
      %3067 = vmatprep.mubr.f32.mxu0 0.0
      %3068 = vmatmul.mubr.f32.gmra.mxu0 %v2892
      %v3069 = vpop.f32.mrf.mxu0
      %v3070 = vadd.f32 0.0, %v3069
      %v3071 = vpop.f32.mrf.mxu0
      %3072 = vmatprep.mubr.f32.mxu0 0.0
      %3073 = vmatmul.mubr.f32.gmra.mxu0 %v2895
      %v3074 = vpop.f32.mrf.mxu0
      %v3075 = vadd.f32 0.0, %v3074
      %v3076 = vpop.f32.mrf.mxu0
      %3077 = vmatprep.mubr.f32.mxu0 0.0
      %3078 = vmatmul.mubr.f32.gmra.mxu0 %v2898
      %v3079 = vpop.f32.mrf.mxu0
      %v3080 = vadd.f32 0.0, %v3079
      %v3081 = vpop.f32.mrf.mxu0
      %3082 = vmatprep.mubr.f32.mxu0 0.0
      %3083 = vmatmul.mubr.f32.gmra.mxu0 %v2901
      %v3084 = vpop.f32.mrf.mxu0
      %v3085 = vadd.f32 0.0, %v3084
      %v3086 = vpop.f32.mrf.mxu0
      %3087 = vmatprep.mubr.f32.mxu0 0.0
      %3088 = vmatmul.mubr.f32.gmra.mxu0 %v2904
      %v3089 = vpop.f32.mrf.mxu0
      %v3090 = vadd.f32 0.0, %v3089
      %v3091 = vpop.f32.mrf.mxu0
      %3092 = vmatprep.mubr.f32.mxu0 0.0
      %3093 = vmatmul.mubr.f32.gmra.mxu0 %v2907
      %v3094 = vpop.f32.mrf.mxu0
      %v3095 = vadd.f32 0.0, %v3094
      %v3096 = vpop.f32.mrf.mxu0
      %3097 = vmatprep.mubr.f32.mxu0 0.0
      %3098 = vmatmul.mubr.f32.gmra.mxu0 %v2910
      %v3099 = vpop.f32.mrf.mxu0
      %v3100 = vadd.f32 0.0, %v3099
      %v3101 = vpop.f32.mrf.mxu0
      %3102 = vmatprep.mubr.f32.mxu0 0.0
      %3103 = vmatmul.mubr.f32.gmra.mxu0 %v2913
      %v3104 = vpop.f32.mrf.mxu0
      %v3105 = vadd.f32 0.0, %v3104
      %v3106 = vpop.f32.mrf.mxu0
      %3107 = vmatprep.mubr.f32.mxu0 0.0
      %3108 = vmatmul.mubr.f32.gmra.mxu0 %v2916
      %v3109 = vpop.f32.mrf.mxu0
      %v3110 = vadd.f32 0.0, %v3109
      %v3111 = vpop.f32.mrf.mxu0
      %3112 = vmatprep.mubr.f32.mxu0 0.0
      %3113 = vmatmul.mubr.f32.gmra.mxu0 %v2919
      %v3114 = vpop.f32.mrf.mxu0
      %v3115 = vadd.f32 0.0, %v3114
      %v3116 = vpop.f32.mrf.mxu0
      %3117 = vmatprep.mubr.f32.mxu0 0.0
      %3118 = vmatmul.mubr.f32.gmra.mxu0 %v2922
      %v3119 = vpop.f32.mrf.mxu0
      %v3120 = vadd.f32 0.0, %v3119
      %v3121 = vpop.f32.mrf.mxu0
      %3122 = vmatprep.mubr.f32.mxu0 0.0
      %3123 = vmatmul.mubr.f32.gmra.mxu0 %v2925
      %v3124 = vpop.f32.mrf.mxu0
      %v3125 = vadd.f32 0.0, %v3124
      %v3126 = vpop.f32.mrf.mxu0
      %3127 = vmatprep.mubr.f32.mxu0 0.0
      %3128 = vmatmul.mubr.f32.gmra.mxu0 %v2928
      %v3129 = vpop.f32.mrf.mxu0
      %v3130 = vadd.f32 0.0, %v3129
      %v3131 = vpop.f32.mrf.mxu0
      %3132 = vmatprep.mubr.f32.mxu0 0.0
      %3133 = vmatmul.mubr.f32.gmra.mxu0 %v2931
      %v3134 = vpop.f32.mrf.mxu0
      %v3135 = vadd.f32 0.0, %v3134
      %v3136 = vpop.f32.mrf.mxu0
      %3137 = vmatprep.mubr.f32.mxu0 0.0
      %3138 = vmatmul.mubr.f32.gmra.mxu0 %v2934
      %v3139 = vpop.f32.mrf.mxu0
      %v3140 = vadd.f32 0.0, %v3139
      %v3141 = vpop.f32.mrf.mxu0
      %3142 = vmatprep.mubr.f32.mxu0 0.0
      %3143 = vmatmul.mubr.f32.gmra.mxu0 %v2937
      %v3144 = vpop.f32.mrf.mxu0
      %v3145 = vadd.f32 0.0, %v3144
      %v3146 = vpop.f32.mrf.mxu0
      %3147 = vmatprep.mubr.f32.mxu0 0.0
      %3148 = vmatmul.mubr.f32.gmra.mxu0 %v2940
      %v3149 = vpop.f32.mrf.mxu0
      %v3150 = vadd.f32 0.0, %v3149
      %v3151 = vpop.f32.mrf.mxu0
      %3152 = vmatprep.mubr.f32.mxu0 0.0
      %3153 = vmatmul.mubr.f32.gmra.mxu0 %v2943
      %v3154 = vpop.f32.mrf.mxu0
      %v3155 = vadd.f32 0.0, %v3154
      %v3156 = vpop.f32.mrf.mxu0
      %3157 = vmatprep.mubr.f32.mxu0 0.0
      %3158 = vmatmul.mubr.f32.gmra.mxu0 %v2946
      %v3159 = vpop.f32.mrf.mxu0
      %v3160 = vadd.f32 0.0, %v3159
      %v3161 = vpop.f32.mrf.mxu0
      %3162 = vmatprep.mubr.f32.mxu0 0.0
      %3163 = vmatmul.mubr.f32.gmra.mxu0 %v2949
      %v3164 = vpop.f32.mrf.mxu0
      %v3165 = vadd.f32 0.0, %v3164
      %v3166 = vpop.f32.mrf.mxu0
      %3167 = vmatprep.mubr.f32.mxu0 0.0
      %3168 = vmatmul.mubr.f32.gmra.mxu0 %v2952
      %v3169 = vpop.f32.mrf.mxu0
      %v3170 = vadd.f32 0.0, %v3169
      %v3171 = vpop.f32.mrf.mxu0
      %3172 = vmatprep.mubr.f32.mxu0 0.0
      %3173 = vmatmul.mubr.f32.gmra.mxu0 %v2955
      %v3174 = vpop.f32.mrf.mxu0
      %v3175 = vadd.f32 0.0, %v3174
      %v3176 = vpop.f32.mrf.mxu0
      %3177 = vmatprep.mubr.f32.mxu0 0.0
      %3178 = vmatmul.mubr.f32.gmra.mxu0 %v2958
      %v3179 = vpop.f32.mrf.mxu0
      %v3180 = vadd.f32 0.0, %v3179
      %v3181 = vpop.f32.mrf.mxu0
      %3182 = vmatprep.mubr.f32.mxu0 0.0
      %3183 = vmatmul.mubr.f32.gmra.mxu0 %v2961
      %v3184 = vpop.f32.mrf.mxu0
      %v3185 = vadd.f32 0.0, %v3184
      %v3186 = vpop.f32.mrf.mxu0
      %3187 = vmatprep.mubr.f32.mxu0 0.0
      %3188 = vmatmul.mubr.f32.gmra.mxu0 %v2964
      %v3189 = vpop.f32.mrf.mxu0
      %v3190 = vadd.f32 0.0, %v3189
      %v3191 = vpop.f32.mrf.mxu0
      %3192 = vmatprep.mubr.f32.mxu0 0.0
      %3193 = vmatmul.mubr.f32.gmra.mxu0 %v2967
      %v3194 = vpop.f32.mrf.mxu0
      %v3195 = vadd.f32 0.0, %v3194
      %v3196 = vpop.f32.mrf.mxu0
      %3197 = vmatprep.mubr.f32.mxu0 0.0
      %3198 = vmatmul.mubr.f32.gmra.mxu0 %v2970
      %v3199 = vpop.f32.mrf.mxu0
      %v3200 = vadd.f32 0.0, %v3199
      %v3201 = vpop.f32.mrf.mxu0
      %3202 = vmatprep.mubr.f32.mxu0 0.0
      %3203 = vmatmul.mubr.f32.gmra.mxu0 %v2973
      %v3204 = vpop.f32.mrf.mxu0
      %v3205 = vadd.f32 0.0, %v3204
      %v3206 = vpop.f32.mrf.mxu0
      %3207 = vmatprep.mubr.f32.mxu0 0.0
      %3208 = vmatmul.mubr.f32.gmra.mxu0 %v2976
      %v3209 = vpop.f32.mrf.mxu0
      %v3210 = vadd.f32 0.0, %v3209
      %v3211 = vpop.f32.mrf.mxu0
      %3212 = vmatprep.mubr.f32.mxu0 0.0
      %3213 = vmatmul.mubr.f32.gmra.mxu0 %v2979
      %v3214 = vpop.f32.mrf.mxu0
      %v3215 = vadd.f32 0.0, %v3214
      %v3216 = vpop.f32.mrf.mxu0
      %3217 = vmatprep.mubr.f32.mxu0 0.0
      %3218 = vmatmul.mubr.f32.gmra.mxu0 %v2982
      %v3219 = vpop.f32.mrf.mxu0
      %v3220 = vadd.f32 0.0, %v3219
      %v3221 = vpop.f32.mrf.mxu0
      %3222 = vmatprep.mubr.f32.mxu0 0.0
      %3223 = vmatmul.mubr.f32.gmra.mxu0 %v2985
      %v3224 = vpop.f32.mrf.mxu0
      %v3225 = vadd.f32 0.0, %v3224
      %v3226 = vpop.f32.mrf.mxu0
      %3227 = vmatprep.mubr.f32.mxu0 0.0
      %3228 = vmatmul.mubr.f32.gmra.mxu0 %v2988
      %v3229 = vpop.f32.mrf.mxu0
      %v3230 = vadd.f32 0.0, %v3229
      %v3231 = vpop.f32.mrf.mxu0
      %3232 = vmatprep.mubr.f32.mxu0 0.0
      %3233 = vmatmul.mubr.f32.gmra.mxu0 %v2991
      %v3234 = vpop.f32.mrf.mxu0
      %v3235 = vadd.f32 0.0, %v3234
      %v3236 = vpop.f32.mrf.mxu0
      %3237 = vdwg.mxu0
      %v3238 = vadd.f32 %v2804, %v3060
      %v3239 = vadd.f32 %v2805, %v3065
      %v3240 = vadd.f32 %v2806, %v3070
      %v3241 = vadd.f32 %v2807, %v3075
      %v3242 = vadd.f32 %v2808, %v3080
      %v3243 = vadd.f32 %v2809, %v3085
      %v3244 = vadd.f32 %v2810, %v3090
      %v3245 = vadd.f32 %v2811, %v3095
      %v3246 = vadd.f32 %v2812, %v3100
      %v3247 = vadd.f32 %v2813, %v3105
      %v3248 = vadd.f32 %v2814, %v3110
      %v3249 = vadd.f32 %v2815, %v3115
      %v3250 = vadd.f32 %v2816, %v3120
      %v3251 = vadd.f32 %v2817, %v3125
      %v3252 = vadd.f32 %v2818, %v3130
      %v3253 = vadd.f32 %v2819, %v3135
      %v3254 = vadd.f32 %v2820, %v3140
      %v3255 = vadd.f32 %v2821, %v3145
      %v3256 = vadd.f32 %v2822, %v3150
      %v3257 = vadd.f32 %v2823, %v3155
      %v3258 = vadd.f32 %v2824, %v3160
      %v3259 = vadd.f32 %v2825, %v3165
      %v3260 = vadd.f32 %v2826, %v3170
      %v3261 = vadd.f32 %v2827, %v3175
      %v3262 = vadd.f32 %v2828, %v3180
      %v3263 = vadd.f32 %v2829, %v3185
      %v3264 = vadd.f32 %v2830, %v3190
      %v3265 = vadd.f32 %v2831, %v3195
      %v3266 = vadd.f32 %v2832, %v3200
      %v3267 = vadd.f32 %v2833, %v3205
      %v3268 = vadd.f32 %v2834, %v3210
      %v3269 = vadd.f32 %v2835, %v3215
      %v3270 = vadd.f32 %v2836, %v3220
      %v3271 = vadd.f32 %v2837, %v3225
      %v3272 = vadd.f32 %v2838, %v3230
      %v3273 = vadd.f32 %v2839, %v3235
      %3274 = vst [vmem:[#allocation4] sm:$0xff] %v3238
      %3275 = vst [vmem:[#allocation4 + $0x8] sm:$0xff] %v3239
      %3276 = vst [vmem:[#allocation4 + $0x10] sm:$0xff] %v3240
      %3277 = vst [vmem:[#allocation4 + $0x18] sm:$0xff] %v3241
      %3278 = vst [vmem:[#allocation4 + $0x20] sm:$0xff] %v3242
      %3279 = vst [vmem:[#allocation4 + $0x28] sm:$0xff] %v3243
      %3280 = vst [vmem:[#allocation4 + $0x30] sm:$0xff] %v3244
      %3281 = vst [vmem:[#allocation4 + $0x38] sm:$0xff] %v3245
      %3282 = vst [vmem:[#allocation4 + $0x40] sm:$0xff] %v3246
      %3283 = vst [vmem:[#allocation4 + $0x48] sm:$0xff] %v3247
      %3284 = vst [vmem:[#allocation4 + $0x50] sm:$0xff] %v3248
      %3285 = vst [vmem:[#allocation4 + $0x58] sm:$0xff] %v3249
      %3286 = vst [vmem:[#allocation4 + $0x60] sm:$0xff] %v3250
      %3287 = vst [vmem:[#allocation4 + $0x68] sm:$0xff] %v3251
      %3288 = vst [vmem:[#allocation4 + $0x70] sm:$0xff] %v3252
      %3289 = vst [vmem:[#allocation4 + $0x78] sm:$0xff] %v3253
      %3290 = vst [vmem:[#allocation4 + $0x80] sm:$0xff] %v3254
      %3291 = vst [vmem:[#allocation4 + $0x88] sm:$0xff] %v3255
      %3292 = vst [vmem:[#allocation4 + $0x90] sm:$0xff] %v3256
      %3293 = vst [vmem:[#allocation4 + $0x98] sm:$0xff] %v3257
      %3294 = vst [vmem:[#allocation4 + $0xa0] sm:$0xff] %v3258
      %3295 = vst [vmem:[#allocation4 + $0xa8] sm:$0xff] %v3259
      %3296 = vst [vmem:[#allocation4 + $0xb0] sm:$0xff] %v3260
      %3297 = vst [vmem:[#allocation4 + $0xb8] sm:$0xff] %v3261
      %3298 = vst [vmem:[#allocation4 + $0xc0] sm:$0xff] %v3262
      %3299 = vst [vmem:[#allocation4 + $0xc8] sm:$0xff] %v3263
      %3300 = vst [vmem:[#allocation4 + $0xd0] sm:$0xff] %v3264
      %3301 = vst [vmem:[#allocation4 + $0xd8] sm:$0xff] %v3265
      %3302 = vst [vmem:[#allocation4 + $0xe0] sm:$0xff] %v3266
      %3303 = vst [vmem:[#allocation4 + $0xe8] sm:$0xff] %v3267
      %3304 = vst [vmem:[#allocation4 + $0xf0] sm:$0xff] %v3268
      %3305 = vst [vmem:[#allocation4 + $0xf8] sm:$0xff] %v3269
      %3306 = vst [vmem:[#allocation4 + $0x100] sm:$0xff] %v3270
      %3307 = vst [vmem:[#allocation4 + $0x108] sm:$0xff] %v3271
      %3308 = vst [vmem:[#allocation4 + $0x110] sm:$0xff] %v3272
      %3309 = vst [vmem:[#allocation4 + $0x118] sm:$0xff] %v3273
      %v3310 = vld [vmem:[#allocation4] sm:$0xff]
      %v3311 = vld [vmem:[#allocation4 + $0x8] sm:$0xff]
      %v3312 = vld [vmem:[#allocation4 + $0x10] sm:$0xff]
      %v3313 = vld [vmem:[#allocation4 + $0x18] sm:$0xff]
      %v3314 = vld [vmem:[#allocation4 + $0x20] sm:$0xff]
      %v3315 = vld [vmem:[#allocation4 + $0x28] sm:$0xff]
      %v3316 = vld [vmem:[#allocation4 + $0x30] sm:$0xff]
      %v3317 = vld [vmem:[#allocation4 + $0x38] sm:$0xff]
      %v3318 = vld [vmem:[#allocation4 + $0x40] sm:$0xff]
      %v3319 = vld [vmem:[#allocation4 + $0x48] sm:$0xff]
      %v3320 = vld [vmem:[#allocation4 + $0x50] sm:$0xff]
      %v3321 = vld [vmem:[#allocation4 + $0x58] sm:$0xff]
      %v3322 = vld [vmem:[#allocation4 + $0x60] sm:$0xff]
      %v3323 = vld [vmem:[#allocation4 + $0x68] sm:$0xff]
      %v3324 = vld [vmem:[#allocation4 + $0x70] sm:$0xff]
      %v3325 = vld [vmem:[#allocation4 + $0x78] sm:$0xff]
      %v3326 = vld [vmem:[#allocation4 + $0x80] sm:$0xff]
      %v3327 = vld [vmem:[#allocation4 + $0x88] sm:$0xff]
      %v3328 = vld [vmem:[#allocation4 + $0x90] sm:$0xff]
      %v3329 = vld [vmem:[#allocation4 + $0x98] sm:$0xff]
      %v3330 = vld [vmem:[#allocation4 + $0xa0] sm:$0xff]
      %v3331 = vld [vmem:[#allocation4 + $0xa8] sm:$0xff]
      %v3332 = vld [vmem:[#allocation4 + $0xb0] sm:$0xff]
      %v3333 = vld [vmem:[#allocation4 + $0xb8] sm:$0xff]
      %v3334 = vld [vmem:[#allocation4 + $0xc0] sm:$0xff]
      %v3335 = vld [vmem:[#allocation4 + $0xc8] sm:$0xff]
      %v3336 = vld [vmem:[#allocation4 + $0xd0] sm:$0xff]
      %v3337 = vld [vmem:[#allocation4 + $0xd8] sm:$0xff]
      %v3338 = vld [vmem:[#allocation4 + $0xe0] sm:$0xff]
      %v3339 = vld [vmem:[#allocation4 + $0xe8] sm:$0xff]
      %v3340 = vld [vmem:[#allocation4 + $0xf0] sm:$0xff]
      %v3341 = vld [vmem:[#allocation4 + $0xf8] sm:$0xff]
      %v3342 = vld [vmem:[#allocation4 + $0x100] sm:$0xff]
      %v3343 = vld [vmem:[#allocation4 + $0x108] sm:$0xff]
      %v3344 = vld [vmem:[#allocation4 + $0x110] sm:$0xff]
      %v3345 = vld [vmem:[#allocation4 + $0x118] sm:$0xff]
      %v3346 = vld [vmem:[#allocation2 + $0x13] sm:$0xff]
      %v3347 = vld [vmem:[#allocation2 + $0x1b] sm:$0xff]
      %v3348 = vld [vmem:[#allocation2 + $0x23] sm:$0xff]
      %v3349 = vld [vmem:[#allocation2 + $0x2b] sm:$0xff]
      %v3350 = vld [vmem:[#allocation2 + $0x33] sm:$0xff]
      %v3351 = vld [vmem:[#allocation2 + $0x3b] sm:$0xff]
      %v3352 = vld [vmem:[#allocation2 + $0x43] sm:$0xff]
      %v3353 = vld [vmem:[#allocation2 + $0x4b] sm:$0xff]
      %v3354 = vld [vmem:[#allocation2 + $0x53] sm:$0xff]
      %v3355 = vld [vmem:[#allocation2 + $0x5b] sm:$0xff]
      %v3356 = vld [vmem:[#allocation2 + $0x63] sm:$0xff]
      %v3357 = vld [vmem:[#allocation2 + $0x6b] sm:$0xff]
      %v3358 = vld [vmem:[#allocation2 + $0x73] sm:$0xff]
      %v3359 = vld [vmem:[#allocation2 + $0x7b] sm:$0xff]
      %v3360 = vld [vmem:[#allocation2 + $0x83] sm:$0xff]
      %v3361 = vld [vmem:[#allocation2 + $0x8b] sm:$0xff]
      %v3362 = vld [vmem:[#allocation2 + $0x93] sm:$0xff]
      %v3363 = vld [vmem:[#allocation2 + $0x9b] sm:$0xff]
      %v3364 = vld [vmem:[#allocation2 + $0xa3] sm:$0xff]
      %v3365 = vld [vmem:[#allocation2 + $0xab] sm:$0xff]
      %v3366 = vld [vmem:[#allocation2 + $0xb3] sm:$0xff]
      %v3367 = vld [vmem:[#allocation2 + $0xbb] sm:$0xff]
      %v3368 = vld [vmem:[#allocation2 + $0xc3] sm:$0xff]
      %v3369 = vld [vmem:[#allocation2 + $0xcb] sm:$0xff]
      %v3370 = vld [vmem:[#allocation2 + $0xd3] sm:$0xff]
      %v3371 = vld [vmem:[#allocation2 + $0xdb] sm:$0xff]
      %v3372 = vld [vmem:[#allocation2 + $0xe3] sm:$0xff]
      %v3373 = vld [vmem:[#allocation2 + $0xeb] sm:$0xff]
      %v3374 = vld [vmem:[#allocation2 + $0xf3] sm:$0xff]
      %v3375 = vld [vmem:[#allocation2 + $0xfb] sm:$0xff]
      %v3376 = vld [vmem:[#allocation2 + $0x103] sm:$0xff]
      %v3377 = vld [vmem:[#allocation2 + $0x10b] sm:$0xff]
      %v3378 = vld [vmem:[#allocation2 + $0x113] sm:$0xff]
      %v3379 = vld [vmem:[#allocation2 + $0x11b] sm:$0xff]
      %v3380 = vld [vmem:[#allocation2 + $0x123] sm:$0xff]
      %v3381 = vld [vmem:[#allocation2 + $0x12b] sm:$0xff]
      %s3382 = scalar_lea.vmem %s7, 256
      %v3383 = vld [vmem:[%s3382] sm:$0xff]
      %v3384 = vld [vmem:[%s3382 + $0x8] sm:$0xff]
      %v3385 = vld [vmem:[%s3382 + $0x10] sm:$0xff]
      %v3386 = vld [vmem:[%s3382 + $0x18] sm:$0xff]
      %v3387 = vld [vmem:[%s3382 + $0x20] sm:$0xff]
      %v3388 = vld [vmem:[%s3382 + $0x28] sm:$0xff]
      %v3389 = vld [vmem:[%s3382 + $0x30] sm:$0xff]
      %v3390 = vld [vmem:[%s3382 + $0x38] sm:$0xff]
      %v3392 = vsel %vm896, %v3346, 0
      %v3395 = vsel %vm896, %v3347, 0
      %v3398 = vsel %vm896, %v3348, 0
      %v3401 = vsel %vm896, %v3349, 0
      %v3404 = vsel %vm896, %v3350, 0
      %v3407 = vsel %vm896, %v3351, 0
      %v3410 = vsel %vm896, %v3352, 0
      %v3413 = vsel %vm896, %v3353, 0
      %v3416 = vsel %vm896, %v3354, 0
      %v3419 = vsel %vm896, %v3355, 0
      %v3422 = vsel %vm896, %v3356, 0
      %v3425 = vsel %vm896, %v3357, 0
      %v3428 = vsel %vm896, %v3358, 0
      %v3431 = vsel %vm896, %v3359, 0
      %v3434 = vsel %vm896, %v3360, 0
      %v3437 = vsel %vm896, %v3361, 0
      %v3440 = vsel %vm896, %v3362, 0
      %v3443 = vsel %vm896, %v3363, 0
      %v3446 = vsel %vm896, %v3364, 0
      %v3449 = vsel %vm896, %v3365, 0
      %v3452 = vsel %vm896, %v3366, 0
      %v3455 = vsel %vm896, %v3367, 0
      %v3458 = vsel %vm896, %v3368, 0
      %v3461 = vsel %vm896, %v3369, 0
      %v3464 = vsel %vm896, %v3370, 0
      %v3467 = vsel %vm896, %v3371, 0
      %v3470 = vsel %vm896, %v3372, 0
      %v3473 = vsel %vm896, %v3373, 0
      %v3476 = vsel %vm896, %v3374, 0
      %v3479 = vsel %vm896, %v3375, 0
      %v3482 = vsel %vm896, %v3376, 0
      %v3485 = vsel %vm896, %v3377, 0
      %v3488 = vsel %vm896, %v3378, 0
      %v3491 = vsel %vm896, %v3379, 0
      %v3494 = vsel %vm896, %v3380, 0
      %v3497 = vsel %vm896, %v3381, 0
      %3499 = vmatprep.subr.mxu0 0.0
      %3500 = vmatpush1.msra.mxu0 0.0
      %3501 = vmatprep.subr.mxu0 0.0
      %3502 = vmatpush1.msra.mxu0 0.0
      %3503 = vmatprep.subr.mxu0 0.0
      %3504 = vmatpush1.msra.mxu0 0.0
      %3505 = vmatprep.subr.mxu0 0.0
      %3506 = vmatpush1.msra.mxu0 0.0
      %3507 = vmatprep.subr.mxu0 0.0
      %3508 = vmatpush1.msra.mxu0 0.0
      %3509 = vmatprep.subr.mxu0 0.0
      %3510 = vmatpush1.msra.mxu0 0.0
      %3511 = vmatprep.subr.mxu0 0.0
      %3512 = vmatpush1.msra.mxu0 0.0
      %3513 = vmatprep.subr.mxu0 0.0
      %3514 = vmatpush1.msra.mxu0 0.0
      %3515 = vmatprep.subr.mxu0 0.0
      %3516 = vmatpush1.msra.mxu0 %v3390
      %3517 = vmatprep.subr.mxu0 0.0
      %3518 = vmatpush1.msra.mxu0 %v3389
      %3519 = vmatprep.subr.mxu0 0.0
      %3520 = vmatpush1.msra.mxu0 %v3388
      %3521 = vmatprep.subr.mxu0 0.0
      %3522 = vmatpush1.msra.mxu0 %v3387
      %3523 = vmatprep.subr.mxu0 0.0
      %3524 = vmatpush1.msra.mxu0 %v3386
      %3525 = vmatprep.subr.mxu0 0.0
      %3526 = vmatpush1.msra.mxu0 %v3385
      %3527 = vmatprep.subr.mxu0 0.0
      %3528 = vmatpush1.msra.mxu0 %v3384
      %3529 = vmatprep.subr.mxu0 0.0
      %3530 = vmatpush1.msra.mxu0 %v3383
      %3531 = vmatprep.subr.mxu0 0.0
      %3532 = vmatpush2.msra.mxu0 0.0
      %3533 = vmatprep.subr.mxu0 0.0
      %3534 = vmatpush2.msra.mxu0 0.0
      %3535 = vmatprep.subr.mxu0 0.0
      %3536 = vmatpush2.msra.mxu0 0.0
      %3537 = vmatprep.subr.mxu0 0.0
      %3538 = vmatpush2.msra.mxu0 0.0
      %3539 = vmatprep.subr.mxu0 0.0
      %3540 = vmatpush2.msra.mxu0 0.0
      %3541 = vmatprep.subr.mxu0 0.0
      %3542 = vmatpush2.msra.mxu0 0.0
      %3543 = vmatprep.subr.mxu0 0.0
      %3544 = vmatpush2.msra.mxu0 0.0
      %3545 = vmatprep.subr.mxu0 0.0
      %3546 = vmatpush2.msra.mxu0 0.0
      %3547 = vmatprep.subr.mxu0 0.0
      %3548 = vmatpush2.msra.mxu0 0.0
      %3549 = vmatprep.subr.mxu0 0.0
      %3550 = vmatpush2.msra.mxu0 0.0
      %3551 = vmatprep.subr.mxu0 0.0
      %3552 = vmatpush2.msra.mxu0 0.0
      %3553 = vmatprep.subr.mxu0 0.0
      %3554 = vmatpush2.msra.mxu0 0.0
      %3555 = vmatprep.subr.mxu0 0.0
      %3556 = vmatpush2.msra.mxu0 0.0
      %3557 = vmatprep.subr.mxu0 0.0
      %3558 = vmatpush2.msra.mxu0 0.0
      %3559 = vmatprep.subr.mxu0 0.0
      %3560 = vmatpush2.msra.mxu0 0.0
      %3561 = vmatprep.subr.mxu0 0.0
      %3562 = vmatpush2.msra.mxu0 0.0
      %3563 = vmatprep.mubr.f32.mxu0 0.0
      %3564 = vmatmul.mubr.f32.gmra.mxu0 %v3392
      %v3565 = vpop.f32.mrf.mxu0
      %v3566 = vadd.f32 0.0, %v3565
      %v3567 = vpop.f32.mrf.mxu0
      %3568 = vmatprep.mubr.f32.mxu0 0.0
      %3569 = vmatmul.mubr.f32.gmra.mxu0 %v3395
      %v3570 = vpop.f32.mrf.mxu0
      %v3571 = vadd.f32 0.0, %v3570
      %v3572 = vpop.f32.mrf.mxu0
      %3573 = vmatprep.mubr.f32.mxu0 0.0
      %3574 = vmatmul.mubr.f32.gmra.mxu0 %v3398
      %v3575 = vpop.f32.mrf.mxu0
      %v3576 = vadd.f32 0.0, %v3575
      %v3577 = vpop.f32.mrf.mxu0
      %3578 = vmatprep.mubr.f32.mxu0 0.0
      %3579 = vmatmul.mubr.f32.gmra.mxu0 %v3401
      %v3580 = vpop.f32.mrf.mxu0
      %v3581 = vadd.f32 0.0, %v3580
      %v3582 = vpop.f32.mrf.mxu0
      %3583 = vmatprep.mubr.f32.mxu0 0.0
      %3584 = vmatmul.mubr.f32.gmra.mxu0 %v3404
      %v3585 = vpop.f32.mrf.mxu0
      %v3586 = vadd.f32 0.0, %v3585
      %v3587 = vpop.f32.mrf.mxu0
      %3588 = vmatprep.mubr.f32.mxu0 0.0
      %3589 = vmatmul.mubr.f32.gmra.mxu0 %v3407
      %v3590 = vpop.f32.mrf.mxu0
      %v3591 = vadd.f32 0.0, %v3590
      %v3592 = vpop.f32.mrf.mxu0
      %3593 = vmatprep.mubr.f32.mxu0 0.0
      %3594 = vmatmul.mubr.f32.gmra.mxu0 %v3410
      %v3595 = vpop.f32.mrf.mxu0
      %v3596 = vadd.f32 0.0, %v3595
      %v3597 = vpop.f32.mrf.mxu0
      %3598 = vmatprep.mubr.f32.mxu0 0.0
      %3599 = vmatmul.mubr.f32.gmra.mxu0 %v3413
      %v3600 = vpop.f32.mrf.mxu0
      %v3601 = vadd.f32 0.0, %v3600
      %v3602 = vpop.f32.mrf.mxu0
      %3603 = vmatprep.mubr.f32.mxu0 0.0
      %3604 = vmatmul.mubr.f32.gmra.mxu0 %v3416
      %v3605 = vpop.f32.mrf.mxu0
      %v3606 = vadd.f32 0.0, %v3605
      %v3607 = vpop.f32.mrf.mxu0
      %3608 = vmatprep.mubr.f32.mxu0 0.0
      %3609 = vmatmul.mubr.f32.gmra.mxu0 %v3419
      %v3610 = vpop.f32.mrf.mxu0
      %v3611 = vadd.f32 0.0, %v3610
      %v3612 = vpop.f32.mrf.mxu0
      %3613 = vmatprep.mubr.f32.mxu0 0.0
      %3614 = vmatmul.mubr.f32.gmra.mxu0 %v3422
      %v3615 = vpop.f32.mrf.mxu0
      %v3616 = vadd.f32 0.0, %v3615
      %v3617 = vpop.f32.mrf.mxu0
      %3618 = vmatprep.mubr.f32.mxu0 0.0
      %3619 = vmatmul.mubr.f32.gmra.mxu0 %v3425
      %v3620 = vpop.f32.mrf.mxu0
      %v3621 = vadd.f32 0.0, %v3620
      %v3622 = vpop.f32.mrf.mxu0
      %3623 = vmatprep.mubr.f32.mxu0 0.0
      %3624 = vmatmul.mubr.f32.gmra.mxu0 %v3428
      %v3625 = vpop.f32.mrf.mxu0
      %v3626 = vadd.f32 0.0, %v3625
      %v3627 = vpop.f32.mrf.mxu0
      %3628 = vmatprep.mubr.f32.mxu0 0.0
      %3629 = vmatmul.mubr.f32.gmra.mxu0 %v3431
      %v3630 = vpop.f32.mrf.mxu0
      %v3631 = vadd.f32 0.0, %v3630
      %v3632 = vpop.f32.mrf.mxu0
      %3633 = vmatprep.mubr.f32.mxu0 0.0
      %3634 = vmatmul.mubr.f32.gmra.mxu0 %v3434
      %v3635 = vpop.f32.mrf.mxu0
      %v3636 = vadd.f32 0.0, %v3635
      %v3637 = vpop.f32.mrf.mxu0
      %3638 = vmatprep.mubr.f32.mxu0 0.0
      %3639 = vmatmul.mubr.f32.gmra.mxu0 %v3437
      %v3640 = vpop.f32.mrf.mxu0
      %v3641 = vadd.f32 0.0, %v3640
      %v3642 = vpop.f32.mrf.mxu0
      %3643 = vmatprep.mubr.f32.mxu0 0.0
      %3644 = vmatmul.mubr.f32.gmra.mxu0 %v3440
      %v3645 = vpop.f32.mrf.mxu0
      %v3646 = vadd.f32 0.0, %v3645
      %v3647 = vpop.f32.mrf.mxu0
      %3648 = vmatprep.mubr.f32.mxu0 0.0
      %3649 = vmatmul.mubr.f32.gmra.mxu0 %v3443
      %v3650 = vpop.f32.mrf.mxu0
      %v3651 = vadd.f32 0.0, %v3650
      %v3652 = vpop.f32.mrf.mxu0
      %3653 = vmatprep.mubr.f32.mxu0 0.0
      %3654 = vmatmul.mubr.f32.gmra.mxu0 %v3446
      %v3655 = vpop.f32.mrf.mxu0
      %v3656 = vadd.f32 0.0, %v3655
      %v3657 = vpop.f32.mrf.mxu0
      %3658 = vmatprep.mubr.f32.mxu0 0.0
      %3659 = vmatmul.mubr.f32.gmra.mxu0 %v3449
      %v3660 = vpop.f32.mrf.mxu0
      %v3661 = vadd.f32 0.0, %v3660
      %v3662 = vpop.f32.mrf.mxu0
      %3663 = vmatprep.mubr.f32.mxu0 0.0
      %3664 = vmatmul.mubr.f32.gmra.mxu0 %v3452
      %v3665 = vpop.f32.mrf.mxu0
      %v3666 = vadd.f32 0.0, %v3665
      %v3667 = vpop.f32.mrf.mxu0
      %3668 = vmatprep.mubr.f32.mxu0 0.0
      %3669 = vmatmul.mubr.f32.gmra.mxu0 %v3455
      %v3670 = vpop.f32.mrf.mxu0
      %v3671 = vadd.f32 0.0, %v3670
      %v3672 = vpop.f32.mrf.mxu0
      %3673 = vmatprep.mubr.f32.mxu0 0.0
      %3674 = vmatmul.mubr.f32.gmra.mxu0 %v3458
      %v3675 = vpop.f32.mrf.mxu0
      %v3676 = vadd.f32 0.0, %v3675
      %v3677 = vpop.f32.mrf.mxu0
      %3678 = vmatprep.mubr.f32.mxu0 0.0
      %3679 = vmatmul.mubr.f32.gmra.mxu0 %v3461
      %v3680 = vpop.f32.mrf.mxu0
      %v3681 = vadd.f32 0.0, %v3680
      %v3682 = vpop.f32.mrf.mxu0
      %3683 = vmatprep.mubr.f32.mxu0 0.0
      %3684 = vmatmul.mubr.f32.gmra.mxu0 %v3464
      %v3685 = vpop.f32.mrf.mxu0
      %v3686 = vadd.f32 0.0, %v3685
      %v3687 = vpop.f32.mrf.mxu0
      %3688 = vmatprep.mubr.f32.mxu0 0.0
      %3689 = vmatmul.mubr.f32.gmra.mxu0 %v3467
      %v3690 = vpop.f32.mrf.mxu0
      %v3691 = vadd.f32 0.0, %v3690
      %v3692 = vpop.f32.mrf.mxu0
      %3693 = vmatprep.mubr.f32.mxu0 0.0
      %3694 = vmatmul.mubr.f32.gmra.mxu0 %v3470
      %v3695 = vpop.f32.mrf.mxu0
      %v3696 = vadd.f32 0.0, %v3695
      %v3697 = vpop.f32.mrf.mxu0
      %3698 = vmatprep.mubr.f32.mxu0 0.0
      %3699 = vmatmul.mubr.f32.gmra.mxu0 %v3473
      %v3700 = vpop.f32.mrf.mxu0
      %v3701 = vadd.f32 0.0, %v3700
      %v3702 = vpop.f32.mrf.mxu0
      %3703 = vmatprep.mubr.f32.mxu0 0.0
      %3704 = vmatmul.mubr.f32.gmra.mxu0 %v3476
      %v3705 = vpop.f32.mrf.mxu0
      %v3706 = vadd.f32 0.0, %v3705
      %v3707 = vpop.f32.mrf.mxu0
      %3708 = vmatprep.mubr.f32.mxu0 0.0
      %3709 = vmatmul.mubr.f32.gmra.mxu0 %v3479
      %v3710 = vpop.f32.mrf.mxu0
      %v3711 = vadd.f32 0.0, %v3710
      %v3712 = vpop.f32.mrf.mxu0
      %3713 = vmatprep.mubr.f32.mxu0 0.0
      %3714 = vmatmul.mubr.f32.gmra.mxu0 %v3482
      %v3715 = vpop.f32.mrf.mxu0
      %v3716 = vadd.f32 0.0, %v3715
      %v3717 = vpop.f32.mrf.mxu0
      %3718 = vmatprep.mubr.f32.mxu0 0.0
      %3719 = vmatmul.mubr.f32.gmra.mxu0 %v3485
      %v3720 = vpop.f32.mrf.mxu0
      %v3721 = vadd.f32 0.0, %v3720
      %v3722 = vpop.f32.mrf.mxu0
      %3723 = vmatprep.mubr.f32.mxu0 0.0
      %3724 = vmatmul.mubr.f32.gmra.mxu0 %v3488
      %v3725 = vpop.f32.mrf.mxu0
      %v3726 = vadd.f32 0.0, %v3725
      %v3727 = vpop.f32.mrf.mxu0
      %3728 = vmatprep.mubr.f32.mxu0 0.0
      %3729 = vmatmul.mubr.f32.gmra.mxu0 %v3491
      %v3730 = vpop.f32.mrf.mxu0
      %v3731 = vadd.f32 0.0, %v3730
      %v3732 = vpop.f32.mrf.mxu0
      %3733 = vmatprep.mubr.f32.mxu0 0.0
      %3734 = vmatmul.mubr.f32.gmra.mxu0 %v3494
      %v3735 = vpop.f32.mrf.mxu0
      %v3736 = vadd.f32 0.0, %v3735
      %v3737 = vpop.f32.mrf.mxu0
      %3738 = vmatprep.mubr.f32.mxu0 0.0
      %3739 = vmatmul.mubr.f32.gmra.mxu0 %v3497
      %v3740 = vpop.f32.mrf.mxu0
      %v3741 = vadd.f32 0.0, %v3740
      %v3742 = vpop.f32.mrf.mxu0
      %3743 = vdwg.mxu0
      %v3744 = vadd.f32 %v3310, %v3566
      %v3745 = vadd.f32 %v3311, %v3571
      %v3746 = vadd.f32 %v3312, %v3576
      %v3747 = vadd.f32 %v3313, %v3581
      %v3748 = vadd.f32 %v3314, %v3586
      %v3749 = vadd.f32 %v3315, %v3591
      %v3750 = vadd.f32 %v3316, %v3596
      %v3751 = vadd.f32 %v3317, %v3601
      %v3752 = vadd.f32 %v3318, %v3606
      %v3753 = vadd.f32 %v3319, %v3611
      %v3754 = vadd.f32 %v3320, %v3616
      %v3755 = vadd.f32 %v3321, %v3621
      %v3756 = vadd.f32 %v3322, %v3626
      %v3757 = vadd.f32 %v3323, %v3631
      %v3758 = vadd.f32 %v3324, %v3636
      %v3759 = vadd.f32 %v3325, %v3641
      %v3760 = vadd.f32 %v3326, %v3646
      %v3761 = vadd.f32 %v3327, %v3651
      %v3762 = vadd.f32 %v3328, %v3656
      %v3763 = vadd.f32 %v3329, %v3661
      %v3764 = vadd.f32 %v3330, %v3666
      %v3765 = vadd.f32 %v3331, %v3671
      %v3766 = vadd.f32 %v3332, %v3676
      %v3767 = vadd.f32 %v3333, %v3681
      %v3768 = vadd.f32 %v3334, %v3686
      %v3769 = vadd.f32 %v3335, %v3691
      %v3770 = vadd.f32 %v3336, %v3696
      %v3771 = vadd.f32 %v3337, %v3701
      %v3772 = vadd.f32 %v3338, %v3706
      %v3773 = vadd.f32 %v3339, %v3711
      %v3774 = vadd.f32 %v3340, %v3716
      %v3775 = vadd.f32 %v3341, %v3721
      %v3776 = vadd.f32 %v3342, %v3726
      %v3777 = vadd.f32 %v3343, %v3731
      %v3778 = vadd.f32 %v3344, %v3736
      %v3779 = vadd.f32 %v3345, %v3741
      %3780 = vst [vmem:[#allocation4] sm:$0xff] %v3744
      %3781 = vst [vmem:[#allocation4 + $0x8] sm:$0xff] %v3745
      %3782 = vst [vmem:[#allocation4 + $0x10] sm:$0xff] %v3746
      %3783 = vst [vmem:[#allocation4 + $0x18] sm:$0xff] %v3747
      %3784 = vst [vmem:[#allocation4 + $0x20] sm:$0xff] %v3748
      %3785 = vst [vmem:[#allocation4 + $0x28] sm:$0xff] %v3749
      %3786 = vst [vmem:[#allocation4 + $0x30] sm:$0xff] %v3750
      %3787 = vst [vmem:[#allocation4 + $0x38] sm:$0xff] %v3751
      %3788 = vst [vmem:[#allocation4 + $0x40] sm:$0xff] %v3752
      %3789 = vst [vmem:[#allocation4 + $0x48] sm:$0xff] %v3753
      %3790 = vst [vmem:[#allocation4 + $0x50] sm:$0xff] %v3754
      %3791 = vst [vmem:[#allocation4 + $0x58] sm:$0xff] %v3755
      %3792 = vst [vmem:[#allocation4 + $0x60] sm:$0xff] %v3756
      %3793 = vst [vmem:[#allocation4 + $0x68] sm:$0xff] %v3757
      %3794 = vst [vmem:[#allocation4 + $0x70] sm:$0xff] %v3758
      %3795 = vst [vmem:[#allocation4 + $0x78] sm:$0xff] %v3759
      %3796 = vst [vmem:[#allocation4 + $0x80] sm:$0xff] %v3760
      %3797 = vst [vmem:[#allocation4 + $0x88] sm:$0xff] %v3761
      %3798 = vst [vmem:[#allocation4 + $0x90] sm:$0xff] %v3762
      %3799 = vst [vmem:[#allocation4 + $0x98] sm:$0xff] %v3763
      %3800 = vst [vmem:[#allocation4 + $0xa0] sm:$0xff] %v3764
      %3801 = vst [vmem:[#allocation4 + $0xa8] sm:$0xff] %v3765
      %3802 = vst [vmem:[#allocation4 + $0xb0] sm:$0xff] %v3766
      %3803 = vst [vmem:[#allocation4 + $0xb8] sm:$0xff] %v3767
      %3804 = vst [vmem:[#allocation4 + $0xc0] sm:$0xff] %v3768
      %3805 = vst [vmem:[#allocation4 + $0xc8] sm:$0xff] %v3769
      %3806 = vst [vmem:[#allocation4 + $0xd0] sm:$0xff] %v3770
      %3807 = vst [vmem:[#allocation4 + $0xd8] sm:$0xff] %v3771
      %3808 = vst [vmem:[#allocation4 + $0xe0] sm:$0xff] %v3772
      %3809 = vst [vmem:[#allocation4 + $0xe8] sm:$0xff] %v3773
      %3810 = vst [vmem:[#allocation4 + $0xf0] sm:$0xff] %v3774
      %3811 = vst [vmem:[#allocation4 + $0xf8] sm:$0xff] %v3775
      %3812 = vst [vmem:[#allocation4 + $0x100] sm:$0xff] %v3776
      %3813 = vst [vmem:[#allocation4 + $0x108] sm:$0xff] %v3777
      %3814 = vst [vmem:[#allocation4 + $0x110] sm:$0xff] %v3778
      %3815 = vst [vmem:[#allocation4 + $0x118] sm:$0xff] %v3779
      %v3816 = vld [vmem:[#allocation4] sm:$0xff]
      %v3817 = vld [vmem:[#allocation4 + $0x8] sm:$0xff]
      %v3818 = vld [vmem:[#allocation4 + $0x10] sm:$0xff]
      %v3819 = vld [vmem:[#allocation4 + $0x18] sm:$0xff]
      %v3820 = vld [vmem:[#allocation4 + $0x20] sm:$0xff]
      %v3821 = vld [vmem:[#allocation4 + $0x28] sm:$0xff]
      %v3822 = vld [vmem:[#allocation4 + $0x30] sm:$0xff]
      %v3823 = vld [vmem:[#allocation4 + $0x38] sm:$0xff]
      %v3824 = vld [vmem:[#allocation4 + $0x40] sm:$0xff]
      %v3825 = vld [vmem:[#allocation4 + $0x48] sm:$0xff]
      %v3826 = vld [vmem:[#allocation4 + $0x50] sm:$0xff]
      %v3827 = vld [vmem:[#allocation4 + $0x58] sm:$0xff]
      %v3828 = vld [vmem:[#allocation4 + $0x60] sm:$0xff]
      %v3829 = vld [vmem:[#allocation4 + $0x68] sm:$0xff]
      %v3830 = vld [vmem:[#allocation4 + $0x70] sm:$0xff]
      %v3831 = vld [vmem:[#allocation4 + $0x78] sm:$0xff]
      %v3832 = vld [vmem:[#allocation4 + $0x80] sm:$0xff]
      %v3833 = vld [vmem:[#allocation4 + $0x88] sm:$0xff]
      %v3834 = vld [vmem:[#allocation4 + $0x90] sm:$0xff]
      %v3835 = vld [vmem:[#allocation4 + $0x98] sm:$0xff]
      %v3836 = vld [vmem:[#allocation4 + $0xa0] sm:$0xff]
      %v3837 = vld [vmem:[#allocation4 + $0xa8] sm:$0xff]
      %v3838 = vld [vmem:[#allocation4 + $0xb0] sm:$0xff]
      %v3839 = vld [vmem:[#allocation4 + $0xb8] sm:$0xff]
      %v3840 = vld [vmem:[#allocation4 + $0xc0] sm:$0xff]
      %v3841 = vld [vmem:[#allocation4 + $0xc8] sm:$0xff]
      %v3842 = vld [vmem:[#allocation4 + $0xd0] sm:$0xff]
      %v3843 = vld [vmem:[#allocation4 + $0xd8] sm:$0xff]
      %v3844 = vld [vmem:[#allocation4 + $0xe0] sm:$0xff]
      %v3845 = vld [vmem:[#allocation4 + $0xe8] sm:$0xff]
      %v3846 = vld [vmem:[#allocation4 + $0xf0] sm:$0xff]
      %v3847 = vld [vmem:[#allocation4 + $0xf8] sm:$0xff]
      %v3848 = vld [vmem:[#allocation4 + $0x100] sm:$0xff]
      %v3849 = vld [vmem:[#allocation4 + $0x108] sm:$0xff]
      %v3850 = vld [vmem:[#allocation4 + $0x110] sm:$0xff]
      %v3851 = vld [vmem:[#allocation4 + $0x118] sm:$0xff]
      %v3852 = vld [vmem:[#allocation2 + $0x14] sm:$0xff]
      %v3853 = vld [vmem:[#allocation2 + $0x1c] sm:$0xff]
      %v3854 = vld [vmem:[#allocation2 + $0x24] sm:$0xff]
      %v3855 = vld [vmem:[#allocation2 + $0x2c] sm:$0xff]
      %v3856 = vld [vmem:[#allocation2 + $0x34] sm:$0xff]
      %v3857 = vld [vmem:[#allocation2 + $0x3c] sm:$0xff]
      %v3858 = vld [vmem:[#allocation2 + $0x44] sm:$0xff]
      %v3859 = vld [vmem:[#allocation2 + $0x4c] sm:$0xff]
      %v3860 = vld [vmem:[#allocation2 + $0x54] sm:$0xff]
      %v3861 = vld [vmem:[#allocation2 + $0x5c] sm:$0xff]
      %v3862 = vld [vmem:[#allocation2 + $0x64] sm:$0xff]
      %v3863 = vld [vmem:[#allocation2 + $0x6c] sm:$0xff]
      %v3864 = vld [vmem:[#allocation2 + $0x74] sm:$0xff]
      %v3865 = vld [vmem:[#allocation2 + $0x7c] sm:$0xff]
      %v3866 = vld [vmem:[#allocation2 + $0x84] sm:$0xff]
      %v3867 = vld [vmem:[#allocation2 + $0x8c] sm:$0xff]
      %v3868 = vld [vmem:[#allocation2 + $0x94] sm:$0xff]
      %v3869 = vld [vmem:[#allocation2 + $0x9c] sm:$0xff]
      %v3870 = vld [vmem:[#allocation2 + $0xa4] sm:$0xff]
      %v3871 = vld [vmem:[#allocation2 + $0xac] sm:$0xff]
      %v3872 = vld [vmem:[#allocation2 + $0xb4] sm:$0xff]
      %v3873 = vld [vmem:[#allocation2 + $0xbc] sm:$0xff]
      %v3874 = vld [vmem:[#allocation2 + $0xc4] sm:$0xff]
      %v3875 = vld [vmem:[#allocation2 + $0xcc] sm:$0xff]
      %v3876 = vld [vmem:[#allocation2 + $0xd4] sm:$0xff]
      %v3877 = vld [vmem:[#allocation2 + $0xdc] sm:$0xff]
      %v3878 = vld [vmem:[#allocation2 + $0xe4] sm:$0xff]
      %v3879 = vld [vmem:[#allocation2 + $0xec] sm:$0xff]
      %v3880 = vld [vmem:[#allocation2 + $0xf4] sm:$0xff]
      %v3881 = vld [vmem:[#allocation2 + $0xfc] sm:$0xff]
      %v3882 = vld [vmem:[#allocation2 + $0x104] sm:$0xff]
      %v3883 = vld [vmem:[#allocation2 + $0x10c] sm:$0xff]
      %v3884 = vld [vmem:[#allocation2 + $0x114] sm:$0xff]
      %v3885 = vld [vmem:[#allocation2 + $0x11c] sm:$0xff]
      %v3886 = vld [vmem:[#allocation2 + $0x124] sm:$0xff]
      %v3887 = vld [vmem:[#allocation2 + $0x12c] sm:$0xff]
      %s3888 = scalar_lea.vmem %s7, 320
      %v3889 = vld [vmem:[%s3888] sm:$0xff]
      %v3890 = vld [vmem:[%s3888 + $0x8] sm:$0xff]
      %v3891 = vld [vmem:[%s3888 + $0x10] sm:$0xff]
      %v3892 = vld [vmem:[%s3888 + $0x18] sm:$0xff]
      %v3893 = vld [vmem:[%s3888 + $0x20] sm:$0xff]
      %v3894 = vld [vmem:[%s3888 + $0x28] sm:$0xff]
      %v3895 = vld [vmem:[%s3888 + $0x30] sm:$0xff]
      %v3896 = vld [vmem:[%s3888 + $0x38] sm:$0xff]
      %v3898 = vsel %vm896, %v3852, 0
      %v3901 = vsel %vm896, %v3853, 0
      %v3904 = vsel %vm896, %v3854, 0
      %v3907 = vsel %vm896, %v3855, 0
      %v3910 = vsel %vm896, %v3856, 0
      %v3913 = vsel %vm896, %v3857, 0
      %v3916 = vsel %vm896, %v3858, 0
      %v3919 = vsel %vm896, %v3859, 0
      %v3922 = vsel %vm896, %v3860, 0
      %v3925 = vsel %vm896, %v3861, 0
      %v3928 = vsel %vm896, %v3862, 0
      %v3931 = vsel %vm896, %v3863, 0
      %v3934 = vsel %vm896, %v3864, 0
      %v3937 = vsel %vm896, %v3865, 0
      %v3940 = vsel %vm896, %v3866, 0
      %v3943 = vsel %vm896, %v3867, 0
      %v3946 = vsel %vm896, %v3868, 0
      %v3949 = vsel %vm896, %v3869, 0
      %v3952 = vsel %vm896, %v3870, 0
      %v3955 = vsel %vm896, %v3871, 0
      %v3958 = vsel %vm896, %v3872, 0
      %v3961 = vsel %vm896, %v3873, 0
      %v3964 = vsel %vm896, %v3874, 0
      %v3967 = vsel %vm896, %v3875, 0
      %v3970 = vsel %vm896, %v3876, 0
      %v3973 = vsel %vm896, %v3877, 0
      %v3976 = vsel %vm896, %v3878, 0
      %v3979 = vsel %vm896, %v3879, 0
      %v3982 = vsel %vm896, %v3880, 0
      %v3985 = vsel %vm896, %v3881, 0
      %v3988 = vsel %vm896, %v3882, 0
      %v3991 = vsel %vm896, %v3883, 0
      %v3994 = vsel %vm896, %v3884, 0
      %v3997 = vsel %vm896, %v3885, 0
      %v4000 = vsel %vm896, %v3886, 0
      %v4003 = vsel %vm896, %v3887, 0
      %4005 = vmatprep.subr.mxu0 0.0
      %4006 = vmatpush1.msra.mxu0 0.0
      %4007 = vmatprep.subr.mxu0 0.0
      %4008 = vmatpush1.msra.mxu0 0.0
      %4009 = vmatprep.subr.mxu0 0.0
      %4010 = vmatpush1.msra.mxu0 0.0
      %4011 = vmatprep.subr.mxu0 0.0
      %4012 = vmatpush1.msra.mxu0 0.0
      %4013 = vmatprep.subr.mxu0 0.0
      %4014 = vmatpush1.msra.mxu0 0.0
      %4015 = vmatprep.subr.mxu0 0.0
      %4016 = vmatpush1.msra.mxu0 0.0
      %4017 = vmatprep.subr.mxu0 0.0
      %4018 = vmatpush1.msra.mxu0 0.0
      %4019 = vmatprep.subr.mxu0 0.0
      %4020 = vmatpush1.msra.mxu0 0.0
      %4021 = vmatprep.subr.mxu0 0.0
      %4022 = vmatpush1.msra.mxu0 %v3896
      %4023 = vmatprep.subr.mxu0 0.0
      %4024 = vmatpush1.msra.mxu0 %v3895
      %4025 = vmatprep.subr.mxu0 0.0
      %4026 = vmatpush1.msra.mxu0 %v3894
      %4027 = vmatprep.subr.mxu0 0.0
      %4028 = vmatpush1.msra.mxu0 %v3893
      %4029 = vmatprep.subr.mxu0 0.0
      %4030 = vmatpush1.msra.mxu0 %v3892
      %4031 = vmatprep.subr.mxu0 0.0
      %4032 = vmatpush1.msra.mxu0 %v3891
      %4033 = vmatprep.subr.mxu0 0.0
      %4034 = vmatpush1.msra.mxu0 %v3890
      %4035 = vmatprep.subr.mxu0 0.0
      %4036 = vmatpush1.msra.mxu0 %v3889
      %4037 = vmatprep.subr.mxu0 0.0
      %4038 = vmatpush2.msra.mxu0 0.0
      %4039 = vmatprep.subr.mxu0 0.0
      %4040 = vmatpush2.msra.mxu0 0.0
      %4041 = vmatprep.subr.mxu0 0.0
      %4042 = vmatpush2.msra.mxu0 0.0
      %4043 = vmatprep.subr.mxu0 0.0
      %4044 = vmatpush2.msra.mxu0 0.0
      %4045 = vmatprep.subr.mxu0 0.0
      %4046 = vmatpush2.msra.mxu0 0.0
      %4047 = vmatprep.subr.mxu0 0.0
      %4048 = vmatpush2.msra.mxu0 0.0
      %4049 = vmatprep.subr.mxu0 0.0
      %4050 = vmatpush2.msra.mxu0 0.0
      %4051 = vmatprep.subr.mxu0 0.0
      %4052 = vmatpush2.msra.mxu0 0.0
      %4053 = vmatprep.subr.mxu0 0.0
      %4054 = vmatpush2.msra.mxu0 0.0
      %4055 = vmatprep.subr.mxu0 0.0
      %4056 = vmatpush2.msra.mxu0 0.0
      %4057 = vmatprep.subr.mxu0 0.0
      %4058 = vmatpush2.msra.mxu0 0.0
      %4059 = vmatprep.subr.mxu0 0.0
      %4060 = vmatpush2.msra.mxu0 0.0
      %4061 = vmatprep.subr.mxu0 0.0
      %4062 = vmatpush2.msra.mxu0 0.0
      %4063 = vmatprep.subr.mxu0 0.0
      %4064 = vmatpush2.msra.mxu0 0.0
      %4065 = vmatprep.subr.mxu0 0.0
      %4066 = vmatpush2.msra.mxu0 0.0
      %4067 = vmatprep.subr.mxu0 0.0
      %4068 = vmatpush2.msra.mxu0 0.0
      %4069 = vmatprep.mubr.f32.mxu0 0.0
      %4070 = vmatmul.mubr.f32.gmra.mxu0 %v3898
      %v4071 = vpop.f32.mrf.mxu0
      %v4072 = vadd.f32 0.0, %v4071
      %v4073 = vpop.f32.mrf.mxu0
      %4074 = vmatprep.mubr.f32.mxu0 0.0
      %4075 = vmatmul.mubr.f32.gmra.mxu0 %v3901
      %v4076 = vpop.f32.mrf.mxu0
      %v4077 = vadd.f32 0.0, %v4076
      %v4078 = vpop.f32.mrf.mxu0
      %4079 = vmatprep.mubr.f32.mxu0 0.0
      %4080 = vmatmul.mubr.f32.gmra.mxu0 %v3904
      %v4081 = vpop.f32.mrf.mxu0
      %v4082 = vadd.f32 0.0, %v4081
      %v4083 = vpop.f32.mrf.mxu0
      %4084 = vmatprep.mubr.f32.mxu0 0.0
      %4085 = vmatmul.mubr.f32.gmra.mxu0 %v3907
      %v4086 = vpop.f32.mrf.mxu0
      %v4087 = vadd.f32 0.0, %v4086
      %v4088 = vpop.f32.mrf.mxu0
      %4089 = vmatprep.mubr.f32.mxu0 0.0
      %4090 = vmatmul.mubr.f32.gmra.mxu0 %v3910
      %v4091 = vpop.f32.mrf.mxu0
      %v4092 = vadd.f32 0.0, %v4091
      %v4093 = vpop.f32.mrf.mxu0
      %4094 = vmatprep.mubr.f32.mxu0 0.0
      %4095 = vmatmul.mubr.f32.gmra.mxu0 %v3913
      %v4096 = vpop.f32.mrf.mxu0
      %v4097 = vadd.f32 0.0, %v4096
      %v4098 = vpop.f32.mrf.mxu0
      %4099 = vmatprep.mubr.f32.mxu0 0.0
      %4100 = vmatmul.mubr.f32.gmra.mxu0 %v3916
      %v4101 = vpop.f32.mrf.mxu0
      %v4102 = vadd.f32 0.0, %v4101
      %v4103 = vpop.f32.mrf.mxu0
      %4104 = vmatprep.mubr.f32.mxu0 0.0
      %4105 = vmatmul.mubr.f32.gmra.mxu0 %v3919
      %v4106 = vpop.f32.mrf.mxu0
      %v4107 = vadd.f32 0.0, %v4106
      %v4108 = vpop.f32.mrf.mxu0
      %4109 = vmatprep.mubr.f32.mxu0 0.0
      %4110 = vmatmul.mubr.f32.gmra.mxu0 %v3922
      %v4111 = vpop.f32.mrf.mxu0
      %v4112 = vadd.f32 0.0, %v4111
      %v4113 = vpop.f32.mrf.mxu0
      %4114 = vmatprep.mubr.f32.mxu0 0.0
      %4115 = vmatmul.mubr.f32.gmra.mxu0 %v3925
      %v4116 = vpop.f32.mrf.mxu0
      %v4117 = vadd.f32 0.0, %v4116
      %v4118 = vpop.f32.mrf.mxu0
      %4119 = vmatprep.mubr.f32.mxu0 0.0
      %4120 = vmatmul.mubr.f32.gmra.mxu0 %v3928
      %v4121 = vpop.f32.mrf.mxu0
      %v4122 = vadd.f32 0.0, %v4121
      %v4123 = vpop.f32.mrf.mxu0
      %4124 = vmatprep.mubr.f32.mxu0 0.0
      %4125 = vmatmul.mubr.f32.gmra.mxu0 %v3931
      %v4126 = vpop.f32.mrf.mxu0
      %v4127 = vadd.f32 0.0, %v4126
      %v4128 = vpop.f32.mrf.mxu0
      %4129 = vmatprep.mubr.f32.mxu0 0.0
      %4130 = vmatmul.mubr.f32.gmra.mxu0 %v3934
      %v4131 = vpop.f32.mrf.mxu0
      %v4132 = vadd.f32 0.0, %v4131
      %v4133 = vpop.f32.mrf.mxu0
      %4134 = vmatprep.mubr.f32.mxu0 0.0
      %4135 = vmatmul.mubr.f32.gmra.mxu0 %v3937
      %v4136 = vpop.f32.mrf.mxu0
      %v4137 = vadd.f32 0.0, %v4136
      %v4138 = vpop.f32.mrf.mxu0
      %4139 = vmatprep.mubr.f32.mxu0 0.0
      %4140 = vmatmul.mubr.f32.gmra.mxu0 %v3940
      %v4141 = vpop.f32.mrf.mxu0
      %v4142 = vadd.f32 0.0, %v4141
      %v4143 = vpop.f32.mrf.mxu0
      %4144 = vmatprep.mubr.f32.mxu0 0.0
      %4145 = vmatmul.mubr.f32.gmra.mxu0 %v3943
      %v4146 = vpop.f32.mrf.mxu0
      %v4147 = vadd.f32 0.0, %v4146
      %v4148 = vpop.f32.mrf.mxu0
      %4149 = vmatprep.mubr.f32.mxu0 0.0
      %4150 = vmatmul.mubr.f32.gmra.mxu0 %v3946
      %v4151 = vpop.f32.mrf.mxu0
      %v4152 = vadd.f32 0.0, %v4151
      %v4153 = vpop.f32.mrf.mxu0
      %4154 = vmatprep.mubr.f32.mxu0 0.0
      %4155 = vmatmul.mubr.f32.gmra.mxu0 %v3949
      %v4156 = vpop.f32.mrf.mxu0
      %v4157 = vadd.f32 0.0, %v4156
      %v4158 = vpop.f32.mrf.mxu0
      %4159 = vmatprep.mubr.f32.mxu0 0.0
      %4160 = vmatmul.mubr.f32.gmra.mxu0 %v3952
      %v4161 = vpop.f32.mrf.mxu0
      %v4162 = vadd.f32 0.0, %v4161
      %v4163 = vpop.f32.mrf.mxu0
      %4164 = vmatprep.mubr.f32.mxu0 0.0
      %4165 = vmatmul.mubr.f32.gmra.mxu0 %v3955
      %v4166 = vpop.f32.mrf.mxu0
      %v4167 = vadd.f32 0.0, %v4166
      %v4168 = vpop.f32.mrf.mxu0
      %4169 = vmatprep.mubr.f32.mxu0 0.0
      %4170 = vmatmul.mubr.f32.gmra.mxu0 %v3958
      %v4171 = vpop.f32.mrf.mxu0
      %v4172 = vadd.f32 0.0, %v4171
      %v4173 = vpop.f32.mrf.mxu0
      %4174 = vmatprep.mubr.f32.mxu0 0.0
      %4175 = vmatmul.mubr.f32.gmra.mxu0 %v3961
      %v4176 = vpop.f32.mrf.mxu0
      %v4177 = vadd.f32 0.0, %v4176
      %v4178 = vpop.f32.mrf.mxu0
      %4179 = vmatprep.mubr.f32.mxu0 0.0
      %4180 = vmatmul.mubr.f32.gmra.mxu0 %v3964
      %v4181 = vpop.f32.mrf.mxu0
      %v4182 = vadd.f32 0.0, %v4181
      %v4183 = vpop.f32.mrf.mxu0
      %4184 = vmatprep.mubr.f32.mxu0 0.0
      %4185 = vmatmul.mubr.f32.gmra.mxu0 %v3967
      %v4186 = vpop.f32.mrf.mxu0
      %v4187 = vadd.f32 0.0, %v4186
      %v4188 = vpop.f32.mrf.mxu0
      %4189 = vmatprep.mubr.f32.mxu0 0.0
      %4190 = vmatmul.mubr.f32.gmra.mxu0 %v3970
      %v4191 = vpop.f32.mrf.mxu0
      %v4192 = vadd.f32 0.0, %v4191
      %v4193 = vpop.f32.mrf.mxu0
      %4194 = vmatprep.mubr.f32.mxu0 0.0
      %4195 = vmatmul.mubr.f32.gmra.mxu0 %v3973
      %v4196 = vpop.f32.mrf.mxu0
      %v4197 = vadd.f32 0.0, %v4196
      %v4198 = vpop.f32.mrf.mxu0
      %4199 = vmatprep.mubr.f32.mxu0 0.0
      %4200 = vmatmul.mubr.f32.gmra.mxu0 %v3976
      %v4201 = vpop.f32.mrf.mxu0
      %v4202 = vadd.f32 0.0, %v4201
      %v4203 = vpop.f32.mrf.mxu0
      %4204 = vmatprep.mubr.f32.mxu0 0.0
      %4205 = vmatmul.mubr.f32.gmra.mxu0 %v3979
      %v4206 = vpop.f32.mrf.mxu0
      %v4207 = vadd.f32 0.0, %v4206
      %v4208 = vpop.f32.mrf.mxu0
      %4209 = vmatprep.mubr.f32.mxu0 0.0
      %4210 = vmatmul.mubr.f32.gmra.mxu0 %v3982
      %v4211 = vpop.f32.mrf.mxu0
      %v4212 = vadd.f32 0.0, %v4211
      %v4213 = vpop.f32.mrf.mxu0
      %4214 = vmatprep.mubr.f32.mxu0 0.0
      %4215 = vmatmul.mubr.f32.gmra.mxu0 %v3985
      %v4216 = vpop.f32.mrf.mxu0
      %v4217 = vadd.f32 0.0, %v4216
      %v4218 = vpop.f32.mrf.mxu0
      %4219 = vmatprep.mubr.f32.mxu0 0.0
      %4220 = vmatmul.mubr.f32.gmra.mxu0 %v3988
      %v4221 = vpop.f32.mrf.mxu0
      %v4222 = vadd.f32 0.0, %v4221
      %v4223 = vpop.f32.mrf.mxu0
      %4224 = vmatprep.mubr.f32.mxu0 0.0
      %4225 = vmatmul.mubr.f32.gmra.mxu0 %v3991
      %v4226 = vpop.f32.mrf.mxu0
      %v4227 = vadd.f32 0.0, %v4226
      %v4228 = vpop.f32.mrf.mxu0
      %4229 = vmatprep.mubr.f32.mxu0 0.0
      %4230 = vmatmul.mubr.f32.gmra.mxu0 %v3994
      %v4231 = vpop.f32.mrf.mxu0
      %v4232 = vadd.f32 0.0, %v4231
      %v4233 = vpop.f32.mrf.mxu0
      %4234 = vmatprep.mubr.f32.mxu0 0.0
      %4235 = vmatmul.mubr.f32.gmra.mxu0 %v3997
      %v4236 = vpop.f32.mrf.mxu0
      %v4237 = vadd.f32 0.0, %v4236
      %v4238 = vpop.f32.mrf.mxu0
      %4239 = vmatprep.mubr.f32.mxu0 0.0
      %4240 = vmatmul.mubr.f32.gmra.mxu0 %v4000
      %v4241 = vpop.f32.mrf.mxu0
      %v4242 = vadd.f32 0.0, %v4241
      %v4243 = vpop.f32.mrf.mxu0
      %4244 = vmatprep.mubr.f32.mxu0 0.0
      %4245 = vmatmul.mubr.f32.gmra.mxu0 %v4003
      %v4246 = vpop.f32.mrf.mxu0
      %v4247 = vadd.f32 0.0, %v4246
      %v4248 = vpop.f32.mrf.mxu0
      %4249 = vdwg.mxu0
      %v4250 = vadd.f32 %v3816, %v4072
      %v4251 = vadd.f32 %v3817, %v4077
      %v4252 = vadd.f32 %v3818, %v4082
      %v4253 = vadd.f32 %v3819, %v4087
      %v4254 = vadd.f32 %v3820, %v4092
      %v4255 = vadd.f32 %v3821, %v4097
      %v4256 = vadd.f32 %v3822, %v4102
      %v4257 = vadd.f32 %v3823, %v4107
      %v4258 = vadd.f32 %v3824, %v4112
      %v4259 = vadd.f32 %v3825, %v4117
      %v4260 = vadd.f32 %v3826, %v4122
      %v4261 = vadd.f32 %v3827, %v4127
      %v4262 = vadd.f32 %v3828, %v4132
      %v4263 = vadd.f32 %v3829, %v4137
      %v4264 = vadd.f32 %v3830, %v4142
      %v4265 = vadd.f32 %v3831, %v4147
      %v4266 = vadd.f32 %v3832, %v4152
      %v4267 = vadd.f32 %v3833, %v4157
      %v4268 = vadd.f32 %v3834, %v4162
      %v4269 = vadd.f32 %v3835, %v4167
      %v4270 = vadd.f32 %v3836, %v4172
      %v4271 = vadd.f32 %v3837, %v4177
      %v4272 = vadd.f32 %v3838, %v4182
      %v4273 = vadd.f32 %v3839, %v4187
      %v4274 = vadd.f32 %v3840, %v4192
      %v4275 = vadd.f32 %v3841, %v4197
      %v4276 = vadd.f32 %v3842, %v4202
      %v4277 = vadd.f32 %v3843, %v4207
      %v4278 = vadd.f32 %v3844, %v4212
      %v4279 = vadd.f32 %v3845, %v4217
      %v4280 = vadd.f32 %v3846, %v4222
      %v4281 = vadd.f32 %v3847, %v4227
      %v4282 = vadd.f32 %v3848, %v4232
      %v4283 = vadd.f32 %v3849, %v4237
      %v4284 = vadd.f32 %v3850, %v4242
      %v4285 = vadd.f32 %v3851, %v4247
      %4286 = vst [vmem:[#allocation4] sm:$0xff] %v4250
      %4287 = vst [vmem:[#allocation4 + $0x8] sm:$0xff] %v4251
      %4288 = vst [vmem:[#allocation4 + $0x10] sm:$0xff] %v4252
      %4289 = vst [vmem:[#allocation4 + $0x18] sm:$0xff] %v4253
      %4290 = vst [vmem:[#allocation4 + $0x20] sm:$0xff] %v4254
      %4291 = vst [vmem:[#allocation4 + $0x28] sm:$0xff] %v4255
      %4292 = vst [vmem:[#allocation4 + $0x30] sm:$0xff] %v4256
      %4293 = vst [vmem:[#allocation4 + $0x38] sm:$0xff] %v4257
      %4294 = vst [vmem:[#allocation4 + $0x40] sm:$0xff] %v4258
      %4295 = vst [vmem:[#allocation4 + $0x48] sm:$0xff] %v4259
      %4296 = vst [vmem:[#allocation4 + $0x50] sm:$0xff] %v4260
      %4297 = vst [vmem:[#allocation4 + $0x58] sm:$0xff] %v4261
      %4298 = vst [vmem:[#allocation4 + $0x60] sm:$0xff] %v4262
      %4299 = vst [vmem:[#allocation4 + $0x68] sm:$0xff] %v4263
      %4300 = vst [vmem:[#allocation4 + $0x70] sm:$0xff] %v4264
      %4301 = vst [vmem:[#allocation4 + $0x78] sm:$0xff] %v4265
      %4302 = vst [vmem:[#allocation4 + $0x80] sm:$0xff] %v4266
      %4303 = vst [vmem:[#allocation4 + $0x88] sm:$0xff] %v4267
      %4304 = vst [vmem:[#allocation4 + $0x90] sm:$0xff] %v4268
      %4305 = vst [vmem:[#allocation4 + $0x98] sm:$0xff] %v4269
      %4306 = vst [vmem:[#allocation4 + $0xa0] sm:$0xff] %v4270
      %4307 = vst [vmem:[#allocation4 + $0xa8] sm:$0xff] %v4271
      %4308 = vst [vmem:[#allocation4 + $0xb0] sm:$0xff] %v4272
      %4309 = vst [vmem:[#allocation4 + $0xb8] sm:$0xff] %v4273
      %4310 = vst [vmem:[#allocation4 + $0xc0] sm:$0xff] %v4274
      %4311 = vst [vmem:[#allocation4 + $0xc8] sm:$0xff] %v4275
      %4312 = vst [vmem:[#allocation4 + $0xd0] sm:$0xff] %v4276
      %4313 = vst [vmem:[#allocation4 + $0xd8] sm:$0xff] %v4277
      %4314 = vst [vmem:[#allocation4 + $0xe0] sm:$0xff] %v4278
      %4315 = vst [vmem:[#allocation4 + $0xe8] sm:$0xff] %v4279
      %4316 = vst [vmem:[#allocation4 + $0xf0] sm:$0xff] %v4280
      %4317 = vst [vmem:[#allocation4 + $0xf8] sm:$0xff] %v4281
      %4318 = vst [vmem:[#allocation4 + $0x100] sm:$0xff] %v4282
      %4319 = vst [vmem:[#allocation4 + $0x108] sm:$0xff] %v4283
      %4320 = vst [vmem:[#allocation4 + $0x110] sm:$0xff] %v4284
      %4321 = vst [vmem:[#allocation4 + $0x118] sm:$0xff] %v4285
      %v4322 = vld [vmem:[#allocation4] sm:$0xff]
      %v4323 = vld [vmem:[#allocation4 + $0x8] sm:$0xff]
      %v4324 = vld [vmem:[#allocation4 + $0x10] sm:$0xff]
      %v4325 = vld [vmem:[#allocation4 + $0x18] sm:$0xff]
      %v4326 = vld [vmem:[#allocation4 + $0x20] sm:$0xff]
      %v4327 = vld [vmem:[#allocation4 + $0x28] sm:$0xff]
      %v4328 = vld [vmem:[#allocation4 + $0x30] sm:$0xff]
      %v4329 = vld [vmem:[#allocation4 + $0x38] sm:$0xff]
      %v4330 = vld [vmem:[#allocation4 + $0x40] sm:$0xff]
      %v4331 = vld [vmem:[#allocation4 + $0x48] sm:$0xff]
      %v4332 = vld [vmem:[#allocation4 + $0x50] sm:$0xff]
      %v4333 = vld [vmem:[#allocation4 + $0x58] sm:$0xff]
      %v4334 = vld [vmem:[#allocation4 + $0x60] sm:$0xff]
      %v4335 = vld [vmem:[#allocation4 + $0x68] sm:$0xff]
      %v4336 = vld [vmem:[#allocation4 + $0x70] sm:$0xff]
      %v4337 = vld [vmem:[#allocation4 + $0x78] sm:$0xff]
      %v4338 = vld [vmem:[#allocation4 + $0x80] sm:$0xff]
      %v4339 = vld [vmem:[#allocation4 + $0x88] sm:$0xff]
      %v4340 = vld [vmem:[#allocation4 + $0x90] sm:$0xff]
      %v4341 = vld [vmem:[#allocation4 + $0x98] sm:$0xff]
      %v4342 = vld [vmem:[#allocation4 + $0xa0] sm:$0xff]
      %v4343 = vld [vmem:[#allocation4 + $0xa8] sm:$0xff]
      %v4344 = vld [vmem:[#allocation4 + $0xb0] sm:$0xff]
      %v4345 = vld [vmem:[#allocation4 + $0xb8] sm:$0xff]
      %v4346 = vld [vmem:[#allocation4 + $0xc0] sm:$0xff]
      %v4347 = vld [vmem:[#allocation4 + $0xc8] sm:$0xff]
      %v4348 = vld [vmem:[#allocation4 + $0xd0] sm:$0xff]
      %v4349 = vld [vmem:[#allocation4 + $0xd8] sm:$0xff]
      %v4350 = vld [vmem:[#allocation4 + $0xe0] sm:$0xff]
      %v4351 = vld [vmem:[#allocation4 + $0xe8] sm:$0xff]
      %v4352 = vld [vmem:[#allocation4 + $0xf0] sm:$0xff]
      %v4353 = vld [vmem:[#allocation4 + $0xf8] sm:$0xff]
      %v4354 = vld [vmem:[#allocation4 + $0x100] sm:$0xff]
      %v4355 = vld [vmem:[#allocation4 + $0x108] sm:$0xff]
      %v4356 = vld [vmem:[#allocation4 + $0x110] sm:$0xff]
      %v4357 = vld [vmem:[#allocation4 + $0x118] sm:$0xff]
      %v4358 = vld [vmem:[#allocation2 + $0x24] sm:$0xff]
      %v4359 = vld [vmem:[#allocation2 + $0x2c] sm:$0xff]
      %v4360 = vld [vmem:[#allocation2 + $0x34] sm:$0xff]
      %v4361 = vld [vmem:[#allocation2 + $0x3c] sm:$0xff]
      %v4362 = vld [vmem:[#allocation2 + $0x44] sm:$0xff]
      %v4363 = vld [vmem:[#allocation2 + $0x4c] sm:$0xff]
      %v4364 = vld [vmem:[#allocation2 + $0x54] sm:$0xff]
      %v4365 = vld [vmem:[#allocation2 + $0x5c] sm:$0xff]
      %v4366 = vld [vmem:[#allocation2 + $0x64] sm:$0xff]
      %v4367 = vld [vmem:[#allocation2 + $0x6c] sm:$0xff]
      %v4368 = vld [vmem:[#allocation2 + $0x74] sm:$0xff]
      %v4369 = vld [vmem:[#allocation2 + $0x7c] sm:$0xff]
      %v4370 = vld [vmem:[#allocation2 + $0x84] sm:$0xff]
      %v4371 = vld [vmem:[#allocation2 + $0x8c] sm:$0xff]
      %v4372 = vld [vmem:[#allocation2 + $0x94] sm:$0xff]
      %v4373 = vld [vmem:[#allocation2 + $0x9c] sm:$0xff]
      %v4374 = vld [vmem:[#allocation2 + $0xa4] sm:$0xff]
      %v4375 = vld [vmem:[#allocation2 + $0xac] sm:$0xff]
      %v4376 = vld [vmem:[#allocation2 + $0xb4] sm:$0xff]
      %v4377 = vld [vmem:[#allocation2 + $0xbc] sm:$0xff]
      %v4378 = vld [vmem:[#allocation2 + $0xc4] sm:$0xff]
      %v4379 = vld [vmem:[#allocation2 + $0xcc] sm:$0xff]
      %v4380 = vld [vmem:[#allocation2 + $0xd4] sm:$0xff]
      %v4381 = vld [vmem:[#allocation2 + $0xdc] sm:$0xff]
      %v4382 = vld [vmem:[#allocation2 + $0xe4] sm:$0xff]
      %v4383 = vld [vmem:[#allocation2 + $0xec] sm:$0xff]
      %v4384 = vld [vmem:[#allocation2 + $0xf4] sm:$0xff]
      %v4385 = vld [vmem:[#allocation2 + $0xfc] sm:$0xff]
      %v4386 = vld [vmem:[#allocation2 + $0x104] sm:$0xff]
      %v4387 = vld [vmem:[#allocation2 + $0x10c] sm:$0xff]
      %v4388 = vld [vmem:[#allocation2 + $0x114] sm:$0xff]
      %v4389 = vld [vmem:[#allocation2 + $0x11c] sm:$0xff]
      %v4390 = vld [vmem:[#allocation2 + $0x124] sm:$0xff]
      %v4391 = vld [vmem:[#allocation2 + $0x12c] sm:$0xff]
      %v4392 = vld [vmem:[#allocation2 + $0x134] sm:$0xff]
      %v4393 = vld [vmem:[#allocation2 + $0x13c] sm:$0xff]
      %s4394 = scalar_lea.vmem %s7, 384
      %v4395 = vld [vmem:[%s4394] sm:$0xff]
      %v4396 = vld [vmem:[%s4394 + $0x8] sm:$0xff]
      %v4397 = vld [vmem:[%s4394 + $0x10] sm:$0xff]
      %v4398 = vld [vmem:[%s4394 + $0x18] sm:$0xff]
      %v4399 = vld [vmem:[%s4394 + $0x20] sm:$0xff]
      %v4400 = vld [vmem:[%s4394 + $0x28] sm:$0xff]
      %v4401 = vld [vmem:[%s4394 + $0x30] sm:$0xff]
      %v4402 = vld [vmem:[%s4394 + $0x38] sm:$0xff]
      %v4404 = vsel %vm896, %v4358, 0
      %v4407 = vsel %vm896, %v4359, 0
      %v4410 = vsel %vm896, %v4360, 0
      %v4413 = vsel %vm896, %v4361, 0
      %v4416 = vsel %vm896, %v4362, 0
      %v4419 = vsel %vm896, %v4363, 0
      %v4422 = vsel %vm896, %v4364, 0
      %v4425 = vsel %vm896, %v4365, 0
      %v4428 = vsel %vm896, %v4366, 0
      %v4431 = vsel %vm896, %v4367, 0
      %v4434 = vsel %vm896, %v4368, 0
      %v4437 = vsel %vm896, %v4369, 0
      %v4440 = vsel %vm896, %v4370, 0
      %v4443 = vsel %vm896, %v4371, 0
      %v4446 = vsel %vm896, %v4372, 0
      %v4449 = vsel %vm896, %v4373, 0
      %v4452 = vsel %vm896, %v4374, 0
      %v4455 = vsel %vm896, %v4375, 0
      %v4458 = vsel %vm896, %v4376, 0
      %v4461 = vsel %vm896, %v4377, 0
      %v4464 = vsel %vm896, %v4378, 0
      %v4467 = vsel %vm896, %v4379, 0
      %v4470 = vsel %vm896, %v4380, 0
      %v4473 = vsel %vm896, %v4381, 0
      %v4476 = vsel %vm896, %v4382, 0
      %v4479 = vsel %vm896, %v4383, 0
      %v4482 = vsel %vm896, %v4384, 0
      %v4485 = vsel %vm896, %v4385, 0
      %v4488 = vsel %vm896, %v4386, 0
      %v4491 = vsel %vm896, %v4387, 0
      %v4494 = vsel %vm896, %v4388, 0
      %v4497 = vsel %vm896, %v4389, 0
      %v4500 = vsel %vm896, %v4390, 0
      %v4503 = vsel %vm896, %v4391, 0
      %v4506 = vsel %vm896, %v4392, 0
      %v4509 = vsel %vm896, %v4393, 0
      %4511 = vmatprep.subr.mxu0 0.0
      %4512 = vmatpush1.msra.mxu0 0.0
      %4513 = vmatprep.subr.mxu0 0.0
      %4514 = vmatpush1.msra.mxu0 0.0
      %4515 = vmatprep.subr.mxu0 0.0
      %4516 = vmatpush1.msra.mxu0 0.0
      %4517 = vmatprep.subr.mxu0 0.0
      %4518 = vmatpush1.msra.mxu0 0.0
      %4519 = vmatprep.subr.mxu0 0.0
      %4520 = vmatpush1.msra.mxu0 0.0
      %4521 = vmatprep.subr.mxu0 0.0
      %4522 = vmatpush1.msra.mxu0 0.0
      %4523 = vmatprep.subr.mxu0 0.0
      %4524 = vmatpush1.msra.mxu0 0.0
      %4525 = vmatprep.subr.mxu0 0.0
      %4526 = vmatpush1.msra.mxu0 0.0
      %4527 = vmatprep.subr.mxu0 0.0
      %4528 = vmatpush1.msra.mxu0 %v4402
      %4529 = vmatprep.subr.mxu0 0.0
      %4530 = vmatpush1.msra.mxu0 %v4401
      %4531 = vmatprep.subr.mxu0 0.0
      %4532 = vmatpush1.msra.mxu0 %v4400
      %4533 = vmatprep.subr.mxu0 0.0
      %4534 = vmatpush1.msra.mxu0 %v4399
      %4535 = vmatprep.subr.mxu0 0.0
      %4536 = vmatpush1.msra.mxu0 %v4398
      %4537 = vmatprep.subr.mxu0 0.0
      %4538 = vmatpush1.msra.mxu0 %v4397
      %4539 = vmatprep.subr.mxu0 0.0
      %4540 = vmatpush1.msra.mxu0 %v4396
      %4541 = vmatprep.subr.mxu0 0.0
      %4542 = vmatpush1.msra.mxu0 %v4395
      %4543 = vmatprep.subr.mxu0 0.0
      %4544 = vmatpush2.msra.mxu0 0.0
      %4545 = vmatprep.subr.mxu0 0.0
      %4546 = vmatpush2.msra.mxu0 0.0
      %4547 = vmatprep.subr.mxu0 0.0
      %4548 = vmatpush2.msra.mxu0 0.0
      %4549 = vmatprep.subr.mxu0 0.0
      %4550 = vmatpush2.msra.mxu0 0.0
      %4551 = vmatprep.subr.mxu0 0.0
      %4552 = vmatpush2.msra.mxu0 0.0
      %4553 = vmatprep.subr.mxu0 0.0
      %4554 = vmatpush2.msra.mxu0 0.0
      %4555 = vmatprep.subr.mxu0 0.0
      %4556 = vmatpush2.msra.mxu0 0.0
      %4557 = vmatprep.subr.mxu0 0.0
      %4558 = vmatpush2.msra.mxu0 0.0
      %4559 = vmatprep.subr.mxu0 0.0
      %4560 = vmatpush2.msra.mxu0 0.0
      %4561 = vmatprep.subr.mxu0 0.0
      %4562 = vmatpush2.msra.mxu0 0.0
      %4563 = vmatprep.subr.mxu0 0.0
      %4564 = vmatpush2.msra.mxu0 0.0
      %4565 = vmatprep.subr.mxu0 0.0
      %4566 = vmatpush2.msra.mxu0 0.0
      %4567 = vmatprep.subr.mxu0 0.0
      %4568 = vmatpush2.msra.mxu0 0.0
      %4569 = vmatprep.subr.mxu0 0.0
      %4570 = vmatpush2.msra.mxu0 0.0
      %4571 = vmatprep.subr.mxu0 0.0
      %4572 = vmatpush2.msra.mxu0 0.0
      %4573 = vmatprep.subr.mxu0 0.0
      %4574 = vmatpush2.msra.mxu0 0.0
      %4575 = vmatprep.mubr.f32.mxu0 0.0
      %4576 = vmatmul.mubr.f32.gmra.mxu0 %v4404
      %v4577 = vpop.f32.mrf.mxu0
      %v4578 = vadd.f32 0.0, %v4577
      %v4579 = vpop.f32.mrf.mxu0
      %4580 = vmatprep.mubr.f32.mxu0 0.0
      %4581 = vmatmul.mubr.f32.gmra.mxu0 %v4407
      %v4582 = vpop.f32.mrf.mxu0
      %v4583 = vadd.f32 0.0, %v4582
      %v4584 = vpop.f32.mrf.mxu0
      %4585 = vmatprep.mubr.f32.mxu0 0.0
      %4586 = vmatmul.mubr.f32.gmra.mxu0 %v4410
      %v4587 = vpop.f32.mrf.mxu0
      %v4588 = vadd.f32 0.0, %v4587
      %v4589 = vpop.f32.mrf.mxu0
      %4590 = vmatprep.mubr.f32.mxu0 0.0
      %4591 = vmatmul.mubr.f32.gmra.mxu0 %v4413
      %v4592 = vpop.f32.mrf.mxu0
      %v4593 = vadd.f32 0.0, %v4592
      %v4594 = vpop.f32.mrf.mxu0
      %4595 = vmatprep.mubr.f32.mxu0 0.0
      %4596 = vmatmul.mubr.f32.gmra.mxu0 %v4416
      %v4597 = vpop.f32.mrf.mxu0
      %v4598 = vadd.f32 0.0, %v4597
      %v4599 = vpop.f32.mrf.mxu0
      %4600 = vmatprep.mubr.f32.mxu0 0.0
      %4601 = vmatmul.mubr.f32.gmra.mxu0 %v4419
      %v4602 = vpop.f32.mrf.mxu0
      %v4603 = vadd.f32 0.0, %v4602
      %v4604 = vpop.f32.mrf.mxu0
      %4605 = vmatprep.mubr.f32.mxu0 0.0
      %4606 = vmatmul.mubr.f32.gmra.mxu0 %v4422
      %v4607 = vpop.f32.mrf.mxu0
      %v4608 = vadd.f32 0.0, %v4607
      %v4609 = vpop.f32.mrf.mxu0
      %4610 = vmatprep.mubr.f32.mxu0 0.0
      %4611 = vmatmul.mubr.f32.gmra.mxu0 %v4425
      %v4612 = vpop.f32.mrf.mxu0
      %v4613 = vadd.f32 0.0, %v4612
      %v4614 = vpop.f32.mrf.mxu0
      %4615 = vmatprep.mubr.f32.mxu0 0.0
      %4616 = vmatmul.mubr.f32.gmra.mxu0 %v4428
      %v4617 = vpop.f32.mrf.mxu0
      %v4618 = vadd.f32 0.0, %v4617
      %v4619 = vpop.f32.mrf.mxu0
      %4620 = vmatprep.mubr.f32.mxu0 0.0
      %4621 = vmatmul.mubr.f32.gmra.mxu0 %v4431
      %v4622 = vpop.f32.mrf.mxu0
      %v4623 = vadd.f32 0.0, %v4622
      %v4624 = vpop.f32.mrf.mxu0
      %4625 = vmatprep.mubr.f32.mxu0 0.0
      %4626 = vmatmul.mubr.f32.gmra.mxu0 %v4434
      %v4627 = vpop.f32.mrf.mxu0
      %v4628 = vadd.f32 0.0, %v4627
      %v4629 = vpop.f32.mrf.mxu0
      %4630 = vmatprep.mubr.f32.mxu0 0.0
      %4631 = vmatmul.mubr.f32.gmra.mxu0 %v4437
      %v4632 = vpop.f32.mrf.mxu0
      %v4633 = vadd.f32 0.0, %v4632
      %v4634 = vpop.f32.mrf.mxu0
      %4635 = vmatprep.mubr.f32.mxu0 0.0
      %4636 = vmatmul.mubr.f32.gmra.mxu0 %v4440
      %v4637 = vpop.f32.mrf.mxu0
      %v4638 = vadd.f32 0.0, %v4637
      %v4639 = vpop.f32.mrf.mxu0
      %4640 = vmatprep.mubr.f32.mxu0 0.0
      %4641 = vmatmul.mubr.f32.gmra.mxu0 %v4443
      %v4642 = vpop.f32.mrf.mxu0
      %v4643 = vadd.f32 0.0, %v4642
      %v4644 = vpop.f32.mrf.mxu0
      %4645 = vmatprep.mubr.f32.mxu0 0.0
      %4646 = vmatmul.mubr.f32.gmra.mxu0 %v4446
      %v4647 = vpop.f32.mrf.mxu0
      %v4648 = vadd.f32 0.0, %v4647
      %v4649 = vpop.f32.mrf.mxu0
      %4650 = vmatprep.mubr.f32.mxu0 0.0
      %4651 = vmatmul.mubr.f32.gmra.mxu0 %v4449
      %v4652 = vpop.f32.mrf.mxu0
      %v4653 = vadd.f32 0.0, %v4652
      %v4654 = vpop.f32.mrf.mxu0
      %4655 = vmatprep.mubr.f32.mxu0 0.0
      %4656 = vmatmul.mubr.f32.gmra.mxu0 %v4452
      %v4657 = vpop.f32.mrf.mxu0
      %v4658 = vadd.f32 0.0, %v4657
      %v4659 = vpop.f32.mrf.mxu0
      %4660 = vmatprep.mubr.f32.mxu0 0.0
      %4661 = vmatmul.mubr.f32.gmra.mxu0 %v4455
      %v4662 = vpop.f32.mrf.mxu0
      %v4663 = vadd.f32 0.0, %v4662
      %v4664 = vpop.f32.mrf.mxu0
      %4665 = vmatprep.mubr.f32.mxu0 0.0
      %4666 = vmatmul.mubr.f32.gmra.mxu0 %v4458
      %v4667 = vpop.f32.mrf.mxu0
      %v4668 = vadd.f32 0.0, %v4667
      %v4669 = vpop.f32.mrf.mxu0
      %4670 = vmatprep.mubr.f32.mxu0 0.0
      %4671 = vmatmul.mubr.f32.gmra.mxu0 %v4461
      %v4672 = vpop.f32.mrf.mxu0
      %v4673 = vadd.f32 0.0, %v4672
      %v4674 = vpop.f32.mrf.mxu0
      %4675 = vmatprep.mubr.f32.mxu0 0.0
      %4676 = vmatmul.mubr.f32.gmra.mxu0 %v4464
      %v4677 = vpop.f32.mrf.mxu0
      %v4678 = vadd.f32 0.0, %v4677
      %v4679 = vpop.f32.mrf.mxu0
      %4680 = vmatprep.mubr.f32.mxu0 0.0
      %4681 = vmatmul.mubr.f32.gmra.mxu0 %v4467
      %v4682 = vpop.f32.mrf.mxu0
      %v4683 = vadd.f32 0.0, %v4682
      %v4684 = vpop.f32.mrf.mxu0
      %4685 = vmatprep.mubr.f32.mxu0 0.0
      %4686 = vmatmul.mubr.f32.gmra.mxu0 %v4470
      %v4687 = vpop.f32.mrf.mxu0
      %v4688 = vadd.f32 0.0, %v4687
      %v4689 = vpop.f32.mrf.mxu0
      %4690 = vmatprep.mubr.f32.mxu0 0.0
      %4691 = vmatmul.mubr.f32.gmra.mxu0 %v4473
      %v4692 = vpop.f32.mrf.mxu0
      %v4693 = vadd.f32 0.0, %v4692
      %v4694 = vpop.f32.mrf.mxu0
      %4695 = vmatprep.mubr.f32.mxu0 0.0
      %4696 = vmatmul.mubr.f32.gmra.mxu0 %v4476
      %v4697 = vpop.f32.mrf.mxu0
      %v4698 = vadd.f32 0.0, %v4697
      %v4699 = vpop.f32.mrf.mxu0
      %4700 = vmatprep.mubr.f32.mxu0 0.0
      %4701 = vmatmul.mubr.f32.gmra.mxu0 %v4479
      %v4702 = vpop.f32.mrf.mxu0
      %v4703 = vadd.f32 0.0, %v4702
      %v4704 = vpop.f32.mrf.mxu0
      %4705 = vmatprep.mubr.f32.mxu0 0.0
      %4706 = vmatmul.mubr.f32.gmra.mxu0 %v4482
      %v4707 = vpop.f32.mrf.mxu0
      %v4708 = vadd.f32 0.0, %v4707
      %v4709 = vpop.f32.mrf.mxu0
      %4710 = vmatprep.mubr.f32.mxu0 0.0
      %4711 = vmatmul.mubr.f32.gmra.mxu0 %v4485
      %v4712 = vpop.f32.mrf.mxu0
      %v4713 = vadd.f32 0.0, %v4712
      %v4714 = vpop.f32.mrf.mxu0
      %4715 = vmatprep.mubr.f32.mxu0 0.0
      %4716 = vmatmul.mubr.f32.gmra.mxu0 %v4488
      %v4717 = vpop.f32.mrf.mxu0
      %v4718 = vadd.f32 0.0, %v4717
      %v4719 = vpop.f32.mrf.mxu0
      %4720 = vmatprep.mubr.f32.mxu0 0.0
      %4721 = vmatmul.mubr.f32.gmra.mxu0 %v4491
      %v4722 = vpop.f32.mrf.mxu0
      %v4723 = vadd.f32 0.0, %v4722
      %v4724 = vpop.f32.mrf.mxu0
      %4725 = vmatprep.mubr.f32.mxu0 0.0
      %4726 = vmatmul.mubr.f32.gmra.mxu0 %v4494
      %v4727 = vpop.f32.mrf.mxu0
      %v4728 = vadd.f32 0.0, %v4727
      %v4729 = vpop.f32.mrf.mxu0
      %4730 = vmatprep.mubr.f32.mxu0 0.0
      %4731 = vmatmul.mubr.f32.gmra.mxu0 %v4497
      %v4732 = vpop.f32.mrf.mxu0
      %v4733 = vadd.f32 0.0, %v4732
      %v4734 = vpop.f32.mrf.mxu0
      %4735 = vmatprep.mubr.f32.mxu0 0.0
      %4736 = vmatmul.mubr.f32.gmra.mxu0 %v4500
      %v4737 = vpop.f32.mrf.mxu0
      %v4738 = vadd.f32 0.0, %v4737
      %v4739 = vpop.f32.mrf.mxu0
      %4740 = vmatprep.mubr.f32.mxu0 0.0
      %4741 = vmatmul.mubr.f32.gmra.mxu0 %v4503
      %v4742 = vpop.f32.mrf.mxu0
      %v4743 = vadd.f32 0.0, %v4742
      %v4744 = vpop.f32.mrf.mxu0
      %4745 = vmatprep.mubr.f32.mxu0 0.0
      %4746 = vmatmul.mubr.f32.gmra.mxu0 %v4506
      %v4747 = vpop.f32.mrf.mxu0
      %v4748 = vadd.f32 0.0, %v4747
      %v4749 = vpop.f32.mrf.mxu0
      %4750 = vmatprep.mubr.f32.mxu0 0.0
      %4751 = vmatmul.mubr.f32.gmra.mxu0 %v4509
      %v4752 = vpop.f32.mrf.mxu0
      %v4753 = vadd.f32 0.0, %v4752
      %v4754 = vpop.f32.mrf.mxu0
      %4755 = vdwg.mxu0
      %v4756 = vadd.f32 %v4322, %v4578
      %v4757 = vadd.f32 %v4323, %v4583
      %v4758 = vadd.f32 %v4324, %v4588
      %v4759 = vadd.f32 %v4325, %v4593
      %v4760 = vadd.f32 %v4326, %v4598
      %v4761 = vadd.f32 %v4327, %v4603
      %v4762 = vadd.f32 %v4328, %v4608
      %v4763 = vadd.f32 %v4329, %v4613
      %v4764 = vadd.f32 %v4330, %v4618
      %v4765 = vadd.f32 %v4331, %v4623
      %v4766 = vadd.f32 %v4332, %v4628
      %v4767 = vadd.f32 %v4333, %v4633
      %v4768 = vadd.f32 %v4334, %v4638
      %v4769 = vadd.f32 %v4335, %v4643
      %v4770 = vadd.f32 %v4336, %v4648
      %v4771 = vadd.f32 %v4337, %v4653
      %v4772 = vadd.f32 %v4338, %v4658
      %v4773 = vadd.f32 %v4339, %v4663
      %v4774 = vadd.f32 %v4340, %v4668
      %v4775 = vadd.f32 %v4341, %v4673
      %v4776 = vadd.f32 %v4342, %v4678
      %v4777 = vadd.f32 %v4343, %v4683
      %v4778 = vadd.f32 %v4344, %v4688
      %v4779 = vadd.f32 %v4345, %v4693
      %v4780 = vadd.f32 %v4346, %v4698
      %v4781 = vadd.f32 %v4347, %v4703
      %v4782 = vadd.f32 %v4348, %v4708
      %v4783 = vadd.f32 %v4349, %v4713
      %v4784 = vadd.f32 %v4350, %v4718
      %v4785 = vadd.f32 %v4351, %v4723
      %v4786 = vadd.f32 %v4352, %v4728
      %v4787 = vadd.f32 %v4353, %v4733
      %v4788 = vadd.f32 %v4354, %v4738
      %v4789 = vadd.f32 %v4355, %v4743
      %v4790 = vadd.f32 %v4356, %v4748
      %v4791 = vadd.f32 %v4357, %v4753
      %4792 = vst [vmem:[#allocation4] sm:$0xff] %v4756
      %4793 = vst [vmem:[#allocation4 + $0x8] sm:$0xff] %v4757
      %4794 = vst [vmem:[#allocation4 + $0x10] sm:$0xff] %v4758
      %4795 = vst [vmem:[#allocation4 + $0x18] sm:$0xff] %v4759
      %4796 = vst [vmem:[#allocation4 + $0x20] sm:$0xff] %v4760
      %4797 = vst [vmem:[#allocation4 + $0x28] sm:$0xff] %v4761
      %4798 = vst [vmem:[#allocation4 + $0x30] sm:$0xff] %v4762
      %4799 = vst [vmem:[#allocation4 + $0x38] sm:$0xff] %v4763
      %4800 = vst [vmem:[#allocation4 + $0x40] sm:$0xff] %v4764
      %4801 = vst [vmem:[#allocation4 + $0x48] sm:$0xff] %v4765
      %4802 = vst [vmem:[#allocation4 + $0x50] sm:$0xff] %v4766
      %4803 = vst [vmem:[#allocation4 + $0x58] sm:$0xff] %v4767
      %4804 = vst [vmem:[#allocation4 + $0x60] sm:$0xff] %v4768
      %4805 = vst [vmem:[#allocation4 + $0x68] sm:$0xff] %v4769
      %4806 = vst [vmem:[#allocation4 + $0x70] sm:$0xff] %v4770
      %4807 = vst [vmem:[#allocation4 + $0x78] sm:$0xff] %v4771
      %4808 = vst [vmem:[#allocation4 + $0x80] sm:$0xff] %v4772
      %4809 = vst [vmem:[#allocation4 + $0x88] sm:$0xff] %v4773
      %4810 = vst [vmem:[#allocation4 + $0x90] sm:$0xff] %v4774
      %4811 = vst [vmem:[#allocation4 + $0x98] sm:$0xff] %v4775
      %4812 = vst [vmem:[#allocation4 + $0xa0] sm:$0xff] %v4776
      %4813 = vst [vmem:[#allocation4 + $0xa8] sm:$0xff] %v4777
      %4814 = vst [vmem:[#allocation4 + $0xb0] sm:$0xff] %v4778
      %4815 = vst [vmem:[#allocation4 + $0xb8] sm:$0xff] %v4779
      %4816 = vst [vmem:[#allocation4 + $0xc0] sm:$0xff] %v4780
      %4817 = vst [vmem:[#allocation4 + $0xc8] sm:$0xff] %v4781
      %4818 = vst [vmem:[#allocation4 + $0xd0] sm:$0xff] %v4782
      %4819 = vst [vmem:[#allocation4 + $0xd8] sm:$0xff] %v4783
      %4820 = vst [vmem:[#allocation4 + $0xe0] sm:$0xff] %v4784
      %4821 = vst [vmem:[#allocation4 + $0xe8] sm:$0xff] %v4785
      %4822 = vst [vmem:[#allocation4 + $0xf0] sm:$0xff] %v4786
      %4823 = vst [vmem:[#allocation4 + $0xf8] sm:$0xff] %v4787
      %4824 = vst [vmem:[#allocation4 + $0x100] sm:$0xff] %v4788
      %4825 = vst [vmem:[#allocation4 + $0x108] sm:$0xff] %v4789
      %4826 = vst [vmem:[#allocation4 + $0x110] sm:$0xff] %v4790
      %4827 = vst [vmem:[#allocation4 + $0x118] sm:$0xff] %v4791
      %v4828 = vld [vmem:[#allocation4] sm:$0xff]
      %v4829 = vld [vmem:[#allocation4 + $0x8] sm:$0xff]
      %v4830 = vld [vmem:[#allocation4 + $0x10] sm:$0xff]
      %v4831 = vld [vmem:[#allocation4 + $0x18] sm:$0xff]
      %v4832 = vld [vmem:[#allocation4 + $0x20] sm:$0xff]
      %v4833 = vld [vmem:[#allocation4 + $0x28] sm:$0xff]
      %v4834 = vld [vmem:[#allocation4 + $0x30] sm:$0xff]
      %v4835 = vld [vmem:[#allocation4 + $0x38] sm:$0xff]
      %v4836 = vld [vmem:[#allocation4 + $0x40] sm:$0xff]
      %v4837 = vld [vmem:[#allocation4 + $0x48] sm:$0xff]
      %v4838 = vld [vmem:[#allocation4 + $0x50] sm:$0xff]
      %v4839 = vld [vmem:[#allocation4 + $0x58] sm:$0xff]
      %v4840 = vld [vmem:[#allocation4 + $0x60] sm:$0xff]
      %v4841 = vld [vmem:[#allocation4 + $0x68] sm:$0xff]
      %v4842 = vld [vmem:[#allocation4 + $0x70] sm:$0xff]
      %v4843 = vld [vmem:[#allocation4 + $0x78] sm:$0xff]
      %v4844 = vld [vmem:[#allocation4 + $0x80] sm:$0xff]
      %v4845 = vld [vmem:[#allocation4 + $0x88] sm:$0xff]
      %v4846 = vld [vmem:[#allocation4 + $0x90] sm:$0xff]
      %v4847 = vld [vmem:[#allocation4 + $0x98] sm:$0xff]
      %v4848 = vld [vmem:[#allocation4 + $0xa0] sm:$0xff]
      %v4849 = vld [vmem:[#allocation4 + $0xa8] sm:$0xff]
      %v4850 = vld [vmem:[#allocation4 + $0xb0] sm:$0xff]
      %v4851 = vld [vmem:[#allocation4 + $0xb8] sm:$0xff]
      %v4852 = vld [vmem:[#allocation4 + $0xc0] sm:$0xff]
      %v4853 = vld [vmem:[#allocation4 + $0xc8] sm:$0xff]
      %v4854 = vld [vmem:[#allocation4 + $0xd0] sm:$0xff]
      %v4855 = vld [vmem:[#allocation4 + $0xd8] sm:$0xff]
      %v4856 = vld [vmem:[#allocation4 + $0xe0] sm:$0xff]
      %v4857 = vld [vmem:[#allocation4 + $0xe8] sm:$0xff]
      %v4858 = vld [vmem:[#allocation4 + $0xf0] sm:$0xff]
      %v4859 = vld [vmem:[#allocation4 + $0xf8] sm:$0xff]
      %v4860 = vld [vmem:[#allocation4 + $0x100] sm:$0xff]
      %v4861 = vld [vmem:[#allocation4 + $0x108] sm:$0xff]
      %v4862 = vld [vmem:[#allocation4 + $0x110] sm:$0xff]
      %v4863 = vld [vmem:[#allocation4 + $0x118] sm:$0xff]
      %v4864 = vld [vmem:[#allocation2 + $0x25] sm:$0xff]
      %v4865 = vld [vmem:[#allocation2 + $0x2d] sm:$0xff]
      %v4866 = vld [vmem:[#allocation2 + $0x35] sm:$0xff]
      %v4867 = vld [vmem:[#allocation2 + $0x3d] sm:$0xff]
      %v4868 = vld [vmem:[#allocation2 + $0x45] sm:$0xff]
      %v4869 = vld [vmem:[#allocation2 + $0x4d] sm:$0xff]
      %v4870 = vld [vmem:[#allocation2 + $0x55] sm:$0xff]
      %v4871 = vld [vmem:[#allocation2 + $0x5d] sm:$0xff]
      %v4872 = vld [vmem:[#allocation2 + $0x65] sm:$0xff]
      %v4873 = vld [vmem:[#allocation2 + $0x6d] sm:$0xff]
      %v4874 = vld [vmem:[#allocation2 + $0x75] sm:$0xff]
      %v4875 = vld [vmem:[#allocation2 + $0x7d] sm:$0xff]
      %v4876 = vld [vmem:[#allocation2 + $0x85] sm:$0xff]
      %v4877 = vld [vmem:[#allocation2 + $0x8d] sm:$0xff]
      %v4878 = vld [vmem:[#allocation2 + $0x95] sm:$0xff]
      %v4879 = vld [vmem:[#allocation2 + $0x9d] sm:$0xff]
      %v4880 = vld [vmem:[#allocation2 + $0xa5] sm:$0xff]
      %v4881 = vld [vmem:[#allocation2 + $0xad] sm:$0xff]
      %v4882 = vld [vmem:[#allocation2 + $0xb5] sm:$0xff]
      %v4883 = vld [vmem:[#allocation2 + $0xbd] sm:$0xff]
      %v4884 = vld [vmem:[#allocation2 + $0xc5] sm:$0xff]
      %v4885 = vld [vmem:[#allocation2 + $0xcd] sm:$0xff]
      %v4886 = vld [vmem:[#allocation2 + $0xd5] sm:$0xff]
      %v4887 = vld [vmem:[#allocation2 + $0xdd] sm:$0xff]
      %v4888 = vld [vmem:[#allocation2 + $0xe5] sm:$0xff]
      %v4889 = vld [vmem:[#allocation2 + $0xed] sm:$0xff]
      %v4890 = vld [vmem:[#allocation2 + $0xf5] sm:$0xff]
      %v4891 = vld [vmem:[#allocation2 + $0xfd] sm:$0xff]
      %v4892 = vld [vmem:[#allocation2 + $0x105] sm:$0xff]
      %v4893 = vld [vmem:[#allocation2 + $0x10d] sm:$0xff]
      %v4894 = vld [vmem:[#allocation2 + $0x115] sm:$0xff]
      %v4895 = vld [vmem:[#allocation2 + $0x11d] sm:$0xff]
      %v4896 = vld [vmem:[#allocation2 + $0x125] sm:$0xff]
      %v4897 = vld [vmem:[#allocation2 + $0x12d] sm:$0xff]
      %v4898 = vld [vmem:[#allocation2 + $0x135] sm:$0xff]
      %v4899 = vld [vmem:[#allocation2 + $0x13d] sm:$0xff]
      %s4900 = scalar_lea.vmem %s7, 448
      %v4901 = vld [vmem:[%s4900] sm:$0xff]
      %v4902 = vld [vmem:[%s4900 + $0x8] sm:$0xff]
      %v4903 = vld [vmem:[%s4900 + $0x10] sm:$0xff]
      %v4904 = vld [vmem:[%s4900 + $0x18] sm:$0xff]
      %v4905 = vld [vmem:[%s4900 + $0x20] sm:$0xff]
      %v4906 = vld [vmem:[%s4900 + $0x28] sm:$0xff]
      %v4907 = vld [vmem:[%s4900 + $0x30] sm:$0xff]
      %v4908 = vld [vmem:[%s4900 + $0x38] sm:$0xff]
      %v4910 = vsel %vm896, %v4864, 0
      %v4913 = vsel %vm896, %v4865, 0
      %v4916 = vsel %vm896, %v4866, 0
      %v4919 = vsel %vm896, %v4867, 0
      %v4922 = vsel %vm896, %v4868, 0
      %v4925 = vsel %vm896, %v4869, 0
      %v4928 = vsel %vm896, %v4870, 0
      %v4931 = vsel %vm896, %v4871, 0
      %v4934 = vsel %vm896, %v4872, 0
      %v4937 = vsel %vm896, %v4873, 0
      %v4940 = vsel %vm896, %v4874, 0
      %v4943 = vsel %vm896, %v4875, 0
      %v4946 = vsel %vm896, %v4876, 0
      %v4949 = vsel %vm896, %v4877, 0
      %v4952 = vsel %vm896, %v4878, 0
      %v4955 = vsel %vm896, %v4879, 0
      %v4958 = vsel %vm896, %v4880, 0
      %v4961 = vsel %vm896, %v4881, 0
      %v4964 = vsel %vm896, %v4882, 0
      %v4967 = vsel %vm896, %v4883, 0
      %v4970 = vsel %vm896, %v4884, 0
      %v4973 = vsel %vm896, %v4885, 0
      %v4976 = vsel %vm896, %v4886, 0
      %v4979 = vsel %vm896, %v4887, 0
      %v4982 = vsel %vm896, %v4888, 0
      %v4985 = vsel %vm896, %v4889, 0
      %v4988 = vsel %vm896, %v4890, 0
      %v4991 = vsel %vm896, %v4891, 0
      %v4994 = vsel %vm896, %v4892, 0
      %v4997 = vsel %vm896, %v4893, 0
      %v5000 = vsel %vm896, %v4894, 0
      %v5003 = vsel %vm896, %v4895, 0
      %v5006 = vsel %vm896, %v4896, 0
      %v5009 = vsel %vm896, %v4897, 0
      %v5012 = vsel %vm896, %v4898, 0
      %v5015 = vsel %vm896, %v4899, 0
      %5017 = vmatprep.subr.mxu0 0.0
      %5018 = vmatpush1.msra.mxu0 0.0
      %5019 = vmatprep.subr.mxu0 0.0
      %5020 = vmatpush1.msra.mxu0 0.0
      %5021 = vmatprep.subr.mxu0 0.0
      %5022 = vmatpush1.msra.mxu0 0.0
      %5023 = vmatprep.subr.mxu0 0.0
      %5024 = vmatpush1.msra.mxu0 0.0
      %5025 = vmatprep.subr.mxu0 0.0
      %5026 = vmatpush1.msra.mxu0 0.0
      %5027 = vmatprep.subr.mxu0 0.0
      %5028 = vmatpush1.msra.mxu0 0.0
      %5029 = vmatprep.subr.mxu0 0.0
      %5030 = vmatpush1.msra.mxu0 0.0
      %5031 = vmatprep.subr.mxu0 0.0
      %5032 = vmatpush1.msra.mxu0 0.0
      %5033 = vmatprep.subr.mxu0 0.0
      %5034 = vmatpush1.msra.mxu0 %v4908
      %5035 = vmatprep.subr.mxu0 0.0
      %5036 = vmatpush1.msra.mxu0 %v4907
      %5037 = vmatprep.subr.mxu0 0.0
      %5038 = vmatpush1.msra.mxu0 %v4906
      %5039 = vmatprep.subr.mxu0 0.0
      %5040 = vmatpush1.msra.mxu0 %v4905
      %5041 = vmatprep.subr.mxu0 0.0
      %5042 = vmatpush1.msra.mxu0 %v4904
      %5043 = vmatprep.subr.mxu0 0.0
      %5044 = vmatpush1.msra.mxu0 %v4903
      %5045 = vmatprep.subr.mxu0 0.0
      %5046 = vmatpush1.msra.mxu0 %v4902
      %5047 = vmatprep.subr.mxu0 0.0
      %5048 = vmatpush1.msra.mxu0 %v4901
      %5049 = vmatprep.subr.mxu0 0.0
      %5050 = vmatpush2.msra.mxu0 0.0
      %5051 = vmatprep.subr.mxu0 0.0
      %5052 = vmatpush2.msra.mxu0 0.0
      %5053 = vmatprep.subr.mxu0 0.0
      %5054 = vmatpush2.msra.mxu0 0.0
      %5055 = vmatprep.subr.mxu0 0.0
      %5056 = vmatpush2.msra.mxu0 0.0
      %5057 = vmatprep.subr.mxu0 0.0
      %5058 = vmatpush2.msra.mxu0 0.0
      %5059 = vmatprep.subr.mxu0 0.0
      %5060 = vmatpush2.msra.mxu0 0.0
      %5061 = vmatprep.subr.mxu0 0.0
      %5062 = vmatpush2.msra.mxu0 0.0
      %5063 = vmatprep.subr.mxu0 0.0
      %5064 = vmatpush2.msra.mxu0 0.0
      %5065 = vmatprep.subr.mxu0 0.0
      %5066 = vmatpush2.msra.mxu0 0.0
      %5067 = vmatprep.subr.mxu0 0.0
      %5068 = vmatpush2.msra.mxu0 0.0
      %5069 = vmatprep.subr.mxu0 0.0
      %5070 = vmatpush2.msra.mxu0 0.0
      %5071 = vmatprep.subr.mxu0 0.0
      %5072 = vmatpush2.msra.mxu0 0.0
      %5073 = vmatprep.subr.mxu0 0.0
      %5074 = vmatpush2.msra.mxu0 0.0
      %5075 = vmatprep.subr.mxu0 0.0
      %5076 = vmatpush2.msra.mxu0 0.0
      %5077 = vmatprep.subr.mxu0 0.0
      %5078 = vmatpush2.msra.mxu0 0.0
      %5079 = vmatprep.subr.mxu0 0.0
      %5080 = vmatpush2.msra.mxu0 0.0
      %5081 = vmatprep.mubr.f32.mxu0 0.0
      %5082 = vmatmul.mubr.f32.gmra.mxu0 %v4910
      %v5083 = vpop.f32.mrf.mxu0
      %v5084 = vadd.f32 0.0, %v5083
      %v5085 = vpop.f32.mrf.mxu0
      %5086 = vmatprep.mubr.f32.mxu0 0.0
      %5087 = vmatmul.mubr.f32.gmra.mxu0 %v4913
      %v5088 = vpop.f32.mrf.mxu0
      %v5089 = vadd.f32 0.0, %v5088
      %v5090 = vpop.f32.mrf.mxu0
      %5091 = vmatprep.mubr.f32.mxu0 0.0
      %5092 = vmatmul.mubr.f32.gmra.mxu0 %v4916
      %v5093 = vpop.f32.mrf.mxu0
      %v5094 = vadd.f32 0.0, %v5093
      %v5095 = vpop.f32.mrf.mxu0
      %5096 = vmatprep.mubr.f32.mxu0 0.0
      %5097 = vmatmul.mubr.f32.gmra.mxu0 %v4919
      %v5098 = vpop.f32.mrf.mxu0
      %v5099 = vadd.f32 0.0, %v5098
      %v5100 = vpop.f32.mrf.mxu0
      %5101 = vmatprep.mubr.f32.mxu0 0.0
      %5102 = vmatmul.mubr.f32.gmra.mxu0 %v4922
      %v5103 = vpop.f32.mrf.mxu0
      %v5104 = vadd.f32 0.0, %v5103
      %v5105 = vpop.f32.mrf.mxu0
      %5106 = vmatprep.mubr.f32.mxu0 0.0
      %5107 = vmatmul.mubr.f32.gmra.mxu0 %v4925
      %v5108 = vpop.f32.mrf.mxu0
      %v5109 = vadd.f32 0.0, %v5108
      %v5110 = vpop.f32.mrf.mxu0
      %5111 = vmatprep.mubr.f32.mxu0 0.0
      %5112 = vmatmul.mubr.f32.gmra.mxu0 %v4928
      %v5113 = vpop.f32.mrf.mxu0
      %v5114 = vadd.f32 0.0, %v5113
      %v5115 = vpop.f32.mrf.mxu0
      %5116 = vmatprep.mubr.f32.mxu0 0.0
      %5117 = vmatmul.mubr.f32.gmra.mxu0 %v4931
      %v5118 = vpop.f32.mrf.mxu0
      %v5119 = vadd.f32 0.0, %v5118
      %v5120 = vpop.f32.mrf.mxu0
      %5121 = vmatprep.mubr.f32.mxu0 0.0
      %5122 = vmatmul.mubr.f32.gmra.mxu0 %v4934
      %v5123 = vpop.f32.mrf.mxu0
      %v5124 = vadd.f32 0.0, %v5123
      %v5125 = vpop.f32.mrf.mxu0
      %5126 = vmatprep.mubr.f32.mxu0 0.0
      %5127 = vmatmul.mubr.f32.gmra.mxu0 %v4937
      %v5128 = vpop.f32.mrf.mxu0
      %v5129 = vadd.f32 0.0, %v5128
      %v5130 = vpop.f32.mrf.mxu0
      %5131 = vmatprep.mubr.f32.mxu0 0.0
      %5132 = vmatmul.mubr.f32.gmra.mxu0 %v4940
      %v5133 = vpop.f32.mrf.mxu0
      %v5134 = vadd.f32 0.0, %v5133
      %v5135 = vpop.f32.mrf.mxu0
      %5136 = vmatprep.mubr.f32.mxu0 0.0
      %5137 = vmatmul.mubr.f32.gmra.mxu0 %v4943
      %v5138 = vpop.f32.mrf.mxu0
      %v5139 = vadd.f32 0.0, %v5138
      %v5140 = vpop.f32.mrf.mxu0
      %5141 = vmatprep.mubr.f32.mxu0 0.0
      %5142 = vmatmul.mubr.f32.gmra.mxu0 %v4946
      %v5143 = vpop.f32.mrf.mxu0
      %v5144 = vadd.f32 0.0, %v5143
      %v5145 = vpop.f32.mrf.mxu0
      %5146 = vmatprep.mubr.f32.mxu0 0.0
      %5147 = vmatmul.mubr.f32.gmra.mxu0 %v4949
      %v5148 = vpop.f32.mrf.mxu0
      %v5149 = vadd.f32 0.0, %v5148
      %v5150 = vpop.f32.mrf.mxu0
      %5151 = vmatprep.mubr.f32.mxu0 0.0
      %5152 = vmatmul.mubr.f32.gmra.mxu0 %v4952
      %v5153 = vpop.f32.mrf.mxu0
      %v5154 = vadd.f32 0.0, %v5153
      %v5155 = vpop.f32.mrf.mxu0
      %5156 = vmatprep.mubr.f32.mxu0 0.0
      %5157 = vmatmul.mubr.f32.gmra.mxu0 %v4955
      %v5158 = vpop.f32.mrf.mxu0
      %v5159 = vadd.f32 0.0, %v5158
      %v5160 = vpop.f32.mrf.mxu0
      %5161 = vmatprep.mubr.f32.mxu0 0.0
      %5162 = vmatmul.mubr.f32.gmra.mxu0 %v4958
      %v5163 = vpop.f32.mrf.mxu0
      %v5164 = vadd.f32 0.0, %v5163
      %v5165 = vpop.f32.mrf.mxu0
      %5166 = vmatprep.mubr.f32.mxu0 0.0
      %5167 = vmatmul.mubr.f32.gmra.mxu0 %v4961
      %v5168 = vpop.f32.mrf.mxu0
      %v5169 = vadd.f32 0.0, %v5168
      %v5170 = vpop.f32.mrf.mxu0
      %5171 = vmatprep.mubr.f32.mxu0 0.0
      %5172 = vmatmul.mubr.f32.gmra.mxu0 %v4964
      %v5173 = vpop.f32.mrf.mxu0
      %v5174 = vadd.f32 0.0, %v5173
      %v5175 = vpop.f32.mrf.mxu0
      %5176 = vmatprep.mubr.f32.mxu0 0.0
      %5177 = vmatmul.mubr.f32.gmra.mxu0 %v4967
      %v5178 = vpop.f32.mrf.mxu0
      %v5179 = vadd.f32 0.0, %v5178
      %v5180 = vpop.f32.mrf.mxu0
      %5181 = vmatprep.mubr.f32.mxu0 0.0
      %5182 = vmatmul.mubr.f32.gmra.mxu0 %v4970
      %v5183 = vpop.f32.mrf.mxu0
      %v5184 = vadd.f32 0.0, %v5183
      %v5185 = vpop.f32.mrf.mxu0
      %5186 = vmatprep.mubr.f32.mxu0 0.0
      %5187 = vmatmul.mubr.f32.gmra.mxu0 %v4973
      %v5188 = vpop.f32.mrf.mxu0
      %v5189 = vadd.f32 0.0, %v5188
      %v5190 = vpop.f32.mrf.mxu0
      %5191 = vmatprep.mubr.f32.mxu0 0.0
      %5192 = vmatmul.mubr.f32.gmra.mxu0 %v4976
      %v5193 = vpop.f32.mrf.mxu0
      %v5194 = vadd.f32 0.0, %v5193
      %v5195 = vpop.f32.mrf.mxu0
      %5196 = vmatprep.mubr.f32.mxu0 0.0
      %5197 = vmatmul.mubr.f32.gmra.mxu0 %v4979
      %v5198 = vpop.f32.mrf.mxu0
      %v5199 = vadd.f32 0.0, %v5198
      %v5200 = vpop.f32.mrf.mxu0
      %5201 = vmatprep.mubr.f32.mxu0 0.0
      %5202 = vmatmul.mubr.f32.gmra.mxu0 %v4982
      %v5203 = vpop.f32.mrf.mxu0
      %v5204 = vadd.f32 0.0, %v5203
      %v5205 = vpop.f32.mrf.mxu0
      %5206 = vmatprep.mubr.f32.mxu0 0.0
      %5207 = vmatmul.mubr.f32.gmra.mxu0 %v4985
      %v5208 = vpop.f32.mrf.mxu0
      %v5209 = vadd.f32 0.0, %v5208
      %v5210 = vpop.f32.mrf.mxu0
      %5211 = vmatprep.mubr.f32.mxu0 0.0
      %5212 = vmatmul.mubr.f32.gmra.mxu0 %v4988
      %v5213 = vpop.f32.mrf.mxu0
      %v5214 = vadd.f32 0.0, %v5213
      %v5215 = vpop.f32.mrf.mxu0
      %5216 = vmatprep.mubr.f32.mxu0 0.0
      %5217 = vmatmul.mubr.f32.gmra.mxu0 %v4991
      %v5218 = vpop.f32.mrf.mxu0
      %v5219 = vadd.f32 0.0, %v5218
      %v5220 = vpop.f32.mrf.mxu0
      %5221 = vmatprep.mubr.f32.mxu0 0.0
      %5222 = vmatmul.mubr.f32.gmra.mxu0 %v4994
      %v5223 = vpop.f32.mrf.mxu0
      %v5224 = vadd.f32 0.0, %v5223
      %v5225 = vpop.f32.mrf.mxu0
      %5226 = vmatprep.mubr.f32.mxu0 0.0
      %5227 = vmatmul.mubr.f32.gmra.mxu0 %v4997
      %v5228 = vpop.f32.mrf.mxu0
      %v5229 = vadd.f32 0.0, %v5228
      %v5230 = vpop.f32.mrf.mxu0
      %5231 = vmatprep.mubr.f32.mxu0 0.0
      %5232 = vmatmul.mubr.f32.gmra.mxu0 %v5000
      %v5233 = vpop.f32.mrf.mxu0
      %v5234 = vadd.f32 0.0, %v5233
      %v5235 = vpop.f32.mrf.mxu0
      %5236 = vmatprep.mubr.f32.mxu0 0.0
      %5237 = vmatmul.mubr.f32.gmra.mxu0 %v5003
      %v5238 = vpop.f32.mrf.mxu0
      %v5239 = vadd.f32 0.0, %v5238
      %v5240 = vpop.f32.mrf.mxu0
      %5241 = vmatprep.mubr.f32.mxu0 0.0
      %5242 = vmatmul.mubr.f32.gmra.mxu0 %v5006
      %v5243 = vpop.f32.mrf.mxu0
      %v5244 = vadd.f32 0.0, %v5243
      %v5245 = vpop.f32.mrf.mxu0
      %5246 = vmatprep.mubr.f32.mxu0 0.0
      %5247 = vmatmul.mubr.f32.gmra.mxu0 %v5009
      %v5248 = vpop.f32.mrf.mxu0
      %v5249 = vadd.f32 0.0, %v5248
      %v5250 = vpop.f32.mrf.mxu0
      %5251 = vmatprep.mubr.f32.mxu0 0.0
      %5252 = vmatmul.mubr.f32.gmra.mxu0 %v5012
      %v5253 = vpop.f32.mrf.mxu0
      %v5254 = vadd.f32 0.0, %v5253
      %v5255 = vpop.f32.mrf.mxu0
      %5256 = vmatprep.mubr.f32.mxu0 0.0
      %5257 = vmatmul.mubr.f32.gmra.mxu0 %v5015
      %v5258 = vpop.f32.mrf.mxu0
      %v5259 = vadd.f32 0.0, %v5258
      %v5260 = vpop.f32.mrf.mxu0
      %5261 = vdwg.mxu0
      %v5262 = vadd.f32 %v4828, %v5084
      %v5263 = vadd.f32 %v4829, %v5089
      %v5264 = vadd.f32 %v4830, %v5094
      %v5265 = vadd.f32 %v4831, %v5099
      %v5266 = vadd.f32 %v4832, %v5104
      %v5267 = vadd.f32 %v4833, %v5109
      %v5268 = vadd.f32 %v4834, %v5114
      %v5269 = vadd.f32 %v4835, %v5119
      %v5270 = vadd.f32 %v4836, %v5124
      %v5271 = vadd.f32 %v4837, %v5129
      %v5272 = vadd.f32 %v4838, %v5134
      %v5273 = vadd.f32 %v4839, %v5139
      %v5274 = vadd.f32 %v4840, %v5144
      %v5275 = vadd.f32 %v4841, %v5149
      %v5276 = vadd.f32 %v4842, %v5154
      %v5277 = vadd.f32 %v4843, %v5159
      %v5278 = vadd.f32 %v4844, %v5164
      %v5279 = vadd.f32 %v4845, %v5169
      %v5280 = vadd.f32 %v4846, %v5174
      %v5281 = vadd.f32 %v4847, %v5179
      %v5282 = vadd.f32 %v4848, %v5184
      %v5283 = vadd.f32 %v4849, %v5189
      %v5284 = vadd.f32 %v4850, %v5194
      %v5285 = vadd.f32 %v4851, %v5199
      %v5286 = vadd.f32 %v4852, %v5204
      %v5287 = vadd.f32 %v4853, %v5209
      %v5288 = vadd.f32 %v4854, %v5214
      %v5289 = vadd.f32 %v4855, %v5219
      %v5290 = vadd.f32 %v4856, %v5224
      %v5291 = vadd.f32 %v4857, %v5229
      %v5292 = vadd.f32 %v4858, %v5234
      %v5293 = vadd.f32 %v4859, %v5239
      %v5294 = vadd.f32 %v4860, %v5244
      %v5295 = vadd.f32 %v4861, %v5249
      %v5296 = vadd.f32 %v4862, %v5254
      %v5297 = vadd.f32 %v4863, %v5259
      %5298 = vst [vmem:[#allocation4] sm:$0xff] %v5262
      %5299 = vst [vmem:[#allocation4 + $0x8] sm:$0xff] %v5263
      %5300 = vst [vmem:[#allocation4 + $0x10] sm:$0xff] %v5264
      %5301 = vst [vmem:[#allocation4 + $0x18] sm:$0xff] %v5265
      %5302 = vst [vmem:[#allocation4 + $0x20] sm:$0xff] %v5266
      %5303 = vst [vmem:[#allocation4 + $0x28] sm:$0xff] %v5267
      %5304 = vst [vmem:[#allocation4 + $0x30] sm:$0xff] %v5268
      %5305 = vst [vmem:[#allocation4 + $0x38] sm:$0xff] %v5269
      %5306 = vst [vmem:[#allocation4 + $0x40] sm:$0xff] %v5270
      %5307 = vst [vmem:[#allocation4 + $0x48] sm:$0xff] %v5271
      %5308 = vst [vmem:[#allocation4 + $0x50] sm:$0xff] %v5272
      %5309 = vst [vmem:[#allocation4 + $0x58] sm:$0xff] %v5273
      %5310 = vst [vmem:[#allocation4 + $0x60] sm:$0xff] %v5274
      %5311 = vst [vmem:[#allocation4 + $0x68] sm:$0xff] %v5275
      %5312 = vst [vmem:[#allocation4 + $0x70] sm:$0xff] %v5276
      %5313 = vst [vmem:[#allocation4 + $0x78] sm:$0xff] %v5277
      %5314 = vst [vmem:[#allocation4 + $0x80] sm:$0xff] %v5278
      %5315 = vst [vmem:[#allocation4 + $0x88] sm:$0xff] %v5279
      %5316 = vst [vmem:[#allocation4 + $0x90] sm:$0xff] %v5280
      %5317 = vst [vmem:[#allocation4 + $0x98] sm:$0xff] %v5281
      %5318 = vst [vmem:[#allocation4 + $0xa0] sm:$0xff] %v5282
      %5319 = vst [vmem:[#allocation4 + $0xa8] sm:$0xff] %v5283
      %5320 = vst [vmem:[#allocation4 + $0xb0] sm:$0xff] %v5284
      %5321 = vst [vmem:[#allocation4 + $0xb8] sm:$0xff] %v5285
      %5322 = vst [vmem:[#allocation4 + $0xc0] sm:$0xff] %v5286
      %5323 = vst [vmem:[#allocation4 + $0xc8] sm:$0xff] %v5287
      %5324 = vst [vmem:[#allocation4 + $0xd0] sm:$0xff] %v5288
      %5325 = vst [vmem:[#allocation4 + $0xd8] sm:$0xff] %v5289
      %5326 = vst [vmem:[#allocation4 + $0xe0] sm:$0xff] %v5290
      %5327 = vst [vmem:[#allocation4 + $0xe8] sm:$0xff] %v5291
      %5328 = vst [vmem:[#allocation4 + $0xf0] sm:$0xff] %v5292
      %5329 = vst [vmem:[#allocation4 + $0xf8] sm:$0xff] %v5293
      %5330 = vst [vmem:[#allocation4 + $0x100] sm:$0xff] %v5294
      %5331 = vst [vmem:[#allocation4 + $0x108] sm:$0xff] %v5295
      %5332 = vst [vmem:[#allocation4 + $0x110] sm:$0xff] %v5296
      %5333 = vst [vmem:[#allocation4 + $0x118] sm:$0xff] %v5297
      %v5334 = vld [vmem:[#allocation4] sm:$0xff]
      %v5335 = vld [vmem:[#allocation4 + $0x8] sm:$0xff]
      %v5336 = vld [vmem:[#allocation4 + $0x10] sm:$0xff]
      %v5337 = vld [vmem:[#allocation4 + $0x18] sm:$0xff]
      %v5338 = vld [vmem:[#allocation4 + $0x20] sm:$0xff]
      %v5339 = vld [vmem:[#allocation4 + $0x28] sm:$0xff]
      %v5340 = vld [vmem:[#allocation4 + $0x30] sm:$0xff]
      %v5341 = vld [vmem:[#allocation4 + $0x38] sm:$0xff]
      %v5342 = vld [vmem:[#allocation4 + $0x40] sm:$0xff]
      %v5343 = vld [vmem:[#allocation4 + $0x48] sm:$0xff]
      %v5344 = vld [vmem:[#allocation4 + $0x50] sm:$0xff]
      %v5345 = vld [vmem:[#allocation4 + $0x58] sm:$0xff]
      %v5346 = vld [vmem:[#allocation4 + $0x60] sm:$0xff]
      %v5347 = vld [vmem:[#allocation4 + $0x68] sm:$0xff]
      %v5348 = vld [vmem:[#allocation4 + $0x70] sm:$0xff]
      %v5349 = vld [vmem:[#allocation4 + $0x78] sm:$0xff]
      %v5350 = vld [vmem:[#allocation4 + $0x80] sm:$0xff]
      %v5351 = vld [vmem:[#allocation4 + $0x88] sm:$0xff]
      %v5352 = vld [vmem:[#allocation4 + $0x90] sm:$0xff]
      %v5353 = vld [vmem:[#allocation4 + $0x98] sm:$0xff]
      %v5354 = vld [vmem:[#allocation4 + $0xa0] sm:$0xff]
      %v5355 = vld [vmem:[#allocation4 + $0xa8] sm:$0xff]
      %v5356 = vld [vmem:[#allocation4 + $0xb0] sm:$0xff]
      %v5357 = vld [vmem:[#allocation4 + $0xb8] sm:$0xff]
      %v5358 = vld [vmem:[#allocation4 + $0xc0] sm:$0xff]
      %v5359 = vld [vmem:[#allocation4 + $0xc8] sm:$0xff]
      %v5360 = vld [vmem:[#allocation4 + $0xd0] sm:$0xff]
      %v5361 = vld [vmem:[#allocation4 + $0xd8] sm:$0xff]
      %v5362 = vld [vmem:[#allocation4 + $0xe0] sm:$0xff]
      %v5363 = vld [vmem:[#allocation4 + $0xe8] sm:$0xff]
      %v5364 = vld [vmem:[#allocation4 + $0xf0] sm:$0xff]
      %v5365 = vld [vmem:[#allocation4 + $0xf8] sm:$0xff]
      %v5366 = vld [vmem:[#allocation4 + $0x100] sm:$0xff]
      %v5367 = vld [vmem:[#allocation4 + $0x108] sm:$0xff]
      %v5368 = vld [vmem:[#allocation4 + $0x110] sm:$0xff]
      %v5369 = vld [vmem:[#allocation4 + $0x118] sm:$0xff]
      %v5370 = vld [vmem:[#allocation2 + $0x26] sm:$0xff]
      %v5371 = vld [vmem:[#allocation2 + $0x2e] sm:$0xff]
      %v5372 = vld [vmem:[#allocation2 + $0x36] sm:$0xff]
      %v5373 = vld [vmem:[#allocation2 + $0x3e] sm:$0xff]
      %v5374 = vld [vmem:[#allocation2 + $0x46] sm:$0xff]
      %v5375 = vld [vmem:[#allocation2 + $0x4e] sm:$0xff]
      %v5376 = vld [vmem:[#allocation2 + $0x56] sm:$0xff]
      %v5377 = vld [vmem:[#allocation2 + $0x5e] sm:$0xff]
      %v5378 = vld [vmem:[#allocation2 + $0x66] sm:$0xff]
      %v5379 = vld [vmem:[#allocation2 + $0x6e] sm:$0xff]
      %v5380 = vld [vmem:[#allocation2 + $0x76] sm:$0xff]
      %v5381 = vld [vmem:[#allocation2 + $0x7e] sm:$0xff]
      %v5382 = vld [vmem:[#allocation2 + $0x86] sm:$0xff]
      %v5383 = vld [vmem:[#allocation2 + $0x8e] sm:$0xff]
      %v5384 = vld [vmem:[#allocation2 + $0x96] sm:$0xff]
      %v5385 = vld [vmem:[#allocation2 + $0x9e] sm:$0xff]
      %v5386 = vld [vmem:[#allocation2 + $0xa6] sm:$0xff]
      %v5387 = vld [vmem:[#allocation2 + $0xae] sm:$0xff]
      %v5388 = vld [vmem:[#allocation2 + $0xb6] sm:$0xff]
      %v5389 = vld [vmem:[#allocation2 + $0xbe] sm:$0xff]
      %v5390 = vld [vmem:[#allocation2 + $0xc6] sm:$0xff]
      %v5391 = vld [vmem:[#allocation2 + $0xce] sm:$0xff]
      %v5392 = vld [vmem:[#allocation2 + $0xd6] sm:$0xff]
      %v5393 = vld [vmem:[#allocation2 + $0xde] sm:$0xff]
      %v5394 = vld [vmem:[#allocation2 + $0xe6] sm:$0xff]
      %v5395 = vld [vmem:[#allocation2 + $0xee] sm:$0xff]
      %v5396 = vld [vmem:[#allocation2 + $0xf6] sm:$0xff]
      %v5397 = vld [vmem:[#allocation2 + $0xfe] sm:$0xff]
      %v5398 = vld [vmem:[#allocation2 + $0x106] sm:$0xff]
      %v5399 = vld [vmem:[#allocation2 + $0x10e] sm:$0xff]
      %v5400 = vld [vmem:[#allocation2 + $0x116] sm:$0xff]
      %v5401 = vld [vmem:[#allocation2 + $0x11e] sm:$0xff]
      %v5402 = vld [vmem:[#allocation2 + $0x126] sm:$0xff]
      %v5403 = vld [vmem:[#allocation2 + $0x12e] sm:$0xff]
      %v5404 = vld [vmem:[#allocation2 + $0x136] sm:$0xff]
      %v5405 = vld [vmem:[#allocation2 + $0x13e] sm:$0xff]
      %s5406 = scalar_lea.vmem %s7, 512
      %v5407 = vld [vmem:[%s5406] sm:$0xff]
      %v5408 = vld [vmem:[%s5406 + $0x8] sm:$0xff]
      %v5409 = vld [vmem:[%s5406 + $0x10] sm:$0xff]
      %v5410 = vld [vmem:[%s5406 + $0x18] sm:$0xff]
      %v5411 = vld [vmem:[%s5406 + $0x20] sm:$0xff]
      %v5412 = vld [vmem:[%s5406 + $0x28] sm:$0xff]
      %v5413 = vld [vmem:[%s5406 + $0x30] sm:$0xff]
      %v5414 = vld [vmem:[%s5406 + $0x38] sm:$0xff]
      %v5416 = vsel %vm896, %v5370, 0
      %v5419 = vsel %vm896, %v5371, 0
      %v5422 = vsel %vm896, %v5372, 0
      %v5425 = vsel %vm896, %v5373, 0
      %v5428 = vsel %vm896, %v5374, 0
      %v5431 = vsel %vm896, %v5375, 0
      %v5434 = vsel %vm896, %v5376, 0
      %v5437 = vsel %vm896, %v5377, 0
      %v5440 = vsel %vm896, %v5378, 0
      %v5443 = vsel %vm896, %v5379, 0
      %v5446 = vsel %vm896, %v5380, 0
      %v5449 = vsel %vm896, %v5381, 0
      %v5452 = vsel %vm896, %v5382, 0
      %v5455 = vsel %vm896, %v5383, 0
      %v5458 = vsel %vm896, %v5384, 0
      %v5461 = vsel %vm896, %v5385, 0
      %v5464 = vsel %vm896, %v5386, 0
      %v5467 = vsel %vm896, %v5387, 0
      %v5470 = vsel %vm896, %v5388, 0
      %v5473 = vsel %vm896, %v5389, 0
      %v5476 = vsel %vm896, %v5390, 0
      %v5479 = vsel %vm896, %v5391, 0
      %v5482 = vsel %vm896, %v5392, 0
      %v5485 = vsel %vm896, %v5393, 0
      %v5488 = vsel %vm896, %v5394, 0
      %v5491 = vsel %vm896, %v5395, 0
      %v5494 = vsel %vm896, %v5396, 0
      %v5497 = vsel %vm896, %v5397, 0
      %v5500 = vsel %vm896, %v5398, 0
      %v5503 = vsel %vm896, %v5399, 0
      %v5506 = vsel %vm896, %v5400, 0
      %v5509 = vsel %vm896, %v5401, 0
      %v5512 = vsel %vm896, %v5402, 0
      %v5515 = vsel %vm896, %v5403, 0
      %v5518 = vsel %vm896, %v5404, 0
      %v5521 = vsel %vm896, %v5405, 0
      %5523 = vmatprep.subr.mxu0 0.0
      %5524 = vmatpush1.msra.mxu0 0.0
      %5525 = vmatprep.subr.mxu0 0.0
      %5526 = vmatpush1.msra.mxu0 0.0
      %5527 = vmatprep.subr.mxu0 0.0
      %5528 = vmatpush1.msra.mxu0 0.0
      %5529 = vmatprep.subr.mxu0 0.0
      %5530 = vmatpush1.msra.mxu0 0.0
      %5531 = vmatprep.subr.mxu0 0.0
      %5532 = vmatpush1.msra.mxu0 0.0
      %5533 = vmatprep.subr.mxu0 0.0
      %5534 = vmatpush1.msra.mxu0 0.0
      %5535 = vmatprep.subr.mxu0 0.0
      %5536 = vmatpush1.msra.mxu0 0.0
      %5537 = vmatprep.subr.mxu0 0.0
      %5538 = vmatpush1.msra.mxu0 0.0
      %5539 = vmatprep.subr.mxu0 0.0
      %5540 = vmatpush1.msra.mxu0 %v5414
      %5541 = vmatprep.subr.mxu0 0.0
      %5542 = vmatpush1.msra.mxu0 %v5413
      %5543 = vmatprep.subr.mxu0 0.0
      %5544 = vmatpush1.msra.mxu0 %v5412
      %5545 = vmatprep.subr.mxu0 0.0
      %5546 = vmatpush1.msra.mxu0 %v5411
      %5547 = vmatprep.subr.mxu0 0.0
      %5548 = vmatpush1.msra.mxu0 %v5410
      %5549 = vmatprep.subr.mxu0 0.0
      %5550 = vmatpush1.msra.mxu0 %v5409
      %5551 = vmatprep.subr.mxu0 0.0
      %5552 = vmatpush1.msra.mxu0 %v5408
      %5553 = vmatprep.subr.mxu0 0.0
      %5554 = vmatpush1.msra.mxu0 %v5407
      %5555 = vmatprep.subr.mxu0 0.0
      %5556 = vmatpush2.msra.mxu0 0.0
      %5557 = vmatprep.subr.mxu0 0.0
      %5558 = vmatpush2.msra.mxu0 0.0
      %5559 = vmatprep.subr.mxu0 0.0
      %5560 = vmatpush2.msra.mxu0 0.0
      %5561 = vmatprep.subr.mxu0 0.0
      %5562 = vmatpush2.msra.mxu0 0.0
      %5563 = vmatprep.subr.mxu0 0.0
      %5564 = vmatpush2.msra.mxu0 0.0
      %5565 = vmatprep.subr.mxu0 0.0
      %5566 = vmatpush2.msra.mxu0 0.0
      %5567 = vmatprep.subr.mxu0 0.0
      %5568 = vmatpush2.msra.mxu0 0.0
      %5569 = vmatprep.subr.mxu0 0.0
      %5570 = vmatpush2.msra.mxu0 0.0
      %5571 = vmatprep.subr.mxu0 0.0
      %5572 = vmatpush2.msra.mxu0 0.0
      %5573 = vmatprep.subr.mxu0 0.0
      %5574 = vmatpush2.msra.mxu0 0.0
      %5575 = vmatprep.subr.mxu0 0.0
      %5576 = vmatpush2.msra.mxu0 0.0
      %5577 = vmatprep.subr.mxu0 0.0
      %5578 = vmatpush2.msra.mxu0 0.0
      %5579 = vmatprep.subr.mxu0 0.0
      %5580 = vmatpush2.msra.mxu0 0.0
      %5581 = vmatprep.subr.mxu0 0.0
      %5582 = vmatpush2.msra.mxu0 0.0
      %5583 = vmatprep.subr.mxu0 0.0
      %5584 = vmatpush2.msra.mxu0 0.0
      %5585 = vmatprep.subr.mxu0 0.0
      %5586 = vmatpush2.msra.mxu0 0.0
      %5587 = vmatprep.mubr.f32.mxu0 0.0
      %5588 = vmatmul.mubr.f32.gmra.mxu0 %v5416
      %v5589 = vpop.f32.mrf.mxu0
      %v5590 = vadd.f32 0.0, %v5589
      %v5591 = vpop.f32.mrf.mxu0
      %5592 = vmatprep.mubr.f32.mxu0 0.0
      %5593 = vmatmul.mubr.f32.gmra.mxu0 %v5419
      %v5594 = vpop.f32.mrf.mxu0
      %v5595 = vadd.f32 0.0, %v5594
      %v5596 = vpop.f32.mrf.mxu0
      %5597 = vmatprep.mubr.f32.mxu0 0.0
      %5598 = vmatmul.mubr.f32.gmra.mxu0 %v5422
      %v5599 = vpop.f32.mrf.mxu0
      %v5600 = vadd.f32 0.0, %v5599
      %v5601 = vpop.f32.mrf.mxu0
      %5602 = vmatprep.mubr.f32.mxu0 0.0
      %5603 = vmatmul.mubr.f32.gmra.mxu0 %v5425
      %v5604 = vpop.f32.mrf.mxu0
      %v5605 = vadd.f32 0.0, %v5604
      %v5606 = vpop.f32.mrf.mxu0
      %5607 = vmatprep.mubr.f32.mxu0 0.0
      %5608 = vmatmul.mubr.f32.gmra.mxu0 %v5428
      %v5609 = vpop.f32.mrf.mxu0
      %v5610 = vadd.f32 0.0, %v5609
      %v5611 = vpop.f32.mrf.mxu0
      %5612 = vmatprep.mubr.f32.mxu0 0.0
      %5613 = vmatmul.mubr.f32.gmra.mxu0 %v5431
      %v5614 = vpop.f32.mrf.mxu0
      %v5615 = vadd.f32 0.0, %v5614
      %v5616 = vpop.f32.mrf.mxu0
      %5617 = vmatprep.mubr.f32.mxu0 0.0
      %5618 = vmatmul.mubr.f32.gmra.mxu0 %v5434
      %v5619 = vpop.f32.mrf.mxu0
      %v5620 = vadd.f32 0.0, %v5619
      %v5621 = vpop.f32.mrf.mxu0
      %5622 = vmatprep.mubr.f32.mxu0 0.0
      %5623 = vmatmul.mubr.f32.gmra.mxu0 %v5437
      %v5624 = vpop.f32.mrf.mxu0
      %v5625 = vadd.f32 0.0, %v5624
      %v5626 = vpop.f32.mrf.mxu0
      %5627 = vmatprep.mubr.f32.mxu0 0.0
      %5628 = vmatmul.mubr.f32.gmra.mxu0 %v5440
      %v5629 = vpop.f32.mrf.mxu0
      %v5630 = vadd.f32 0.0, %v5629
      %v5631 = vpop.f32.mrf.mxu0
      %5632 = vmatprep.mubr.f32.mxu0 0.0
      %5633 = vmatmul.mubr.f32.gmra.mxu0 %v5443
      %v5634 = vpop.f32.mrf.mxu0
      %v5635 = vadd.f32 0.0, %v5634
      %v5636 = vpop.f32.mrf.mxu0
      %5637 = vmatprep.mubr.f32.mxu0 0.0
      %5638 = vmatmul.mubr.f32.gmra.mxu0 %v5446
      %v5639 = vpop.f32.mrf.mxu0
      %v5640 = vadd.f32 0.0, %v5639
      %v5641 = vpop.f32.mrf.mxu0
      %5642 = vmatprep.mubr.f32.mxu0 0.0
      %5643 = vmatmul.mubr.f32.gmra.mxu0 %v5449
      %v5644 = vpop.f32.mrf.mxu0
      %v5645 = vadd.f32 0.0, %v5644
      %v5646 = vpop.f32.mrf.mxu0
      %5647 = vmatprep.mubr.f32.mxu0 0.0
      %5648 = vmatmul.mubr.f32.gmra.mxu0 %v5452
      %v5649 = vpop.f32.mrf.mxu0
      %v5650 = vadd.f32 0.0, %v5649
      %v5651 = vpop.f32.mrf.mxu0
      %5652 = vmatprep.mubr.f32.mxu0 0.0
      %5653 = vmatmul.mubr.f32.gmra.mxu0 %v5455
      %v5654 = vpop.f32.mrf.mxu0
      %v5655 = vadd.f32 0.0, %v5654
      %v5656 = vpop.f32.mrf.mxu0
      %5657 = vmatprep.mubr.f32.mxu0 0.0
      %5658 = vmatmul.mubr.f32.gmra.mxu0 %v5458
      %v5659 = vpop.f32.mrf.mxu0
      %v5660 = vadd.f32 0.0, %v5659
      %v5661 = vpop.f32.mrf.mxu0
      %5662 = vmatprep.mubr.f32.mxu0 0.0
      %5663 = vmatmul.mubr.f32.gmra.mxu0 %v5461
      %v5664 = vpop.f32.mrf.mxu0
      %v5665 = vadd.f32 0.0, %v5664
      %v5666 = vpop.f32.mrf.mxu0
      %5667 = vmatprep.mubr.f32.mxu0 0.0
      %5668 = vmatmul.mubr.f32.gmra.mxu0 %v5464
      %v5669 = vpop.f32.mrf.mxu0
      %v5670 = vadd.f32 0.0, %v5669
      %v5671 = vpop.f32.mrf.mxu0
      %5672 = vmatprep.mubr.f32.mxu0 0.0
      %5673 = vmatmul.mubr.f32.gmra.mxu0 %v5467
      %v5674 = vpop.f32.mrf.mxu0
      %v5675 = vadd.f32 0.0, %v5674
      %v5676 = vpop.f32.mrf.mxu0
      %5677 = vmatprep.mubr.f32.mxu0 0.0
      %5678 = vmatmul.mubr.f32.gmra.mxu0 %v5470
      %v5679 = vpop.f32.mrf.mxu0
      %v5680 = vadd.f32 0.0, %v5679
      %v5681 = vpop.f32.mrf.mxu0
      %5682 = vmatprep.mubr.f32.mxu0 0.0
      %5683 = vmatmul.mubr.f32.gmra.mxu0 %v5473
      %v5684 = vpop.f32.mrf.mxu0
      %v5685 = vadd.f32 0.0, %v5684
      %v5686 = vpop.f32.mrf.mxu0
      %5687 = vmatprep.mubr.f32.mxu0 0.0
      %5688 = vmatmul.mubr.f32.gmra.mxu0 %v5476
      %v5689 = vpop.f32.mrf.mxu0
      %v5690 = vadd.f32 0.0, %v5689
      %v5691 = vpop.f32.mrf.mxu0
      %5692 = vmatprep.mubr.f32.mxu0 0.0
      %5693 = vmatmul.mubr.f32.gmra.mxu0 %v5479
      %v5694 = vpop.f32.mrf.mxu0
      %v5695 = vadd.f32 0.0, %v5694
      %v5696 = vpop.f32.mrf.mxu0
      %5697 = vmatprep.mubr.f32.mxu0 0.0
      %5698 = vmatmul.mubr.f32.gmra.mxu0 %v5482
      %v5699 = vpop.f32.mrf.mxu0
      %v5700 = vadd.f32 0.0, %v5699
      %v5701 = vpop.f32.mrf.mxu0
      %5702 = vmatprep.mubr.f32.mxu0 0.0
      %5703 = vmatmul.mubr.f32.gmra.mxu0 %v5485
      %v5704 = vpop.f32.mrf.mxu0
      %v5705 = vadd.f32 0.0, %v5704
      %v5706 = vpop.f32.mrf.mxu0
      %5707 = vmatprep.mubr.f32.mxu0 0.0
      %5708 = vmatmul.mubr.f32.gmra.mxu0 %v5488
      %v5709 = vpop.f32.mrf.mxu0
      %v5710 = vadd.f32 0.0, %v5709
      %v5711 = vpop.f32.mrf.mxu0
      %5712 = vmatprep.mubr.f32.mxu0 0.0
      %5713 = vmatmul.mubr.f32.gmra.mxu0 %v5491
      %v5714 = vpop.f32.mrf.mxu0
      %v5715 = vadd.f32 0.0, %v5714
      %v5716 = vpop.f32.mrf.mxu0
      %5717 = vmatprep.mubr.f32.mxu0 0.0
      %5718 = vmatmul.mubr.f32.gmra.mxu0 %v5494
      %v5719 = vpop.f32.mrf.mxu0
      %v5720 = vadd.f32 0.0, %v5719
      %v5721 = vpop.f32.mrf.mxu0
      %5722 = vmatprep.mubr.f32.mxu0 0.0
      %5723 = vmatmul.mubr.f32.gmra.mxu0 %v5497
      %v5724 = vpop.f32.mrf.mxu0
      %v5725 = vadd.f32 0.0, %v5724
      %v5726 = vpop.f32.mrf.mxu0
      %5727 = vmatprep.mubr.f32.mxu0 0.0
      %5728 = vmatmul.mubr.f32.gmra.mxu0 %v5500
      %v5729 = vpop.f32.mrf.mxu0
      %v5730 = vadd.f32 0.0, %v5729
      %v5731 = vpop.f32.mrf.mxu0
      %5732 = vmatprep.mubr.f32.mxu0 0.0
      %5733 = vmatmul.mubr.f32.gmra.mxu0 %v5503
      %v5734 = vpop.f32.mrf.mxu0
      %v5735 = vadd.f32 0.0, %v5734
      %v5736 = vpop.f32.mrf.mxu0
      %5737 = vmatprep.mubr.f32.mxu0 0.0
      %5738 = vmatmul.mubr.f32.gmra.mxu0 %v5506
      %v5739 = vpop.f32.mrf.mxu0
      %v5740 = vadd.f32 0.0, %v5739
      %v5741 = vpop.f32.mrf.mxu0
      %5742 = vmatprep.mubr.f32.mxu0 0.0
      %5743 = vmatmul.mubr.f32.gmra.mxu0 %v5509
      %v5744 = vpop.f32.mrf.mxu0
      %v5745 = vadd.f32 0.0, %v5744
      %v5746 = vpop.f32.mrf.mxu0
      %5747 = vmatprep.mubr.f32.mxu0 0.0
      %5748 = vmatmul.mubr.f32.gmra.mxu0 %v5512
      %v5749 = vpop.f32.mrf.mxu0
      %v5750 = vadd.f32 0.0, %v5749
      %v5751 = vpop.f32.mrf.mxu0
      %5752 = vmatprep.mubr.f32.mxu0 0.0
      %5753 = vmatmul.mubr.f32.gmra.mxu0 %v5515
      %v5754 = vpop.f32.mrf.mxu0
      %v5755 = vadd.f32 0.0, %v5754
      %v5756 = vpop.f32.mrf.mxu0
      %5757 = vmatprep.mubr.f32.mxu0 0.0
      %5758 = vmatmul.mubr.f32.gmra.mxu0 %v5518
      %v5759 = vpop.f32.mrf.mxu0
      %v5760 = vadd.f32 0.0, %v5759
      %v5761 = vpop.f32.mrf.mxu0
      %5762 = vmatprep.mubr.f32.mxu0 0.0
      %5763 = vmatmul.mubr.f32.gmra.mxu0 %v5521
      %v5764 = vpop.f32.mrf.mxu0
      %v5765 = vadd.f32 0.0, %v5764
      %v5766 = vpop.f32.mrf.mxu0
      %5767 = vdwg.mxu0
      %v5768 = vadd.f32 %v5334, %v5590
      %v5769 = vadd.f32 %v5335, %v5595
      %v5770 = vadd.f32 %v5336, %v5600
      %v5771 = vadd.f32 %v5337, %v5605
      %v5772 = vadd.f32 %v5338, %v5610
      %v5773 = vadd.f32 %v5339, %v5615
      %v5774 = vadd.f32 %v5340, %v5620
      %v5775 = vadd.f32 %v5341, %v5625
      %v5776 = vadd.f32 %v5342, %v5630
      %v5777 = vadd.f32 %v5343, %v5635
      %v5778 = vadd.f32 %v5344, %v5640
      %v5779 = vadd.f32 %v5345, %v5645
      %v5780 = vadd.f32 %v5346, %v5650
      %v5781 = vadd.f32 %v5347, %v5655
      %v5782 = vadd.f32 %v5348, %v5660
      %v5783 = vadd.f32 %v5349, %v5665
      %v5784 = vadd.f32 %v5350, %v5670
      %v5785 = vadd.f32 %v5351, %v5675
      %v5786 = vadd.f32 %v5352, %v5680
      %v5787 = vadd.f32 %v5353, %v5685
      %v5788 = vadd.f32 %v5354, %v5690
      %v5789 = vadd.f32 %v5355, %v5695
      %v5790 = vadd.f32 %v5356, %v5700
      %v5791 = vadd.f32 %v5357, %v5705
      %v5792 = vadd.f32 %v5358, %v5710
      %v5793 = vadd.f32 %v5359, %v5715
      %v5794 = vadd.f32 %v5360, %v5720
      %v5795 = vadd.f32 %v5361, %v5725
      %v5796 = vadd.f32 %v5362, %v5730
      %v5797 = vadd.f32 %v5363, %v5735
      %v5798 = vadd.f32 %v5364, %v5740
      %v5799 = vadd.f32 %v5365, %v5745
      %v5800 = vadd.f32 %v5366, %v5750
      %v5801 = vadd.f32 %v5367, %v5755
      %v5802 = vadd.f32 %v5368, %v5760
      %v5803 = vadd.f32 %v5369, %v5765
      %5804 = vst [vmem:[#allocation4] sm:$0xff] %v5768
      %5805 = vst [vmem:[#allocation4 + $0x8] sm:$0xff] %v5769
      %5806 = vst [vmem:[#allocation4 + $0x10] sm:$0xff] %v5770
      %5807 = vst [vmem:[#allocation4 + $0x18] sm:$0xff] %v5771
      %5808 = vst [vmem:[#allocation4 + $0x20] sm:$0xff] %v5772
      %5809 = vst [vmem:[#allocation4 + $0x28] sm:$0xff] %v5773
      %5810 = vst [vmem:[#allocation4 + $0x30] sm:$0xff] %v5774
      %5811 = vst [vmem:[#allocation4 + $0x38] sm:$0xff] %v5775
      %5812 = vst [vmem:[#allocation4 + $0x40] sm:$0xff] %v5776
      %5813 = vst [vmem:[#allocation4 + $0x48] sm:$0xff] %v5777
      %5814 = vst [vmem:[#allocation4 + $0x50] sm:$0xff] %v5778
      %5815 = vst [vmem:[#allocation4 + $0x58] sm:$0xff] %v5779
      %5816 = vst [vmem:[#allocation4 + $0x60] sm:$0xff] %v5780
      %5817 = vst [vmem:[#allocation4 + $0x68] sm:$0xff] %v5781
      %5818 = vst [vmem:[#allocation4 + $0x70] sm:$0xff] %v5782
      %5819 = vst [vmem:[#allocation4 + $0x78] sm:$0xff] %v5783
      %5820 = vst [vmem:[#allocation4 + $0x80] sm:$0xff] %v5784
      %5821 = vst [vmem:[#allocation4 + $0x88] sm:$0xff] %v5785
      %5822 = vst [vmem:[#allocation4 + $0x90] sm:$0xff] %v5786
      %5823 = vst [vmem:[#allocation4 + $0x98] sm:$0xff] %v5787
      %5824 = vst [vmem:[#allocation4 + $0xa0] sm:$0xff] %v5788
      %5825 = vst [vmem:[#allocation4 + $0xa8] sm:$0xff] %v5789
      %5826 = vst [vmem:[#allocation4 + $0xb0] sm:$0xff] %v5790
      %5827 = vst [vmem:[#allocation4 + $0xb8] sm:$0xff] %v5791
      %5828 = vst [vmem:[#allocation4 + $0xc0] sm:$0xff] %v5792
      %5829 = vst [vmem:[#allocation4 + $0xc8] sm:$0xff] %v5793
      %5830 = vst [vmem:[#allocation4 + $0xd0] sm:$0xff] %v5794
      %5831 = vst [vmem:[#allocation4 + $0xd8] sm:$0xff] %v5795
      %5832 = vst [vmem:[#allocation4 + $0xe0] sm:$0xff] %v5796
      %5833 = vst [vmem:[#allocation4 + $0xe8] sm:$0xff] %v5797
      %5834 = vst [vmem:[#allocation4 + $0xf0] sm:$0xff] %v5798
      %5835 = vst [vmem:[#allocation4 + $0xf8] sm:$0xff] %v5799
      %5836 = vst [vmem:[#allocation4 + $0x100] sm:$0xff] %v5800
      %5837 = vst [vmem:[#allocation4 + $0x108] sm:$0xff] %v5801
      %5838 = vst [vmem:[#allocation4 + $0x110] sm:$0xff] %v5802
      %5839 = vst [vmem:[#allocation4 + $0x118] sm:$0xff] %v5803
      %v5840 = vld [vmem:[#allocation4] sm:$0xff]
      %v5841 = vld [vmem:[#allocation4 + $0x8] sm:$0xff]
      %v5842 = vld [vmem:[#allocation4 + $0x10] sm:$0xff]
      %v5843 = vld [vmem:[#allocation4 + $0x18] sm:$0xff]
      %v5844 = vld [vmem:[#allocation4 + $0x20] sm:$0xff]
      %v5845 = vld [vmem:[#allocation4 + $0x28] sm:$0xff]
      %v5846 = vld [vmem:[#allocation4 + $0x30] sm:$0xff]
      %v5847 = vld [vmem:[#allocation4 + $0x38] sm:$0xff]
      %v5848 = vld [vmem:[#allocation4 + $0x40] sm:$0xff]
      %v5849 = vld [vmem:[#allocation4 + $0x48] sm:$0xff]
      %v5850 = vld [vmem:[#allocation4 + $0x50] sm:$0xff]
      %v5851 = vld [vmem:[#allocation4 + $0x58] sm:$0xff]
      %v5852 = vld [vmem:[#allocation4 + $0x60] sm:$0xff]
      %v5853 = vld [vmem:[#allocation4 + $0x68] sm:$0xff]
      %v5854 = vld [vmem:[#allocation4 + $0x70] sm:$0xff]
      %v5855 = vld [vmem:[#allocation4 + $0x78] sm:$0xff]
      %v5856 = vld [vmem:[#allocation4 + $0x80] sm:$0xff]
      %v5857 = vld [vmem:[#allocation4 + $0x88] sm:$0xff]
      %v5858 = vld [vmem:[#allocation4 + $0x90] sm:$0xff]
      %v5859 = vld [vmem:[#allocation4 + $0x98] sm:$0xff]
      %v5860 = vld [vmem:[#allocation4 + $0xa0] sm:$0xff]
      %v5861 = vld [vmem:[#allocation4 + $0xa8] sm:$0xff]
      %v5862 = vld [vmem:[#allocation4 + $0xb0] sm:$0xff]
      %v5863 = vld [vmem:[#allocation4 + $0xb8] sm:$0xff]
      %v5864 = vld [vmem:[#allocation4 + $0xc0] sm:$0xff]
      %v5865 = vld [vmem:[#allocation4 + $0xc8] sm:$0xff]
      %v5866 = vld [vmem:[#allocation4 + $0xd0] sm:$0xff]
      %v5867 = vld [vmem:[#allocation4 + $0xd8] sm:$0xff]
      %v5868 = vld [vmem:[#allocation4 + $0xe0] sm:$0xff]
      %v5869 = vld [vmem:[#allocation4 + $0xe8] sm:$0xff]
      %v5870 = vld [vmem:[#allocation4 + $0xf0] sm:$0xff]
      %v5871 = vld [vmem:[#allocation4 + $0xf8] sm:$0xff]
      %v5872 = vld [vmem:[#allocation4 + $0x100] sm:$0xff]
      %v5873 = vld [vmem:[#allocation4 + $0x108] sm:$0xff]
      %v5874 = vld [vmem:[#allocation4 + $0x110] sm:$0xff]
      %v5875 = vld [vmem:[#allocation4 + $0x118] sm:$0xff]
      %v5876 = vld [vmem:[%s8] sm:$0x1]
      %v5878 = vlaneseq
      %v5879 = vshrl.u32 %v5878, 7
      %v5880 = vsub.s32 0, %v5879
      %v5881 = vrot.slane %v5876, %v5880
      %v5883 = vmul.f32 %v5840, %v5881
      %v5884 = vmul.f32 %v5841, %v5881
      %v5885 = vmul.f32 %v5842, %v5881
      %v5886 = vmul.f32 %v5843, %v5881
      %v5887 = vmul.f32 %v5844, %v5881
      %v5888 = vmul.f32 %v5845, %v5881
      %v5889 = vmul.f32 %v5846, %v5881
      %v5890 = vmul.f32 %v5847, %v5881
      %v5891 = vmul.f32 %v5848, %v5881
      %v5892 = vmul.f32 %v5849, %v5881
      %v5893 = vmul.f32 %v5850, %v5881
      %v5894 = vmul.f32 %v5851, %v5881
      %v5895 = vmul.f32 %v5852, %v5881
      %v5896 = vmul.f32 %v5853, %v5881
      %v5897 = vmul.f32 %v5854, %v5881
      %v5898 = vmul.f32 %v5855, %v5881
      %v5899 = vmul.f32 %v5856, %v5881
      %v5900 = vmul.f32 %v5857, %v5881
      %v5901 = vmul.f32 %v5858, %v5881
      %v5902 = vmul.f32 %v5859, %v5881
      %v5903 = vmul.f32 %v5860, %v5881
      %v5904 = vmul.f32 %v5861, %v5881
      %v5905 = vmul.f32 %v5862, %v5881
      %v5906 = vmul.f32 %v5863, %v5881
      %v5907 = vmul.f32 %v5864, %v5881
      %v5908 = vmul.f32 %v5865, %v5881
      %v5909 = vmul.f32 %v5866, %v5881
      %v5910 = vmul.f32 %v5867, %v5881
      %v5911 = vmul.f32 %v5868, %v5881
      %v5912 = vmul.f32 %v5869, %v5881
      %v5913 = vmul.f32 %v5870, %v5881
      %v5914 = vmul.f32 %v5871, %v5881
      %v5915 = vmul.f32 %v5872, %v5881
      %v5916 = vmul.f32 %v5873, %v5881
      %v5917 = vmul.f32 %v5874, %v5881
      %v5918 = vmul.f32 %v5875, %v5881
      %v5919 = vld [vmem:[%s9] sm:$0x1]
      %v5921 = vlaneseq
      %v5922 = vshrl.u32 %v5921, 7
      %v5923 = vsub.s32 0, %v5922
      %v5924 = vrot.slane %v5919, %v5923
      %v5926 = vadd.f32 %v5883, %v5924
      %v5927 = vadd.f32 %v5884, %v5924
      %v5928 = vadd.f32 %v5885, %v5924
      %v5929 = vadd.f32 %v5886, %v5924
      %v5930 = vadd.f32 %v5887, %v5924
      %v5931 = vadd.f32 %v5888, %v5924
      %v5932 = vadd.f32 %v5889, %v5924
      %v5933 = vadd.f32 %v5890, %v5924
      %v5934 = vadd.f32 %v5891, %v5924
      %v5935 = vadd.f32 %v5892, %v5924
      %v5936 = vadd.f32 %v5893, %v5924
      %v5937 = vadd.f32 %v5894, %v5924
      %v5938 = vadd.f32 %v5895, %v5924
      %v5939 = vadd.f32 %v5896, %v5924
      %v5940 = vadd.f32 %v5897, %v5924
      %v5941 = vadd.f32 %v5898, %v5924
      %v5942 = vadd.f32 %v5899, %v5924
      %v5943 = vadd.f32 %v5900, %v5924
      %v5944 = vadd.f32 %v5901, %v5924
      %v5945 = vadd.f32 %v5902, %v5924
      %v5946 = vadd.f32 %v5903, %v5924
      %v5947 = vadd.f32 %v5904, %v5924
      %v5948 = vadd.f32 %v5905, %v5924
      %v5949 = vadd.f32 %v5906, %v5924
      %v5950 = vadd.f32 %v5907, %v5924
      %v5951 = vadd.f32 %v5908, %v5924
      %v5952 = vadd.f32 %v5909, %v5924
      %v5953 = vadd.f32 %v5910, %v5924
      %v5954 = vadd.f32 %v5911, %v5924
      %v5955 = vadd.f32 %v5912, %v5924
      %v5956 = vadd.f32 %v5913, %v5924
      %v5957 = vadd.f32 %v5914, %v5924
      %v5958 = vadd.f32 %v5915, %v5924
      %v5959 = vadd.f32 %v5916, %v5924
      %v5960 = vadd.f32 %v5917, %v5924
      %v5961 = vadd.f32 %v5918, %v5924
      %v5962 = vmax.f32 %v5926, 0.0
      %v5963 = vmax.f32 %v5927, 0.0
      %v5964 = vmax.f32 %v5928, 0.0
      %v5965 = vmax.f32 %v5929, 0.0
      %v5966 = vmax.f32 %v5930, 0.0
      %v5967 = vmax.f32 %v5931, 0.0
      %v5968 = vmax.f32 %v5932, 0.0
      %v5969 = vmax.f32 %v5933, 0.0
      %v5970 = vmax.f32 %v5934, 0.0
      %v5971 = vmax.f32 %v5935, 0.0
      %v5972 = vmax.f32 %v5936, 0.0
      %v5973 = vmax.f32 %v5937, 0.0
      %v5974 = vmax.f32 %v5938, 0.0
      %v5975 = vmax.f32 %v5939, 0.0
      %v5976 = vmax.f32 %v5940, 0.0
      %v5977 = vmax.f32 %v5941, 0.0
      %v5978 = vmax.f32 %v5942, 0.0
      %v5979 = vmax.f32 %v5943, 0.0
      %v5980 = vmax.f32 %v5944, 0.0
      %v5981 = vmax.f32 %v5945, 0.0
      %v5982 = vmax.f32 %v5946, 0.0
      %v5983 = vmax.f32 %v5947, 0.0
      %v5984 = vmax.f32 %v5948, 0.0
      %v5985 = vmax.f32 %v5949, 0.0
      %v5986 = vmax.f32 %v5950, 0.0
      %v5987 = vmax.f32 %v5951, 0.0
      %v5988 = vmax.f32 %v5952, 0.0
      %v5989 = vmax.f32 %v5953, 0.0
      %v5990 = vmax.f32 %v5954, 0.0
      %v5991 = vmax.f32 %v5955, 0.0
      %v5992 = vmax.f32 %v5956, 0.0
      %v5993 = vmax.f32 %v5957, 0.0
      %v5994 = vmax.f32 %v5958, 0.0
      %v5995 = vmax.f32 %v5959, 0.0
      %v5996 = vmax.f32 %v5960, 0.0
      %v5997 = vmax.f32 %v5961, 0.0
      %v5998 = vld [vmem:[%s2] sm:$0xff]
      %v5999 = vld [vmem:[%s2 + $0x8] sm:$0xff]
      %v6000 = vld [vmem:[%s2 + $0x10] sm:$0xff]
      %v6001 = vld [vmem:[%s2 + $0x18] sm:$0xff]
      %v6002 = vld [vmem:[%s2 + $0x20] sm:$0xff]
      %v6003 = vld [vmem:[%s2 + $0x28] sm:$0xff]
      %v6004 = vld [vmem:[%s2 + $0x30] sm:$0xff]
      %v6005 = vld [vmem:[%s2 + $0x38] sm:$0xff]
      %v6006 = vld [vmem:[%s2 + $0x40] sm:$0xff]
      %v6007 = vld [vmem:[%s2 + $0x48] sm:$0xff]
      %v6008 = vld [vmem:[%s2 + $0x50] sm:$0xff]
      %v6009 = vld [vmem:[%s2 + $0x58] sm:$0xff]
      %v6010 = vld [vmem:[%s2 + $0x60] sm:$0xff]
      %v6011 = vld [vmem:[%s2 + $0x68] sm:$0xff]
      %v6012 = vld [vmem:[%s2 + $0x70] sm:$0xff]
      %v6013 = vld [vmem:[%s2 + $0x78] sm:$0xff]
      %v6014 = vld [vmem:[%s2 + $0x80] sm:$0xff]
      %v6015 = vld [vmem:[%s2 + $0x88] sm:$0xff]
      %v6016 = vld [vmem:[%s2 + $0x90] sm:$0xff]
      %v6017 = vld [vmem:[%s2 + $0x98] sm:$0xff]
      %v6018 = vld [vmem:[%s2 + $0xa0] sm:$0xff]
      %v6019 = vld [vmem:[%s2 + $0xa8] sm:$0xff]
      %v6020 = vld [vmem:[%s2 + $0xb0] sm:$0xff]
      %v6021 = vld [vmem:[%s2 + $0xb8] sm:$0xff]
      %v6022 = vld [vmem:[%s2 + $0xc0] sm:$0xff]
      %v6023 = vld [vmem:[%s2 + $0xc8] sm:$0xff]
      %v6024 = vld [vmem:[%s2 + $0xd0] sm:$0xff]
      %v6025 = vld [vmem:[%s2 + $0xd8] sm:$0xff]
      %v6026 = vld [vmem:[%s2 + $0xe0] sm:$0xff]
      %v6027 = vld [vmem:[%s2 + $0xe8] sm:$0xff]
      %v6028 = vld [vmem:[%s2 + $0xf0] sm:$0xff]
      %v6029 = vld [vmem:[%s2 + $0xf8] sm:$0xff]
      %v6030 = vld [vmem:[%s2 + $0x100] sm:$0xff]
      %v6031 = vld [vmem:[%s2 + $0x108] sm:$0xff]
      %v6032 = vld [vmem:[%s2 + $0x110] sm:$0xff]
      %v6033 = vld [vmem:[%s2 + $0x118] sm:$0xff]
      %6035 = vset.pattern.permute.xlu0 0
      %6036 = vperm.xlu0 %6035, %v5998
      %v6037 = vpop.permute.xlu0 %6036
      %6040 = vset.pattern.permute.xlu0 0
      %6041 = vperm.xlu0 %6040, %v5999
      %v6042 = vpop.permute.xlu0 %6041
      %6045 = vset.pattern.permute.xlu0 0
      %6046 = vperm.xlu0 %6045, %v6000
      %v6047 = vpop.permute.xlu0 %6046
      %6050 = vset.pattern.permute.xlu0 0
      %6051 = vperm.xlu0 %6050, %v6001
      %v6052 = vpop.permute.xlu0 %6051
      %6055 = vset.pattern.permute.xlu0 0
      %6056 = vperm.xlu0 %6055, %v6002
      %v6057 = vpop.permute.xlu0 %6056
      %6060 = vset.pattern.permute.xlu0 0
      %6061 = vperm.xlu0 %6060, %v6003
      %v6062 = vpop.permute.xlu0 %6061
      %6065 = vset.pattern.permute.xlu0 0
      %6066 = vperm.xlu0 %6065, %v6004
      %v6067 = vpop.permute.xlu0 %6066
      %6070 = vset.pattern.permute.xlu0 0
      %6071 = vperm.xlu0 %6070, %v6005
      %v6072 = vpop.permute.xlu0 %6071
      %6075 = vset.pattern.permute.xlu0 0
      %6076 = vperm.xlu0 %6075, %v6006
      %v6077 = vpop.permute.xlu0 %6076
      %6080 = vset.pattern.permute.xlu0 0
      %6081 = vperm.xlu0 %6080, %v6007
      %v6082 = vpop.permute.xlu0 %6081
      %6085 = vset.pattern.permute.xlu0 0
      %6086 = vperm.xlu0 %6085, %v6008
      %v6087 = vpop.permute.xlu0 %6086
      %6090 = vset.pattern.permute.xlu0 0
      %6091 = vperm.xlu0 %6090, %v6009
      %v6092 = vpop.permute.xlu0 %6091
      %6095 = vset.pattern.permute.xlu0 0
      %6096 = vperm.xlu0 %6095, %v6010
      %v6097 = vpop.permute.xlu0 %6096
      %6100 = vset.pattern.permute.xlu0 0
      %6101 = vperm.xlu0 %6100, %v6011
      %v6102 = vpop.permute.xlu0 %6101
      %6105 = vset.pattern.permute.xlu0 0
      %6106 = vperm.xlu0 %6105, %v6012
      %v6107 = vpop.permute.xlu0 %6106
      %6110 = vset.pattern.permute.xlu0 0
      %6111 = vperm.xlu0 %6110, %v6013
      %v6112 = vpop.permute.xlu0 %6111
      %6115 = vset.pattern.permute.xlu0 0
      %6116 = vperm.xlu0 %6115, %v6014
      %v6117 = vpop.permute.xlu0 %6116
      %6120 = vset.pattern.permute.xlu0 0
      %6121 = vperm.xlu0 %6120, %v6015
      %v6122 = vpop.permute.xlu0 %6121
      %6125 = vset.pattern.permute.xlu0 0
      %6126 = vperm.xlu0 %6125, %v6016
      %v6127 = vpop.permute.xlu0 %6126
      %6130 = vset.pattern.permute.xlu0 0
      %6131 = vperm.xlu0 %6130, %v6017
      %v6132 = vpop.permute.xlu0 %6131
      %6135 = vset.pattern.permute.xlu0 0
      %6136 = vperm.xlu0 %6135, %v6018
      %v6137 = vpop.permute.xlu0 %6136
      %6140 = vset.pattern.permute.xlu0 0
      %6141 = vperm.xlu0 %6140, %v6019
      %v6142 = vpop.permute.xlu0 %6141
      %6145 = vset.pattern.permute.xlu0 0
      %6146 = vperm.xlu0 %6145, %v6020
      %v6147 = vpop.permute.xlu0 %6146
      %6150 = vset.pattern.permute.xlu0 0
      %6151 = vperm.xlu0 %6150, %v6021
      %v6152 = vpop.permute.xlu0 %6151
      %6155 = vset.pattern.permute.xlu0 0
      %6156 = vperm.xlu0 %6155, %v6022
      %v6157 = vpop.permute.xlu0 %6156
      %6160 = vset.pattern.permute.xlu0 0
      %6161 = vperm.xlu0 %6160, %v6023
      %v6162 = vpop.permute.xlu0 %6161
      %6165 = vset.pattern.permute.xlu0 0
      %6166 = vperm.xlu0 %6165, %v6024
      %v6167 = vpop.permute.xlu0 %6166
      %6170 = vset.pattern.permute.xlu0 0
      %6171 = vperm.xlu0 %6170, %v6025
      %v6172 = vpop.permute.xlu0 %6171
      %6175 = vset.pattern.permute.xlu0 0
      %6176 = vperm.xlu0 %6175, %v6026
      %v6177 = vpop.permute.xlu0 %6176
      %6180 = vset.pattern.permute.xlu0 0
      %6181 = vperm.xlu0 %6180, %v6027
      %v6182 = vpop.permute.xlu0 %6181
      %6185 = vset.pattern.permute.xlu0 0
      %6186 = vperm.xlu0 %6185, %v6028
      %v6187 = vpop.permute.xlu0 %6186
      %6190 = vset.pattern.permute.xlu0 0
      %6191 = vperm.xlu0 %6190, %v6029
      %v6192 = vpop.permute.xlu0 %6191
      %6195 = vset.pattern.permute.xlu0 0
      %6196 = vperm.xlu0 %6195, %v6030
      %v6197 = vpop.permute.xlu0 %6196
      %6200 = vset.pattern.permute.xlu0 0
      %6201 = vperm.xlu0 %6200, %v6031
      %v6202 = vpop.permute.xlu0 %6201
      %6205 = vset.pattern.permute.xlu0 0
      %6206 = vperm.xlu0 %6205, %v6032
      %v6207 = vpop.permute.xlu0 %6206
      %6210 = vset.pattern.permute.xlu0 0
      %6211 = vperm.xlu0 %6210, %v6033
      %v6212 = vpop.permute.xlu0 %6211
      %v6214 = vmul.f32 %v5962, %v6037
      %v6215 = vmul.f32 %v5963, %v6042
      %v6216 = vmul.f32 %v5964, %v6047
      %v6217 = vmul.f32 %v5965, %v6052
      %v6218 = vmul.f32 %v5966, %v6057
      %v6219 = vmul.f32 %v5967, %v6062
      %v6220 = vmul.f32 %v5968, %v6067
      %v6221 = vmul.f32 %v5969, %v6072
      %v6222 = vmul.f32 %v5970, %v6077
      %v6223 = vmul.f32 %v5971, %v6082
      %v6224 = vmul.f32 %v5972, %v6087
      %v6225 = vmul.f32 %v5973, %v6092
      %v6226 = vmul.f32 %v5974, %v6097
      %v6227 = vmul.f32 %v5975, %v6102
      %v6228 = vmul.f32 %v5976, %v6107
      %v6229 = vmul.f32 %v5977, %v6112
      %v6230 = vmul.f32 %v5978, %v6117
      %v6231 = vmul.f32 %v5979, %v6122
      %v6232 = vmul.f32 %v5980, %v6127
      %v6233 = vmul.f32 %v5981, %v6132
      %v6234 = vmul.f32 %v5982, %v6137
      %v6235 = vmul.f32 %v5983, %v6142
      %v6236 = vmul.f32 %v5984, %v6147
      %v6237 = vmul.f32 %v5985, %v6152
      %v6238 = vmul.f32 %v5986, %v6157
      %v6239 = vmul.f32 %v5987, %v6162
      %v6240 = vmul.f32 %v5988, %v6167
      %v6241 = vmul.f32 %v5989, %v6172
      %v6242 = vmul.f32 %v5990, %v6177
      %v6243 = vmul.f32 %v5991, %v6182
      %v6244 = vmul.f32 %v5992, %v6187
      %v6245 = vmul.f32 %v5993, %v6192
      %v6246 = vmul.f32 %v5994, %v6197
      %v6247 = vmul.f32 %v5995, %v6202
      %v6248 = vmul.f32 %v5996, %v6207
      %v6249 = vmul.f32 %v5997, %v6212
      %6250 = vst [vmem:[#allocation3] sm:$0xff] 0.0
      %6251 = vst [vmem:[#allocation3 + $0x8] sm:$0xff] 0.0
      %6252 = vst [vmem:[#allocation3 + $0x10] sm:$0x7] 0.0
      %6253 = vst [vmem:[#allocation3 + $0x133] sm:$0xff] 0.0
      %6254 = vst [vmem:[#allocation3 + $0x13b] sm:$0xff] 0.0
      %6255 = vst [vmem:[#allocation3 + $0x143] sm:$0xff] 0.0
      %6256 = vst [vmem:[#allocation3 + $0x14b] sm:$0xff] 0.0
      %6257 = vst [vmem:[#allocation3 + $0x153] sm:$0x7] 0.0
      %6258 = vst [vmem:[#allocation3 + $0x13] sm:$0xff] %v6214
      %6259 = vst [vmem:[#allocation3 + $0x1b] sm:$0xff] %v6215
      %6260 = vst [vmem:[#allocation3 + $0x23] sm:$0xff] %v6216
      %6261 = vst [vmem:[#allocation3 + $0x2b] sm:$0xff] %v6217
      %6262 = vst [vmem:[#allocation3 + $0x33] sm:$0xff] %v6218
      %6263 = vst [vmem:[#allocation3 + $0x3b] sm:$0xff] %v6219
      %6264 = vst [vmem:[#allocation3 + $0x43] sm:$0xff] %v6220
      %6265 = vst [vmem:[#allocation3 + $0x4b] sm:$0xff] %v6221
      %6266 = vst [vmem:[#allocation3 + $0x53] sm:$0xff] %v6222
      %6267 = vst [vmem:[#allocation3 + $0x5b] sm:$0xff] %v6223
      %6268 = vst [vmem:[#allocation3 + $0x63] sm:$0xff] %v6224
      %6269 = vst [vmem:[#allocation3 + $0x6b] sm:$0xff] %v6225
      %6270 = vst [vmem:[#allocation3 + $0x73] sm:$0xff] %v6226
      %6271 = vst [vmem:[#allocation3 + $0x7b] sm:$0xff] %v6227
      %6272 = vst [vmem:[#allocation3 + $0x83] sm:$0xff] %v6228
      %6273 = vst [vmem:[#allocation3 + $0x8b] sm:$0xff] %v6229
      %6274 = vst [vmem:[#allocation3 + $0x93] sm:$0xff] %v6230
      %6275 = vst [vmem:[#allocation3 + $0x9b] sm:$0xff] %v6231
      %6276 = vst [vmem:[#allocation3 + $0xa3] sm:$0xff] %v6232
      %6277 = vst [vmem:[#allocation3 + $0xab] sm:$0xff] %v6233
      %6278 = vst [vmem:[#allocation3 + $0xb3] sm:$0xff] %v6234
      %6279 = vst [vmem:[#allocation3 + $0xbb] sm:$0xff] %v6235
      %6280 = vst [vmem:[#allocation3 + $0xc3] sm:$0xff] %v6236
      %6281 = vst [vmem:[#allocation3 + $0xcb] sm:$0xff] %v6237
      %6282 = vst [vmem:[#allocation3 + $0xd3] sm:$0xff] %v6238
      %6283 = vst [vmem:[#allocation3 + $0xdb] sm:$0xff] %v6239
      %6284 = vst [vmem:[#allocation3 + $0xe3] sm:$0xff] %v6240
      %6285 = vst [vmem:[#allocation3 + $0xeb] sm:$0xff] %v6241
      %6286 = vst [vmem:[#allocation3 + $0xf3] sm:$0xff] %v6242
      %6287 = vst [vmem:[#allocation3 + $0xfb] sm:$0xff] %v6243
      %6288 = vst [vmem:[#allocation3 + $0x103] sm:$0xff] %v6244
      %6289 = vst [vmem:[#allocation3 + $0x10b] sm:$0xff] %v6245
      %6290 = vst [vmem:[#allocation3 + $0x113] sm:$0xff] %v6246
      %6291 = vst [vmem:[#allocation3 + $0x11b] sm:$0xff] %v6247
      %6292 = vst [vmem:[#allocation3 + $0x123] sm:$0xff] %v6248
      %6293 = vst [vmem:[#allocation3 + $0x12b] sm:$0xff] %v6249
      %v6294 = vld [vmem:[%s11] sm:$0x1]
      %v6296 = vlaneseq
      %v6297 = vshrl.u32 %v6296, 7
      %v6298 = vsub.s32 0, %v6297
      %v6299 = vrot.slane %v6294, %v6298
      %6301 = vst [vmem:[%s433] sm:$0xff] %v6299
      %6302 = vst [vmem:[%s433 + $0x8] sm:$0xff] %v6299
      %6303 = vst [vmem:[%s433 + $0x10] sm:$0xff] %v6299
      %6304 = vst [vmem:[%s433 + $0x18] sm:$0xff] %v6299
      %6305 = vst [vmem:[%s433 + $0x20] sm:$0xff] %v6299
      %6306 = vst [vmem:[%s433 + $0x28] sm:$0xff] %v6299
      %6307 = vst [vmem:[%s433 + $0x30] sm:$0xff] %v6299
      %6308 = vst [vmem:[%s433 + $0x38] sm:$0xff] %v6299
      %6309 = vst [vmem:[%s433 + $0x40] sm:$0xff] %v6299
      %6310 = vst [vmem:[%s433 + $0x48] sm:$0xff] %v6299
      %6311 = vst [vmem:[%s433 + $0x50] sm:$0xff] %v6299
      %6312 = vst [vmem:[%s433 + $0x58] sm:$0xff] %v6299
      %6313 = vst [vmem:[%s433 + $0x60] sm:$0xff] %v6299
      %6314 = vst [vmem:[%s433 + $0x68] sm:$0xff] %v6299
      %6315 = vst [vmem:[%s433 + $0x70] sm:$0xff] %v6299
      %6316 = vst [vmem:[%s433 + $0x78] sm:$0xff] %v6299
      %6317 = vst [vmem:[%s433 + $0x80] sm:$0xff] %v6299
      %6318 = vst [vmem:[%s433 + $0x88] sm:$0xff] %v6299
      %6319 = vst [vmem:[%s433 + $0x90] sm:$0xff] %v6299
      %6320 = vst [vmem:[%s433 + $0x98] sm:$0xff] %v6299
      %6321 = vst [vmem:[%s433 + $0xa0] sm:$0xff] %v6299
      %6322 = vst [vmem:[%s433 + $0xa8] sm:$0xff] %v6299
      %6323 = vst [vmem:[%s433 + $0xb0] sm:$0xff] %v6299
      %6324 = vst [vmem:[%s433 + $0xb8] sm:$0xff] %v6299
      %6325 = vst [vmem:[%s433 + $0xc0] sm:$0xff] %v6299
      %6326 = vst [vmem:[%s433 + $0xc8] sm:$0xff] %v6299
      %6327 = vst [vmem:[%s433 + $0xd0] sm:$0xff] %v6299
      %6328 = vst [vmem:[%s433 + $0xd8] sm:$0xff] %v6299
      %6329 = vst [vmem:[%s433 + $0xe0] sm:$0xff] %v6299
      %6330 = vst [vmem:[%s433 + $0xe8] sm:$0xff] %v6299
      %6331 = vst [vmem:[%s433 + $0xf0] sm:$0xff] %v6299
      %6332 = vst [vmem:[%s433 + $0xf8] sm:$0xff] %v6299
      %6333 = vst [vmem:[%s433 + $0x100] sm:$0xff] %v6299
      %6334 = vst [vmem:[%s433 + $0x108] sm:$0xff] %v6299
      %6335 = vst [vmem:[%s433 + $0x110] sm:$0xff] %v6299
      %6336 = vst [vmem:[%s433 + $0x118] sm:$0xff] %v6299
      %v6337 = vld [vmem:[%s433] sm:$0xff]
      %v6338 = vld [vmem:[%s433 + $0x8] sm:$0xff]
      %v6339 = vld [vmem:[%s433 + $0x10] sm:$0xff]
      %v6340 = vld [vmem:[%s433 + $0x18] sm:$0xff]
      %v6341 = vld [vmem:[%s433 + $0x20] sm:$0xff]
      %v6342 = vld [vmem:[%s433 + $0x28] sm:$0xff]
      %v6343 = vld [vmem:[%s433 + $0x30] sm:$0xff]
      %v6344 = vld [vmem:[%s433 + $0x38] sm:$0xff]
      %v6345 = vld [vmem:[%s433 + $0x40] sm:$0xff]
      %v6346 = vld [vmem:[%s433 + $0x48] sm:$0xff]
      %v6347 = vld [vmem:[%s433 + $0x50] sm:$0xff]
      %v6348 = vld [vmem:[%s433 + $0x58] sm:$0xff]
      %v6349 = vld [vmem:[%s433 + $0x60] sm:$0xff]
      %v6350 = vld [vmem:[%s433 + $0x68] sm:$0xff]
      %v6351 = vld [vmem:[%s433 + $0x70] sm:$0xff]
      %v6352 = vld [vmem:[%s433 + $0x78] sm:$0xff]
      %v6353 = vld [vmem:[%s433 + $0x80] sm:$0xff]
      %v6354 = vld [vmem:[%s433 + $0x88] sm:$0xff]
      %v6355 = vld [vmem:[%s433 + $0x90] sm:$0xff]
      %v6356 = vld [vmem:[%s433 + $0x98] sm:$0xff]
      %v6357 = vld [vmem:[%s433 + $0xa0] sm:$0xff]
      %v6358 = vld [vmem:[%s433 + $0xa8] sm:$0xff]
      %v6359 = vld [vmem:[%s433 + $0xb0] sm:$0xff]
      %v6360 = vld [vmem:[%s433 + $0xb8] sm:$0xff]
      %v6361 = vld [vmem:[%s433 + $0xc0] sm:$0xff]
      %v6362 = vld [vmem:[%s433 + $0xc8] sm:$0xff]
      %v6363 = vld [vmem:[%s433 + $0xd0] sm:$0xff]
      %v6364 = vld [vmem:[%s433 + $0xd8] sm:$0xff]
      %v6365 = vld [vmem:[%s433 + $0xe0] sm:$0xff]
      %v6366 = vld [vmem:[%s433 + $0xe8] sm:$0xff]
      %v6367 = vld [vmem:[%s433 + $0xf0] sm:$0xff]
      %v6368 = vld [vmem:[%s433 + $0xf8] sm:$0xff]
      %v6369 = vld [vmem:[%s433 + $0x100] sm:$0xff]
      %v6370 = vld [vmem:[%s433 + $0x108] sm:$0xff]
      %v6371 = vld [vmem:[%s433 + $0x110] sm:$0xff]
      %v6372 = vld [vmem:[%s433 + $0x118] sm:$0xff]
      %v6373 = vld [vmem:[#allocation3] sm:$0xff]
      %v6374 = vld [vmem:[#allocation3 + $0x8] sm:$0xff]
      %v6375 = vld [vmem:[#allocation3 + $0x10] sm:$0xff]
      %v6376 = vld [vmem:[#allocation3 + $0x18] sm:$0xff]
      %v6377 = vld [vmem:[#allocation3 + $0x20] sm:$0xff]
      %v6378 = vld [vmem:[#allocation3 + $0x28] sm:$0xff]
      %v6379 = vld [vmem:[#allocation3 + $0x30] sm:$0xff]
      %v6380 = vld [vmem:[#allocation3 + $0x38] sm:$0xff]
      %v6381 = vld [vmem:[#allocation3 + $0x40] sm:$0xff]
      %v6382 = vld [vmem:[#allocation3 + $0x48] sm:$0xff]
      %v6383 = vld [vmem:[#allocation3 + $0x50] sm:$0xff]
      %v6384 = vld [vmem:[#allocation3 + $0x58] sm:$0xff]
      %v6385 = vld [vmem:[#allocation3 + $0x60] sm:$0xff]
      %v6386 = vld [vmem:[#allocation3 + $0x68] sm:$0xff]
      %v6387 = vld [vmem:[#allocation3 + $0x70] sm:$0xff]
      %v6388 = vld [vmem:[#allocation3 + $0x78] sm:$0xff]
      %v6389 = vld [vmem:[#allocation3 + $0x80] sm:$0xff]
      %v6390 = vld [vmem:[#allocation3 + $0x88] sm:$0xff]
      %v6391 = vld [vmem:[#allocation3 + $0x90] sm:$0xff]
      %v6392 = vld [vmem:[#allocation3 + $0x98] sm:$0xff]
      %v6393 = vld [vmem:[#allocation3 + $0xa0] sm:$0xff]
      %v6394 = vld [vmem:[#allocation3 + $0xa8] sm:$0xff]
      %v6395 = vld [vmem:[#allocation3 + $0xb0] sm:$0xff]
      %v6396 = vld [vmem:[#allocation3 + $0xb8] sm:$0xff]
      %v6397 = vld [vmem:[#allocation3 + $0xc0] sm:$0xff]
      %v6398 = vld [vmem:[#allocation3 + $0xc8] sm:$0xff]
      %v6399 = vld [vmem:[#allocation3 + $0xd0] sm:$0xff]
      %v6400 = vld [vmem:[#allocation3 + $0xd8] sm:$0xff]
      %v6401 = vld [vmem:[#allocation3 + $0xe0] sm:$0xff]
      %v6402 = vld [vmem:[#allocation3 + $0xe8] sm:$0xff]
      %v6403 = vld [vmem:[#allocation3 + $0xf0] sm:$0xff]
      %v6404 = vld [vmem:[#allocation3 + $0xf8] sm:$0xff]
      %v6405 = vld [vmem:[#allocation3 + $0x100] sm:$0xff]
      %v6406 = vld [vmem:[#allocation3 + $0x108] sm:$0xff]
      %v6407 = vld [vmem:[#allocation3 + $0x110] sm:$0xff]
      %v6408 = vld [vmem:[#allocation3 + $0x118] sm:$0xff]
      %v6409 = vld [vmem:[%s10] sm:$0xff]
      %v6410 = vld [vmem:[%s10 + $0x8] sm:$0xff]
      %v6411 = vld [vmem:[%s10 + $0x10] sm:$0xff]
      %v6412 = vld [vmem:[%s10 + $0x18] sm:$0xff]
      %v6413 = vld [vmem:[%s10 + $0x20] sm:$0xff]
      %v6414 = vld [vmem:[%s10 + $0x28] sm:$0xff]
      %v6415 = vld [vmem:[%s10 + $0x30] sm:$0xff]
      %v6416 = vld [vmem:[%s10 + $0x38] sm:$0xff]
      %v6417 = vld [vmem:[%s10 + $0x40] sm:$0xff]
      %v6418 = vld [vmem:[%s10 + $0x48] sm:$0xff]
      %v6419 = vld [vmem:[%s10 + $0x50] sm:$0xff]
      %v6420 = vld [vmem:[%s10 + $0x58] sm:$0xff]
      %v6421 = vld [vmem:[%s10 + $0x60] sm:$0xff]
      %v6422 = vld [vmem:[%s10 + $0x68] sm:$0xff]
      %v6423 = vld [vmem:[%s10 + $0x70] sm:$0xff]
      %v6424 = vld [vmem:[%s10 + $0x78] sm:$0xff]
      %6425 = vmatprep.subr.mxu0 0.0
      %6426 = vmatpush1.msra.mxu0 %v6424
      %6427 = vmatprep.subr.mxu0 0.0
      %6428 = vmatpush1.msra.mxu0 %v6423
      %6429 = vmatprep.subr.mxu0 0.0
      %6430 = vmatpush1.msra.mxu0 %v6422
      %6431 = vmatprep.subr.mxu0 0.0
      %6432 = vmatpush1.msra.mxu0 %v6421
      %6433 = vmatprep.subr.mxu0 0.0
      %6434 = vmatpush1.msra.mxu0 %v6420
      %6435 = vmatprep.subr.mxu0 0.0
      %6436 = vmatpush1.msra.mxu0 %v6419
      %6437 = vmatprep.subr.mxu0 0.0
      %6438 = vmatpush1.msra.mxu0 %v6418
      %6439 = vmatprep.subr.mxu0 0.0
      %6440 = vmatpush1.msra.mxu0 %v6417
      %6441 = vmatprep.subr.mxu0 0.0
      %6442 = vmatpush1.msra.mxu0 %v6416
      %6443 = vmatprep.subr.mxu0 0.0
      %6444 = vmatpush1.msra.mxu0 %v6415
      %6445 = vmatprep.subr.mxu0 0.0
      %6446 = vmatpush1.msra.mxu0 %v6414
      %6447 = vmatprep.subr.mxu0 0.0
      %6448 = vmatpush1.msra.mxu0 %v6413
      %6449 = vmatprep.subr.mxu0 0.0
      %6450 = vmatpush1.msra.mxu0 %v6412
      %6451 = vmatprep.subr.mxu0 0.0
      %6452 = vmatpush1.msra.mxu0 %v6411
      %6453 = vmatprep.subr.mxu0 0.0
      %6454 = vmatpush1.msra.mxu0 %v6410
      %6455 = vmatprep.subr.mxu0 0.0
      %6456 = vmatpush1.msra.mxu0 %v6409
      %6457 = vmatprep.subr.mxu0 0.0
      %6458 = vmatpush2.msra.mxu0 0.0
      %6459 = vmatprep.subr.mxu0 0.0
      %6460 = vmatpush2.msra.mxu0 0.0
      %6461 = vmatprep.subr.mxu0 0.0
      %6462 = vmatpush2.msra.mxu0 0.0
      %6463 = vmatprep.subr.mxu0 0.0
      %6464 = vmatpush2.msra.mxu0 0.0
      %6465 = vmatprep.subr.mxu0 0.0
      %6466 = vmatpush2.msra.mxu0 0.0
      %6467 = vmatprep.subr.mxu0 0.0
      %6468 = vmatpush2.msra.mxu0 0.0
      %6469 = vmatprep.subr.mxu0 0.0
      %6470 = vmatpush2.msra.mxu0 0.0
      %6471 = vmatprep.subr.mxu0 0.0
      %6472 = vmatpush2.msra.mxu0 0.0
      %6473 = vmatprep.subr.mxu0 0.0
      %6474 = vmatpush2.msra.mxu0 0.0
      %6475 = vmatprep.subr.mxu0 0.0
      %6476 = vmatpush2.msra.mxu0 0.0
      %6477 = vmatprep.subr.mxu0 0.0
      %6478 = vmatpush2.msra.mxu0 0.0
      %6479 = vmatprep.subr.mxu0 0.0
      %6480 = vmatpush2.msra.mxu0 0.0
      %6481 = vmatprep.subr.mxu0 0.0
      %6482 = vmatpush2.msra.mxu0 0.0
      %6483 = vmatprep.subr.mxu0 0.0
      %6484 = vmatpush2.msra.mxu0 0.0
      %6485 = vmatprep.subr.mxu0 0.0
      %6486 = vmatpush2.msra.mxu0 0.0
      %6487 = vmatprep.subr.mxu0 0.0
      %6488 = vmatpush2.msra.mxu0 0.0
      %6489 = vmatprep.mubr.f32.mxu0 0.0
      %6490 = vmatmul.mubr.f32.gmra.mxu0 %v6373
      %v6491 = vpop.f32.mrf.mxu0
      %v6492 = vadd.f32 0.0, %v6491
      %v6493 = vpop.f32.mrf.mxu0
      %6494 = vmatprep.mubr.f32.mxu0 0.0
      %6495 = vmatmul.mubr.f32.gmra.mxu0 %v6374
      %v6496 = vpop.f32.mrf.mxu0
      %v6497 = vadd.f32 0.0, %v6496
      %v6498 = vpop.f32.mrf.mxu0
      %6499 = vmatprep.mubr.f32.mxu0 0.0
      %6500 = vmatmul.mubr.f32.gmra.mxu0 %v6375
      %v6501 = vpop.f32.mrf.mxu0
      %v6502 = vadd.f32 0.0, %v6501
      %v6503 = vpop.f32.mrf.mxu0
      %6504 = vmatprep.mubr.f32.mxu0 0.0
      %6505 = vmatmul.mubr.f32.gmra.mxu0 %v6376
      %v6506 = vpop.f32.mrf.mxu0
      %v6507 = vadd.f32 0.0, %v6506
      %v6508 = vpop.f32.mrf.mxu0
      %6509 = vmatprep.mubr.f32.mxu0 0.0
      %6510 = vmatmul.mubr.f32.gmra.mxu0 %v6377
      %v6511 = vpop.f32.mrf.mxu0
      %v6512 = vadd.f32 0.0, %v6511
      %v6513 = vpop.f32.mrf.mxu0
      %6514 = vmatprep.mubr.f32.mxu0 0.0
      %6515 = vmatmul.mubr.f32.gmra.mxu0 %v6378
      %v6516 = vpop.f32.mrf.mxu0
      %v6517 = vadd.f32 0.0, %v6516
      %v6518 = vpop.f32.mrf.mxu0
      %6519 = vmatprep.mubr.f32.mxu0 0.0
      %6520 = vmatmul.mubr.f32.gmra.mxu0 %v6379
      %v6521 = vpop.f32.mrf.mxu0
      %v6522 = vadd.f32 0.0, %v6521
      %v6523 = vpop.f32.mrf.mxu0
      %6524 = vmatprep.mubr.f32.mxu0 0.0
      %6525 = vmatmul.mubr.f32.gmra.mxu0 %v6380
      %v6526 = vpop.f32.mrf.mxu0
      %v6527 = vadd.f32 0.0, %v6526
      %v6528 = vpop.f32.mrf.mxu0
      %6529 = vmatprep.mubr.f32.mxu0 0.0
      %6530 = vmatmul.mubr.f32.gmra.mxu0 %v6381
      %v6531 = vpop.f32.mrf.mxu0
      %v6532 = vadd.f32 0.0, %v6531
      %v6533 = vpop.f32.mrf.mxu0
      %6534 = vmatprep.mubr.f32.mxu0 0.0
      %6535 = vmatmul.mubr.f32.gmra.mxu0 %v6382
      %v6536 = vpop.f32.mrf.mxu0
      %v6537 = vadd.f32 0.0, %v6536
      %v6538 = vpop.f32.mrf.mxu0
      %6539 = vmatprep.mubr.f32.mxu0 0.0
      %6540 = vmatmul.mubr.f32.gmra.mxu0 %v6383
      %v6541 = vpop.f32.mrf.mxu0
      %v6542 = vadd.f32 0.0, %v6541
      %v6543 = vpop.f32.mrf.mxu0
      %6544 = vmatprep.mubr.f32.mxu0 0.0
      %6545 = vmatmul.mubr.f32.gmra.mxu0 %v6384
      %v6546 = vpop.f32.mrf.mxu0
      %v6547 = vadd.f32 0.0, %v6546
      %v6548 = vpop.f32.mrf.mxu0
      %6549 = vmatprep.mubr.f32.mxu0 0.0
      %6550 = vmatmul.mubr.f32.gmra.mxu0 %v6385
      %v6551 = vpop.f32.mrf.mxu0
      %v6552 = vadd.f32 0.0, %v6551
      %v6553 = vpop.f32.mrf.mxu0
      %6554 = vmatprep.mubr.f32.mxu0 0.0
      %6555 = vmatmul.mubr.f32.gmra.mxu0 %v6386
      %v6556 = vpop.f32.mrf.mxu0
      %v6557 = vadd.f32 0.0, %v6556
      %v6558 = vpop.f32.mrf.mxu0
      %6559 = vmatprep.mubr.f32.mxu0 0.0
      %6560 = vmatmul.mubr.f32.gmra.mxu0 %v6387
      %v6561 = vpop.f32.mrf.mxu0
      %v6562 = vadd.f32 0.0, %v6561
      %v6563 = vpop.f32.mrf.mxu0
      %6564 = vmatprep.mubr.f32.mxu0 0.0
      %6565 = vmatmul.mubr.f32.gmra.mxu0 %v6388
      %v6566 = vpop.f32.mrf.mxu0
      %v6567 = vadd.f32 0.0, %v6566
      %v6568 = vpop.f32.mrf.mxu0
      %6569 = vmatprep.mubr.f32.mxu0 0.0
      %6570 = vmatmul.mubr.f32.gmra.mxu0 %v6389
      %v6571 = vpop.f32.mrf.mxu0
      %v6572 = vadd.f32 0.0, %v6571
      %v6573 = vpop.f32.mrf.mxu0
      %6574 = vmatprep.mubr.f32.mxu0 0.0
      %6575 = vmatmul.mubr.f32.gmra.mxu0 %v6390
      %v6576 = vpop.f32.mrf.mxu0
      %v6577 = vadd.f32 0.0, %v6576
      %v6578 = vpop.f32.mrf.mxu0
      %6579 = vmatprep.mubr.f32.mxu0 0.0
      %6580 = vmatmul.mubr.f32.gmra.mxu0 %v6391
      %v6581 = vpop.f32.mrf.mxu0
      %v6582 = vadd.f32 0.0, %v6581
      %v6583 = vpop.f32.mrf.mxu0
      %6584 = vmatprep.mubr.f32.mxu0 0.0
      %6585 = vmatmul.mubr.f32.gmra.mxu0 %v6392
      %v6586 = vpop.f32.mrf.mxu0
      %v6587 = vadd.f32 0.0, %v6586
      %v6588 = vpop.f32.mrf.mxu0
      %6589 = vmatprep.mubr.f32.mxu0 0.0
      %6590 = vmatmul.mubr.f32.gmra.mxu0 %v6393
      %v6591 = vpop.f32.mrf.mxu0
      %v6592 = vadd.f32 0.0, %v6591
      %v6593 = vpop.f32.mrf.mxu0
      %6594 = vmatprep.mubr.f32.mxu0 0.0
      %6595 = vmatmul.mubr.f32.gmra.mxu0 %v6394
      %v6596 = vpop.f32.mrf.mxu0
      %v6597 = vadd.f32 0.0, %v6596
      %v6598 = vpop.f32.mrf.mxu0
      %6599 = vmatprep.mubr.f32.mxu0 0.0
      %6600 = vmatmul.mubr.f32.gmra.mxu0 %v6395
      %v6601 = vpop.f32.mrf.mxu0
      %v6602 = vadd.f32 0.0, %v6601
      %v6603 = vpop.f32.mrf.mxu0
      %6604 = vmatprep.mubr.f32.mxu0 0.0
      %6605 = vmatmul.mubr.f32.gmra.mxu0 %v6396
      %v6606 = vpop.f32.mrf.mxu0
      %v6607 = vadd.f32 0.0, %v6606
      %v6608 = vpop.f32.mrf.mxu0
      %6609 = vmatprep.mubr.f32.mxu0 0.0
      %6610 = vmatmul.mubr.f32.gmra.mxu0 %v6397
      %v6611 = vpop.f32.mrf.mxu0
      %v6612 = vadd.f32 0.0, %v6611
      %v6613 = vpop.f32.mrf.mxu0
      %6614 = vmatprep.mubr.f32.mxu0 0.0
      %6615 = vmatmul.mubr.f32.gmra.mxu0 %v6398
      %v6616 = vpop.f32.mrf.mxu0
      %v6617 = vadd.f32 0.0, %v6616
      %v6618 = vpop.f32.mrf.mxu0
      %6619 = vmatprep.mubr.f32.mxu0 0.0
      %6620 = vmatmul.mubr.f32.gmra.mxu0 %v6399
      %v6621 = vpop.f32.mrf.mxu0
      %v6622 = vadd.f32 0.0, %v6621
      %v6623 = vpop.f32.mrf.mxu0
      %6624 = vmatprep.mubr.f32.mxu0 0.0
      %6625 = vmatmul.mubr.f32.gmra.mxu0 %v6400
      %v6626 = vpop.f32.mrf.mxu0
      %v6627 = vadd.f32 0.0, %v6626
      %v6628 = vpop.f32.mrf.mxu0
      %6629 = vmatprep.mubr.f32.mxu0 0.0
      %6630 = vmatmul.mubr.f32.gmra.mxu0 %v6401
      %v6631 = vpop.f32.mrf.mxu0
      %v6632 = vadd.f32 0.0, %v6631
      %v6633 = vpop.f32.mrf.mxu0
      %6634 = vmatprep.mubr.f32.mxu0 0.0
      %6635 = vmatmul.mubr.f32.gmra.mxu0 %v6402
      %v6636 = vpop.f32.mrf.mxu0
      %v6637 = vadd.f32 0.0, %v6636
      %v6638 = vpop.f32.mrf.mxu0
      %6639 = vmatprep.mubr.f32.mxu0 0.0
      %6640 = vmatmul.mubr.f32.gmra.mxu0 %v6403
      %v6641 = vpop.f32.mrf.mxu0
      %v6642 = vadd.f32 0.0, %v6641
      %v6643 = vpop.f32.mrf.mxu0
      %6644 = vmatprep.mubr.f32.mxu0 0.0
      %6645 = vmatmul.mubr.f32.gmra.mxu0 %v6404
      %v6646 = vpop.f32.mrf.mxu0
      %v6647 = vadd.f32 0.0, %v6646
      %v6648 = vpop.f32.mrf.mxu0
      %6649 = vmatprep.mubr.f32.mxu0 0.0
      %6650 = vmatmul.mubr.f32.gmra.mxu0 %v6405
      %v6651 = vpop.f32.mrf.mxu0
      %v6652 = vadd.f32 0.0, %v6651
      %v6653 = vpop.f32.mrf.mxu0
      %6654 = vmatprep.mubr.f32.mxu0 0.0
      %6655 = vmatmul.mubr.f32.gmra.mxu0 %v6406
      %v6656 = vpop.f32.mrf.mxu0
      %v6657 = vadd.f32 0.0, %v6656
      %v6658 = vpop.f32.mrf.mxu0
      %6659 = vmatprep.mubr.f32.mxu0 0.0
      %6660 = vmatmul.mubr.f32.gmra.mxu0 %v6407
      %v6661 = vpop.f32.mrf.mxu0
      %v6662 = vadd.f32 0.0, %v6661
      %v6663 = vpop.f32.mrf.mxu0
      %6664 = vmatprep.mubr.f32.mxu0 0.0
      %6665 = vmatmul.mubr.f32.gmra.mxu0 %v6408
      %v6666 = vpop.f32.mrf.mxu0
      %v6667 = vadd.f32 0.0, %v6666
      %v6668 = vpop.f32.mrf.mxu0
      %6669 = vdwg.mxu0
      %v6670 = vadd.f32 %v6337, %v6492
      %v6671 = vadd.f32 %v6338, %v6497
      %v6672 = vadd.f32 %v6339, %v6502
      %v6673 = vadd.f32 %v6340, %v6507
      %v6674 = vadd.f32 %v6341, %v6512
      %v6675 = vadd.f32 %v6342, %v6517
      %v6676 = vadd.f32 %v6343, %v6522
      %v6677 = vadd.f32 %v6344, %v6527
      %v6678 = vadd.f32 %v6345, %v6532
      %v6679 = vadd.f32 %v6346, %v6537
      %v6680 = vadd.f32 %v6347, %v6542
      %v6681 = vadd.f32 %v6348, %v6547
      %v6682 = vadd.f32 %v6349, %v6552
      %v6683 = vadd.f32 %v6350, %v6557
      %v6684 = vadd.f32 %v6351, %v6562
      %v6685 = vadd.f32 %v6352, %v6567
      %v6686 = vadd.f32 %v6353, %v6572
      %v6687 = vadd.f32 %v6354, %v6577
      %v6688 = vadd.f32 %v6355, %v6582
      %v6689 = vadd.f32 %v6356, %v6587
      %v6690 = vadd.f32 %v6357, %v6592
      %v6691 = vadd.f32 %v6358, %v6597
      %v6692 = vadd.f32 %v6359, %v6602
      %v6693 = vadd.f32 %v6360, %v6607
      %v6694 = vadd.f32 %v6361, %v6612
      %v6695 = vadd.f32 %v6362, %v6617
      %v6696 = vadd.f32 %v6363, %v6622
      %v6697 = vadd.f32 %v6364, %v6627
      %v6698 = vadd.f32 %v6365, %v6632
      %v6699 = vadd.f32 %v6366, %v6637
      %v6700 = vadd.f32 %v6367, %v6642
      %v6701 = vadd.f32 %v6368, %v6647
      %v6702 = vadd.f32 %v6369, %v6652
      %v6703 = vadd.f32 %v6370, %v6657
      %v6704 = vadd.f32 %v6371, %v6662
      %v6705 = vadd.f32 %v6372, %v6667
      %6706 = vst [vmem:[%s433] sm:$0xff] %v6670
      %6707 = vst [vmem:[%s433 + $0x8] sm:$0xff] %v6671
      %6708 = vst [vmem:[%s433 + $0x10] sm:$0xff] %v6672
      %6709 = vst [vmem:[%s433 + $0x18] sm:$0xff] %v6673
      %6710 = vst [vmem:[%s433 + $0x20] sm:$0xff] %v6674
      %6711 = vst [vmem:[%s433 + $0x28] sm:$0xff] %v6675
      %6712 = vst [vmem:[%s433 + $0x30] sm:$0xff] %v6676
      %6713 = vst [vmem:[%s433 + $0x38] sm:$0xff] %v6677
      %6714 = vst [vmem:[%s433 + $0x40] sm:$0xff] %v6678
      %6715 = vst [vmem:[%s433 + $0x48] sm:$0xff] %v6679
      %6716 = vst [vmem:[%s433 + $0x50] sm:$0xff] %v6680
      %6717 = vst [vmem:[%s433 + $0x58] sm:$0xff] %v6681
      %6718 = vst [vmem:[%s433 + $0x60] sm:$0xff] %v6682
      %6719 = vst [vmem:[%s433 + $0x68] sm:$0xff] %v6683
      %6720 = vst [vmem:[%s433 + $0x70] sm:$0xff] %v6684
      %6721 = vst [vmem:[%s433 + $0x78] sm:$0xff] %v6685
      %6722 = vst [vmem:[%s433 + $0x80] sm:$0xff] %v6686
      %6723 = vst [vmem:[%s433 + $0x88] sm:$0xff] %v6687
      %6724 = vst [vmem:[%s433 + $0x90] sm:$0xff] %v6688
      %6725 = vst [vmem:[%s433 + $0x98] sm:$0xff] %v6689
      %6726 = vst [vmem:[%s433 + $0xa0] sm:$0xff] %v6690
      %6727 = vst [vmem:[%s433 + $0xa8] sm:$0xff] %v6691
      %6728 = vst [vmem:[%s433 + $0xb0] sm:$0xff] %v6692
      %6729 = vst [vmem:[%s433 + $0xb8] sm:$0xff] %v6693
      %6730 = vst [vmem:[%s433 + $0xc0] sm:$0xff] %v6694
      %6731 = vst [vmem:[%s433 + $0xc8] sm:$0xff] %v6695
      %6732 = vst [vmem:[%s433 + $0xd0] sm:$0xff] %v6696
      %6733 = vst [vmem:[%s433 + $0xd8] sm:$0xff] %v6697
      %6734 = vst [vmem:[%s433 + $0xe0] sm:$0xff] %v6698
      %6735 = vst [vmem:[%s433 + $0xe8] sm:$0xff] %v6699
      %6736 = vst [vmem:[%s433 + $0xf0] sm:$0xff] %v6700
      %6737 = vst [vmem:[%s433 + $0xf8] sm:$0xff] %v6701
      %6738 = vst [vmem:[%s433 + $0x100] sm:$0xff] %v6702
      %6739 = vst [vmem:[%s433 + $0x108] sm:$0xff] %v6703
      %6740 = vst [vmem:[%s433 + $0x110] sm:$0xff] %v6704
      %6741 = vst [vmem:[%s433 + $0x118] sm:$0xff] %v6705
      %v6742 = vld [vmem:[%s433] sm:$0xff]
      %v6743 = vld [vmem:[%s433 + $0x8] sm:$0xff]
      %v6744 = vld [vmem:[%s433 + $0x10] sm:$0xff]
      %v6745 = vld [vmem:[%s433 + $0x18] sm:$0xff]
      %v6746 = vld [vmem:[%s433 + $0x20] sm:$0xff]
      %v6747 = vld [vmem:[%s433 + $0x28] sm:$0xff]
      %v6748 = vld [vmem:[%s433 + $0x30] sm:$0xff]
      %v6749 = vld [vmem:[%s433 + $0x38] sm:$0xff]
      %v6750 = vld [vmem:[%s433 + $0x40] sm:$0xff]
      %v6751 = vld [vmem:[%s433 + $0x48] sm:$0xff]
      %v6752 = vld [vmem:[%s433 + $0x50] sm:$0xff]
      %v6753 = vld [vmem:[%s433 + $0x58] sm:$0xff]
      %v6754 = vld [vmem:[%s433 + $0x60] sm:$0xff]
      %v6755 = vld [vmem:[%s433 + $0x68] sm:$0xff]
      %v6756 = vld [vmem:[%s433 + $0x70] sm:$0xff]
      %v6757 = vld [vmem:[%s433 + $0x78] sm:$0xff]
      %v6758 = vld [vmem:[%s433 + $0x80] sm:$0xff]
      %v6759 = vld [vmem:[%s433 + $0x88] sm:$0xff]
      %v6760 = vld [vmem:[%s433 + $0x90] sm:$0xff]
      %v6761 = vld [vmem:[%s433 + $0x98] sm:$0xff]
      %v6762 = vld [vmem:[%s433 + $0xa0] sm:$0xff]
      %v6763 = vld [vmem:[%s433 + $0xa8] sm:$0xff]
      %v6764 = vld [vmem:[%s433 + $0xb0] sm:$0xff]
      %v6765 = vld [vmem:[%s433 + $0xb8] sm:$0xff]
      %v6766 = vld [vmem:[%s433 + $0xc0] sm:$0xff]
      %v6767 = vld [vmem:[%s433 + $0xc8] sm:$0xff]
      %v6768 = vld [vmem:[%s433 + $0xd0] sm:$0xff]
      %v6769 = vld [vmem:[%s433 + $0xd8] sm:$0xff]
      %v6770 = vld [vmem:[%s433 + $0xe0] sm:$0xff]
      %v6771 = vld [vmem:[%s433 + $0xe8] sm:$0xff]
      %v6772 = vld [vmem:[%s433 + $0xf0] sm:$0xff]
      %v6773 = vld [vmem:[%s433 + $0xf8] sm:$0xff]
      %v6774 = vld [vmem:[%s433 + $0x100] sm:$0xff]
      %v6775 = vld [vmem:[%s433 + $0x108] sm:$0xff]
      %v6776 = vld [vmem:[%s433 + $0x110] sm:$0xff]
      %v6777 = vld [vmem:[%s433 + $0x118] sm:$0xff]
      %v6778 = vld [vmem:[#allocation3 + $0x1] sm:$0xff]
      %v6779 = vld [vmem:[#allocation3 + $0x9] sm:$0xff]
      %v6780 = vld [vmem:[#allocation3 + $0x11] sm:$0xff]
      %v6781 = vld [vmem:[#allocation3 + $0x19] sm:$0xff]
      %v6782 = vld [vmem:[#allocation3 + $0x21] sm:$0xff]
      %v6783 = vld [vmem:[#allocation3 + $0x29] sm:$0xff]
      %v6784 = vld [vmem:[#allocation3 + $0x31] sm:$0xff]
      %v6785 = vld [vmem:[#allocation3 + $0x39] sm:$0xff]
      %v6786 = vld [vmem:[#allocation3 + $0x41] sm:$0xff]
      %v6787 = vld [vmem:[#allocation3 + $0x49] sm:$0xff]
      %v6788 = vld [vmem:[#allocation3 + $0x51] sm:$0xff]
      %v6789 = vld [vmem:[#allocation3 + $0x59] sm:$0xff]
      %v6790 = vld [vmem:[#allocation3 + $0x61] sm:$0xff]
      %v6791 = vld [vmem:[#allocation3 + $0x69] sm:$0xff]
      %v6792 = vld [vmem:[#allocation3 + $0x71] sm:$0xff]
      %v6793 = vld [vmem:[#allocation3 + $0x79] sm:$0xff]
      %v6794 = vld [vmem:[#allocation3 + $0x81] sm:$0xff]
      %v6795 = vld [vmem:[#allocation3 + $0x89] sm:$0xff]
      %v6796 = vld [vmem:[#allocation3 + $0x91] sm:$0xff]
      %v6797 = vld [vmem:[#allocation3 + $0x99] sm:$0xff]
      %v6798 = vld [vmem:[#allocation3 + $0xa1] sm:$0xff]
      %v6799 = vld [vmem:[#allocation3 + $0xa9] sm:$0xff]
      %v6800 = vld [vmem:[#allocation3 + $0xb1] sm:$0xff]
      %v6801 = vld [vmem:[#allocation3 + $0xb9] sm:$0xff]
      %v6802 = vld [vmem:[#allocation3 + $0xc1] sm:$0xff]
      %v6803 = vld [vmem:[#allocation3 + $0xc9] sm:$0xff]
      %v6804 = vld [vmem:[#allocation3 + $0xd1] sm:$0xff]
      %v6805 = vld [vmem:[#allocation3 + $0xd9] sm:$0xff]
      %v6806 = vld [vmem:[#allocation3 + $0xe1] sm:$0xff]
      %v6807 = vld [vmem:[#allocation3 + $0xe9] sm:$0xff]
      %v6808 = vld [vmem:[#allocation3 + $0xf1] sm:$0xff]
      %v6809 = vld [vmem:[#allocation3 + $0xf9] sm:$0xff]
      %v6810 = vld [vmem:[#allocation3 + $0x101] sm:$0xff]
      %v6811 = vld [vmem:[#allocation3 + $0x109] sm:$0xff]
      %v6812 = vld [vmem:[#allocation3 + $0x111] sm:$0xff]
      %v6813 = vld [vmem:[#allocation3 + $0x119] sm:$0xff]
      %s6814 = scalar_lea.vmem %s10, 128
      %v6815 = vld [vmem:[%s6814] sm:$0xff]
      %v6816 = vld [vmem:[%s6814 + $0x8] sm:$0xff]
      %v6817 = vld [vmem:[%s6814 + $0x10] sm:$0xff]
      %v6818 = vld [vmem:[%s6814 + $0x18] sm:$0xff]
      %v6819 = vld [vmem:[%s6814 + $0x20] sm:$0xff]
      %v6820 = vld [vmem:[%s6814 + $0x28] sm:$0xff]
      %v6821 = vld [vmem:[%s6814 + $0x30] sm:$0xff]
      %v6822 = vld [vmem:[%s6814 + $0x38] sm:$0xff]
      %v6823 = vld [vmem:[%s6814 + $0x40] sm:$0xff]
      %v6824 = vld [vmem:[%s6814 + $0x48] sm:$0xff]
      %v6825 = vld [vmem:[%s6814 + $0x50] sm:$0xff]
      %v6826 = vld [vmem:[%s6814 + $0x58] sm:$0xff]
      %v6827 = vld [vmem:[%s6814 + $0x60] sm:$0xff]
      %v6828 = vld [vmem:[%s6814 + $0x68] sm:$0xff]
      %v6829 = vld [vmem:[%s6814 + $0x70] sm:$0xff]
      %v6830 = vld [vmem:[%s6814 + $0x78] sm:$0xff]
      %6831 = vmatprep.subr.mxu0 0.0
      %6832 = vmatpush1.msra.mxu0 %v6830
      %6833 = vmatprep.subr.mxu0 0.0
      %6834 = vmatpush1.msra.mxu0 %v6829
      %6835 = vmatprep.subr.mxu0 0.0
      %6836 = vmatpush1.msra.mxu0 %v6828
      %6837 = vmatprep.subr.mxu0 0.0
      %6838 = vmatpush1.msra.mxu0 %v6827
      %6839 = vmatprep.subr.mxu0 0.0
      %6840 = vmatpush1.msra.mxu0 %v6826
      %6841 = vmatprep.subr.mxu0 0.0
      %6842 = vmatpush1.msra.mxu0 %v6825
      %6843 = vmatprep.subr.mxu0 0.0
      %6844 = vmatpush1.msra.mxu0 %v6824
      %6845 = vmatprep.subr.mxu0 0.0
      %6846 = vmatpush1.msra.mxu0 %v6823
      %6847 = vmatprep.subr.mxu0 0.0
      %6848 = vmatpush1.msra.mxu0 %v6822
      %6849 = vmatprep.subr.mxu0 0.0
      %6850 = vmatpush1.msra.mxu0 %v6821
      %6851 = vmatprep.subr.mxu0 0.0
      %6852 = vmatpush1.msra.mxu0 %v6820
      %6853 = vmatprep.subr.mxu0 0.0
      %6854 = vmatpush1.msra.mxu0 %v6819
      %6855 = vmatprep.subr.mxu0 0.0
      %6856 = vmatpush1.msra.mxu0 %v6818
      %6857 = vmatprep.subr.mxu0 0.0
      %6858 = vmatpush1.msra.mxu0 %v6817
      %6859 = vmatprep.subr.mxu0 0.0
      %6860 = vmatpush1.msra.mxu0 %v6816
      %6861 = vmatprep.subr.mxu0 0.0
      %6862 = vmatpush1.msra.mxu0 %v6815
      %6863 = vmatprep.subr.mxu0 0.0
      %6864 = vmatpush2.msra.mxu0 0.0
      %6865 = vmatprep.subr.mxu0 0.0
      %6866 = vmatpush2.msra.mxu0 0.0
      %6867 = vmatprep.subr.mxu0 0.0
      %6868 = vmatpush2.msra.mxu0 0.0
      %6869 = vmatprep.subr.mxu0 0.0
      %6870 = vmatpush2.msra.mxu0 0.0
      %6871 = vmatprep.subr.mxu0 0.0
      %6872 = vmatpush2.msra.mxu0 0.0
      %6873 = vmatprep.subr.mxu0 0.0
      %6874 = vmatpush2.msra.mxu0 0.0
      %6875 = vmatprep.subr.mxu0 0.0
      %6876 = vmatpush2.msra.mxu0 0.0
      %6877 = vmatprep.subr.mxu0 0.0
      %6878 = vmatpush2.msra.mxu0 0.0
      %6879 = vmatprep.subr.mxu0 0.0
      %6880 = vmatpush2.msra.mxu0 0.0
      %6881 = vmatprep.subr.mxu0 0.0
      %6882 = vmatpush2.msra.mxu0 0.0
      %6883 = vmatprep.subr.mxu0 0.0
      %6884 = vmatpush2.msra.mxu0 0.0
      %6885 = vmatprep.subr.mxu0 0.0
      %6886 = vmatpush2.msra.mxu0 0.0
      %6887 = vmatprep.subr.mxu0 0.0
      %6888 = vmatpush2.msra.mxu0 0.0
      %6889 = vmatprep.subr.mxu0 0.0
      %6890 = vmatpush2.msra.mxu0 0.0
      %6891 = vmatprep.subr.mxu0 0.0
      %6892 = vmatpush2.msra.mxu0 0.0
      %6893 = vmatprep.subr.mxu0 0.0
      %6894 = vmatpush2.msra.mxu0 0.0
      %6895 = vmatprep.mubr.f32.mxu0 0.0
      %6896 = vmatmul.mubr.f32.gmra.mxu0 %v6778
      %v6897 = vpop.f32.mrf.mxu0
      %v6898 = vadd.f32 0.0, %v6897
      %v6899 = vpop.f32.mrf.mxu0
      %6900 = vmatprep.mubr.f32.mxu0 0.0
      %6901 = vmatmul.mubr.f32.gmra.mxu0 %v6779
      %v6902 = vpop.f32.mrf.mxu0
      %v6903 = vadd.f32 0.0, %v6902
      %v6904 = vpop.f32.mrf.mxu0
      %6905 = vmatprep.mubr.f32.mxu0 0.0
      %6906 = vmatmul.mubr.f32.gmra.mxu0 %v6780
      %v6907 = vpop.f32.mrf.mxu0
      %v6908 = vadd.f32 0.0, %v6907
      %v6909 = vpop.f32.mrf.mxu0
      %6910 = vmatprep.mubr.f32.mxu0 0.0
      %6911 = vmatmul.mubr.f32.gmra.mxu0 %v6781
      %v6912 = vpop.f32.mrf.mxu0
      %v6913 = vadd.f32 0.0, %v6912
      %v6914 = vpop.f32.mrf.mxu0
      %6915 = vmatprep.mubr.f32.mxu0 0.0
      %6916 = vmatmul.mubr.f32.gmra.mxu0 %v6782
      %v6917 = vpop.f32.mrf.mxu0
      %v6918 = vadd.f32 0.0, %v6917
      %v6919 = vpop.f32.mrf.mxu0
      %6920 = vmatprep.mubr.f32.mxu0 0.0
      %6921 = vmatmul.mubr.f32.gmra.mxu0 %v6783
      %v6922 = vpop.f32.mrf.mxu0
      %v6923 = vadd.f32 0.0, %v6922
      %v6924 = vpop.f32.mrf.mxu0
      %6925 = vmatprep.mubr.f32.mxu0 0.0
      %6926 = vmatmul.mubr.f32.gmra.mxu0 %v6784
      %v6927 = vpop.f32.mrf.mxu0
      %v6928 = vadd.f32 0.0, %v6927
      %v6929 = vpop.f32.mrf.mxu0
      %6930 = vmatprep.mubr.f32.mxu0 0.0
      %6931 = vmatmul.mubr.f32.gmra.mxu0 %v6785
      %v6932 = vpop.f32.mrf.mxu0
      %v6933 = vadd.f32 0.0, %v6932
      %v6934 = vpop.f32.mrf.mxu0
      %6935 = vmatprep.mubr.f32.mxu0 0.0
      %6936 = vmatmul.mubr.f32.gmra.mxu0 %v6786
      %v6937 = vpop.f32.mrf.mxu0
      %v6938 = vadd.f32 0.0, %v6937
      %v6939 = vpop.f32.mrf.mxu0
      %6940 = vmatprep.mubr.f32.mxu0 0.0
      %6941 = vmatmul.mubr.f32.gmra.mxu0 %v6787
      %v6942 = vpop.f32.mrf.mxu0
      %v6943 = vadd.f32 0.0, %v6942
      %v6944 = vpop.f32.mrf.mxu0
      %6945 = vmatprep.mubr.f32.mxu0 0.0
      %6946 = vmatmul.mubr.f32.gmra.mxu0 %v6788
      %v6947 = vpop.f32.mrf.mxu0
      %v6948 = vadd.f32 0.0, %v6947
      %v6949 = vpop.f32.mrf.mxu0
      %6950 = vmatprep.mubr.f32.mxu0 0.0
      %6951 = vmatmul.mubr.f32.gmra.mxu0 %v6789
      %v6952 = vpop.f32.mrf.mxu0
      %v6953 = vadd.f32 0.0, %v6952
      %v6954 = vpop.f32.mrf.mxu0
      %6955 = vmatprep.mubr.f32.mxu0 0.0
      %6956 = vmatmul.mubr.f32.gmra.mxu0 %v6790
      %v6957 = vpop.f32.mrf.mxu0
      %v6958 = vadd.f32 0.0, %v6957
      %v6959 = vpop.f32.mrf.mxu0
      %6960 = vmatprep.mubr.f32.mxu0 0.0
      %6961 = vmatmul.mubr.f32.gmra.mxu0 %v6791
      %v6962 = vpop.f32.mrf.mxu0
      %v6963 = vadd.f32 0.0, %v6962
      %v6964 = vpop.f32.mrf.mxu0
      %6965 = vmatprep.mubr.f32.mxu0 0.0
      %6966 = vmatmul.mubr.f32.gmra.mxu0 %v6792
      %v6967 = vpop.f32.mrf.mxu0
      %v6968 = vadd.f32 0.0, %v6967
      %v6969 = vpop.f32.mrf.mxu0
      %6970 = vmatprep.mubr.f32.mxu0 0.0
      %6971 = vmatmul.mubr.f32.gmra.mxu0 %v6793
      %v6972 = vpop.f32.mrf.mxu0
      %v6973 = vadd.f32 0.0, %v6972
      %v6974 = vpop.f32.mrf.mxu0
      %6975 = vmatprep.mubr.f32.mxu0 0.0
      %6976 = vmatmul.mubr.f32.gmra.mxu0 %v6794
      %v6977 = vpop.f32.mrf.mxu0
      %v6978 = vadd.f32 0.0, %v6977
      %v6979 = vpop.f32.mrf.mxu0
      %6980 = vmatprep.mubr.f32.mxu0 0.0
      %6981 = vmatmul.mubr.f32.gmra.mxu0 %v6795
      %v6982 = vpop.f32.mrf.mxu0
      %v6983 = vadd.f32 0.0, %v6982
      %v6984 = vpop.f32.mrf.mxu0
      %6985 = vmatprep.mubr.f32.mxu0 0.0
      %6986 = vmatmul.mubr.f32.gmra.mxu0 %v6796
      %v6987 = vpop.f32.mrf.mxu0
      %v6988 = vadd.f32 0.0, %v6987
      %v6989 = vpop.f32.mrf.mxu0
      %6990 = vmatprep.mubr.f32.mxu0 0.0
      %6991 = vmatmul.mubr.f32.gmra.mxu0 %v6797
      %v6992 = vpop.f32.mrf.mxu0
      %v6993 = vadd.f32 0.0, %v6992
      %v6994 = vpop.f32.mrf.mxu0
      %6995 = vmatprep.mubr.f32.mxu0 0.0
      %6996 = vmatmul.mubr.f32.gmra.mxu0 %v6798
      %v6997 = vpop.f32.mrf.mxu0
      %v6998 = vadd.f32 0.0, %v6997
      %v6999 = vpop.f32.mrf.mxu0
      %7000 = vmatprep.mubr.f32.mxu0 0.0
      %7001 = vmatmul.mubr.f32.gmra.mxu0 %v6799
      %v7002 = vpop.f32.mrf.mxu0
      %v7003 = vadd.f32 0.0, %v7002
      %v7004 = vpop.f32.mrf.mxu0
      %7005 = vmatprep.mubr.f32.mxu0 0.0
      %7006 = vmatmul.mubr.f32.gmra.mxu0 %v6800
      %v7007 = vpop.f32.mrf.mxu0
      %v7008 = vadd.f32 0.0, %v7007
      %v7009 = vpop.f32.mrf.mxu0
      %7010 = vmatprep.mubr.f32.mxu0 0.0
      %7011 = vmatmul.mubr.f32.gmra.mxu0 %v6801
      %v7012 = vpop.f32.mrf.mxu0
      %v7013 = vadd.f32 0.0, %v7012
      %v7014 = vpop.f32.mrf.mxu0
      %7015 = vmatprep.mubr.f32.mxu0 0.0
      %7016 = vmatmul.mubr.f32.gmra.mxu0 %v6802
      %v7017 = vpop.f32.mrf.mxu0
      %v7018 = vadd.f32 0.0, %v7017
      %v7019 = vpop.f32.mrf.mxu0
      %7020 = vmatprep.mubr.f32.mxu0 0.0
      %7021 = vmatmul.mubr.f32.gmra.mxu0 %v6803
      %v7022 = vpop.f32.mrf.mxu0
      %v7023 = vadd.f32 0.0, %v7022
      %v7024 = vpop.f32.mrf.mxu0
      %7025 = vmatprep.mubr.f32.mxu0 0.0
      %7026 = vmatmul.mubr.f32.gmra.mxu0 %v6804
      %v7027 = vpop.f32.mrf.mxu0
      %v7028 = vadd.f32 0.0, %v7027
      %v7029 = vpop.f32.mrf.mxu0
      %7030 = vmatprep.mubr.f32.mxu0 0.0
      %7031 = vmatmul.mubr.f32.gmra.mxu0 %v6805
      %v7032 = vpop.f32.mrf.mxu0
      %v7033 = vadd.f32 0.0, %v7032
      %v7034 = vpop.f32.mrf.mxu0
      %7035 = vmatprep.mubr.f32.mxu0 0.0
      %7036 = vmatmul.mubr.f32.gmra.mxu0 %v6806
      %v7037 = vpop.f32.mrf.mxu0
      %v7038 = vadd.f32 0.0, %v7037
      %v7039 = vpop.f32.mrf.mxu0
      %7040 = vmatprep.mubr.f32.mxu0 0.0
      %7041 = vmatmul.mubr.f32.gmra.mxu0 %v6807
      %v7042 = vpop.f32.mrf.mxu0
      %v7043 = vadd.f32 0.0, %v7042
      %v7044 = vpop.f32.mrf.mxu0
      %7045 = vmatprep.mubr.f32.mxu0 0.0
      %7046 = vmatmul.mubr.f32.gmra.mxu0 %v6808
      %v7047 = vpop.f32.mrf.mxu0
      %v7048 = vadd.f32 0.0, %v7047
      %v7049 = vpop.f32.mrf.mxu0
      %7050 = vmatprep.mubr.f32.mxu0 0.0
      %7051 = vmatmul.mubr.f32.gmra.mxu0 %v6809
      %v7052 = vpop.f32.mrf.mxu0
      %v7053 = vadd.f32 0.0, %v7052
      %v7054 = vpop.f32.mrf.mxu0
      %7055 = vmatprep.mubr.f32.mxu0 0.0
      %7056 = vmatmul.mubr.f32.gmra.mxu0 %v6810
      %v7057 = vpop.f32.mrf.mxu0
      %v7058 = vadd.f32 0.0, %v7057
      %v7059 = vpop.f32.mrf.mxu0
      %7060 = vmatprep.mubr.f32.mxu0 0.0
      %7061 = vmatmul.mubr.f32.gmra.mxu0 %v6811
      %v7062 = vpop.f32.mrf.mxu0
      %v7063 = vadd.f32 0.0, %v7062
      %v7064 = vpop.f32.mrf.mxu0
      %7065 = vmatprep.mubr.f32.mxu0 0.0
      %7066 = vmatmul.mubr.f32.gmra.mxu0 %v6812
      %v7067 = vpop.f32.mrf.mxu0
      %v7068 = vadd.f32 0.0, %v7067
      %v7069 = vpop.f32.mrf.mxu0
      %7070 = vmatprep.mubr.f32.mxu0 0.0
      %7071 = vmatmul.mubr.f32.gmra.mxu0 %v6813
      %v7072 = vpop.f32.mrf.mxu0
      %v7073 = vadd.f32 0.0, %v7072
      %v7074 = vpop.f32.mrf.mxu0
      %7075 = vdwg.mxu0
      %v7076 = vadd.f32 %v6742, %v6898
      %v7077 = vadd.f32 %v6743, %v6903
      %v7078 = vadd.f32 %v6744, %v6908
      %v7079 = vadd.f32 %v6745, %v6913
      %v7080 = vadd.f32 %v6746, %v6918
      %v7081 = vadd.f32 %v6747, %v6923
      %v7082 = vadd.f32 %v6748, %v6928
      %v7083 = vadd.f32 %v6749, %v6933
      %v7084 = vadd.f32 %v6750, %v6938
      %v7085 = vadd.f32 %v6751, %v6943
      %v7086 = vadd.f32 %v6752, %v6948
      %v7087 = vadd.f32 %v6753, %v6953
      %v7088 = vadd.f32 %v6754, %v6958
      %v7089 = vadd.f32 %v6755, %v6963
      %v7090 = vadd.f32 %v6756, %v6968
      %v7091 = vadd.f32 %v6757, %v6973
      %v7092 = vadd.f32 %v6758, %v6978
      %v7093 = vadd.f32 %v6759, %v6983
      %v7094 = vadd.f32 %v6760, %v6988
      %v7095 = vadd.f32 %v6761, %v6993
      %v7096 = vadd.f32 %v6762, %v6998
      %v7097 = vadd.f32 %v6763, %v7003
      %v7098 = vadd.f32 %v6764, %v7008
      %v7099 = vadd.f32 %v6765, %v7013
      %v7100 = vadd.f32 %v6766, %v7018
      %v7101 = vadd.f32 %v6767, %v7023
      %v7102 = vadd.f32 %v6768, %v7028
      %v7103 = vadd.f32 %v6769, %v7033
      %v7104 = vadd.f32 %v6770, %v7038
      %v7105 = vadd.f32 %v6771, %v7043
      %v7106 = vadd.f32 %v6772, %v7048
      %v7107 = vadd.f32 %v6773, %v7053
      %v7108 = vadd.f32 %v6774, %v7058
      %v7109 = vadd.f32 %v6775, %v7063
      %v7110 = vadd.f32 %v6776, %v7068
      %v7111 = vadd.f32 %v6777, %v7073
      %7112 = vst [vmem:[%s433] sm:$0xff] %v7076
      %7113 = vst [vmem:[%s433 + $0x8] sm:$0xff] %v7077
      %7114 = vst [vmem:[%s433 + $0x10] sm:$0xff] %v7078
      %7115 = vst [vmem:[%s433 + $0x18] sm:$0xff] %v7079
      %7116 = vst [vmem:[%s433 + $0x20] sm:$0xff] %v7080
      %7117 = vst [vmem:[%s433 + $0x28] sm:$0xff] %v7081
      %7118 = vst [vmem:[%s433 + $0x30] sm:$0xff] %v7082
      %7119 = vst [vmem:[%s433 + $0x38] sm:$0xff] %v7083
      %7120 = vst [vmem:[%s433 + $0x40] sm:$0xff] %v7084
      %7121 = vst [vmem:[%s433 + $0x48] sm:$0xff] %v7085
      %7122 = vst [vmem:[%s433 + $0x50] sm:$0xff] %v7086
      %7123 = vst [vmem:[%s433 + $0x58] sm:$0xff] %v7087
      %7124 = vst [vmem:[%s433 + $0x60] sm:$0xff] %v7088
      %7125 = vst [vmem:[%s433 + $0x68] sm:$0xff] %v7089
      %7126 = vst [vmem:[%s433 + $0x70] sm:$0xff] %v7090
      %7127 = vst [vmem:[%s433 + $0x78] sm:$0xff] %v7091
      %7128 = vst [vmem:[%s433 + $0x80] sm:$0xff] %v7092
      %7129 = vst [vmem:[%s433 + $0x88] sm:$0xff] %v7093
      %7130 = vst [vmem:[%s433 + $0x90] sm:$0xff] %v7094
      %7131 = vst [vmem:[%s433 + $0x98] sm:$0xff] %v7095
      %7132 = vst [vmem:[%s433 + $0xa0] sm:$0xff] %v7096
      %7133 = vst [vmem:[%s433 + $0xa8] sm:$0xff] %v7097
      %7134 = vst [vmem:[%s433 + $0xb0] sm:$0xff] %v7098
      %7135 = vst [vmem:[%s433 + $0xb8] sm:$0xff] %v7099
      %7136 = vst [vmem:[%s433 + $0xc0] sm:$0xff] %v7100
      %7137 = vst [vmem:[%s433 + $0xc8] sm:$0xff] %v7101
      %7138 = vst [vmem:[%s433 + $0xd0] sm:$0xff] %v7102
      %7139 = vst [vmem:[%s433 + $0xd8] sm:$0xff] %v7103
      %7140 = vst [vmem:[%s433 + $0xe0] sm:$0xff] %v7104
      %7141 = vst [vmem:[%s433 + $0xe8] sm:$0xff] %v7105
      %7142 = vst [vmem:[%s433 + $0xf0] sm:$0xff] %v7106
      %7143 = vst [vmem:[%s433 + $0xf8] sm:$0xff] %v7107
      %7144 = vst [vmem:[%s433 + $0x100] sm:$0xff] %v7108
      %7145 = vst [vmem:[%s433 + $0x108] sm:$0xff] %v7109
      %7146 = vst [vmem:[%s433 + $0x110] sm:$0xff] %v7110
      %7147 = vst [vmem:[%s433 + $0x118] sm:$0xff] %v7111
      %v7148 = vld [vmem:[%s433] sm:$0xff]
      %v7149 = vld [vmem:[%s433 + $0x8] sm:$0xff]
      %v7150 = vld [vmem:[%s433 + $0x10] sm:$0xff]
      %v7151 = vld [vmem:[%s433 + $0x18] sm:$0xff]
      %v7152 = vld [vmem:[%s433 + $0x20] sm:$0xff]
      %v7153 = vld [vmem:[%s433 + $0x28] sm:$0xff]
      %v7154 = vld [vmem:[%s433 + $0x30] sm:$0xff]
      %v7155 = vld [vmem:[%s433 + $0x38] sm:$0xff]
      %v7156 = vld [vmem:[%s433 + $0x40] sm:$0xff]
      %v7157 = vld [vmem:[%s433 + $0x48] sm:$0xff]
      %v7158 = vld [vmem:[%s433 + $0x50] sm:$0xff]
      %v7159 = vld [vmem:[%s433 + $0x58] sm:$0xff]
      %v7160 = vld [vmem:[%s433 + $0x60] sm:$0xff]
      %v7161 = vld [vmem:[%s433 + $0x68] sm:$0xff]
      %v7162 = vld [vmem:[%s433 + $0x70] sm:$0xff]
      %v7163 = vld [vmem:[%s433 + $0x78] sm:$0xff]
      %v7164 = vld [vmem:[%s433 + $0x80] sm:$0xff]
      %v7165 = vld [vmem:[%s433 + $0x88] sm:$0xff]
      %v7166 = vld [vmem:[%s433 + $0x90] sm:$0xff]
      %v7167 = vld [vmem:[%s433 + $0x98] sm:$0xff]
      %v7168 = vld [vmem:[%s433 + $0xa0] sm:$0xff]
      %v7169 = vld [vmem:[%s433 + $0xa8] sm:$0xff]
      %v7170 = vld [vmem:[%s433 + $0xb0] sm:$0xff]
      %v7171 = vld [vmem:[%s433 + $0xb8] sm:$0xff]
      %v7172 = vld [vmem:[%s433 + $0xc0] sm:$0xff]
      %v7173 = vld [vmem:[%s433 + $0xc8] sm:$0xff]
      %v7174 = vld [vmem:[%s433 + $0xd0] sm:$0xff]
      %v7175 = vld [vmem:[%s433 + $0xd8] sm:$0xff]
      %v7176 = vld [vmem:[%s433 + $0xe0] sm:$0xff]
      %v7177 = vld [vmem:[%s433 + $0xe8] sm:$0xff]
      %v7178 = vld [vmem:[%s433 + $0xf0] sm:$0xff]
      %v7179 = vld [vmem:[%s433 + $0xf8] sm:$0xff]
      %v7180 = vld [vmem:[%s433 + $0x100] sm:$0xff]
      %v7181 = vld [vmem:[%s433 + $0x108] sm:$0xff]
      %v7182 = vld [vmem:[%s433 + $0x110] sm:$0xff]
      %v7183 = vld [vmem:[%s433 + $0x118] sm:$0xff]
      %v7184 = vld [vmem:[#allocation3 + $0x2] sm:$0xff]
      %v7185 = vld [vmem:[#allocation3 + $0xa] sm:$0xff]
      %v7186 = vld [vmem:[#allocation3 + $0x12] sm:$0xff]
      %v7187 = vld [vmem:[#allocation3 + $0x1a] sm:$0xff]
      %v7188 = vld [vmem:[#allocation3 + $0x22] sm:$0xff]
      %v7189 = vld [vmem:[#allocation3 + $0x2a] sm:$0xff]
      %v7190 = vld [vmem:[#allocation3 + $0x32] sm:$0xff]
      %v7191 = vld [vmem:[#allocation3 + $0x3a] sm:$0xff]
      %v7192 = vld [vmem:[#allocation3 + $0x42] sm:$0xff]
      %v7193 = vld [vmem:[#allocation3 + $0x4a] sm:$0xff]
      %v7194 = vld [vmem:[#allocation3 + $0x52] sm:$0xff]
      %v7195 = vld [vmem:[#allocation3 + $0x5a] sm:$0xff]
      %v7196 = vld [vmem:[#allocation3 + $0x62] sm:$0xff]
      %v7197 = vld [vmem:[#allocation3 + $0x6a] sm:$0xff]
      %v7198 = vld [vmem:[#allocation3 + $0x72] sm:$0xff]
      %v7199 = vld [vmem:[#allocation3 + $0x7a] sm:$0xff]
      %v7200 = vld [vmem:[#allocation3 + $0x82] sm:$0xff]
      %v7201 = vld [vmem:[#allocation3 + $0x8a] sm:$0xff]
      %v7202 = vld [vmem:[#allocation3 + $0x92] sm:$0xff]
      %v7203 = vld [vmem:[#allocation3 + $0x9a] sm:$0xff]
      %v7204 = vld [vmem:[#allocation3 + $0xa2] sm:$0xff]
      %v7205 = vld [vmem:[#allocation3 + $0xaa] sm:$0xff]
      %v7206 = vld [vmem:[#allocation3 + $0xb2] sm:$0xff]
      %v7207 = vld [vmem:[#allocation3 + $0xba] sm:$0xff]
      %v7208 = vld [vmem:[#allocation3 + $0xc2] sm:$0xff]
      %v7209 = vld [vmem:[#allocation3 + $0xca] sm:$0xff]
      %v7210 = vld [vmem:[#allocation3 + $0xd2] sm:$0xff]
      %v7211 = vld [vmem:[#allocation3 + $0xda] sm:$0xff]
      %v7212 = vld [vmem:[#allocation3 + $0xe2] sm:$0xff]
      %v7213 = vld [vmem:[#allocation3 + $0xea] sm:$0xff]
      %v7214 = vld [vmem:[#allocation3 + $0xf2] sm:$0xff]
      %v7215 = vld [vmem:[#allocation3 + $0xfa] sm:$0xff]
      %v7216 = vld [vmem:[#allocation3 + $0x102] sm:$0xff]
      %v7217 = vld [vmem:[#allocation3 + $0x10a] sm:$0xff]
      %v7218 = vld [vmem:[#allocation3 + $0x112] sm:$0xff]
      %v7219 = vld [vmem:[#allocation3 + $0x11a] sm:$0xff]
      %s7220 = scalar_lea.vmem %s10, 256
      %v7221 = vld [vmem:[%s7220] sm:$0xff]
      %v7222 = vld [vmem:[%s7220 + $0x8] sm:$0xff]
      %v7223 = vld [vmem:[%s7220 + $0x10] sm:$0xff]
      %v7224 = vld [vmem:[%s7220 + $0x18] sm:$0xff]
      %v7225 = vld [vmem:[%s7220 + $0x20] sm:$0xff]
      %v7226 = vld [vmem:[%s7220 + $0x28] sm:$0xff]
      %v7227 = vld [vmem:[%s7220 + $0x30] sm:$0xff]
      %v7228 = vld [vmem:[%s7220 + $0x38] sm:$0xff]
      %v7229 = vld [vmem:[%s7220 + $0x40] sm:$0xff]
      %v7230 = vld [vmem:[%s7220 + $0x48] sm:$0xff]
      %v7231 = vld [vmem:[%s7220 + $0x50] sm:$0xff]
      %v7232 = vld [vmem:[%s7220 + $0x58] sm:$0xff]
      %v7233 = vld [vmem:[%s7220 + $0x60] sm:$0xff]
      %v7234 = vld [vmem:[%s7220 + $0x68] sm:$0xff]
      %v7235 = vld [vmem:[%s7220 + $0x70] sm:$0xff]
      %v7236 = vld [vmem:[%s7220 + $0x78] sm:$0xff]
      %7237 = vmatprep.subr.mxu0 0.0
      %7238 = vmatpush1.msra.mxu0 %v7236
      %7239 = vmatprep.subr.mxu0 0.0
      %7240 = vmatpush1.msra.mxu0 %v7235
      %7241 = vmatprep.subr.mxu0 0.0
      %7242 = vmatpush1.msra.mxu0 %v7234
      %7243 = vmatprep.subr.mxu0 0.0
      %7244 = vmatpush1.msra.mxu0 %v7233
      %7245 = vmatprep.subr.mxu0 0.0
      %7246 = vmatpush1.msra.mxu0 %v7232
      %7247 = vmatprep.subr.mxu0 0.0
      %7248 = vmatpush1.msra.mxu0 %v7231
      %7249 = vmatprep.subr.mxu0 0.0
      %7250 = vmatpush1.msra.mxu0 %v7230
      %7251 = vmatprep.subr.mxu0 0.0
      %7252 = vmatpush1.msra.mxu0 %v7229
      %7253 = vmatprep.subr.mxu0 0.0
      %7254 = vmatpush1.msra.mxu0 %v7228
      %7255 = vmatprep.subr.mxu0 0.0
      %7256 = vmatpush1.msra.mxu0 %v7227
      %7257 = vmatprep.subr.mxu0 0.0
      %7258 = vmatpush1.msra.mxu0 %v7226
      %7259 = vmatprep.subr.mxu0 0.0
      %7260 = vmatpush1.msra.mxu0 %v7225
      %7261 = vmatprep.subr.mxu0 0.0
      %7262 = vmatpush1.msra.mxu0 %v7224
      %7263 = vmatprep.subr.mxu0 0.0
      %7264 = vmatpush1.msra.mxu0 %v7223
      %7265 = vmatprep.subr.mxu0 0.0
      %7266 = vmatpush1.msra.mxu0 %v7222
      %7267 = vmatprep.subr.mxu0 0.0
      %7268 = vmatpush1.msra.mxu0 %v7221
      %7269 = vmatprep.subr.mxu0 0.0
      %7270 = vmatpush2.msra.mxu0 0.0
      %7271 = vmatprep.subr.mxu0 0.0
      %7272 = vmatpush2.msra.mxu0 0.0
      %7273 = vmatprep.subr.mxu0 0.0
      %7274 = vmatpush2.msra.mxu0 0.0
      %7275 = vmatprep.subr.mxu0 0.0
      %7276 = vmatpush2.msra.mxu0 0.0
      %7277 = vmatprep.subr.mxu0 0.0
      %7278 = vmatpush2.msra.mxu0 0.0
      %7279 = vmatprep.subr.mxu0 0.0
      %7280 = vmatpush2.msra.mxu0 0.0
      %7281 = vmatprep.subr.mxu0 0.0
      %7282 = vmatpush2.msra.mxu0 0.0
      %7283 = vmatprep.subr.mxu0 0.0
      %7284 = vmatpush2.msra.mxu0 0.0
      %7285 = vmatprep.subr.mxu0 0.0
      %7286 = vmatpush2.msra.mxu0 0.0
      %7287 = vmatprep.subr.mxu0 0.0
      %7288 = vmatpush2.msra.mxu0 0.0
      %7289 = vmatprep.subr.mxu0 0.0
      %7290 = vmatpush2.msra.mxu0 0.0
      %7291 = vmatprep.subr.mxu0 0.0
      %7292 = vmatpush2.msra.mxu0 0.0
      %7293 = vmatprep.subr.mxu0 0.0
      %7294 = vmatpush2.msra.mxu0 0.0
      %7295 = vmatprep.subr.mxu0 0.0
      %7296 = vmatpush2.msra.mxu0 0.0
      %7297 = vmatprep.subr.mxu0 0.0
      %7298 = vmatpush2.msra.mxu0 0.0
      %7299 = vmatprep.subr.mxu0 0.0
      %7300 = vmatpush2.msra.mxu0 0.0
      %7301 = vmatprep.mubr.f32.mxu0 0.0
      %7302 = vmatmul.mubr.f32.gmra.mxu0 %v7184
      %v7303 = vpop.f32.mrf.mxu0
      %v7304 = vadd.f32 0.0, %v7303
      %v7305 = vpop.f32.mrf.mxu0
      %7306 = vmatprep.mubr.f32.mxu0 0.0
      %7307 = vmatmul.mubr.f32.gmra.mxu0 %v7185
      %v7308 = vpop.f32.mrf.mxu0
      %v7309 = vadd.f32 0.0, %v7308
      %v7310 = vpop.f32.mrf.mxu0
      %7311 = vmatprep.mubr.f32.mxu0 0.0
      %7312 = vmatmul.mubr.f32.gmra.mxu0 %v7186
      %v7313 = vpop.f32.mrf.mxu0
      %v7314 = vadd.f32 0.0, %v7313
      %v7315 = vpop.f32.mrf.mxu0
      %7316 = vmatprep.mubr.f32.mxu0 0.0
      %7317 = vmatmul.mubr.f32.gmra.mxu0 %v7187
      %v7318 = vpop.f32.mrf.mxu0
      %v7319 = vadd.f32 0.0, %v7318
      %v7320 = vpop.f32.mrf.mxu0
      %7321 = vmatprep.mubr.f32.mxu0 0.0
      %7322 = vmatmul.mubr.f32.gmra.mxu0 %v7188
      %v7323 = vpop.f32.mrf.mxu0
      %v7324 = vadd.f32 0.0, %v7323
      %v7325 = vpop.f32.mrf.mxu0
      %7326 = vmatprep.mubr.f32.mxu0 0.0
      %7327 = vmatmul.mubr.f32.gmra.mxu0 %v7189
      %v7328 = vpop.f32.mrf.mxu0
      %v7329 = vadd.f32 0.0, %v7328
      %v7330 = vpop.f32.mrf.mxu0
      %7331 = vmatprep.mubr.f32.mxu0 0.0
      %7332 = vmatmul.mubr.f32.gmra.mxu0 %v7190
      %v7333 = vpop.f32.mrf.mxu0
      %v7334 = vadd.f32 0.0, %v7333
      %v7335 = vpop.f32.mrf.mxu0
      %7336 = vmatprep.mubr.f32.mxu0 0.0
      %7337 = vmatmul.mubr.f32.gmra.mxu0 %v7191
      %v7338 = vpop.f32.mrf.mxu0
      %v7339 = vadd.f32 0.0, %v7338
      %v7340 = vpop.f32.mrf.mxu0
      %7341 = vmatprep.mubr.f32.mxu0 0.0
      %7342 = vmatmul.mubr.f32.gmra.mxu0 %v7192
      %v7343 = vpop.f32.mrf.mxu0
      %v7344 = vadd.f32 0.0, %v7343
      %v7345 = vpop.f32.mrf.mxu0
      %7346 = vmatprep.mubr.f32.mxu0 0.0
      %7347 = vmatmul.mubr.f32.gmra.mxu0 %v7193
      %v7348 = vpop.f32.mrf.mxu0
      %v7349 = vadd.f32 0.0, %v7348
      %v7350 = vpop.f32.mrf.mxu0
      %7351 = vmatprep.mubr.f32.mxu0 0.0
      %7352 = vmatmul.mubr.f32.gmra.mxu0 %v7194
      %v7353 = vpop.f32.mrf.mxu0
      %v7354 = vadd.f32 0.0, %v7353
      %v7355 = vpop.f32.mrf.mxu0
      %7356 = vmatprep.mubr.f32.mxu0 0.0
      %7357 = vmatmul.mubr.f32.gmra.mxu0 %v7195
      %v7358 = vpop.f32.mrf.mxu0
      %v7359 = vadd.f32 0.0, %v7358
      %v7360 = vpop.f32.mrf.mxu0
      %7361 = vmatprep.mubr.f32.mxu0 0.0
      %7362 = vmatmul.mubr.f32.gmra.mxu0 %v7196
      %v7363 = vpop.f32.mrf.mxu0
      %v7364 = vadd.f32 0.0, %v7363
      %v7365 = vpop.f32.mrf.mxu0
      %7366 = vmatprep.mubr.f32.mxu0 0.0
      %7367 = vmatmul.mubr.f32.gmra.mxu0 %v7197
      %v7368 = vpop.f32.mrf.mxu0
      %v7369 = vadd.f32 0.0, %v7368
      %v7370 = vpop.f32.mrf.mxu0
      %7371 = vmatprep.mubr.f32.mxu0 0.0
      %7372 = vmatmul.mubr.f32.gmra.mxu0 %v7198
      %v7373 = vpop.f32.mrf.mxu0
      %v7374 = vadd.f32 0.0, %v7373
      %v7375 = vpop.f32.mrf.mxu0
      %7376 = vmatprep.mubr.f32.mxu0 0.0
      %7377 = vmatmul.mubr.f32.gmra.mxu0 %v7199
      %v7378 = vpop.f32.mrf.mxu0
      %v7379 = vadd.f32 0.0, %v7378
      %v7380 = vpop.f32.mrf.mxu0
      %7381 = vmatprep.mubr.f32.mxu0 0.0
      %7382 = vmatmul.mubr.f32.gmra.mxu0 %v7200
      %v7383 = vpop.f32.mrf.mxu0
      %v7384 = vadd.f32 0.0, %v7383
      %v7385 = vpop.f32.mrf.mxu0
      %7386 = vmatprep.mubr.f32.mxu0 0.0
      %7387 = vmatmul.mubr.f32.gmra.mxu0 %v7201
      %v7388 = vpop.f32.mrf.mxu0
      %v7389 = vadd.f32 0.0, %v7388
      %v7390 = vpop.f32.mrf.mxu0
      %7391 = vmatprep.mubr.f32.mxu0 0.0
      %7392 = vmatmul.mubr.f32.gmra.mxu0 %v7202
      %v7393 = vpop.f32.mrf.mxu0
      %v7394 = vadd.f32 0.0, %v7393
      %v7395 = vpop.f32.mrf.mxu0
      %7396 = vmatprep.mubr.f32.mxu0 0.0
      %7397 = vmatmul.mubr.f32.gmra.mxu0 %v7203
      %v7398 = vpop.f32.mrf.mxu0
      %v7399 = vadd.f32 0.0, %v7398
      %v7400 = vpop.f32.mrf.mxu0
      %7401 = vmatprep.mubr.f32.mxu0 0.0
      %7402 = vmatmul.mubr.f32.gmra.mxu0 %v7204
      %v7403 = vpop.f32.mrf.mxu0
      %v7404 = vadd.f32 0.0, %v7403
      %v7405 = vpop.f32.mrf.mxu0
      %7406 = vmatprep.mubr.f32.mxu0 0.0
      %7407 = vmatmul.mubr.f32.gmra.mxu0 %v7205
      %v7408 = vpop.f32.mrf.mxu0
      %v7409 = vadd.f32 0.0, %v7408
      %v7410 = vpop.f32.mrf.mxu0
      %7411 = vmatprep.mubr.f32.mxu0 0.0
      %7412 = vmatmul.mubr.f32.gmra.mxu0 %v7206
      %v7413 = vpop.f32.mrf.mxu0
      %v7414 = vadd.f32 0.0, %v7413
      %v7415 = vpop.f32.mrf.mxu0
      %7416 = vmatprep.mubr.f32.mxu0 0.0
      %7417 = vmatmul.mubr.f32.gmra.mxu0 %v7207
      %v7418 = vpop.f32.mrf.mxu0
      %v7419 = vadd.f32 0.0, %v7418
      %v7420 = vpop.f32.mrf.mxu0
      %7421 = vmatprep.mubr.f32.mxu0 0.0
      %7422 = vmatmul.mubr.f32.gmra.mxu0 %v7208
      %v7423 = vpop.f32.mrf.mxu0
      %v7424 = vadd.f32 0.0, %v7423
      %v7425 = vpop.f32.mrf.mxu0
      %7426 = vmatprep.mubr.f32.mxu0 0.0
      %7427 = vmatmul.mubr.f32.gmra.mxu0 %v7209
      %v7428 = vpop.f32.mrf.mxu0
      %v7429 = vadd.f32 0.0, %v7428
      %v7430 = vpop.f32.mrf.mxu0
      %7431 = vmatprep.mubr.f32.mxu0 0.0
      %7432 = vmatmul.mubr.f32.gmra.mxu0 %v7210
      %v7433 = vpop.f32.mrf.mxu0
      %v7434 = vadd.f32 0.0, %v7433
      %v7435 = vpop.f32.mrf.mxu0
      %7436 = vmatprep.mubr.f32.mxu0 0.0
      %7437 = vmatmul.mubr.f32.gmra.mxu0 %v7211
      %v7438 = vpop.f32.mrf.mxu0
      %v7439 = vadd.f32 0.0, %v7438
      %v7440 = vpop.f32.mrf.mxu0
      %7441 = vmatprep.mubr.f32.mxu0 0.0
      %7442 = vmatmul.mubr.f32.gmra.mxu0 %v7212
      %v7443 = vpop.f32.mrf.mxu0
      %v7444 = vadd.f32 0.0, %v7443
      %v7445 = vpop.f32.mrf.mxu0
      %7446 = vmatprep.mubr.f32.mxu0 0.0
      %7447 = vmatmul.mubr.f32.gmra.mxu0 %v7213
      %v7448 = vpop.f32.mrf.mxu0
      %v7449 = vadd.f32 0.0, %v7448
      %v7450 = vpop.f32.mrf.mxu0
      %7451 = vmatprep.mubr.f32.mxu0 0.0
      %7452 = vmatmul.mubr.f32.gmra.mxu0 %v7214
      %v7453 = vpop.f32.mrf.mxu0
      %v7454 = vadd.f32 0.0, %v7453
      %v7455 = vpop.f32.mrf.mxu0
      %7456 = vmatprep.mubr.f32.mxu0 0.0
      %7457 = vmatmul.mubr.f32.gmra.mxu0 %v7215
      %v7458 = vpop.f32.mrf.mxu0
      %v7459 = vadd.f32 0.0, %v7458
      %v7460 = vpop.f32.mrf.mxu0
      %7461 = vmatprep.mubr.f32.mxu0 0.0
      %7462 = vmatmul.mubr.f32.gmra.mxu0 %v7216
      %v7463 = vpop.f32.mrf.mxu0
      %v7464 = vadd.f32 0.0, %v7463
      %v7465 = vpop.f32.mrf.mxu0
      %7466 = vmatprep.mubr.f32.mxu0 0.0
      %7467 = vmatmul.mubr.f32.gmra.mxu0 %v7217
      %v7468 = vpop.f32.mrf.mxu0
      %v7469 = vadd.f32 0.0, %v7468
      %v7470 = vpop.f32.mrf.mxu0
      %7471 = vmatprep.mubr.f32.mxu0 0.0
      %7472 = vmatmul.mubr.f32.gmra.mxu0 %v7218
      %v7473 = vpop.f32.mrf.mxu0
      %v7474 = vadd.f32 0.0, %v7473
      %v7475 = vpop.f32.mrf.mxu0
      %7476 = vmatprep.mubr.f32.mxu0 0.0
      %7477 = vmatmul.mubr.f32.gmra.mxu0 %v7219
      %v7478 = vpop.f32.mrf.mxu0
      %v7479 = vadd.f32 0.0, %v7478
      %v7480 = vpop.f32.mrf.mxu0
      %7481 = vdwg.mxu0
      %v7482 = vadd.f32 %v7148, %v7304
      %v7483 = vadd.f32 %v7149, %v7309
      %v7484 = vadd.f32 %v7150, %v7314
      %v7485 = vadd.f32 %v7151, %v7319
      %v7486 = vadd.f32 %v7152, %v7324
      %v7487 = vadd.f32 %v7153, %v7329
      %v7488 = vadd.f32 %v7154, %v7334
      %v7489 = vadd.f32 %v7155, %v7339
      %v7490 = vadd.f32 %v7156, %v7344
      %v7491 = vadd.f32 %v7157, %v7349
      %v7492 = vadd.f32 %v7158, %v7354
      %v7493 = vadd.f32 %v7159, %v7359
      %v7494 = vadd.f32 %v7160, %v7364
      %v7495 = vadd.f32 %v7161, %v7369
      %v7496 = vadd.f32 %v7162, %v7374
      %v7497 = vadd.f32 %v7163, %v7379
      %v7498 = vadd.f32 %v7164, %v7384
      %v7499 = vadd.f32 %v7165, %v7389
      %v7500 = vadd.f32 %v7166, %v7394
      %v7501 = vadd.f32 %v7167, %v7399
      %v7502 = vadd.f32 %v7168, %v7404
      %v7503 = vadd.f32 %v7169, %v7409
      %v7504 = vadd.f32 %v7170, %v7414
      %v7505 = vadd.f32 %v7171, %v7419
      %v7506 = vadd.f32 %v7172, %v7424
      %v7507 = vadd.f32 %v7173, %v7429
      %v7508 = vadd.f32 %v7174, %v7434
      %v7509 = vadd.f32 %v7175, %v7439
      %v7510 = vadd.f32 %v7176, %v7444
      %v7511 = vadd.f32 %v7177, %v7449
      %v7512 = vadd.f32 %v7178, %v7454
      %v7513 = vadd.f32 %v7179, %v7459
      %v7514 = vadd.f32 %v7180, %v7464
      %v7515 = vadd.f32 %v7181, %v7469
      %v7516 = vadd.f32 %v7182, %v7474
      %v7517 = vadd.f32 %v7183, %v7479
      %7518 = vst [vmem:[%s433] sm:$0xff] %v7482
      %7519 = vst [vmem:[%s433 + $0x8] sm:$0xff] %v7483
      %7520 = vst [vmem:[%s433 + $0x10] sm:$0xff] %v7484
      %7521 = vst [vmem:[%s433 + $0x18] sm:$0xff] %v7485
      %7522 = vst [vmem:[%s433 + $0x20] sm:$0xff] %v7486
      %7523 = vst [vmem:[%s433 + $0x28] sm:$0xff] %v7487
      %7524 = vst [vmem:[%s433 + $0x30] sm:$0xff] %v7488
      %7525 = vst [vmem:[%s433 + $0x38] sm:$0xff] %v7489
      %7526 = vst [vmem:[%s433 + $0x40] sm:$0xff] %v7490
      %7527 = vst [vmem:[%s433 + $0x48] sm:$0xff] %v7491
      %7528 = vst [vmem:[%s433 + $0x50] sm:$0xff] %v7492
      %7529 = vst [vmem:[%s433 + $0x58] sm:$0xff] %v7493
      %7530 = vst [vmem:[%s433 + $0x60] sm:$0xff] %v7494
      %7531 = vst [vmem:[%s433 + $0x68] sm:$0xff] %v7495
      %7532 = vst [vmem:[%s433 + $0x70] sm:$0xff] %v7496
      %7533 = vst [vmem:[%s433 + $0x78] sm:$0xff] %v7497
      %7534 = vst [vmem:[%s433 + $0x80] sm:$0xff] %v7498
      %7535 = vst [vmem:[%s433 + $0x88] sm:$0xff] %v7499
      %7536 = vst [vmem:[%s433 + $0x90] sm:$0xff] %v7500
      %7537 = vst [vmem:[%s433 + $0x98] sm:$0xff] %v7501
      %7538 = vst [vmem:[%s433 + $0xa0] sm:$0xff] %v7502
      %7539 = vst [vmem:[%s433 + $0xa8] sm:$0xff] %v7503
      %7540 = vst [vmem:[%s433 + $0xb0] sm:$0xff] %v7504
      %7541 = vst [vmem:[%s433 + $0xb8] sm:$0xff] %v7505
      %7542 = vst [vmem:[%s433 + $0xc0] sm:$0xff] %v7506
      %7543 = vst [vmem:[%s433 + $0xc8] sm:$0xff] %v7507
      %7544 = vst [vmem:[%s433 + $0xd0] sm:$0xff] %v7508
      %7545 = vst [vmem:[%s433 + $0xd8] sm:$0xff] %v7509
      %7546 = vst [vmem:[%s433 + $0xe0] sm:$0xff] %v7510
      %7547 = vst [vmem:[%s433 + $0xe8] sm:$0xff] %v7511
      %7548 = vst [vmem:[%s433 + $0xf0] sm:$0xff] %v7512
      %7549 = vst [vmem:[%s433 + $0xf8] sm:$0xff] %v7513
      %7550 = vst [vmem:[%s433 + $0x100] sm:$0xff] %v7514
      %7551 = vst [vmem:[%s433 + $0x108] sm:$0xff] %v7515
      %7552 = vst [vmem:[%s433 + $0x110] sm:$0xff] %v7516
      %7553 = vst [vmem:[%s433 + $0x118] sm:$0xff] %v7517
      %v7554 = vld [vmem:[%s433] sm:$0xff]
      %v7555 = vld [vmem:[%s433 + $0x8] sm:$0xff]
      %v7556 = vld [vmem:[%s433 + $0x10] sm:$0xff]
      %v7557 = vld [vmem:[%s433 + $0x18] sm:$0xff]
      %v7558 = vld [vmem:[%s433 + $0x20] sm:$0xff]
      %v7559 = vld [vmem:[%s433 + $0x28] sm:$0xff]
      %v7560 = vld [vmem:[%s433 + $0x30] sm:$0xff]
      %v7561 = vld [vmem:[%s433 + $0x38] sm:$0xff]
      %v7562 = vld [vmem:[%s433 + $0x40] sm:$0xff]
      %v7563 = vld [vmem:[%s433 + $0x48] sm:$0xff]
      %v7564 = vld [vmem:[%s433 + $0x50] sm:$0xff]
      %v7565 = vld [vmem:[%s433 + $0x58] sm:$0xff]
      %v7566 = vld [vmem:[%s433 + $0x60] sm:$0xff]
      %v7567 = vld [vmem:[%s433 + $0x68] sm:$0xff]
      %v7568 = vld [vmem:[%s433 + $0x70] sm:$0xff]
      %v7569 = vld [vmem:[%s433 + $0x78] sm:$0xff]
      %v7570 = vld [vmem:[%s433 + $0x80] sm:$0xff]
      %v7571 = vld [vmem:[%s433 + $0x88] sm:$0xff]
      %v7572 = vld [vmem:[%s433 + $0x90] sm:$0xff]
      %v7573 = vld [vmem:[%s433 + $0x98] sm:$0xff]
      %v7574 = vld [vmem:[%s433 + $0xa0] sm:$0xff]
      %v7575 = vld [vmem:[%s433 + $0xa8] sm:$0xff]
      %v7576 = vld [vmem:[%s433 + $0xb0] sm:$0xff]
      %v7577 = vld [vmem:[%s433 + $0xb8] sm:$0xff]
      %v7578 = vld [vmem:[%s433 + $0xc0] sm:$0xff]
      %v7579 = vld [vmem:[%s433 + $0xc8] sm:$0xff]
      %v7580 = vld [vmem:[%s433 + $0xd0] sm:$0xff]
      %v7581 = vld [vmem:[%s433 + $0xd8] sm:$0xff]
      %v7582 = vld [vmem:[%s433 + $0xe0] sm:$0xff]
      %v7583 = vld [vmem:[%s433 + $0xe8] sm:$0xff]
      %v7584 = vld [vmem:[%s433 + $0xf0] sm:$0xff]
      %v7585 = vld [vmem:[%s433 + $0xf8] sm:$0xff]
      %v7586 = vld [vmem:[%s433 + $0x100] sm:$0xff]
      %v7587 = vld [vmem:[%s433 + $0x108] sm:$0xff]
      %v7588 = vld [vmem:[%s433 + $0x110] sm:$0xff]
      %v7589 = vld [vmem:[%s433 + $0x118] sm:$0xff]
      %v7590 = vld [vmem:[#allocation3 + $0x12] sm:$0xff]
      %v7591 = vld [vmem:[#allocation3 + $0x1a] sm:$0xff]
      %v7592 = vld [vmem:[#allocation3 + $0x22] sm:$0xff]
      %v7593 = vld [vmem:[#allocation3 + $0x2a] sm:$0xff]
      %v7594 = vld [vmem:[#allocation3 + $0x32] sm:$0xff]
      %v7595 = vld [vmem:[#allocation3 + $0x3a] sm:$0xff]
      %v7596 = vld [vmem:[#allocation3 + $0x42] sm:$0xff]
      %v7597 = vld [vmem:[#allocation3 + $0x4a] sm:$0xff]
      %v7598 = vld [vmem:[#allocation3 + $0x52] sm:$0xff]
      %v7599 = vld [vmem:[#allocation3 + $0x5a] sm:$0xff]
      %v7600 = vld [vmem:[#allocation3 + $0x62] sm:$0xff]
      %v7601 = vld [vmem:[#allocation3 + $0x6a] sm:$0xff]
      %v7602 = vld [vmem:[#allocation3 + $0x72] sm:$0xff]
      %v7603 = vld [vmem:[#allocation3 + $0x7a] sm:$0xff]
      %v7604 = vld [vmem:[#allocation3 + $0x82] sm:$0xff]
      %v7605 = vld [vmem:[#allocation3 + $0x8a] sm:$0xff]
      %v7606 = vld [vmem:[#allocation3 + $0x92] sm:$0xff]
      %v7607 = vld [vmem:[#allocation3 + $0x9a] sm:$0xff]
      %v7608 = vld [vmem:[#allocation3 + $0xa2] sm:$0xff]
      %v7609 = vld [vmem:[#allocation3 + $0xaa] sm:$0xff]
      %v7610 = vld [vmem:[#allocation3 + $0xb2] sm:$0xff]
      %v7611 = vld [vmem:[#allocation3 + $0xba] sm:$0xff]
      %v7612 = vld [vmem:[#allocation3 + $0xc2] sm:$0xff]
      %v7613 = vld [vmem:[#allocation3 + $0xca] sm:$0xff]
      %v7614 = vld [vmem:[#allocation3 + $0xd2] sm:$0xff]
      %v7615 = vld [vmem:[#allocation3 + $0xda] sm:$0xff]
      %v7616 = vld [vmem:[#allocation3 + $0xe2] sm:$0xff]
      %v7617 = vld [vmem:[#allocation3 + $0xea] sm:$0xff]
      %v7618 = vld [vmem:[#allocation3 + $0xf2] sm:$0xff]
      %v7619 = vld [vmem:[#allocation3 + $0xfa] sm:$0xff]
      %v7620 = vld [vmem:[#allocation3 + $0x102] sm:$0xff]
      %v7621 = vld [vmem:[#allocation3 + $0x10a] sm:$0xff]
      %v7622 = vld [vmem:[#allocation3 + $0x112] sm:$0xff]
      %v7623 = vld [vmem:[#allocation3 + $0x11a] sm:$0xff]
      %v7624 = vld [vmem:[#allocation3 + $0x122] sm:$0xff]
      %v7625 = vld [vmem:[#allocation3 + $0x12a] sm:$0xff]
      %s7626 = scalar_lea.vmem %s10, 384
      %v7627 = vld [vmem:[%s7626] sm:$0xff]
      %v7628 = vld [vmem:[%s7626 + $0x8] sm:$0xff]
      %v7629 = vld [vmem:[%s7626 + $0x10] sm:$0xff]
      %v7630 = vld [vmem:[%s7626 + $0x18] sm:$0xff]
      %v7631 = vld [vmem:[%s7626 + $0x20] sm:$0xff]
      %v7632 = vld [vmem:[%s7626 + $0x28] sm:$0xff]
      %v7633 = vld [vmem:[%s7626 + $0x30] sm:$0xff]
      %v7634 = vld [vmem:[%s7626 + $0x38] sm:$0xff]
      %v7635 = vld [vmem:[%s7626 + $0x40] sm:$0xff]
      %v7636 = vld [vmem:[%s7626 + $0x48] sm:$0xff]
      %v7637 = vld [vmem:[%s7626 + $0x50] sm:$0xff]
      %v7638 = vld [vmem:[%s7626 + $0x58] sm:$0xff]
      %v7639 = vld [vmem:[%s7626 + $0x60] sm:$0xff]
      %v7640 = vld [vmem:[%s7626 + $0x68] sm:$0xff]
      %v7641 = vld [vmem:[%s7626 + $0x70] sm:$0xff]
      %v7642 = vld [vmem:[%s7626 + $0x78] sm:$0xff]
      %7643 = vmatprep.subr.mxu0 0.0
      %7644 = vmatpush1.msra.mxu0 %v7642
      %7645 = vmatprep.subr.mxu0 0.0
      %7646 = vmatpush1.msra.mxu0 %v7641
      %7647 = vmatprep.subr.mxu0 0.0
      %7648 = vmatpush1.msra.mxu0 %v7640
      %7649 = vmatprep.subr.mxu0 0.0
      %7650 = vmatpush1.msra.mxu0 %v7639
      %7651 = vmatprep.subr.mxu0 0.0
      %7652 = vmatpush1.msra.mxu0 %v7638
      %7653 = vmatprep.subr.mxu0 0.0
      %7654 = vmatpush1.msra.mxu0 %v7637
      %7655 = vmatprep.subr.mxu0 0.0
      %7656 = vmatpush1.msra.mxu0 %v7636
      %7657 = vmatprep.subr.mxu0 0.0
      %7658 = vmatpush1.msra.mxu0 %v7635
      %7659 = vmatprep.subr.mxu0 0.0
      %7660 = vmatpush1.msra.mxu0 %v7634
      %7661 = vmatprep.subr.mxu0 0.0
      %7662 = vmatpush1.msra.mxu0 %v7633
      %7663 = vmatprep.subr.mxu0 0.0
      %7664 = vmatpush1.msra.mxu0 %v7632
      %7665 = vmatprep.subr.mxu0 0.0
      %7666 = vmatpush1.msra.mxu0 %v7631
      %7667 = vmatprep.subr.mxu0 0.0
      %7668 = vmatpush1.msra.mxu0 %v7630
      %7669 = vmatprep.subr.mxu0 0.0
      %7670 = vmatpush1.msra.mxu0 %v7629
      %7671 = vmatprep.subr.mxu0 0.0
      %7672 = vmatpush1.msra.mxu0 %v7628
      %7673 = vmatprep.subr.mxu0 0.0
      %7674 = vmatpush1.msra.mxu0 %v7627
      %7675 = vmatprep.subr.mxu0 0.0
      %7676 = vmatpush2.msra.mxu0 0.0
      %7677 = vmatprep.subr.mxu0 0.0
      %7678 = vmatpush2.msra.mxu0 0.0
      %7679 = vmatprep.subr.mxu0 0.0
      %7680 = vmatpush2.msra.mxu0 0.0
      %7681 = vmatprep.subr.mxu0 0.0
      %7682 = vmatpush2.msra.mxu0 0.0
      %7683 = vmatprep.subr.mxu0 0.0
      %7684 = vmatpush2.msra.mxu0 0.0
      %7685 = vmatprep.subr.mxu0 0.0
      %7686 = vmatpush2.msra.mxu0 0.0
      %7687 = vmatprep.subr.mxu0 0.0
      %7688 = vmatpush2.msra.mxu0 0.0
      %7689 = vmatprep.subr.mxu0 0.0
      %7690 = vmatpush2.msra.mxu0 0.0
      %7691 = vmatprep.subr.mxu0 0.0
      %7692 = vmatpush2.msra.mxu0 0.0
      %7693 = vmatprep.subr.mxu0 0.0
      %7694 = vmatpush2.msra.mxu0 0.0
      %7695 = vmatprep.subr.mxu0 0.0
      %7696 = vmatpush2.msra.mxu0 0.0
      %7697 = vmatprep.subr.mxu0 0.0
      %7698 = vmatpush2.msra.mxu0 0.0
      %7699 = vmatprep.subr.mxu0 0.0
      %7700 = vmatpush2.msra.mxu0 0.0
      %7701 = vmatprep.subr.mxu0 0.0
      %7702 = vmatpush2.msra.mxu0 0.0
      %7703 = vmatprep.subr.mxu0 0.0
      %7704 = vmatpush2.msra.mxu0 0.0
      %7705 = vmatprep.subr.mxu0 0.0
      %7706 = vmatpush2.msra.mxu0 0.0
      %7707 = vmatprep.mubr.f32.mxu0 0.0
      %7708 = vmatmul.mubr.f32.gmra.mxu0 %v7590
      %v7709 = vpop.f32.mrf.mxu0
      %v7710 = vadd.f32 0.0, %v7709
      %v7711 = vpop.f32.mrf.mxu0
      %7712 = vmatprep.mubr.f32.mxu0 0.0
      %7713 = vmatmul.mubr.f32.gmra.mxu0 %v7591
      %v7714 = vpop.f32.mrf.mxu0
      %v7715 = vadd.f32 0.0, %v7714
      %v7716 = vpop.f32.mrf.mxu0
      %7717 = vmatprep.mubr.f32.mxu0 0.0
      %7718 = vmatmul.mubr.f32.gmra.mxu0 %v7592
      %v7719 = vpop.f32.mrf.mxu0
      %v7720 = vadd.f32 0.0, %v7719
      %v7721 = vpop.f32.mrf.mxu0
      %7722 = vmatprep.mubr.f32.mxu0 0.0
      %7723 = vmatmul.mubr.f32.gmra.mxu0 %v7593
      %v7724 = vpop.f32.mrf.mxu0
      %v7725 = vadd.f32 0.0, %v7724
      %v7726 = vpop.f32.mrf.mxu0
      %7727 = vmatprep.mubr.f32.mxu0 0.0
      %7728 = vmatmul.mubr.f32.gmra.mxu0 %v7594
      %v7729 = vpop.f32.mrf.mxu0
      %v7730 = vadd.f32 0.0, %v7729
      %v7731 = vpop.f32.mrf.mxu0
      %7732 = vmatprep.mubr.f32.mxu0 0.0
      %7733 = vmatmul.mubr.f32.gmra.mxu0 %v7595
      %v7734 = vpop.f32.mrf.mxu0
      %v7735 = vadd.f32 0.0, %v7734
      %v7736 = vpop.f32.mrf.mxu0
      %7737 = vmatprep.mubr.f32.mxu0 0.0
      %7738 = vmatmul.mubr.f32.gmra.mxu0 %v7596
      %v7739 = vpop.f32.mrf.mxu0
      %v7740 = vadd.f32 0.0, %v7739
      %v7741 = vpop.f32.mrf.mxu0
      %7742 = vmatprep.mubr.f32.mxu0 0.0
      %7743 = vmatmul.mubr.f32.gmra.mxu0 %v7597
      %v7744 = vpop.f32.mrf.mxu0
      %v7745 = vadd.f32 0.0, %v7744
      %v7746 = vpop.f32.mrf.mxu0
      %7747 = vmatprep.mubr.f32.mxu0 0.0
      %7748 = vmatmul.mubr.f32.gmra.mxu0 %v7598
      %v7749 = vpop.f32.mrf.mxu0
      %v7750 = vadd.f32 0.0, %v7749
      %v7751 = vpop.f32.mrf.mxu0
      %7752 = vmatprep.mubr.f32.mxu0 0.0
      %7753 = vmatmul.mubr.f32.gmra.mxu0 %v7599
      %v7754 = vpop.f32.mrf.mxu0
      %v7755 = vadd.f32 0.0, %v7754
      %v7756 = vpop.f32.mrf.mxu0
      %7757 = vmatprep.mubr.f32.mxu0 0.0
      %7758 = vmatmul.mubr.f32.gmra.mxu0 %v7600
      %v7759 = vpop.f32.mrf.mxu0
      %v7760 = vadd.f32 0.0, %v7759
      %v7761 = vpop.f32.mrf.mxu0
      %7762 = vmatprep.mubr.f32.mxu0 0.0
      %7763 = vmatmul.mubr.f32.gmra.mxu0 %v7601
      %v7764 = vpop.f32.mrf.mxu0
      %v7765 = vadd.f32 0.0, %v7764
      %v7766 = vpop.f32.mrf.mxu0
      %7767 = vmatprep.mubr.f32.mxu0 0.0
      %7768 = vmatmul.mubr.f32.gmra.mxu0 %v7602
      %v7769 = vpop.f32.mrf.mxu0
      %v7770 = vadd.f32 0.0, %v7769
      %v7771 = vpop.f32.mrf.mxu0
      %7772 = vmatprep.mubr.f32.mxu0 0.0
      %7773 = vmatmul.mubr.f32.gmra.mxu0 %v7603
      %v7774 = vpop.f32.mrf.mxu0
      %v7775 = vadd.f32 0.0, %v7774
      %v7776 = vpop.f32.mrf.mxu0
      %7777 = vmatprep.mubr.f32.mxu0 0.0
      %7778 = vmatmul.mubr.f32.gmra.mxu0 %v7604
      %v7779 = vpop.f32.mrf.mxu0
      %v7780 = vadd.f32 0.0, %v7779
      %v7781 = vpop.f32.mrf.mxu0
      %7782 = vmatprep.mubr.f32.mxu0 0.0
      %7783 = vmatmul.mubr.f32.gmra.mxu0 %v7605
      %v7784 = vpop.f32.mrf.mxu0
      %v7785 = vadd.f32 0.0, %v7784
      %v7786 = vpop.f32.mrf.mxu0
      %7787 = vmatprep.mubr.f32.mxu0 0.0
      %7788 = vmatmul.mubr.f32.gmra.mxu0 %v7606
      %v7789 = vpop.f32.mrf.mxu0
      %v7790 = vadd.f32 0.0, %v7789
      %v7791 = vpop.f32.mrf.mxu0
      %7792 = vmatprep.mubr.f32.mxu0 0.0
      %7793 = vmatmul.mubr.f32.gmra.mxu0 %v7607
      %v7794 = vpop.f32.mrf.mxu0
      %v7795 = vadd.f32 0.0, %v7794
      %v7796 = vpop.f32.mrf.mxu0
      %7797 = vmatprep.mubr.f32.mxu0 0.0
      %7798 = vmatmul.mubr.f32.gmra.mxu0 %v7608
      %v7799 = vpop.f32.mrf.mxu0
      %v7800 = vadd.f32 0.0, %v7799
      %v7801 = vpop.f32.mrf.mxu0
      %7802 = vmatprep.mubr.f32.mxu0 0.0
      %7803 = vmatmul.mubr.f32.gmra.mxu0 %v7609
      %v7804 = vpop.f32.mrf.mxu0
      %v7805 = vadd.f32 0.0, %v7804
      %v7806 = vpop.f32.mrf.mxu0
      %7807 = vmatprep.mubr.f32.mxu0 0.0
      %7808 = vmatmul.mubr.f32.gmra.mxu0 %v7610
      %v7809 = vpop.f32.mrf.mxu0
      %v7810 = vadd.f32 0.0, %v7809
      %v7811 = vpop.f32.mrf.mxu0
      %7812 = vmatprep.mubr.f32.mxu0 0.0
      %7813 = vmatmul.mubr.f32.gmra.mxu0 %v7611
      %v7814 = vpop.f32.mrf.mxu0
      %v7815 = vadd.f32 0.0, %v7814
      %v7816 = vpop.f32.mrf.mxu0
      %7817 = vmatprep.mubr.f32.mxu0 0.0
      %7818 = vmatmul.mubr.f32.gmra.mxu0 %v7612
      %v7819 = vpop.f32.mrf.mxu0
      %v7820 = vadd.f32 0.0, %v7819
      %v7821 = vpop.f32.mrf.mxu0
      %7822 = vmatprep.mubr.f32.mxu0 0.0
      %7823 = vmatmul.mubr.f32.gmra.mxu0 %v7613
      %v7824 = vpop.f32.mrf.mxu0
      %v7825 = vadd.f32 0.0, %v7824
      %v7826 = vpop.f32.mrf.mxu0
      %7827 = vmatprep.mubr.f32.mxu0 0.0
      %7828 = vmatmul.mubr.f32.gmra.mxu0 %v7614
      %v7829 = vpop.f32.mrf.mxu0
      %v7830 = vadd.f32 0.0, %v7829
      %v7831 = vpop.f32.mrf.mxu0
      %7832 = vmatprep.mubr.f32.mxu0 0.0
      %7833 = vmatmul.mubr.f32.gmra.mxu0 %v7615
      %v7834 = vpop.f32.mrf.mxu0
      %v7835 = vadd.f32 0.0, %v7834
      %v7836 = vpop.f32.mrf.mxu0
      %7837 = vmatprep.mubr.f32.mxu0 0.0
      %7838 = vmatmul.mubr.f32.gmra.mxu0 %v7616
      %v7839 = vpop.f32.mrf.mxu0
      %v7840 = vadd.f32 0.0, %v7839
      %v7841 = vpop.f32.mrf.mxu0
      %7842 = vmatprep.mubr.f32.mxu0 0.0
      %7843 = vmatmul.mubr.f32.gmra.mxu0 %v7617
      %v7844 = vpop.f32.mrf.mxu0
      %v7845 = vadd.f32 0.0, %v7844
      %v7846 = vpop.f32.mrf.mxu0
      %7847 = vmatprep.mubr.f32.mxu0 0.0
      %7848 = vmatmul.mubr.f32.gmra.mxu0 %v7618
      %v7849 = vpop.f32.mrf.mxu0
      %v7850 = vadd.f32 0.0, %v7849
      %v7851 = vpop.f32.mrf.mxu0
      %7852 = vmatprep.mubr.f32.mxu0 0.0
      %7853 = vmatmul.mubr.f32.gmra.mxu0 %v7619
      %v7854 = vpop.f32.mrf.mxu0
      %v7855 = vadd.f32 0.0, %v7854
      %v7856 = vpop.f32.mrf.mxu0
      %7857 = vmatprep.mubr.f32.mxu0 0.0
      %7858 = vmatmul.mubr.f32.gmra.mxu0 %v7620
      %v7859 = vpop.f32.mrf.mxu0
      %v7860 = vadd.f32 0.0, %v7859
      %v7861 = vpop.f32.mrf.mxu0
      %7862 = vmatprep.mubr.f32.mxu0 0.0
      %7863 = vmatmul.mubr.f32.gmra.mxu0 %v7621
      %v7864 = vpop.f32.mrf.mxu0
      %v7865 = vadd.f32 0.0, %v7864
      %v7866 = vpop.f32.mrf.mxu0
      %7867 = vmatprep.mubr.f32.mxu0 0.0
      %7868 = vmatmul.mubr.f32.gmra.mxu0 %v7622
      %v7869 = vpop.f32.mrf.mxu0
      %v7870 = vadd.f32 0.0, %v7869
      %v7871 = vpop.f32.mrf.mxu0
      %7872 = vmatprep.mubr.f32.mxu0 0.0
      %7873 = vmatmul.mubr.f32.gmra.mxu0 %v7623
      %v7874 = vpop.f32.mrf.mxu0
      %v7875 = vadd.f32 0.0, %v7874
      %v7876 = vpop.f32.mrf.mxu0
      %7877 = vmatprep.mubr.f32.mxu0 0.0
      %7878 = vmatmul.mubr.f32.gmra.mxu0 %v7624
      %v7879 = vpop.f32.mrf.mxu0
      %v7880 = vadd.f32 0.0, %v7879
      %v7881 = vpop.f32.mrf.mxu0
      %7882 = vmatprep.mubr.f32.mxu0 0.0
      %7883 = vmatmul.mubr.f32.gmra.mxu0 %v7625
      %v7884 = vpop.f32.mrf.mxu0
      %v7885 = vadd.f32 0.0, %v7884
      %v7886 = vpop.f32.mrf.mxu0
      %7887 = vdwg.mxu0
      %v7888 = vadd.f32 %v7554, %v7710
      %v7889 = vadd.f32 %v7555, %v7715
      %v7890 = vadd.f32 %v7556, %v7720
      %v7891 = vadd.f32 %v7557, %v7725
      %v7892 = vadd.f32 %v7558, %v7730
      %v7893 = vadd.f32 %v7559, %v7735
      %v7894 = vadd.f32 %v7560, %v7740
      %v7895 = vadd.f32 %v7561, %v7745
      %v7896 = vadd.f32 %v7562, %v7750
      %v7897 = vadd.f32 %v7563, %v7755
      %v7898 = vadd.f32 %v7564, %v7760
      %v7899 = vadd.f32 %v7565, %v7765
      %v7900 = vadd.f32 %v7566, %v7770
      %v7901 = vadd.f32 %v7567, %v7775
      %v7902 = vadd.f32 %v7568, %v7780
      %v7903 = vadd.f32 %v7569, %v7785
      %v7904 = vadd.f32 %v7570, %v7790
      %v7905 = vadd.f32 %v7571, %v7795
      %v7906 = vadd.f32 %v7572, %v7800
      %v7907 = vadd.f32 %v7573, %v7805
      %v7908 = vadd.f32 %v7574, %v7810
      %v7909 = vadd.f32 %v7575, %v7815
      %v7910 = vadd.f32 %v7576, %v7820
      %v7911 = vadd.f32 %v7577, %v7825
      %v7912 = vadd.f32 %v7578, %v7830
      %v7913 = vadd.f32 %v7579, %v7835
      %v7914 = vadd.f32 %v7580, %v7840
      %v7915 = vadd.f32 %v7581, %v7845
      %v7916 = vadd.f32 %v7582, %v7850
      %v7917 = vadd.f32 %v7583, %v7855
      %v7918 = vadd.f32 %v7584, %v7860
      %v7919 = vadd.f32 %v7585, %v7865
      %v7920 = vadd.f32 %v7586, %v7870
      %v7921 = vadd.f32 %v7587, %v7875
      %v7922 = vadd.f32 %v7588, %v7880
      %v7923 = vadd.f32 %v7589, %v7885
      %7924 = vst [vmem:[%s433] sm:$0xff] %v7888
      %7925 = vst [vmem:[%s433 + $0x8] sm:$0xff] %v7889
      %7926 = vst [vmem:[%s433 + $0x10] sm:$0xff] %v7890
      %7927 = vst [vmem:[%s433 + $0x18] sm:$0xff] %v7891
      %7928 = vst [vmem:[%s433 + $0x20] sm:$0xff] %v7892
      %7929 = vst [vmem:[%s433 + $0x28] sm:$0xff] %v7893
      %7930 = vst [vmem:[%s433 + $0x30] sm:$0xff] %v7894
      %7931 = vst [vmem:[%s433 + $0x38] sm:$0xff] %v7895
      %7932 = vst [vmem:[%s433 + $0x40] sm:$0xff] %v7896
      %7933 = vst [vmem:[%s433 + $0x48] sm:$0xff] %v7897
      %7934 = vst [vmem:[%s433 + $0x50] sm:$0xff] %v7898
      %7935 = vst [vmem:[%s433 + $0x58] sm:$0xff] %v7899
      %7936 = vst [vmem:[%s433 + $0x60] sm:$0xff] %v7900
      %7937 = vst [vmem:[%s433 + $0x68] sm:$0xff] %v7901
      %7938 = vst [vmem:[%s433 + $0x70] sm:$0xff] %v7902
      %7939 = vst [vmem:[%s433 + $0x78] sm:$0xff] %v7903
      %7940 = vst [vmem:[%s433 + $0x80] sm:$0xff] %v7904
      %7941 = vst [vmem:[%s433 + $0x88] sm:$0xff] %v7905
      %7942 = vst [vmem:[%s433 + $0x90] sm:$0xff] %v7906
      %7943 = vst [vmem:[%s433 + $0x98] sm:$0xff] %v7907
      %7944 = vst [vmem:[%s433 + $0xa0] sm:$0xff] %v7908
      %7945 = vst [vmem:[%s433 + $0xa8] sm:$0xff] %v7909
      %7946 = vst [vmem:[%s433 + $0xb0] sm:$0xff] %v7910
      %7947 = vst [vmem:[%s433 + $0xb8] sm:$0xff] %v7911
      %7948 = vst [vmem:[%s433 + $0xc0] sm:$0xff] %v7912
      %7949 = vst [vmem:[%s433 + $0xc8] sm:$0xff] %v7913
      %7950 = vst [vmem:[%s433 + $0xd0] sm:$0xff] %v7914
      %7951 = vst [vmem:[%s433 + $0xd8] sm:$0xff] %v7915
      %7952 = vst [vmem:[%s433 + $0xe0] sm:$0xff] %v7916
      %7953 = vst [vmem:[%s433 + $0xe8] sm:$0xff] %v7917
      %7954 = vst [vmem:[%s433 + $0xf0] sm:$0xff] %v7918
      %7955 = vst [vmem:[%s433 + $0xf8] sm:$0xff] %v7919
      %7956 = vst [vmem:[%s433 + $0x100] sm:$0xff] %v7920
      %7957 = vst [vmem:[%s433 + $0x108] sm:$0xff] %v7921
      %7958 = vst [vmem:[%s433 + $0x110] sm:$0xff] %v7922
      %7959 = vst [vmem:[%s433 + $0x118] sm:$0xff] %v7923
      %v7960 = vld [vmem:[%s433] sm:$0xff]
      %v7961 = vld [vmem:[%s433 + $0x8] sm:$0xff]
      %v7962 = vld [vmem:[%s433 + $0x10] sm:$0xff]
      %v7963 = vld [vmem:[%s433 + $0x18] sm:$0xff]
      %v7964 = vld [vmem:[%s433 + $0x20] sm:$0xff]
      %v7965 = vld [vmem:[%s433 + $0x28] sm:$0xff]
      %v7966 = vld [vmem:[%s433 + $0x30] sm:$0xff]
      %v7967 = vld [vmem:[%s433 + $0x38] sm:$0xff]
      %v7968 = vld [vmem:[%s433 + $0x40] sm:$0xff]
      %v7969 = vld [vmem:[%s433 + $0x48] sm:$0xff]
      %v7970 = vld [vmem:[%s433 + $0x50] sm:$0xff]
      %v7971 = vld [vmem:[%s433 + $0x58] sm:$0xff]
      %v7972 = vld [vmem:[%s433 + $0x60] sm:$0xff]
      %v7973 = vld [vmem:[%s433 + $0x68] sm:$0xff]
      %v7974 = vld [vmem:[%s433 + $0x70] sm:$0xff]
      %v7975 = vld [vmem:[%s433 + $0x78] sm:$0xff]
      %v7976 = vld [vmem:[%s433 + $0x80] sm:$0xff]
      %v7977 = vld [vmem:[%s433 + $0x88] sm:$0xff]
      %v7978 = vld [vmem:[%s433 + $0x90] sm:$0xff]
      %v7979 = vld [vmem:[%s433 + $0x98] sm:$0xff]
      %v7980 = vld [vmem:[%s433 + $0xa0] sm:$0xff]
      %v7981 = vld [vmem:[%s433 + $0xa8] sm:$0xff]
      %v7982 = vld [vmem:[%s433 + $0xb0] sm:$0xff]
      %v7983 = vld [vmem:[%s433 + $0xb8] sm:$0xff]
      %v7984 = vld [vmem:[%s433 + $0xc0] sm:$0xff]
      %v7985 = vld [vmem:[%s433 + $0xc8] sm:$0xff]
      %v7986 = vld [vmem:[%s433 + $0xd0] sm:$0xff]
      %v7987 = vld [vmem:[%s433 + $0xd8] sm:$0xff]
      %v7988 = vld [vmem:[%s433 + $0xe0] sm:$0xff]
      %v7989 = vld [vmem:[%s433 + $0xe8] sm:$0xff]
      %v7990 = vld [vmem:[%s433 + $0xf0] sm:$0xff]
      %v7991 = vld [vmem:[%s433 + $0xf8] sm:$0xff]
      %v7992 = vld [vmem:[%s433 + $0x100] sm:$0xff]
      %v7993 = vld [vmem:[%s433 + $0x108] sm:$0xff]
      %v7994 = vld [vmem:[%s433 + $0x110] sm:$0xff]
      %v7995 = vld [vmem:[%s433 + $0x118] sm:$0xff]
      %v7996 = vld [vmem:[#allocation3 + $0x13] sm:$0xff]
      %v7997 = vld [vmem:[#allocation3 + $0x1b] sm:$0xff]
      %v7998 = vld [vmem:[#allocation3 + $0x23] sm:$0xff]
      %v7999 = vld [vmem:[#allocation3 + $0x2b] sm:$0xff]
      %v8000 = vld [vmem:[#allocation3 + $0x33] sm:$0xff]
      %v8001 = vld [vmem:[#allocation3 + $0x3b] sm:$0xff]
      %v8002 = vld [vmem:[#allocation3 + $0x43] sm:$0xff]
      %v8003 = vld [vmem:[#allocation3 + $0x4b] sm:$0xff]
      %v8004 = vld [vmem:[#allocation3 + $0x53] sm:$0xff]
      %v8005 = vld [vmem:[#allocation3 + $0x5b] sm:$0xff]
      %v8006 = vld [vmem:[#allocation3 + $0x63] sm:$0xff]
      %v8007 = vld [vmem:[#allocation3 + $0x6b] sm:$0xff]
      %v8008 = vld [vmem:[#allocation3 + $0x73] sm:$0xff]
      %v8009 = vld [vmem:[#allocation3 + $0x7b] sm:$0xff]
      %v8010 = vld [vmem:[#allocation3 + $0x83] sm:$0xff]
      %v8011 = vld [vmem:[#allocation3 + $0x8b] sm:$0xff]
      %v8012 = vld [vmem:[#allocation3 + $0x93] sm:$0xff]
      %v8013 = vld [vmem:[#allocation3 + $0x9b] sm:$0xff]
      %v8014 = vld [vmem:[#allocation3 + $0xa3] sm:$0xff]
      %v8015 = vld [vmem:[#allocation3 + $0xab] sm:$0xff]
      %v8016 = vld [vmem:[#allocation3 + $0xb3] sm:$0xff]
      %v8017 = vld [vmem:[#allocation3 + $0xbb] sm:$0xff]
      %v8018 = vld [vmem:[#allocation3 + $0xc3] sm:$0xff]
      %v8019 = vld [vmem:[#allocation3 + $0xcb] sm:$0xff]
      %v8020 = vld [vmem:[#allocation3 + $0xd3] sm:$0xff]
      %v8021 = vld [vmem:[#allocation3 + $0xdb] sm:$0xff]
      %v8022 = vld [vmem:[#allocation3 + $0xe3] sm:$0xff]
      %v8023 = vld [vmem:[#allocation3 + $0xeb] sm:$0xff]
      %v8024 = vld [vmem:[#allocation3 + $0xf3] sm:$0xff]
      %v8025 = vld [vmem:[#allocation3 + $0xfb] sm:$0xff]
      %v8026 = vld [vmem:[#allocation3 + $0x103] sm:$0xff]
      %v8027 = vld [vmem:[#allocation3 + $0x10b] sm:$0xff]
      %v8028 = vld [vmem:[#allocation3 + $0x113] sm:$0xff]
      %v8029 = vld [vmem:[#allocation3 + $0x11b] sm:$0xff]
      %v8030 = vld [vmem:[#allocation3 + $0x123] sm:$0xff]
      %v8031 = vld [vmem:[#allocation3 + $0x12b] sm:$0xff]
      %s8032 = scalar_lea.vmem %s10, 512
      %v8033 = vld [vmem:[%s8032] sm:$0xff]
      %v8034 = vld [vmem:[%s8032 + $0x8] sm:$0xff]
      %v8035 = vld [vmem:[%s8032 + $0x10] sm:$0xff]
      %v8036 = vld [vmem:[%s8032 + $0x18] sm:$0xff]
      %v8037 = vld [vmem:[%s8032 + $0x20] sm:$0xff]
      %v8038 = vld [vmem:[%s8032 + $0x28] sm:$0xff]
      %v8039 = vld [vmem:[%s8032 + $0x30] sm:$0xff]
      %v8040 = vld [vmem:[%s8032 + $0x38] sm:$0xff]
      %v8041 = vld [vmem:[%s8032 + $0x40] sm:$0xff]
      %v8042 = vld [vmem:[%s8032 + $0x48] sm:$0xff]
      %v8043 = vld [vmem:[%s8032 + $0x50] sm:$0xff]
      %v8044 = vld [vmem:[%s8032 + $0x58] sm:$0xff]
      %v8045 = vld [vmem:[%s8032 + $0x60] sm:$0xff]
      %v8046 = vld [vmem:[%s8032 + $0x68] sm:$0xff]
      %v8047 = vld [vmem:[%s8032 + $0x70] sm:$0xff]
      %v8048 = vld [vmem:[%s8032 + $0x78] sm:$0xff]
      %8049 = vmatprep.subr.mxu0 0.0
      %8050 = vmatpush1.msra.mxu0 %v8048
      %8051 = vmatprep.subr.mxu0 0.0
      %8052 = vmatpush1.msra.mxu0 %v8047
      %8053 = vmatprep.subr.mxu0 0.0
      %8054 = vmatpush1.msra.mxu0 %v8046
      %8055 = vmatprep.subr.mxu0 0.0
      %8056 = vmatpush1.msra.mxu0 %v8045
      %8057 = vmatprep.subr.mxu0 0.0
      %8058 = vmatpush1.msra.mxu0 %v8044
      %8059 = vmatprep.subr.mxu0 0.0
      %8060 = vmatpush1.msra.mxu0 %v8043
      %8061 = vmatprep.subr.mxu0 0.0
      %8062 = vmatpush1.msra.mxu0 %v8042
      %8063 = vmatprep.subr.mxu0 0.0
      %8064 = vmatpush1.msra.mxu0 %v8041
      %8065 = vmatprep.subr.mxu0 0.0
      %8066 = vmatpush1.msra.mxu0 %v8040
      %8067 = vmatprep.subr.mxu0 0.0
      %8068 = vmatpush1.msra.mxu0 %v8039
      %8069 = vmatprep.subr.mxu0 0.0
      %8070 = vmatpush1.msra.mxu0 %v8038
      %8071 = vmatprep.subr.mxu0 0.0
      %8072 = vmatpush1.msra.mxu0 %v8037
      %8073 = vmatprep.subr.mxu0 0.0
      %8074 = vmatpush1.msra.mxu0 %v8036
      %8075 = vmatprep.subr.mxu0 0.0
      %8076 = vmatpush1.msra.mxu0 %v8035
      %8077 = vmatprep.subr.mxu0 0.0
      %8078 = vmatpush1.msra.mxu0 %v8034
      %8079 = vmatprep.subr.mxu0 0.0
      %8080 = vmatpush1.msra.mxu0 %v8033
      %8081 = vmatprep.subr.mxu0 0.0
      %8082 = vmatpush2.msra.mxu0 0.0
      %8083 = vmatprep.subr.mxu0 0.0
      %8084 = vmatpush2.msra.mxu0 0.0
      %8085 = vmatprep.subr.mxu0 0.0
      %8086 = vmatpush2.msra.mxu0 0.0
      %8087 = vmatprep.subr.mxu0 0.0
      %8088 = vmatpush2.msra.mxu0 0.0
      %8089 = vmatprep.subr.mxu0 0.0
      %8090 = vmatpush2.msra.mxu0 0.0
      %8091 = vmatprep.subr.mxu0 0.0
      %8092 = vmatpush2.msra.mxu0 0.0
      %8093 = vmatprep.subr.mxu0 0.0
      %8094 = vmatpush2.msra.mxu0 0.0
      %8095 = vmatprep.subr.mxu0 0.0
      %8096 = vmatpush2.msra.mxu0 0.0
      %8097 = vmatprep.subr.mxu0 0.0
      %8098 = vmatpush2.msra.mxu0 0.0
      %8099 = vmatprep.subr.mxu0 0.0
      %8100 = vmatpush2.msra.mxu0 0.0
      %8101 = vmatprep.subr.mxu0 0.0
      %8102 = vmatpush2.msra.mxu0 0.0
      %8103 = vmatprep.subr.mxu0 0.0
      %8104 = vmatpush2.msra.mxu0 0.0
      %8105 = vmatprep.subr.mxu0 0.0
      %8106 = vmatpush2.msra.mxu0 0.0
      %8107 = vmatprep.subr.mxu0 0.0
      %8108 = vmatpush2.msra.mxu0 0.0
      %8109 = vmatprep.subr.mxu0 0.0
      %8110 = vmatpush2.msra.mxu0 0.0
      %8111 = vmatprep.subr.mxu0 0.0
      %8112 = vmatpush2.msra.mxu0 0.0
      %8113 = vmatprep.mubr.f32.mxu0 0.0
      %8114 = vmatmul.mubr.f32.gmra.mxu0 %v7996
      %v8115 = vpop.f32.mrf.mxu0
      %v8116 = vadd.f32 0.0, %v8115
      %v8117 = vpop.f32.mrf.mxu0
      %8118 = vmatprep.mubr.f32.mxu0 0.0
      %8119 = vmatmul.mubr.f32.gmra.mxu0 %v7997
      %v8120 = vpop.f32.mrf.mxu0
      %v8121 = vadd.f32 0.0, %v8120
      %v8122 = vpop.f32.mrf.mxu0
      %8123 = vmatprep.mubr.f32.mxu0 0.0
      %8124 = vmatmul.mubr.f32.gmra.mxu0 %v7998
      %v8125 = vpop.f32.mrf.mxu0
      %v8126 = vadd.f32 0.0, %v8125
      %v8127 = vpop.f32.mrf.mxu0
      %8128 = vmatprep.mubr.f32.mxu0 0.0
      %8129 = vmatmul.mubr.f32.gmra.mxu0 %v7999
      %v8130 = vpop.f32.mrf.mxu0
      %v8131 = vadd.f32 0.0, %v8130
      %v8132 = vpop.f32.mrf.mxu0
      %8133 = vmatprep.mubr.f32.mxu0 0.0
      %8134 = vmatmul.mubr.f32.gmra.mxu0 %v8000
      %v8135 = vpop.f32.mrf.mxu0
      %v8136 = vadd.f32 0.0, %v8135
      %v8137 = vpop.f32.mrf.mxu0
      %8138 = vmatprep.mubr.f32.mxu0 0.0
      %8139 = vmatmul.mubr.f32.gmra.mxu0 %v8001
      %v8140 = vpop.f32.mrf.mxu0
      %v8141 = vadd.f32 0.0, %v8140
      %v8142 = vpop.f32.mrf.mxu0
      %8143 = vmatprep.mubr.f32.mxu0 0.0
      %8144 = vmatmul.mubr.f32.gmra.mxu0 %v8002
      %v8145 = vpop.f32.mrf.mxu0
      %v8146 = vadd.f32 0.0, %v8145
      %v8147 = vpop.f32.mrf.mxu0
      %8148 = vmatprep.mubr.f32.mxu0 0.0
      %8149 = vmatmul.mubr.f32.gmra.mxu0 %v8003
      %v8150 = vpop.f32.mrf.mxu0
      %v8151 = vadd.f32 0.0, %v8150
      %v8152 = vpop.f32.mrf.mxu0
      %8153 = vmatprep.mubr.f32.mxu0 0.0
      %8154 = vmatmul.mubr.f32.gmra.mxu0 %v8004
      %v8155 = vpop.f32.mrf.mxu0
      %v8156 = vadd.f32 0.0, %v8155
      %v8157 = vpop.f32.mrf.mxu0
      %8158 = vmatprep.mubr.f32.mxu0 0.0
      %8159 = vmatmul.mubr.f32.gmra.mxu0 %v8005
      %v8160 = vpop.f32.mrf.mxu0
      %v8161 = vadd.f32 0.0, %v8160
      %v8162 = vpop.f32.mrf.mxu0
      %8163 = vmatprep.mubr.f32.mxu0 0.0
      %8164 = vmatmul.mubr.f32.gmra.mxu0 %v8006
      %v8165 = vpop.f32.mrf.mxu0
      %v8166 = vadd.f32 0.0, %v8165
      %v8167 = vpop.f32.mrf.mxu0
      %8168 = vmatprep.mubr.f32.mxu0 0.0
      %8169 = vmatmul.mubr.f32.gmra.mxu0 %v8007
      %v8170 = vpop.f32.mrf.mxu0
      %v8171 = vadd.f32 0.0, %v8170
      %v8172 = vpop.f32.mrf.mxu0
      %8173 = vmatprep.mubr.f32.mxu0 0.0
      %8174 = vmatmul.mubr.f32.gmra.mxu0 %v8008
      %v8175 = vpop.f32.mrf.mxu0
      %v8176 = vadd.f32 0.0, %v8175
      %v8177 = vpop.f32.mrf.mxu0
      %8178 = vmatprep.mubr.f32.mxu0 0.0
      %8179 = vmatmul.mubr.f32.gmra.mxu0 %v8009
      %v8180 = vpop.f32.mrf.mxu0
      %v8181 = vadd.f32 0.0, %v8180
      %v8182 = vpop.f32.mrf.mxu0
      %8183 = vmatprep.mubr.f32.mxu0 0.0
      %8184 = vmatmul.mubr.f32.gmra.mxu0 %v8010
      %v8185 = vpop.f32.mrf.mxu0
      %v8186 = vadd.f32 0.0, %v8185
      %v8187 = vpop.f32.mrf.mxu0
      %8188 = vmatprep.mubr.f32.mxu0 0.0
      %8189 = vmatmul.mubr.f32.gmra.mxu0 %v8011
      %v8190 = vpop.f32.mrf.mxu0
      %v8191 = vadd.f32 0.0, %v8190
      %v8192 = vpop.f32.mrf.mxu0
      %8193 = vmatprep.mubr.f32.mxu0 0.0
      %8194 = vmatmul.mubr.f32.gmra.mxu0 %v8012
      %v8195 = vpop.f32.mrf.mxu0
      %v8196 = vadd.f32 0.0, %v8195
      %v8197 = vpop.f32.mrf.mxu0
      %8198 = vmatprep.mubr.f32.mxu0 0.0
      %8199 = vmatmul.mubr.f32.gmra.mxu0 %v8013
      %v8200 = vpop.f32.mrf.mxu0
      %v8201 = vadd.f32 0.0, %v8200
      %v8202 = vpop.f32.mrf.mxu0
      %8203 = vmatprep.mubr.f32.mxu0 0.0
      %8204 = vmatmul.mubr.f32.gmra.mxu0 %v8014
      %v8205 = vpop.f32.mrf.mxu0
      %v8206 = vadd.f32 0.0, %v8205
      %v8207 = vpop.f32.mrf.mxu0
      %8208 = vmatprep.mubr.f32.mxu0 0.0
      %8209 = vmatmul.mubr.f32.gmra.mxu0 %v8015
      %v8210 = vpop.f32.mrf.mxu0
      %v8211 = vadd.f32 0.0, %v8210
      %v8212 = vpop.f32.mrf.mxu0
      %8213 = vmatprep.mubr.f32.mxu0 0.0
      %8214 = vmatmul.mubr.f32.gmra.mxu0 %v8016
      %v8215 = vpop.f32.mrf.mxu0
      %v8216 = vadd.f32 0.0, %v8215
      %v8217 = vpop.f32.mrf.mxu0
      %8218 = vmatprep.mubr.f32.mxu0 0.0
      %8219 = vmatmul.mubr.f32.gmra.mxu0 %v8017
      %v8220 = vpop.f32.mrf.mxu0
      %v8221 = vadd.f32 0.0, %v8220
      %v8222 = vpop.f32.mrf.mxu0
      %8223 = vmatprep.mubr.f32.mxu0 0.0
      %8224 = vmatmul.mubr.f32.gmra.mxu0 %v8018
      %v8225 = vpop.f32.mrf.mxu0
      %v8226 = vadd.f32 0.0, %v8225
      %v8227 = vpop.f32.mrf.mxu0
      %8228 = vmatprep.mubr.f32.mxu0 0.0
      %8229 = vmatmul.mubr.f32.gmra.mxu0 %v8019
      %v8230 = vpop.f32.mrf.mxu0
      %v8231 = vadd.f32 0.0, %v8230
      %v8232 = vpop.f32.mrf.mxu0
      %8233 = vmatprep.mubr.f32.mxu0 0.0
      %8234 = vmatmul.mubr.f32.gmra.mxu0 %v8020
      %v8235 = vpop.f32.mrf.mxu0
      %v8236 = vadd.f32 0.0, %v8235
      %v8237 = vpop.f32.mrf.mxu0
      %8238 = vmatprep.mubr.f32.mxu0 0.0
      %8239 = vmatmul.mubr.f32.gmra.mxu0 %v8021
      %v8240 = vpop.f32.mrf.mxu0
      %v8241 = vadd.f32 0.0, %v8240
      %v8242 = vpop.f32.mrf.mxu0
      %8243 = vmatprep.mubr.f32.mxu0 0.0
      %8244 = vmatmul.mubr.f32.gmra.mxu0 %v8022
      %v8245 = vpop.f32.mrf.mxu0
      %v8246 = vadd.f32 0.0, %v8245
      %v8247 = vpop.f32.mrf.mxu0
      %8248 = vmatprep.mubr.f32.mxu0 0.0
      %8249 = vmatmul.mubr.f32.gmra.mxu0 %v8023
      %v8250 = vpop.f32.mrf.mxu0
      %v8251 = vadd.f32 0.0, %v8250
      %v8252 = vpop.f32.mrf.mxu0
      %8253 = vmatprep.mubr.f32.mxu0 0.0
      %8254 = vmatmul.mubr.f32.gmra.mxu0 %v8024
      %v8255 = vpop.f32.mrf.mxu0
      %v8256 = vadd.f32 0.0, %v8255
      %v8257 = vpop.f32.mrf.mxu0
      %8258 = vmatprep.mubr.f32.mxu0 0.0
      %8259 = vmatmul.mubr.f32.gmra.mxu0 %v8025
      %v8260 = vpop.f32.mrf.mxu0
      %v8261 = vadd.f32 0.0, %v8260
      %v8262 = vpop.f32.mrf.mxu0
      %8263 = vmatprep.mubr.f32.mxu0 0.0
      %8264 = vmatmul.mubr.f32.gmra.mxu0 %v8026
      %v8265 = vpop.f32.mrf.mxu0
      %v8266 = vadd.f32 0.0, %v8265
      %v8267 = vpop.f32.mrf.mxu0
      %8268 = vmatprep.mubr.f32.mxu0 0.0
      %8269 = vmatmul.mubr.f32.gmra.mxu0 %v8027
      %v8270 = vpop.f32.mrf.mxu0
      %v8271 = vadd.f32 0.0, %v8270
      %v8272 = vpop.f32.mrf.mxu0
      %8273 = vmatprep.mubr.f32.mxu0 0.0
      %8274 = vmatmul.mubr.f32.gmra.mxu0 %v8028
      %v8275 = vpop.f32.mrf.mxu0
      %v8276 = vadd.f32 0.0, %v8275
      %v8277 = vpop.f32.mrf.mxu0
      %8278 = vmatprep.mubr.f32.mxu0 0.0
      %8279 = vmatmul.mubr.f32.gmra.mxu0 %v8029
      %v8280 = vpop.f32.mrf.mxu0
      %v8281 = vadd.f32 0.0, %v8280
      %v8282 = vpop.f32.mrf.mxu0
      %8283 = vmatprep.mubr.f32.mxu0 0.0
      %8284 = vmatmul.mubr.f32.gmra.mxu0 %v8030
      %v8285 = vpop.f32.mrf.mxu0
      %v8286 = vadd.f32 0.0, %v8285
      %v8287 = vpop.f32.mrf.mxu0
      %8288 = vmatprep.mubr.f32.mxu0 0.0
      %8289 = vmatmul.mubr.f32.gmra.mxu0 %v8031
      %v8290 = vpop.f32.mrf.mxu0
      %v8291 = vadd.f32 0.0, %v8290
      %v8292 = vpop.f32.mrf.mxu0
      %8293 = vdwg.mxu0
      %v8294 = vadd.f32 %v7960, %v8116
      %v8295 = vadd.f32 %v7961, %v8121
      %v8296 = vadd.f32 %v7962, %v8126
      %v8297 = vadd.f32 %v7963, %v8131
      %v8298 = vadd.f32 %v7964, %v8136
      %v8299 = vadd.f32 %v7965, %v8141
      %v8300 = vadd.f32 %v7966, %v8146
      %v8301 = vadd.f32 %v7967, %v8151
      %v8302 = vadd.f32 %v7968, %v8156
      %v8303 = vadd.f32 %v7969, %v8161
      %v8304 = vadd.f32 %v7970, %v8166
      %v8305 = vadd.f32 %v7971, %v8171
      %v8306 = vadd.f32 %v7972, %v8176
      %v8307 = vadd.f32 %v7973, %v8181
      %v8308 = vadd.f32 %v7974, %v8186
      %v8309 = vadd.f32 %v7975, %v8191
      %v8310 = vadd.f32 %v7976, %v8196
      %v8311 = vadd.f32 %v7977, %v8201
      %v8312 = vadd.f32 %v7978, %v8206
      %v8313 = vadd.f32 %v7979, %v8211
      %v8314 = vadd.f32 %v7980, %v8216
      %v8315 = vadd.f32 %v7981, %v8221
      %v8316 = vadd.f32 %v7982, %v8226
      %v8317 = vadd.f32 %v7983, %v8231
      %v8318 = vadd.f32 %v7984, %v8236
      %v8319 = vadd.f32 %v7985, %v8241
      %v8320 = vadd.f32 %v7986, %v8246
      %v8321 = vadd.f32 %v7987, %v8251
      %v8322 = vadd.f32 %v7988, %v8256
      %v8323 = vadd.f32 %v7989, %v8261
      %v8324 = vadd.f32 %v7990, %v8266
      %v8325 = vadd.f32 %v7991, %v8271
      %v8326 = vadd.f32 %v7992, %v8276
      %v8327 = vadd.f32 %v7993, %v8281
      %v8328 = vadd.f32 %v7994, %v8286
      %v8329 = vadd.f32 %v7995, %v8291
      %8330 = vst [vmem:[%s433] sm:$0xff] %v8294
      %8331 = vst [vmem:[%s433 + $0x8] sm:$0xff] %v8295
      %8332 = vst [vmem:[%s433 + $0x10] sm:$0xff] %v8296
      %8333 = vst [vmem:[%s433 + $0x18] sm:$0xff] %v8297
      %8334 = vst [vmem:[%s433 + $0x20] sm:$0xff] %v8298
      %8335 = vst [vmem:[%s433 + $0x28] sm:$0xff] %v8299
      %8336 = vst [vmem:[%s433 + $0x30] sm:$0xff] %v8300
      %8337 = vst [vmem:[%s433 + $0x38] sm:$0xff] %v8301
      %8338 = vst [vmem:[%s433 + $0x40] sm:$0xff] %v8302
      %8339 = vst [vmem:[%s433 + $0x48] sm:$0xff] %v8303
      %8340 = vst [vmem:[%s433 + $0x50] sm:$0xff] %v8304
      %8341 = vst [vmem:[%s433 + $0x58] sm:$0xff] %v8305
      %8342 = vst [vmem:[%s433 + $0x60] sm:$0xff] %v8306
      %8343 = vst [vmem:[%s433 + $0x68] sm:$0xff] %v8307
      %8344 = vst [vmem:[%s433 + $0x70] sm:$0xff] %v8308
      %8345 = vst [vmem:[%s433 + $0x78] sm:$0xff] %v8309
      %8346 = vst [vmem:[%s433 + $0x80] sm:$0xff] %v8310
      %8347 = vst [vmem:[%s433 + $0x88] sm:$0xff] %v8311
      %8348 = vst [vmem:[%s433 + $0x90] sm:$0xff] %v8312
      %8349 = vst [vmem:[%s433 + $0x98] sm:$0xff] %v8313
      %8350 = vst [vmem:[%s433 + $0xa0] sm:$0xff] %v8314
      %8351 = vst [vmem:[%s433 + $0xa8] sm:$0xff] %v8315
      %8352 = vst [vmem:[%s433 + $0xb0] sm:$0xff] %v8316
      %8353 = vst [vmem:[%s433 + $0xb8] sm:$0xff] %v8317
      %8354 = vst [vmem:[%s433 + $0xc0] sm:$0xff] %v8318
      %8355 = vst [vmem:[%s433 + $0xc8] sm:$0xff] %v8319
      %8356 = vst [vmem:[%s433 + $0xd0] sm:$0xff] %v8320
      %8357 = vst [vmem:[%s433 + $0xd8] sm:$0xff] %v8321
      %8358 = vst [vmem:[%s433 + $0xe0] sm:$0xff] %v8322
      %8359 = vst [vmem:[%s433 + $0xe8] sm:$0xff] %v8323
      %8360 = vst [vmem:[%s433 + $0xf0] sm:$0xff] %v8324
      %8361 = vst [vmem:[%s433 + $0xf8] sm:$0xff] %v8325
      %8362 = vst [vmem:[%s433 + $0x100] sm:$0xff] %v8326
      %8363 = vst [vmem:[%s433 + $0x108] sm:$0xff] %v8327
      %8364 = vst [vmem:[%s433 + $0x110] sm:$0xff] %v8328
      %8365 = vst [vmem:[%s433 + $0x118] sm:$0xff] %v8329
      %v8366 = vld [vmem:[%s433] sm:$0xff]
      %v8367 = vld [vmem:[%s433 + $0x8] sm:$0xff]
      %v8368 = vld [vmem:[%s433 + $0x10] sm:$0xff]
      %v8369 = vld [vmem:[%s433 + $0x18] sm:$0xff]
      %v8370 = vld [vmem:[%s433 + $0x20] sm:$0xff]
      %v8371 = vld [vmem:[%s433 + $0x28] sm:$0xff]
      %v8372 = vld [vmem:[%s433 + $0x30] sm:$0xff]
      %v8373 = vld [vmem:[%s433 + $0x38] sm:$0xff]
      %v8374 = vld [vmem:[%s433 + $0x40] sm:$0xff]
      %v8375 = vld [vmem:[%s433 + $0x48] sm:$0xff]
      %v8376 = vld [vmem:[%s433 + $0x50] sm:$0xff]
      %v8377 = vld [vmem:[%s433 + $0x58] sm:$0xff]
      %v8378 = vld [vmem:[%s433 + $0x60] sm:$0xff]
      %v8379 = vld [vmem:[%s433 + $0x68] sm:$0xff]
      %v8380 = vld [vmem:[%s433 + $0x70] sm:$0xff]
      %v8381 = vld [vmem:[%s433 + $0x78] sm:$0xff]
      %v8382 = vld [vmem:[%s433 + $0x80] sm:$0xff]
      %v8383 = vld [vmem:[%s433 + $0x88] sm:$0xff]
      %v8384 = vld [vmem:[%s433 + $0x90] sm:$0xff]
      %v8385 = vld [vmem:[%s433 + $0x98] sm:$0xff]
      %v8386 = vld [vmem:[%s433 + $0xa0] sm:$0xff]
      %v8387 = vld [vmem:[%s433 + $0xa8] sm:$0xff]
      %v8388 = vld [vmem:[%s433 + $0xb0] sm:$0xff]
      %v8389 = vld [vmem:[%s433 + $0xb8] sm:$0xff]
      %v8390 = vld [vmem:[%s433 + $0xc0] sm:$0xff]
      %v8391 = vld [vmem:[%s433 + $0xc8] sm:$0xff]
      %v8392 = vld [vmem:[%s433 + $0xd0] sm:$0xff]
      %v8393 = vld [vmem:[%s433 + $0xd8] sm:$0xff]
      %v8394 = vld [vmem:[%s433 + $0xe0] sm:$0xff]
      %v8395 = vld [vmem:[%s433 + $0xe8] sm:$0xff]
      %v8396 = vld [vmem:[%s433 + $0xf0] sm:$0xff]
      %v8397 = vld [vmem:[%s433 + $0xf8] sm:$0xff]
      %v8398 = vld [vmem:[%s433 + $0x100] sm:$0xff]
      %v8399 = vld [vmem:[%s433 + $0x108] sm:$0xff]
      %v8400 = vld [vmem:[%s433 + $0x110] sm:$0xff]
      %v8401 = vld [vmem:[%s433 + $0x118] sm:$0xff]
      %v8402 = vld [vmem:[#allocation3 + $0x14] sm:$0xff]
      %v8403 = vld [vmem:[#allocation3 + $0x1c] sm:$0xff]
      %v8404 = vld [vmem:[#allocation3 + $0x24] sm:$0xff]
      %v8405 = vld [vmem:[#allocation3 + $0x2c] sm:$0xff]
      %v8406 = vld [vmem:[#allocation3 + $0x34] sm:$0xff]
      %v8407 = vld [vmem:[#allocation3 + $0x3c] sm:$0xff]
      %v8408 = vld [vmem:[#allocation3 + $0x44] sm:$0xff]
      %v8409 = vld [vmem:[#allocation3 + $0x4c] sm:$0xff]
      %v8410 = vld [vmem:[#allocation3 + $0x54] sm:$0xff]
      %v8411 = vld [vmem:[#allocation3 + $0x5c] sm:$0xff]
      %v8412 = vld [vmem:[#allocation3 + $0x64] sm:$0xff]
      %v8413 = vld [vmem:[#allocation3 + $0x6c] sm:$0xff]
      %v8414 = vld [vmem:[#allocation3 + $0x74] sm:$0xff]
      %v8415 = vld [vmem:[#allocation3 + $0x7c] sm:$0xff]
      %v8416 = vld [vmem:[#allocation3 + $0x84] sm:$0xff]
      %v8417 = vld [vmem:[#allocation3 + $0x8c] sm:$0xff]
      %v8418 = vld [vmem:[#allocation3 + $0x94] sm:$0xff]
      %v8419 = vld [vmem:[#allocation3 + $0x9c] sm:$0xff]
      %v8420 = vld [vmem:[#allocation3 + $0xa4] sm:$0xff]
      %v8421 = vld [vmem:[#allocation3 + $0xac] sm:$0xff]
      %v8422 = vld [vmem:[#allocation3 + $0xb4] sm:$0xff]
      %v8423 = vld [vmem:[#allocation3 + $0xbc] sm:$0xff]
      %v8424 = vld [vmem:[#allocation3 + $0xc4] sm:$0xff]
      %v8425 = vld [vmem:[#allocation3 + $0xcc] sm:$0xff]
      %v8426 = vld [vmem:[#allocation3 + $0xd4] sm:$0xff]
      %v8427 = vld [vmem:[#allocation3 + $0xdc] sm:$0xff]
      %v8428 = vld [vmem:[#allocation3 + $0xe4] sm:$0xff]
      %v8429 = vld [vmem:[#allocation3 + $0xec] sm:$0xff]
      %v8430 = vld [vmem:[#allocation3 + $0xf4] sm:$0xff]
      %v8431 = vld [vmem:[#allocation3 + $0xfc] sm:$0xff]
      %v8432 = vld [vmem:[#allocation3 + $0x104] sm:$0xff]
      %v8433 = vld [vmem:[#allocation3 + $0x10c] sm:$0xff]
      %v8434 = vld [vmem:[#allocation3 + $0x114] sm:$0xff]
      %v8435 = vld [vmem:[#allocation3 + $0x11c] sm:$0xff]
      %v8436 = vld [vmem:[#allocation3 + $0x124] sm:$0xff]
      %v8437 = vld [vmem:[#allocation3 + $0x12c] sm:$0xff]
      %s8438 = scalar_lea.vmem %s10, 640
      %v8439 = vld [vmem:[%s8438] sm:$0xff]
      %v8440 = vld [vmem:[%s8438 + $0x8] sm:$0xff]
      %v8441 = vld [vmem:[%s8438 + $0x10] sm:$0xff]
      %v8442 = vld [vmem:[%s8438 + $0x18] sm:$0xff]
      %v8443 = vld [vmem:[%s8438 + $0x20] sm:$0xff]
      %v8444 = vld [vmem:[%s8438 + $0x28] sm:$0xff]
      %v8445 = vld [vmem:[%s8438 + $0x30] sm:$0xff]
      %v8446 = vld [vmem:[%s8438 + $0x38] sm:$0xff]
      %v8447 = vld [vmem:[%s8438 + $0x40] sm:$0xff]
      %v8448 = vld [vmem:[%s8438 + $0x48] sm:$0xff]
      %v8449 = vld [vmem:[%s8438 + $0x50] sm:$0xff]
      %v8450 = vld [vmem:[%s8438 + $0x58] sm:$0xff]
      %v8451 = vld [vmem:[%s8438 + $0x60] sm:$0xff]
      %v8452 = vld [vmem:[%s8438 + $0x68] sm:$0xff]
      %v8453 = vld [vmem:[%s8438 + $0x70] sm:$0xff]
      %v8454 = vld [vmem:[%s8438 + $0x78] sm:$0xff]
      %8455 = vmatprep.subr.mxu0 0.0
      %8456 = vmatpush1.msra.mxu0 %v8454
      %8457 = vmatprep.subr.mxu0 0.0
      %8458 = vmatpush1.msra.mxu0 %v8453
      %8459 = vmatprep.subr.mxu0 0.0
      %8460 = vmatpush1.msra.mxu0 %v8452
      %8461 = vmatprep.subr.mxu0 0.0
      %8462 = vmatpush1.msra.mxu0 %v8451
      %8463 = vmatprep.subr.mxu0 0.0
      %8464 = vmatpush1.msra.mxu0 %v8450
      %8465 = vmatprep.subr.mxu0 0.0
      %8466 = vmatpush1.msra.mxu0 %v8449
      %8467 = vmatprep.subr.mxu0 0.0
      %8468 = vmatpush1.msra.mxu0 %v8448
      %8469 = vmatprep.subr.mxu0 0.0
      %8470 = vmatpush1.msra.mxu0 %v8447
      %8471 = vmatprep.subr.mxu0 0.0
      %8472 = vmatpush1.msra.mxu0 %v8446
      %8473 = vmatprep.subr.mxu0 0.0
      %8474 = vmatpush1.msra.mxu0 %v8445
      %8475 = vmatprep.subr.mxu0 0.0
      %8476 = vmatpush1.msra.mxu0 %v8444
      %8477 = vmatprep.subr.mxu0 0.0
      %8478 = vmatpush1.msra.mxu0 %v8443
      %8479 = vmatprep.subr.mxu0 0.0
      %8480 = vmatpush1.msra.mxu0 %v8442
      %8481 = vmatprep.subr.mxu0 0.0
      %8482 = vmatpush1.msra.mxu0 %v8441
      %8483 = vmatprep.subr.mxu0 0.0
      %8484 = vmatpush1.msra.mxu0 %v8440
      %8485 = vmatprep.subr.mxu0 0.0
      %8486 = vmatpush1.msra.mxu0 %v8439
      %8487 = vmatprep.subr.mxu0 0.0
      %8488 = vmatpush2.msra.mxu0 0.0
      %8489 = vmatprep.subr.mxu0 0.0
      %8490 = vmatpush2.msra.mxu0 0.0
      %8491 = vmatprep.subr.mxu0 0.0
      %8492 = vmatpush2.msra.mxu0 0.0
      %8493 = vmatprep.subr.mxu0 0.0
      %8494 = vmatpush2.msra.mxu0 0.0
      %8495 = vmatprep.subr.mxu0 0.0
      %8496 = vmatpush2.msra.mxu0 0.0
      %8497 = vmatprep.subr.mxu0 0.0
      %8498 = vmatpush2.msra.mxu0 0.0
      %8499 = vmatprep.subr.mxu0 0.0
      %8500 = vmatpush2.msra.mxu0 0.0
      %8501 = vmatprep.subr.mxu0 0.0
      %8502 = vmatpush2.msra.mxu0 0.0
      %8503 = vmatprep.subr.mxu0 0.0
      %8504 = vmatpush2.msra.mxu0 0.0
      %8505 = vmatprep.subr.mxu0 0.0
      %8506 = vmatpush2.msra.mxu0 0.0
      %8507 = vmatprep.subr.mxu0 0.0
      %8508 = vmatpush2.msra.mxu0 0.0
      %8509 = vmatprep.subr.mxu0 0.0
      %8510 = vmatpush2.msra.mxu0 0.0
      %8511 = vmatprep.subr.mxu0 0.0
      %8512 = vmatpush2.msra.mxu0 0.0
      %8513 = vmatprep.subr.mxu0 0.0
      %8514 = vmatpush2.msra.mxu0 0.0
      %8515 = vmatprep.subr.mxu0 0.0
      %8516 = vmatpush2.msra.mxu0 0.0
      %8517 = vmatprep.subr.mxu0 0.0
      %8518 = vmatpush2.msra.mxu0 0.0
      %8519 = vmatprep.mubr.f32.mxu0 0.0
      %8520 = vmatmul.mubr.f32.gmra.mxu0 %v8402
      %v8521 = vpop.f32.mrf.mxu0
      %v8522 = vadd.f32 0.0, %v8521
      %v8523 = vpop.f32.mrf.mxu0
      %8524 = vmatprep.mubr.f32.mxu0 0.0
      %8525 = vmatmul.mubr.f32.gmra.mxu0 %v8403
      %v8526 = vpop.f32.mrf.mxu0
      %v8527 = vadd.f32 0.0, %v8526
      %v8528 = vpop.f32.mrf.mxu0
      %8529 = vmatprep.mubr.f32.mxu0 0.0
      %8530 = vmatmul.mubr.f32.gmra.mxu0 %v8404
      %v8531 = vpop.f32.mrf.mxu0
      %v8532 = vadd.f32 0.0, %v8531
      %v8533 = vpop.f32.mrf.mxu0
      %8534 = vmatprep.mubr.f32.mxu0 0.0
      %8535 = vmatmul.mubr.f32.gmra.mxu0 %v8405
      %v8536 = vpop.f32.mrf.mxu0
      %v8537 = vadd.f32 0.0, %v8536
      %v8538 = vpop.f32.mrf.mxu0
      %8539 = vmatprep.mubr.f32.mxu0 0.0
      %8540 = vmatmul.mubr.f32.gmra.mxu0 %v8406
      %v8541 = vpop.f32.mrf.mxu0
      %v8542 = vadd.f32 0.0, %v8541
      %v8543 = vpop.f32.mrf.mxu0
      %8544 = vmatprep.mubr.f32.mxu0 0.0
      %8545 = vmatmul.mubr.f32.gmra.mxu0 %v8407
      %v8546 = vpop.f32.mrf.mxu0
      %v8547 = vadd.f32 0.0, %v8546
      %v8548 = vpop.f32.mrf.mxu0
      %8549 = vmatprep.mubr.f32.mxu0 0.0
      %8550 = vmatmul.mubr.f32.gmra.mxu0 %v8408
      %v8551 = vpop.f32.mrf.mxu0
      %v8552 = vadd.f32 0.0, %v8551
      %v8553 = vpop.f32.mrf.mxu0
      %8554 = vmatprep.mubr.f32.mxu0 0.0
      %8555 = vmatmul.mubr.f32.gmra.mxu0 %v8409
      %v8556 = vpop.f32.mrf.mxu0
      %v8557 = vadd.f32 0.0, %v8556
      %v8558 = vpop.f32.mrf.mxu0
      %8559 = vmatprep.mubr.f32.mxu0 0.0
      %8560 = vmatmul.mubr.f32.gmra.mxu0 %v8410
      %v8561 = vpop.f32.mrf.mxu0
      %v8562 = vadd.f32 0.0, %v8561
      %v8563 = vpop.f32.mrf.mxu0
      %8564 = vmatprep.mubr.f32.mxu0 0.0
      %8565 = vmatmul.mubr.f32.gmra.mxu0 %v8411
      %v8566 = vpop.f32.mrf.mxu0
      %v8567 = vadd.f32 0.0, %v8566
      %v8568 = vpop.f32.mrf.mxu0
      %8569 = vmatprep.mubr.f32.mxu0 0.0
      %8570 = vmatmul.mubr.f32.gmra.mxu0 %v8412
      %v8571 = vpop.f32.mrf.mxu0
      %v8572 = vadd.f32 0.0, %v8571
      %v8573 = vpop.f32.mrf.mxu0
      %8574 = vmatprep.mubr.f32.mxu0 0.0
      %8575 = vmatmul.mubr.f32.gmra.mxu0 %v8413
      %v8576 = vpop.f32.mrf.mxu0
      %v8577 = vadd.f32 0.0, %v8576
      %v8578 = vpop.f32.mrf.mxu0
      %8579 = vmatprep.mubr.f32.mxu0 0.0
      %8580 = vmatmul.mubr.f32.gmra.mxu0 %v8414
      %v8581 = vpop.f32.mrf.mxu0
      %v8582 = vadd.f32 0.0, %v8581
      %v8583 = vpop.f32.mrf.mxu0
      %8584 = vmatprep.mubr.f32.mxu0 0.0
      %8585 = vmatmul.mubr.f32.gmra.mxu0 %v8415
      %v8586 = vpop.f32.mrf.mxu0
      %v8587 = vadd.f32 0.0, %v8586
      %v8588 = vpop.f32.mrf.mxu0
      %8589 = vmatprep.mubr.f32.mxu0 0.0
      %8590 = vmatmul.mubr.f32.gmra.mxu0 %v8416
      %v8591 = vpop.f32.mrf.mxu0
      %v8592 = vadd.f32 0.0, %v8591
      %v8593 = vpop.f32.mrf.mxu0
      %8594 = vmatprep.mubr.f32.mxu0 0.0
      %8595 = vmatmul.mubr.f32.gmra.mxu0 %v8417
      %v8596 = vpop.f32.mrf.mxu0
      %v8597 = vadd.f32 0.0, %v8596
      %v8598 = vpop.f32.mrf.mxu0
      %8599 = vmatprep.mubr.f32.mxu0 0.0
      %8600 = vmatmul.mubr.f32.gmra.mxu0 %v8418
      %v8601 = vpop.f32.mrf.mxu0
      %v8602 = vadd.f32 0.0, %v8601
      %v8603 = vpop.f32.mrf.mxu0
      %8604 = vmatprep.mubr.f32.mxu0 0.0
      %8605 = vmatmul.mubr.f32.gmra.mxu0 %v8419
      %v8606 = vpop.f32.mrf.mxu0
      %v8607 = vadd.f32 0.0, %v8606
      %v8608 = vpop.f32.mrf.mxu0
      %8609 = vmatprep.mubr.f32.mxu0 0.0
      %8610 = vmatmul.mubr.f32.gmra.mxu0 %v8420
      %v8611 = vpop.f32.mrf.mxu0
      %v8612 = vadd.f32 0.0, %v8611
      %v8613 = vpop.f32.mrf.mxu0
      %8614 = vmatprep.mubr.f32.mxu0 0.0
      %8615 = vmatmul.mubr.f32.gmra.mxu0 %v8421
      %v8616 = vpop.f32.mrf.mxu0
      %v8617 = vadd.f32 0.0, %v8616
      %v8618 = vpop.f32.mrf.mxu0
      %8619 = vmatprep.mubr.f32.mxu0 0.0
      %8620 = vmatmul.mubr.f32.gmra.mxu0 %v8422
      %v8621 = vpop.f32.mrf.mxu0
      %v8622 = vadd.f32 0.0, %v8621
      %v8623 = vpop.f32.mrf.mxu0
      %8624 = vmatprep.mubr.f32.mxu0 0.0
      %8625 = vmatmul.mubr.f32.gmra.mxu0 %v8423
      %v8626 = vpop.f32.mrf.mxu0
      %v8627 = vadd.f32 0.0, %v8626
      %v8628 = vpop.f32.mrf.mxu0
      %8629 = vmatprep.mubr.f32.mxu0 0.0
      %8630 = vmatmul.mubr.f32.gmra.mxu0 %v8424
      %v8631 = vpop.f32.mrf.mxu0
      %v8632 = vadd.f32 0.0, %v8631
      %v8633 = vpop.f32.mrf.mxu0
      %8634 = vmatprep.mubr.f32.mxu0 0.0
      %8635 = vmatmul.mubr.f32.gmra.mxu0 %v8425
      %v8636 = vpop.f32.mrf.mxu0
      %v8637 = vadd.f32 0.0, %v8636
      %v8638 = vpop.f32.mrf.mxu0
      %8639 = vmatprep.mubr.f32.mxu0 0.0
      %8640 = vmatmul.mubr.f32.gmra.mxu0 %v8426
      %v8641 = vpop.f32.mrf.mxu0
      %v8642 = vadd.f32 0.0, %v8641
      %v8643 = vpop.f32.mrf.mxu0
      %8644 = vmatprep.mubr.f32.mxu0 0.0
      %8645 = vmatmul.mubr.f32.gmra.mxu0 %v8427
      %v8646 = vpop.f32.mrf.mxu0
      %v8647 = vadd.f32 0.0, %v8646
      %v8648 = vpop.f32.mrf.mxu0
      %8649 = vmatprep.mubr.f32.mxu0 0.0
      %8650 = vmatmul.mubr.f32.gmra.mxu0 %v8428
      %v8651 = vpop.f32.mrf.mxu0
      %v8652 = vadd.f32 0.0, %v8651
      %v8653 = vpop.f32.mrf.mxu0
      %8654 = vmatprep.mubr.f32.mxu0 0.0
      %8655 = vmatmul.mubr.f32.gmra.mxu0 %v8429
      %v8656 = vpop.f32.mrf.mxu0
      %v8657 = vadd.f32 0.0, %v8656
      %v8658 = vpop.f32.mrf.mxu0
      %8659 = vmatprep.mubr.f32.mxu0 0.0
      %8660 = vmatmul.mubr.f32.gmra.mxu0 %v8430
      %v8661 = vpop.f32.mrf.mxu0
      %v8662 = vadd.f32 0.0, %v8661
      %v8663 = vpop.f32.mrf.mxu0
      %8664 = vmatprep.mubr.f32.mxu0 0.0
      %8665 = vmatmul.mubr.f32.gmra.mxu0 %v8431
      %v8666 = vpop.f32.mrf.mxu0
      %v8667 = vadd.f32 0.0, %v8666
      %v8668 = vpop.f32.mrf.mxu0
      %8669 = vmatprep.mubr.f32.mxu0 0.0
      %8670 = vmatmul.mubr.f32.gmra.mxu0 %v8432
      %v8671 = vpop.f32.mrf.mxu0
      %v8672 = vadd.f32 0.0, %v8671
      %v8673 = vpop.f32.mrf.mxu0
      %8674 = vmatprep.mubr.f32.mxu0 0.0
      %8675 = vmatmul.mubr.f32.gmra.mxu0 %v8433
      %v8676 = vpop.f32.mrf.mxu0
      %v8677 = vadd.f32 0.0, %v8676
      %v8678 = vpop.f32.mrf.mxu0
      %8679 = vmatprep.mubr.f32.mxu0 0.0
      %8680 = vmatmul.mubr.f32.gmra.mxu0 %v8434
      %v8681 = vpop.f32.mrf.mxu0
      %v8682 = vadd.f32 0.0, %v8681
      %v8683 = vpop.f32.mrf.mxu0
      %8684 = vmatprep.mubr.f32.mxu0 0.0
      %8685 = vmatmul.mubr.f32.gmra.mxu0 %v8435
      %v8686 = vpop.f32.mrf.mxu0
      %v8687 = vadd.f32 0.0, %v8686
      %v8688 = vpop.f32.mrf.mxu0
      %8689 = vmatprep.mubr.f32.mxu0 0.0
      %8690 = vmatmul.mubr.f32.gmra.mxu0 %v8436
      %v8691 = vpop.f32.mrf.mxu0
      %v8692 = vadd.f32 0.0, %v8691
      %v8693 = vpop.f32.mrf.mxu0
      %8694 = vmatprep.mubr.f32.mxu0 0.0
      %8695 = vmatmul.mubr.f32.gmra.mxu0 %v8437
      %v8696 = vpop.f32.mrf.mxu0
      %v8697 = vadd.f32 0.0, %v8696
      %v8698 = vpop.f32.mrf.mxu0
      %8699 = vdwg.mxu0
      %v8700 = vadd.f32 %v8366, %v8522
      %v8701 = vadd.f32 %v8367, %v8527
      %v8702 = vadd.f32 %v8368, %v8532
      %v8703 = vadd.f32 %v8369, %v8537
      %v8704 = vadd.f32 %v8370, %v8542
      %v8705 = vadd.f32 %v8371, %v8547
      %v8706 = vadd.f32 %v8372, %v8552
      %v8707 = vadd.f32 %v8373, %v8557
      %v8708 = vadd.f32 %v8374, %v8562
      %v8709 = vadd.f32 %v8375, %v8567
      %v8710 = vadd.f32 %v8376, %v8572
      %v8711 = vadd.f32 %v8377, %v8577
      %v8712 = vadd.f32 %v8378, %v8582
      %v8713 = vadd.f32 %v8379, %v8587
      %v8714 = vadd.f32 %v8380, %v8592
      %v8715 = vadd.f32 %v8381, %v8597
      %v8716 = vadd.f32 %v8382, %v8602
      %v8717 = vadd.f32 %v8383, %v8607
      %v8718 = vadd.f32 %v8384, %v8612
      %v8719 = vadd.f32 %v8385, %v8617
      %v8720 = vadd.f32 %v8386, %v8622
      %v8721 = vadd.f32 %v8387, %v8627
      %v8722 = vadd.f32 %v8388, %v8632
      %v8723 = vadd.f32 %v8389, %v8637
      %v8724 = vadd.f32 %v8390, %v8642
      %v8725 = vadd.f32 %v8391, %v8647
      %v8726 = vadd.f32 %v8392, %v8652
      %v8727 = vadd.f32 %v8393, %v8657
      %v8728 = vadd.f32 %v8394, %v8662
      %v8729 = vadd.f32 %v8395, %v8667
      %v8730 = vadd.f32 %v8396, %v8672
      %v8731 = vadd.f32 %v8397, %v8677
      %v8732 = vadd.f32 %v8398, %v8682
      %v8733 = vadd.f32 %v8399, %v8687
      %v8734 = vadd.f32 %v8400, %v8692
      %v8735 = vadd.f32 %v8401, %v8697
      %8736 = vst [vmem:[%s433] sm:$0xff] %v8700
      %8737 = vst [vmem:[%s433 + $0x8] sm:$0xff] %v8701
      %8738 = vst [vmem:[%s433 + $0x10] sm:$0xff] %v8702
      %8739 = vst [vmem:[%s433 + $0x18] sm:$0xff] %v8703
      %8740 = vst [vmem:[%s433 + $0x20] sm:$0xff] %v8704
      %8741 = vst [vmem:[%s433 + $0x28] sm:$0xff] %v8705
      %8742 = vst [vmem:[%s433 + $0x30] sm:$0xff] %v8706
      %8743 = vst [vmem:[%s433 + $0x38] sm:$0xff] %v8707
      %8744 = vst [vmem:[%s433 + $0x40] sm:$0xff] %v8708
      %8745 = vst [vmem:[%s433 + $0x48] sm:$0xff] %v8709
      %8746 = vst [vmem:[%s433 + $0x50] sm:$0xff] %v8710
      %8747 = vst [vmem:[%s433 + $0x58] sm:$0xff] %v8711
      %8748 = vst [vmem:[%s433 + $0x60] sm:$0xff] %v8712
      %8749 = vst [vmem:[%s433 + $0x68] sm:$0xff] %v8713
      %8750 = vst [vmem:[%s433 + $0x70] sm:$0xff] %v8714
      %8751 = vst [vmem:[%s433 + $0x78] sm:$0xff] %v8715
      %8752 = vst [vmem:[%s433 + $0x80] sm:$0xff] %v8716
      %8753 = vst [vmem:[%s433 + $0x88] sm:$0xff] %v8717
      %8754 = vst [vmem:[%s433 + $0x90] sm:$0xff] %v8718
      %8755 = vst [vmem:[%s433 + $0x98] sm:$0xff] %v8719
      %8756 = vst [vmem:[%s433 + $0xa0] sm:$0xff] %v8720
      %8757 = vst [vmem:[%s433 + $0xa8] sm:$0xff] %v8721
      %8758 = vst [vmem:[%s433 + $0xb0] sm:$0xff] %v8722
      %8759 = vst [vmem:[%s433 + $0xb8] sm:$0xff] %v8723
      %8760 = vst [vmem:[%s433 + $0xc0] sm:$0xff] %v8724
      %8761 = vst [vmem:[%s433 + $0xc8] sm:$0xff] %v8725
      %8762 = vst [vmem:[%s433 + $0xd0] sm:$0xff] %v8726
      %8763 = vst [vmem:[%s433 + $0xd8] sm:$0xff] %v8727
      %8764 = vst [vmem:[%s433 + $0xe0] sm:$0xff] %v8728
      %8765 = vst [vmem:[%s433 + $0xe8] sm:$0xff] %v8729
      %8766 = vst [vmem:[%s433 + $0xf0] sm:$0xff] %v8730
      %8767 = vst [vmem:[%s433 + $0xf8] sm:$0xff] %v8731
      %8768 = vst [vmem:[%s433 + $0x100] sm:$0xff] %v8732
      %8769 = vst [vmem:[%s433 + $0x108] sm:$0xff] %v8733
      %8770 = vst [vmem:[%s433 + $0x110] sm:$0xff] %v8734
      %8771 = vst [vmem:[%s433 + $0x118] sm:$0xff] %v8735
      %v8772 = vld [vmem:[%s433] sm:$0xff]
      %v8773 = vld [vmem:[%s433 + $0x8] sm:$0xff]
      %v8774 = vld [vmem:[%s433 + $0x10] sm:$0xff]
      %v8775 = vld [vmem:[%s433 + $0x18] sm:$0xff]
      %v8776 = vld [vmem:[%s433 + $0x20] sm:$0xff]
      %v8777 = vld [vmem:[%s433 + $0x28] sm:$0xff]
      %v8778 = vld [vmem:[%s433 + $0x30] sm:$0xff]
      %v8779 = vld [vmem:[%s433 + $0x38] sm:$0xff]
      %v8780 = vld [vmem:[%s433 + $0x40] sm:$0xff]
      %v8781 = vld [vmem:[%s433 + $0x48] sm:$0xff]
      %v8782 = vld [vmem:[%s433 + $0x50] sm:$0xff]
      %v8783 = vld [vmem:[%s433 + $0x58] sm:$0xff]
      %v8784 = vld [vmem:[%s433 + $0x60] sm:$0xff]
      %v8785 = vld [vmem:[%s433 + $0x68] sm:$0xff]
      %v8786 = vld [vmem:[%s433 + $0x70] sm:$0xff]
      %v8787 = vld [vmem:[%s433 + $0x78] sm:$0xff]
      %v8788 = vld [vmem:[%s433 + $0x80] sm:$0xff]
      %v8789 = vld [vmem:[%s433 + $0x88] sm:$0xff]
      %v8790 = vld [vmem:[%s433 + $0x90] sm:$0xff]
      %v8791 = vld [vmem:[%s433 + $0x98] sm:$0xff]
      %v8792 = vld [vmem:[%s433 + $0xa0] sm:$0xff]
      %v8793 = vld [vmem:[%s433 + $0xa8] sm:$0xff]
      %v8794 = vld [vmem:[%s433 + $0xb0] sm:$0xff]
      %v8795 = vld [vmem:[%s433 + $0xb8] sm:$0xff]
      %v8796 = vld [vmem:[%s433 + $0xc0] sm:$0xff]
      %v8797 = vld [vmem:[%s433 + $0xc8] sm:$0xff]
      %v8798 = vld [vmem:[%s433 + $0xd0] sm:$0xff]
      %v8799 = vld [vmem:[%s433 + $0xd8] sm:$0xff]
      %v8800 = vld [vmem:[%s433 + $0xe0] sm:$0xff]
      %v8801 = vld [vmem:[%s433 + $0xe8] sm:$0xff]
      %v8802 = vld [vmem:[%s433 + $0xf0] sm:$0xff]
      %v8803 = vld [vmem:[%s433 + $0xf8] sm:$0xff]
      %v8804 = vld [vmem:[%s433 + $0x100] sm:$0xff]
      %v8805 = vld [vmem:[%s433 + $0x108] sm:$0xff]
      %v8806 = vld [vmem:[%s433 + $0x110] sm:$0xff]
      %v8807 = vld [vmem:[%s433 + $0x118] sm:$0xff]
      %v8808 = vld [vmem:[#allocation3 + $0x24] sm:$0xff]
      %v8809 = vld [vmem:[#allocation3 + $0x2c] sm:$0xff]
      %v8810 = vld [vmem:[#allocation3 + $0x34] sm:$0xff]
      %v8811 = vld [vmem:[#allocation3 + $0x3c] sm:$0xff]
      %v8812 = vld [vmem:[#allocation3 + $0x44] sm:$0xff]
      %v8813 = vld [vmem:[#allocation3 + $0x4c] sm:$0xff]
      %v8814 = vld [vmem:[#allocation3 + $0x54] sm:$0xff]
      %v8815 = vld [vmem:[#allocation3 + $0x5c] sm:$0xff]
      %v8816 = vld [vmem:[#allocation3 + $0x64] sm:$0xff]
      %v8817 = vld [vmem:[#allocation3 + $0x6c] sm:$0xff]
      %v8818 = vld [vmem:[#allocation3 + $0x74] sm:$0xff]
      %v8819 = vld [vmem:[#allocation3 + $0x7c] sm:$0xff]
      %v8820 = vld [vmem:[#allocation3 + $0x84] sm:$0xff]
      %v8821 = vld [vmem:[#allocation3 + $0x8c] sm:$0xff]
      %v8822 = vld [vmem:[#allocation3 + $0x94] sm:$0xff]
      %v8823 = vld [vmem:[#allocation3 + $0x9c] sm:$0xff]
      %v8824 = vld [vmem:[#allocation3 + $0xa4] sm:$0xff]
      %v8825 = vld [vmem:[#allocation3 + $0xac] sm:$0xff]
      %v8826 = vld [vmem:[#allocation3 + $0xb4] sm:$0xff]
      %v8827 = vld [vmem:[#allocation3 + $0xbc] sm:$0xff]
      %v8828 = vld [vmem:[#allocation3 + $0xc4] sm:$0xff]
      %v8829 = vld [vmem:[#allocation3 + $0xcc] sm:$0xff]
      %v8830 = vld [vmem:[#allocation3 + $0xd4] sm:$0xff]
      %v8831 = vld [vmem:[#allocation3 + $0xdc] sm:$0xff]
      %v8832 = vld [vmem:[#allocation3 + $0xe4] sm:$0xff]
      %v8833 = vld [vmem:[#allocation3 + $0xec] sm:$0xff]
      %v8834 = vld [vmem:[#allocation3 + $0xf4] sm:$0xff]
      %v8835 = vld [vmem:[#allocation3 + $0xfc] sm:$0xff]
      %v8836 = vld [vmem:[#allocation3 + $0x104] sm:$0xff]
      %v8837 = vld [vmem:[#allocation3 + $0x10c] sm:$0xff]
      %v8838 = vld [vmem:[#allocation3 + $0x114] sm:$0xff]
      %v8839 = vld [vmem:[#allocation3 + $0x11c] sm:$0xff]
      %v8840 = vld [vmem:[#allocation3 + $0x124] sm:$0xff]
      %v8841 = vld [vmem:[#allocation3 + $0x12c] sm:$0xff]
      %v8842 = vld [vmem:[#allocation3 + $0x134] sm:$0xff]
      %v8843 = vld [vmem:[#allocation3 + $0x13c] sm:$0xff]
      %s8844 = scalar_lea.vmem %s10, 768
      %v8845 = vld [vmem:[%s8844] sm:$0xff]
      %v8846 = vld [vmem:[%s8844 + $0x8] sm:$0xff]
      %v8847 = vld [vmem:[%s8844 + $0x10] sm:$0xff]
      %v8848 = vld [vmem:[%s8844 + $0x18] sm:$0xff]
      %v8849 = vld [vmem:[%s8844 + $0x20] sm:$0xff]
      %v8850 = vld [vmem:[%s8844 + $0x28] sm:$0xff]
      %v8851 = vld [vmem:[%s8844 + $0x30] sm:$0xff]
      %v8852 = vld [vmem:[%s8844 + $0x38] sm:$0xff]
      %v8853 = vld [vmem:[%s8844 + $0x40] sm:$0xff]
      %v8854 = vld [vmem:[%s8844 + $0x48] sm:$0xff]
      %v8855 = vld [vmem:[%s8844 + $0x50] sm:$0xff]
      %v8856 = vld [vmem:[%s8844 + $0x58] sm:$0xff]
      %v8857 = vld [vmem:[%s8844 + $0x60] sm:$0xff]
      %v8858 = vld [vmem:[%s8844 + $0x68] sm:$0xff]
      %v8859 = vld [vmem:[%s8844 + $0x70] sm:$0xff]
      %v8860 = vld [vmem:[%s8844 + $0x78] sm:$0xff]
      %8861 = vmatprep.subr.mxu0 0.0
      %8862 = vmatpush1.msra.mxu0 %v8860
      %8863 = vmatprep.subr.mxu0 0.0
      %8864 = vmatpush1.msra.mxu0 %v8859
      %8865 = vmatprep.subr.mxu0 0.0
      %8866 = vmatpush1.msra.mxu0 %v8858
      %8867 = vmatprep.subr.mxu0 0.0
      %8868 = vmatpush1.msra.mxu0 %v8857
      %8869 = vmatprep.subr.mxu0 0.0
      %8870 = vmatpush1.msra.mxu0 %v8856
      %8871 = vmatprep.subr.mxu0 0.0
      %8872 = vmatpush1.msra.mxu0 %v8855
      %8873 = vmatprep.subr.mxu0 0.0
      %8874 = vmatpush1.msra.mxu0 %v8854
      %8875 = vmatprep.subr.mxu0 0.0
      %8876 = vmatpush1.msra.mxu0 %v8853
      %8877 = vmatprep.subr.mxu0 0.0
      %8878 = vmatpush1.msra.mxu0 %v8852
      %8879 = vmatprep.subr.mxu0 0.0
      %8880 = vmatpush1.msra.mxu0 %v8851
      %8881 = vmatprep.subr.mxu0 0.0
      %8882 = vmatpush1.msra.mxu0 %v8850
      %8883 = vmatprep.subr.mxu0 0.0
      %8884 = vmatpush1.msra.mxu0 %v8849
      %8885 = vmatprep.subr.mxu0 0.0
      %8886 = vmatpush1.msra.mxu0 %v8848
      %8887 = vmatprep.subr.mxu0 0.0
      %8888 = vmatpush1.msra.mxu0 %v8847
      %8889 = vmatprep.subr.mxu0 0.0
      %8890 = vmatpush1.msra.mxu0 %v8846
      %8891 = vmatprep.subr.mxu0 0.0
      %8892 = vmatpush1.msra.mxu0 %v8845
      %8893 = vmatprep.subr.mxu0 0.0
      %8894 = vmatpush2.msra.mxu0 0.0
      %8895 = vmatprep.subr.mxu0 0.0
      %8896 = vmatpush2.msra.mxu0 0.0
      %8897 = vmatprep.subr.mxu0 0.0
      %8898 = vmatpush2.msra.mxu0 0.0
      %8899 = vmatprep.subr.mxu0 0.0
      %8900 = vmatpush2.msra.mxu0 0.0
      %8901 = vmatprep.subr.mxu0 0.0
      %8902 = vmatpush2.msra.mxu0 0.0
      %8903 = vmatprep.subr.mxu0 0.0
      %8904 = vmatpush2.msra.mxu0 0.0
      %8905 = vmatprep.subr.mxu0 0.0
      %8906 = vmatpush2.msra.mxu0 0.0
      %8907 = vmatprep.subr.mxu0 0.0
      %8908 = vmatpush2.msra.mxu0 0.0
      %8909 = vmatprep.subr.mxu0 0.0
      %8910 = vmatpush2.msra.mxu0 0.0
      %8911 = vmatprep.subr.mxu0 0.0
      %8912 = vmatpush2.msra.mxu0 0.0
      %8913 = vmatprep.subr.mxu0 0.0
      %8914 = vmatpush2.msra.mxu0 0.0
      %8915 = vmatprep.subr.mxu0 0.0
      %8916 = vmatpush2.msra.mxu0 0.0
      %8917 = vmatprep.subr.mxu0 0.0
      %8918 = vmatpush2.msra.mxu0 0.0
      %8919 = vmatprep.subr.mxu0 0.0
      %8920 = vmatpush2.msra.mxu0 0.0
      %8921 = vmatprep.subr.mxu0 0.0
      %8922 = vmatpush2.msra.mxu0 0.0
      %8923 = vmatprep.subr.mxu0 0.0
      %8924 = vmatpush2.msra.mxu0 0.0
      %8925 = vmatprep.mubr.f32.mxu0 0.0
      %8926 = vmatmul.mubr.f32.gmra.mxu0 %v8808
      %v8927 = vpop.f32.mrf.mxu0
      %v8928 = vadd.f32 0.0, %v8927
      %v8929 = vpop.f32.mrf.mxu0
      %8930 = vmatprep.mubr.f32.mxu0 0.0
      %8931 = vmatmul.mubr.f32.gmra.mxu0 %v8809
      %v8932 = vpop.f32.mrf.mxu0
      %v8933 = vadd.f32 0.0, %v8932
      %v8934 = vpop.f32.mrf.mxu0
      %8935 = vmatprep.mubr.f32.mxu0 0.0
      %8936 = vmatmul.mubr.f32.gmra.mxu0 %v8810
      %v8937 = vpop.f32.mrf.mxu0
      %v8938 = vadd.f32 0.0, %v8937
      %v8939 = vpop.f32.mrf.mxu0
      %8940 = vmatprep.mubr.f32.mxu0 0.0
      %8941 = vmatmul.mubr.f32.gmra.mxu0 %v8811
      %v8942 = vpop.f32.mrf.mxu0
      %v8943 = vadd.f32 0.0, %v8942
      %v8944 = vpop.f32.mrf.mxu0
      %8945 = vmatprep.mubr.f32.mxu0 0.0
      %8946 = vmatmul.mubr.f32.gmra.mxu0 %v8812
      %v8947 = vpop.f32.mrf.mxu0
      %v8948 = vadd.f32 0.0, %v8947
      %v8949 = vpop.f32.mrf.mxu0
      %8950 = vmatprep.mubr.f32.mxu0 0.0
      %8951 = vmatmul.mubr.f32.gmra.mxu0 %v8813
      %v8952 = vpop.f32.mrf.mxu0
      %v8953 = vadd.f32 0.0, %v8952
      %v8954 = vpop.f32.mrf.mxu0
      %8955 = vmatprep.mubr.f32.mxu0 0.0
      %8956 = vmatmul.mubr.f32.gmra.mxu0 %v8814
      %v8957 = vpop.f32.mrf.mxu0
      %v8958 = vadd.f32 0.0, %v8957
      %v8959 = vpop.f32.mrf.mxu0
      %8960 = vmatprep.mubr.f32.mxu0 0.0
      %8961 = vmatmul.mubr.f32.gmra.mxu0 %v8815
      %v8962 = vpop.f32.mrf.mxu0
      %v8963 = vadd.f32 0.0, %v8962
      %v8964 = vpop.f32.mrf.mxu0
      %8965 = vmatprep.mubr.f32.mxu0 0.0
      %8966 = vmatmul.mubr.f32.gmra.mxu0 %v8816
      %v8967 = vpop.f32.mrf.mxu0
      %v8968 = vadd.f32 0.0, %v8967
      %v8969 = vpop.f32.mrf.mxu0
      %8970 = vmatprep.mubr.f32.mxu0 0.0
      %8971 = vmatmul.mubr.f32.gmra.mxu0 %v8817
      %v8972 = vpop.f32.mrf.mxu0
      %v8973 = vadd.f32 0.0, %v8972
      %v8974 = vpop.f32.mrf.mxu0
      %8975 = vmatprep.mubr.f32.mxu0 0.0
      %8976 = vmatmul.mubr.f32.gmra.mxu0 %v8818
      %v8977 = vpop.f32.mrf.mxu0
      %v8978 = vadd.f32 0.0, %v8977
      %v8979 = vpop.f32.mrf.mxu0
      %8980 = vmatprep.mubr.f32.mxu0 0.0
      %8981 = vmatmul.mubr.f32.gmra.mxu0 %v8819
      %v8982 = vpop.f32.mrf.mxu0
      %v8983 = vadd.f32 0.0, %v8982
      %v8984 = vpop.f32.mrf.mxu0
      %8985 = vmatprep.mubr.f32.mxu0 0.0
      %8986 = vmatmul.mubr.f32.gmra.mxu0 %v8820
      %v8987 = vpop.f32.mrf.mxu0
      %v8988 = vadd.f32 0.0, %v8987
      %v8989 = vpop.f32.mrf.mxu0
      %8990 = vmatprep.mubr.f32.mxu0 0.0
      %8991 = vmatmul.mubr.f32.gmra.mxu0 %v8821
      %v8992 = vpop.f32.mrf.mxu0
      %v8993 = vadd.f32 0.0, %v8992
      %v8994 = vpop.f32.mrf.mxu0
      %8995 = vmatprep.mubr.f32.mxu0 0.0
      %8996 = vmatmul.mubr.f32.gmra.mxu0 %v8822
      %v8997 = vpop.f32.mrf.mxu0
      %v8998 = vadd.f32 0.0, %v8997
      %v8999 = vpop.f32.mrf.mxu0
      %9000 = vmatprep.mubr.f32.mxu0 0.0
      %9001 = vmatmul.mubr.f32.gmra.mxu0 %v8823
      %v9002 = vpop.f32.mrf.mxu0
      %v9003 = vadd.f32 0.0, %v9002
      %v9004 = vpop.f32.mrf.mxu0
      %9005 = vmatprep.mubr.f32.mxu0 0.0
      %9006 = vmatmul.mubr.f32.gmra.mxu0 %v8824
      %v9007 = vpop.f32.mrf.mxu0
      %v9008 = vadd.f32 0.0, %v9007
      %v9009 = vpop.f32.mrf.mxu0
      %9010 = vmatprep.mubr.f32.mxu0 0.0
      %9011 = vmatmul.mubr.f32.gmra.mxu0 %v8825
      %v9012 = vpop.f32.mrf.mxu0
      %v9013 = vadd.f32 0.0, %v9012
      %v9014 = vpop.f32.mrf.mxu0
      %9015 = vmatprep.mubr.f32.mxu0 0.0
      %9016 = vmatmul.mubr.f32.gmra.mxu0 %v8826
      %v9017 = vpop.f32.mrf.mxu0
      %v9018 = vadd.f32 0.0, %v9017
      %v9019 = vpop.f32.mrf.mxu0
      %9020 = vmatprep.mubr.f32.mxu0 0.0
      %9021 = vmatmul.mubr.f32.gmra.mxu0 %v8827
      %v9022 = vpop.f32.mrf.mxu0
      %v9023 = vadd.f32 0.0, %v9022
      %v9024 = vpop.f32.mrf.mxu0
      %9025 = vmatprep.mubr.f32.mxu0 0.0
      %9026 = vmatmul.mubr.f32.gmra.mxu0 %v8828
      %v9027 = vpop.f32.mrf.mxu0
      %v9028 = vadd.f32 0.0, %v9027
      %v9029 = vpop.f32.mrf.mxu0
      %9030 = vmatprep.mubr.f32.mxu0 0.0
      %9031 = vmatmul.mubr.f32.gmra.mxu0 %v8829
      %v9032 = vpop.f32.mrf.mxu0
      %v9033 = vadd.f32 0.0, %v9032
      %v9034 = vpop.f32.mrf.mxu0
      %9035 = vmatprep.mubr.f32.mxu0 0.0
      %9036 = vmatmul.mubr.f32.gmra.mxu0 %v8830
      %v9037 = vpop.f32.mrf.mxu0
      %v9038 = vadd.f32 0.0, %v9037
      %v9039 = vpop.f32.mrf.mxu0
      %9040 = vmatprep.mubr.f32.mxu0 0.0
      %9041 = vmatmul.mubr.f32.gmra.mxu0 %v8831
      %v9042 = vpop.f32.mrf.mxu0
      %v9043 = vadd.f32 0.0, %v9042
      %v9044 = vpop.f32.mrf.mxu0
      %9045 = vmatprep.mubr.f32.mxu0 0.0
      %9046 = vmatmul.mubr.f32.gmra.mxu0 %v8832
      %v9047 = vpop.f32.mrf.mxu0
      %v9048 = vadd.f32 0.0, %v9047
      %v9049 = vpop.f32.mrf.mxu0
      %9050 = vmatprep.mubr.f32.mxu0 0.0
      %9051 = vmatmul.mubr.f32.gmra.mxu0 %v8833
      %v9052 = vpop.f32.mrf.mxu0
      %v9053 = vadd.f32 0.0, %v9052
      %v9054 = vpop.f32.mrf.mxu0
      %9055 = vmatprep.mubr.f32.mxu0 0.0
      %9056 = vmatmul.mubr.f32.gmra.mxu0 %v8834
      %v9057 = vpop.f32.mrf.mxu0
      %v9058 = vadd.f32 0.0, %v9057
      %v9059 = vpop.f32.mrf.mxu0
      %9060 = vmatprep.mubr.f32.mxu0 0.0
      %9061 = vmatmul.mubr.f32.gmra.mxu0 %v8835
      %v9062 = vpop.f32.mrf.mxu0
      %v9063 = vadd.f32 0.0, %v9062
      %v9064 = vpop.f32.mrf.mxu0
      %9065 = vmatprep.mubr.f32.mxu0 0.0
      %9066 = vmatmul.mubr.f32.gmra.mxu0 %v8836
      %v9067 = vpop.f32.mrf.mxu0
      %v9068 = vadd.f32 0.0, %v9067
      %v9069 = vpop.f32.mrf.mxu0
      %9070 = vmatprep.mubr.f32.mxu0 0.0
      %9071 = vmatmul.mubr.f32.gmra.mxu0 %v8837
      %v9072 = vpop.f32.mrf.mxu0
      %v9073 = vadd.f32 0.0, %v9072
      %v9074 = vpop.f32.mrf.mxu0
      %9075 = vmatprep.mubr.f32.mxu0 0.0
      %9076 = vmatmul.mubr.f32.gmra.mxu0 %v8838
      %v9077 = vpop.f32.mrf.mxu0
      %v9078 = vadd.f32 0.0, %v9077
      %v9079 = vpop.f32.mrf.mxu0
      %9080 = vmatprep.mubr.f32.mxu0 0.0
      %9081 = vmatmul.mubr.f32.gmra.mxu0 %v8839
      %v9082 = vpop.f32.mrf.mxu0
      %v9083 = vadd.f32 0.0, %v9082
      %v9084 = vpop.f32.mrf.mxu0
      %9085 = vmatprep.mubr.f32.mxu0 0.0
      %9086 = vmatmul.mubr.f32.gmra.mxu0 %v8840
      %v9087 = vpop.f32.mrf.mxu0
      %v9088 = vadd.f32 0.0, %v9087
      %v9089 = vpop.f32.mrf.mxu0
      %9090 = vmatprep.mubr.f32.mxu0 0.0
      %9091 = vmatmul.mubr.f32.gmra.mxu0 %v8841
      %v9092 = vpop.f32.mrf.mxu0
      %v9093 = vadd.f32 0.0, %v9092
      %v9094 = vpop.f32.mrf.mxu0
      %9095 = vmatprep.mubr.f32.mxu0 0.0
      %9096 = vmatmul.mubr.f32.gmra.mxu0 %v8842
      %v9097 = vpop.f32.mrf.mxu0
      %v9098 = vadd.f32 0.0, %v9097
      %v9099 = vpop.f32.mrf.mxu0
      %9100 = vmatprep.mubr.f32.mxu0 0.0
      %9101 = vmatmul.mubr.f32.gmra.mxu0 %v8843
      %v9102 = vpop.f32.mrf.mxu0
      %v9103 = vadd.f32 0.0, %v9102
      %v9104 = vpop.f32.mrf.mxu0
      %9105 = vdwg.mxu0
      %v9106 = vadd.f32 %v8772, %v8928
      %v9107 = vadd.f32 %v8773, %v8933
      %v9108 = vadd.f32 %v8774, %v8938
      %v9109 = vadd.f32 %v8775, %v8943
      %v9110 = vadd.f32 %v8776, %v8948
      %v9111 = vadd.f32 %v8777, %v8953
      %v9112 = vadd.f32 %v8778, %v8958
      %v9113 = vadd.f32 %v8779, %v8963
      %v9114 = vadd.f32 %v8780, %v8968
      %v9115 = vadd.f32 %v8781, %v8973
      %v9116 = vadd.f32 %v8782, %v8978
      %v9117 = vadd.f32 %v8783, %v8983
      %v9118 = vadd.f32 %v8784, %v8988
      %v9119 = vadd.f32 %v8785, %v8993
      %v9120 = vadd.f32 %v8786, %v8998
      %v9121 = vadd.f32 %v8787, %v9003
      %v9122 = vadd.f32 %v8788, %v9008
      %v9123 = vadd.f32 %v8789, %v9013
      %v9124 = vadd.f32 %v8790, %v9018
      %v9125 = vadd.f32 %v8791, %v9023
      %v9126 = vadd.f32 %v8792, %v9028
      %v9127 = vadd.f32 %v8793, %v9033
      %v9128 = vadd.f32 %v8794, %v9038
      %v9129 = vadd.f32 %v8795, %v9043
      %v9130 = vadd.f32 %v8796, %v9048
      %v9131 = vadd.f32 %v8797, %v9053
      %v9132 = vadd.f32 %v8798, %v9058
      %v9133 = vadd.f32 %v8799, %v9063
      %v9134 = vadd.f32 %v8800, %v9068
      %v9135 = vadd.f32 %v8801, %v9073
      %v9136 = vadd.f32 %v8802, %v9078
      %v9137 = vadd.f32 %v8803, %v9083
      %v9138 = vadd.f32 %v8804, %v9088
      %v9139 = vadd.f32 %v8805, %v9093
      %v9140 = vadd.f32 %v8806, %v9098
      %v9141 = vadd.f32 %v8807, %v9103
      %9142 = vst [vmem:[%s433] sm:$0xff] %v9106
      %9143 = vst [vmem:[%s433 + $0x8] sm:$0xff] %v9107
      %9144 = vst [vmem:[%s433 + $0x10] sm:$0xff] %v9108
      %9145 = vst [vmem:[%s433 + $0x18] sm:$0xff] %v9109
      %9146 = vst [vmem:[%s433 + $0x20] sm:$0xff] %v9110
      %9147 = vst [vmem:[%s433 + $0x28] sm:$0xff] %v9111
      %9148 = vst [vmem:[%s433 + $0x30] sm:$0xff] %v9112
      %9149 = vst [vmem:[%s433 + $0x38] sm:$0xff] %v9113
      %9150 = vst [vmem:[%s433 + $0x40] sm:$0xff] %v9114
      %9151 = vst [vmem:[%s433 + $0x48] sm:$0xff] %v9115
      %9152 = vst [vmem:[%s433 + $0x50] sm:$0xff] %v9116
      %9153 = vst [vmem:[%s433 + $0x58] sm:$0xff] %v9117
      %9154 = vst [vmem:[%s433 + $0x60] sm:$0xff] %v9118
      %9155 = vst [vmem:[%s433 + $0x68] sm:$0xff] %v9119
      %9156 = vst [vmem:[%s433 + $0x70] sm:$0xff] %v9120
      %9157 = vst [vmem:[%s433 + $0x78] sm:$0xff] %v9121
      %9158 = vst [vmem:[%s433 + $0x80] sm:$0xff] %v9122
      %9159 = vst [vmem:[%s433 + $0x88] sm:$0xff] %v9123
      %9160 = vst [vmem:[%s433 + $0x90] sm:$0xff] %v9124
      %9161 = vst [vmem:[%s433 + $0x98] sm:$0xff] %v9125
      %9162 = vst [vmem:[%s433 + $0xa0] sm:$0xff] %v9126
      %9163 = vst [vmem:[%s433 + $0xa8] sm:$0xff] %v9127
      %9164 = vst [vmem:[%s433 + $0xb0] sm:$0xff] %v9128
      %9165 = vst [vmem:[%s433 + $0xb8] sm:$0xff] %v9129
      %9166 = vst [vmem:[%s433 + $0xc0] sm:$0xff] %v9130
      %9167 = vst [vmem:[%s433 + $0xc8] sm:$0xff] %v9131
      %9168 = vst [vmem:[%s433 + $0xd0] sm:$0xff] %v9132
      %9169 = vst [vmem:[%s433 + $0xd8] sm:$0xff] %v9133
      %9170 = vst [vmem:[%s433 + $0xe0] sm:$0xff] %v9134
      %9171 = vst [vmem:[%s433 + $0xe8] sm:$0xff] %v9135
      %9172 = vst [vmem:[%s433 + $0xf0] sm:$0xff] %v9136
      %9173 = vst [vmem:[%s433 + $0xf8] sm:$0xff] %v9137
      %9174 = vst [vmem:[%s433 + $0x100] sm:$0xff] %v9138
      %9175 = vst [vmem:[%s433 + $0x108] sm:$0xff] %v9139
      %9176 = vst [vmem:[%s433 + $0x110] sm:$0xff] %v9140
      %9177 = vst [vmem:[%s433 + $0x118] sm:$0xff] %v9141
      %v9178 = vld [vmem:[%s433] sm:$0xff]
      %v9179 = vld [vmem:[%s433 + $0x8] sm:$0xff]
      %v9180 = vld [vmem:[%s433 + $0x10] sm:$0xff]
      %v9181 = vld [vmem:[%s433 + $0x18] sm:$0xff]
      %v9182 = vld [vmem:[%s433 + $0x20] sm:$0xff]
      %v9183 = vld [vmem:[%s433 + $0x28] sm:$0xff]
      %v9184 = vld [vmem:[%s433 + $0x30] sm:$0xff]
      %v9185 = vld [vmem:[%s433 + $0x38] sm:$0xff]
      %v9186 = vld [vmem:[%s433 + $0x40] sm:$0xff]
      %v9187 = vld [vmem:[%s433 + $0x48] sm:$0xff]
      %v9188 = vld [vmem:[%s433 + $0x50] sm:$0xff]
      %v9189 = vld [vmem:[%s433 + $0x58] sm:$0xff]
      %v9190 = vld [vmem:[%s433 + $0x60] sm:$0xff]
      %v9191 = vld [vmem:[%s433 + $0x68] sm:$0xff]
      %v9192 = vld [vmem:[%s433 + $0x70] sm:$0xff]
      %v9193 = vld [vmem:[%s433 + $0x78] sm:$0xff]
      %v9194 = vld [vmem:[%s433 + $0x80] sm:$0xff]
      %v9195 = vld [vmem:[%s433 + $0x88] sm:$0xff]
      %v9196 = vld [vmem:[%s433 + $0x90] sm:$0xff]
      %v9197 = vld [vmem:[%s433 + $0x98] sm:$0xff]
      %v9198 = vld [vmem:[%s433 + $0xa0] sm:$0xff]
      %v9199 = vld [vmem:[%s433 + $0xa8] sm:$0xff]
      %v9200 = vld [vmem:[%s433 + $0xb0] sm:$0xff]
      %v9201 = vld [vmem:[%s433 + $0xb8] sm:$0xff]
      %v9202 = vld [vmem:[%s433 + $0xc0] sm:$0xff]
      %v9203 = vld [vmem:[%s433 + $0xc8] sm:$0xff]
      %v9204 = vld [vmem:[%s433 + $0xd0] sm:$0xff]
      %v9205 = vld [vmem:[%s433 + $0xd8] sm:$0xff]
      %v9206 = vld [vmem:[%s433 + $0xe0] sm:$0xff]
      %v9207 = vld [vmem:[%s433 + $0xe8] sm:$0xff]
      %v9208 = vld [vmem:[%s433 + $0xf0] sm:$0xff]
      %v9209 = vld [vmem:[%s433 + $0xf8] sm:$0xff]
      %v9210 = vld [vmem:[%s433 + $0x100] sm:$0xff]
      %v9211 = vld [vmem:[%s433 + $0x108] sm:$0xff]
      %v9212 = vld [vmem:[%s433 + $0x110] sm:$0xff]
      %v9213 = vld [vmem:[%s433 + $0x118] sm:$0xff]
      %v9214 = vld [vmem:[#allocation3 + $0x25] sm:$0xff]
      %v9215 = vld [vmem:[#allocation3 + $0x2d] sm:$0xff]
      %v9216 = vld [vmem:[#allocation3 + $0x35] sm:$0xff]
      %v9217 = vld [vmem:[#allocation3 + $0x3d] sm:$0xff]
      %v9218 = vld [vmem:[#allocation3 + $0x45] sm:$0xff]
      %v9219 = vld [vmem:[#allocation3 + $0x4d] sm:$0xff]
      %v9220 = vld [vmem:[#allocation3 + $0x55] sm:$0xff]
      %v9221 = vld [vmem:[#allocation3 + $0x5d] sm:$0xff]
      %v9222 = vld [vmem:[#allocation3 + $0x65] sm:$0xff]
      %v9223 = vld [vmem:[#allocation3 + $0x6d] sm:$0xff]
      %v9224 = vld [vmem:[#allocation3 + $0x75] sm:$0xff]
      %v9225 = vld [vmem:[#allocation3 + $0x7d] sm:$0xff]
      %v9226 = vld [vmem:[#allocation3 + $0x85] sm:$0xff]
      %v9227 = vld [vmem:[#allocation3 + $0x8d] sm:$0xff]
      %v9228 = vld [vmem:[#allocation3 + $0x95] sm:$0xff]
      %v9229 = vld [vmem:[#allocation3 + $0x9d] sm:$0xff]
      %v9230 = vld [vmem:[#allocation3 + $0xa5] sm:$0xff]
      %v9231 = vld [vmem:[#allocation3 + $0xad] sm:$0xff]
      %v9232 = vld [vmem:[#allocation3 + $0xb5] sm:$0xff]
      %v9233 = vld [vmem:[#allocation3 + $0xbd] sm:$0xff]
      %v9234 = vld [vmem:[#allocation3 + $0xc5] sm:$0xff]
      %v9235 = vld [vmem:[#allocation3 + $0xcd] sm:$0xff]
      %v9236 = vld [vmem:[#allocation3 + $0xd5] sm:$0xff]
      %v9237 = vld [vmem:[#allocation3 + $0xdd] sm:$0xff]
      %v9238 = vld [vmem:[#allocation3 + $0xe5] sm:$0xff]
      %v9239 = vld [vmem:[#allocation3 + $0xed] sm:$0xff]
      %v9240 = vld [vmem:[#allocation3 + $0xf5] sm:$0xff]
      %v9241 = vld [vmem:[#allocation3 + $0xfd] sm:$0xff]
      %v9242 = vld [vmem:[#allocation3 + $0x105] sm:$0xff]
      %v9243 = vld [vmem:[#allocation3 + $0x10d] sm:$0xff]
      %v9244 = vld [vmem:[#allocation3 + $0x115] sm:$0xff]
      %v9245 = vld [vmem:[#allocation3 + $0x11d] sm:$0xff]
      %v9246 = vld [vmem:[#allocation3 + $0x125] sm:$0xff]
      %v9247 = vld [vmem:[#allocation3 + $0x12d] sm:$0xff]
      %v9248 = vld [vmem:[#allocation3 + $0x135] sm:$0xff]
      %v9249 = vld [vmem:[#allocation3 + $0x13d] sm:$0xff]
      %s9250 = scalar_lea.vmem %s10, 896
      %v9251 = vld [vmem:[%s9250] sm:$0xff]
      %v9252 = vld [vmem:[%s9250 + $0x8] sm:$0xff]
      %v9253 = vld [vmem:[%s9250 + $0x10] sm:$0xff]
      %v9254 = vld [vmem:[%s9250 + $0x18] sm:$0xff]
      %v9255 = vld [vmem:[%s9250 + $0x20] sm:$0xff]
      %v9256 = vld [vmem:[%s9250 + $0x28] sm:$0xff]
      %v9257 = vld [vmem:[%s9250 + $0x30] sm:$0xff]
      %v9258 = vld [vmem:[%s9250 + $0x38] sm:$0xff]
      %v9259 = vld [vmem:[%s9250 + $0x40] sm:$0xff]
      %v9260 = vld [vmem:[%s9250 + $0x48] sm:$0xff]
      %v9261 = vld [vmem:[%s9250 + $0x50] sm:$0xff]
      %v9262 = vld [vmem:[%s9250 + $0x58] sm:$0xff]
      %v9263 = vld [vmem:[%s9250 + $0x60] sm:$0xff]
      %v9264 = vld [vmem:[%s9250 + $0x68] sm:$0xff]
      %v9265 = vld [vmem:[%s9250 + $0x70] sm:$0xff]
      %v9266 = vld [vmem:[%s9250 + $0x78] sm:$0xff]
      %9267 = vmatprep.subr.mxu0 0.0
      %9268 = vmatpush1.msra.mxu0 %v9266
      %9269 = vmatprep.subr.mxu0 0.0
      %9270 = vmatpush1.msra.mxu0 %v9265
      %9271 = vmatprep.subr.mxu0 0.0
      %9272 = vmatpush1.msra.mxu0 %v9264
      %9273 = vmatprep.subr.mxu0 0.0
      %9274 = vmatpush1.msra.mxu0 %v9263
      %9275 = vmatprep.subr.mxu0 0.0
      %9276 = vmatpush1.msra.mxu0 %v9262
      %9277 = vmatprep.subr.mxu0 0.0
      %9278 = vmatpush1.msra.mxu0 %v9261
      %9279 = vmatprep.subr.mxu0 0.0
      %9280 = vmatpush1.msra.mxu0 %v9260
      %9281 = vmatprep.subr.mxu0 0.0
      %9282 = vmatpush1.msra.mxu0 %v9259
      %9283 = vmatprep.subr.mxu0 0.0
      %9284 = vmatpush1.msra.mxu0 %v9258
      %9285 = vmatprep.subr.mxu0 0.0
      %9286 = vmatpush1.msra.mxu0 %v9257
      %9287 = vmatprep.subr.mxu0 0.0
      %9288 = vmatpush1.msra.mxu0 %v9256
      %9289 = vmatprep.subr.mxu0 0.0
      %9290 = vmatpush1.msra.mxu0 %v9255
      %9291 = vmatprep.subr.mxu0 0.0
      %9292 = vmatpush1.msra.mxu0 %v9254
      %9293 = vmatprep.subr.mxu0 0.0
      %9294 = vmatpush1.msra.mxu0 %v9253
      %9295 = vmatprep.subr.mxu0 0.0
      %9296 = vmatpush1.msra.mxu0 %v9252
      %9297 = vmatprep.subr.mxu0 0.0
      %9298 = vmatpush1.msra.mxu0 %v9251
      %9299 = vmatprep.subr.mxu0 0.0
      %9300 = vmatpush2.msra.mxu0 0.0
      %9301 = vmatprep.subr.mxu0 0.0
      %9302 = vmatpush2.msra.mxu0 0.0
      %9303 = vmatprep.subr.mxu0 0.0
      %9304 = vmatpush2.msra.mxu0 0.0
      %9305 = vmatprep.subr.mxu0 0.0
      %9306 = vmatpush2.msra.mxu0 0.0
      %9307 = vmatprep.subr.mxu0 0.0
      %9308 = vmatpush2.msra.mxu0 0.0
      %9309 = vmatprep.subr.mxu0 0.0
      %9310 = vmatpush2.msra.mxu0 0.0
      %9311 = vmatprep.subr.mxu0 0.0
      %9312 = vmatpush2.msra.mxu0 0.0
      %9313 = vmatprep.subr.mxu0 0.0
      %9314 = vmatpush2.msra.mxu0 0.0
      %9315 = vmatprep.subr.mxu0 0.0
      %9316 = vmatpush2.msra.mxu0 0.0
      %9317 = vmatprep.subr.mxu0 0.0
      %9318 = vmatpush2.msra.mxu0 0.0
      %9319 = vmatprep.subr.mxu0 0.0
      %9320 = vmatpush2.msra.mxu0 0.0
      %9321 = vmatprep.subr.mxu0 0.0
      %9322 = vmatpush2.msra.mxu0 0.0
      %9323 = vmatprep.subr.mxu0 0.0
      %9324 = vmatpush2.msra.mxu0 0.0
      %9325 = vmatprep.subr.mxu0 0.0
      %9326 = vmatpush2.msra.mxu0 0.0
      %9327 = vmatprep.subr.mxu0 0.0
      %9328 = vmatpush2.msra.mxu0 0.0
      %9329 = vmatprep.subr.mxu0 0.0
      %9330 = vmatpush2.msra.mxu0 0.0
      %9331 = vmatprep.mubr.f32.mxu0 0.0
      %9332 = vmatmul.mubr.f32.gmra.mxu0 %v9214
      %v9333 = vpop.f32.mrf.mxu0
      %v9334 = vadd.f32 0.0, %v9333
      %v9335 = vpop.f32.mrf.mxu0
      %9336 = vmatprep.mubr.f32.mxu0 0.0
      %9337 = vmatmul.mubr.f32.gmra.mxu0 %v9215
      %v9338 = vpop.f32.mrf.mxu0
      %v9339 = vadd.f32 0.0, %v9338
      %v9340 = vpop.f32.mrf.mxu0
      %9341 = vmatprep.mubr.f32.mxu0 0.0
      %9342 = vmatmul.mubr.f32.gmra.mxu0 %v9216
      %v9343 = vpop.f32.mrf.mxu0
      %v9344 = vadd.f32 0.0, %v9343
      %v9345 = vpop.f32.mrf.mxu0
      %9346 = vmatprep.mubr.f32.mxu0 0.0
      %9347 = vmatmul.mubr.f32.gmra.mxu0 %v9217
      %v9348 = vpop.f32.mrf.mxu0
      %v9349 = vadd.f32 0.0, %v9348
      %v9350 = vpop.f32.mrf.mxu0
      %9351 = vmatprep.mubr.f32.mxu0 0.0
      %9352 = vmatmul.mubr.f32.gmra.mxu0 %v9218
      %v9353 = vpop.f32.mrf.mxu0
      %v9354 = vadd.f32 0.0, %v9353
      %v9355 = vpop.f32.mrf.mxu0
      %9356 = vmatprep.mubr.f32.mxu0 0.0
      %9357 = vmatmul.mubr.f32.gmra.mxu0 %v9219
      %v9358 = vpop.f32.mrf.mxu0
      %v9359 = vadd.f32 0.0, %v9358
      %v9360 = vpop.f32.mrf.mxu0
      %9361 = vmatprep.mubr.f32.mxu0 0.0
      %9362 = vmatmul.mubr.f32.gmra.mxu0 %v9220
      %v9363 = vpop.f32.mrf.mxu0
      %v9364 = vadd.f32 0.0, %v9363
      %v9365 = vpop.f32.mrf.mxu0
      %9366 = vmatprep.mubr.f32.mxu0 0.0
      %9367 = vmatmul.mubr.f32.gmra.mxu0 %v9221
      %v9368 = vpop.f32.mrf.mxu0
      %v9369 = vadd.f32 0.0, %v9368
      %v9370 = vpop.f32.mrf.mxu0
      %9371 = vmatprep.mubr.f32.mxu0 0.0
      %9372 = vmatmul.mubr.f32.gmra.mxu0 %v9222
      %v9373 = vpop.f32.mrf.mxu0
      %v9374 = vadd.f32 0.0, %v9373
      %v9375 = vpop.f32.mrf.mxu0
      %9376 = vmatprep.mubr.f32.mxu0 0.0
      %9377 = vmatmul.mubr.f32.gmra.mxu0 %v9223
      %v9378 = vpop.f32.mrf.mxu0
      %v9379 = vadd.f32 0.0, %v9378
      %v9380 = vpop.f32.mrf.mxu0
      %9381 = vmatprep.mubr.f32.mxu0 0.0
      %9382 = vmatmul.mubr.f32.gmra.mxu0 %v9224
      %v9383 = vpop.f32.mrf.mxu0
      %v9384 = vadd.f32 0.0, %v9383
      %v9385 = vpop.f32.mrf.mxu0
      %9386 = vmatprep.mubr.f32.mxu0 0.0
      %9387 = vmatmul.mubr.f32.gmra.mxu0 %v9225
      %v9388 = vpop.f32.mrf.mxu0
      %v9389 = vadd.f32 0.0, %v9388
      %v9390 = vpop.f32.mrf.mxu0
      %9391 = vmatprep.mubr.f32.mxu0 0.0
      %9392 = vmatmul.mubr.f32.gmra.mxu0 %v9226
      %v9393 = vpop.f32.mrf.mxu0
      %v9394 = vadd.f32 0.0, %v9393
      %v9395 = vpop.f32.mrf.mxu0
      %9396 = vmatprep.mubr.f32.mxu0 0.0
      %9397 = vmatmul.mubr.f32.gmra.mxu0 %v9227
      %v9398 = vpop.f32.mrf.mxu0
      %v9399 = vadd.f32 0.0, %v9398
      %v9400 = vpop.f32.mrf.mxu0
      %9401 = vmatprep.mubr.f32.mxu0 0.0
      %9402 = vmatmul.mubr.f32.gmra.mxu0 %v9228
      %v9403 = vpop.f32.mrf.mxu0
      %v9404 = vadd.f32 0.0, %v9403
      %v9405 = vpop.f32.mrf.mxu0
      %9406 = vmatprep.mubr.f32.mxu0 0.0
      %9407 = vmatmul.mubr.f32.gmra.mxu0 %v9229
      %v9408 = vpop.f32.mrf.mxu0
      %v9409 = vadd.f32 0.0, %v9408
      %v9410 = vpop.f32.mrf.mxu0
      %9411 = vmatprep.mubr.f32.mxu0 0.0
      %9412 = vmatmul.mubr.f32.gmra.mxu0 %v9230
      %v9413 = vpop.f32.mrf.mxu0
      %v9414 = vadd.f32 0.0, %v9413
      %v9415 = vpop.f32.mrf.mxu0
      %9416 = vmatprep.mubr.f32.mxu0 0.0
      %9417 = vmatmul.mubr.f32.gmra.mxu0 %v9231
      %v9418 = vpop.f32.mrf.mxu0
      %v9419 = vadd.f32 0.0, %v9418
      %v9420 = vpop.f32.mrf.mxu0
      %9421 = vmatprep.mubr.f32.mxu0 0.0
      %9422 = vmatmul.mubr.f32.gmra.mxu0 %v9232
      %v9423 = vpop.f32.mrf.mxu0
      %v9424 = vadd.f32 0.0, %v9423
      %v9425 = vpop.f32.mrf.mxu0
      %9426 = vmatprep.mubr.f32.mxu0 0.0
      %9427 = vmatmul.mubr.f32.gmra.mxu0 %v9233
      %v9428 = vpop.f32.mrf.mxu0
      %v9429 = vadd.f32 0.0, %v9428
      %v9430 = vpop.f32.mrf.mxu0
      %9431 = vmatprep.mubr.f32.mxu0 0.0
      %9432 = vmatmul.mubr.f32.gmra.mxu0 %v9234
      %v9433 = vpop.f32.mrf.mxu0
      %v9434 = vadd.f32 0.0, %v9433
      %v9435 = vpop.f32.mrf.mxu0
      %9436 = vmatprep.mubr.f32.mxu0 0.0
      %9437 = vmatmul.mubr.f32.gmra.mxu0 %v9235
      %v9438 = vpop.f32.mrf.mxu0
      %v9439 = vadd.f32 0.0, %v9438
      %v9440 = vpop.f32.mrf.mxu0
      %9441 = vmatprep.mubr.f32.mxu0 0.0
      %9442 = vmatmul.mubr.f32.gmra.mxu0 %v9236
      %v9443 = vpop.f32.mrf.mxu0
      %v9444 = vadd.f32 0.0, %v9443
      %v9445 = vpop.f32.mrf.mxu0
      %9446 = vmatprep.mubr.f32.mxu0 0.0
      %9447 = vmatmul.mubr.f32.gmra.mxu0 %v9237
      %v9448 = vpop.f32.mrf.mxu0
      %v9449 = vadd.f32 0.0, %v9448
      %v9450 = vpop.f32.mrf.mxu0
      %9451 = vmatprep.mubr.f32.mxu0 0.0
      %9452 = vmatmul.mubr.f32.gmra.mxu0 %v9238
      %v9453 = vpop.f32.mrf.mxu0
      %v9454 = vadd.f32 0.0, %v9453
      %v9455 = vpop.f32.mrf.mxu0
      %9456 = vmatprep.mubr.f32.mxu0 0.0
      %9457 = vmatmul.mubr.f32.gmra.mxu0 %v9239
      %v9458 = vpop.f32.mrf.mxu0
      %v9459 = vadd.f32 0.0, %v9458
      %v9460 = vpop.f32.mrf.mxu0
      %9461 = vmatprep.mubr.f32.mxu0 0.0
      %9462 = vmatmul.mubr.f32.gmra.mxu0 %v9240
      %v9463 = vpop.f32.mrf.mxu0
      %v9464 = vadd.f32 0.0, %v9463
      %v9465 = vpop.f32.mrf.mxu0
      %9466 = vmatprep.mubr.f32.mxu0 0.0
      %9467 = vmatmul.mubr.f32.gmra.mxu0 %v9241
      %v9468 = vpop.f32.mrf.mxu0
      %v9469 = vadd.f32 0.0, %v9468
      %v9470 = vpop.f32.mrf.mxu0
      %9471 = vmatprep.mubr.f32.mxu0 0.0
      %9472 = vmatmul.mubr.f32.gmra.mxu0 %v9242
      %v9473 = vpop.f32.mrf.mxu0
      %v9474 = vadd.f32 0.0, %v9473
      %v9475 = vpop.f32.mrf.mxu0
      %9476 = vmatprep.mubr.f32.mxu0 0.0
      %9477 = vmatmul.mubr.f32.gmra.mxu0 %v9243
      %v9478 = vpop.f32.mrf.mxu0
      %v9479 = vadd.f32 0.0, %v9478
      %v9480 = vpop.f32.mrf.mxu0
      %9481 = vmatprep.mubr.f32.mxu0 0.0
      %9482 = vmatmul.mubr.f32.gmra.mxu0 %v9244
      %v9483 = vpop.f32.mrf.mxu0
      %v9484 = vadd.f32 0.0, %v9483
      %v9485 = vpop.f32.mrf.mxu0
      %9486 = vmatprep.mubr.f32.mxu0 0.0
      %9487 = vmatmul.mubr.f32.gmra.mxu0 %v9245
      %v9488 = vpop.f32.mrf.mxu0
      %v9489 = vadd.f32 0.0, %v9488
      %v9490 = vpop.f32.mrf.mxu0
      %9491 = vmatprep.mubr.f32.mxu0 0.0
      %9492 = vmatmul.mubr.f32.gmra.mxu0 %v9246
      %v9493 = vpop.f32.mrf.mxu0
      %v9494 = vadd.f32 0.0, %v9493
      %v9495 = vpop.f32.mrf.mxu0
      %9496 = vmatprep.mubr.f32.mxu0 0.0
      %9497 = vmatmul.mubr.f32.gmra.mxu0 %v9247
      %v9498 = vpop.f32.mrf.mxu0
      %v9499 = vadd.f32 0.0, %v9498
      %v9500 = vpop.f32.mrf.mxu0
      %9501 = vmatprep.mubr.f32.mxu0 0.0
      %9502 = vmatmul.mubr.f32.gmra.mxu0 %v9248
      %v9503 = vpop.f32.mrf.mxu0
      %v9504 = vadd.f32 0.0, %v9503
      %v9505 = vpop.f32.mrf.mxu0
      %9506 = vmatprep.mubr.f32.mxu0 0.0
      %9507 = vmatmul.mubr.f32.gmra.mxu0 %v9249
      %v9508 = vpop.f32.mrf.mxu0
      %v9509 = vadd.f32 0.0, %v9508
      %v9510 = vpop.f32.mrf.mxu0
      %9511 = vdwg.mxu0
      %v9512 = vadd.f32 %v9178, %v9334
      %v9513 = vadd.f32 %v9179, %v9339
      %v9514 = vadd.f32 %v9180, %v9344
      %v9515 = vadd.f32 %v9181, %v9349
      %v9516 = vadd.f32 %v9182, %v9354
      %v9517 = vadd.f32 %v9183, %v9359
      %v9518 = vadd.f32 %v9184, %v9364
      %v9519 = vadd.f32 %v9185, %v9369
      %v9520 = vadd.f32 %v9186, %v9374
      %v9521 = vadd.f32 %v9187, %v9379
      %v9522 = vadd.f32 %v9188, %v9384
      %v9523 = vadd.f32 %v9189, %v9389
      %v9524 = vadd.f32 %v9190, %v9394
      %v9525 = vadd.f32 %v9191, %v9399
      %v9526 = vadd.f32 %v9192, %v9404
      %v9527 = vadd.f32 %v9193, %v9409
      %v9528 = vadd.f32 %v9194, %v9414
      %v9529 = vadd.f32 %v9195, %v9419
      %v9530 = vadd.f32 %v9196, %v9424
      %v9531 = vadd.f32 %v9197, %v9429
      %v9532 = vadd.f32 %v9198, %v9434
      %v9533 = vadd.f32 %v9199, %v9439
      %v9534 = vadd.f32 %v9200, %v9444
      %v9535 = vadd.f32 %v9201, %v9449
      %v9536 = vadd.f32 %v9202, %v9454
      %v9537 = vadd.f32 %v9203, %v9459
      %v9538 = vadd.f32 %v9204, %v9464
      %v9539 = vadd.f32 %v9205, %v9469
      %v9540 = vadd.f32 %v9206, %v9474
      %v9541 = vadd.f32 %v9207, %v9479
      %v9542 = vadd.f32 %v9208, %v9484
      %v9543 = vadd.f32 %v9209, %v9489
      %v9544 = vadd.f32 %v9210, %v9494
      %v9545 = vadd.f32 %v9211, %v9499
      %v9546 = vadd.f32 %v9212, %v9504
      %v9547 = vadd.f32 %v9213, %v9509
      %9548 = vst [vmem:[%s433] sm:$0xff] %v9512
      %9549 = vst [vmem:[%s433 + $0x8] sm:$0xff] %v9513
      %9550 = vst [vmem:[%s433 + $0x10] sm:$0xff] %v9514
      %9551 = vst [vmem:[%s433 + $0x18] sm:$0xff] %v9515
      %9552 = vst [vmem:[%s433 + $0x20] sm:$0xff] %v9516
      %9553 = vst [vmem:[%s433 + $0x28] sm:$0xff] %v9517
      %9554 = vst [vmem:[%s433 + $0x30] sm:$0xff] %v9518
      %9555 = vst [vmem:[%s433 + $0x38] sm:$0xff] %v9519
      %9556 = vst [vmem:[%s433 + $0x40] sm:$0xff] %v9520
      %9557 = vst [vmem:[%s433 + $0x48] sm:$0xff] %v9521
      %9558 = vst [vmem:[%s433 + $0x50] sm:$0xff] %v9522
      %9559 = vst [vmem:[%s433 + $0x58] sm:$0xff] %v9523
      %9560 = vst [vmem:[%s433 + $0x60] sm:$0xff] %v9524
      %9561 = vst [vmem:[%s433 + $0x68] sm:$0xff] %v9525
      %9562 = vst [vmem:[%s433 + $0x70] sm:$0xff] %v9526
      %9563 = vst [vmem:[%s433 + $0x78] sm:$0xff] %v9527
      %9564 = vst [vmem:[%s433 + $0x80] sm:$0xff] %v9528
      %9565 = vst [vmem:[%s433 + $0x88] sm:$0xff] %v9529
      %9566 = vst [vmem:[%s433 + $0x90] sm:$0xff] %v9530
      %9567 = vst [vmem:[%s433 + $0x98] sm:$0xff] %v9531
      %9568 = vst [vmem:[%s433 + $0xa0] sm:$0xff] %v9532
      %9569 = vst [vmem:[%s433 + $0xa8] sm:$0xff] %v9533
      %9570 = vst [vmem:[%s433 + $0xb0] sm:$0xff] %v9534
      %9571 = vst [vmem:[%s433 + $0xb8] sm:$0xff] %v9535
      %9572 = vst [vmem:[%s433 + $0xc0] sm:$0xff] %v9536
      %9573 = vst [vmem:[%s433 + $0xc8] sm:$0xff] %v9537
      %9574 = vst [vmem:[%s433 + $0xd0] sm:$0xff] %v9538
      %9575 = vst [vmem:[%s433 + $0xd8] sm:$0xff] %v9539
      %9576 = vst [vmem:[%s433 + $0xe0] sm:$0xff] %v9540
      %9577 = vst [vmem:[%s433 + $0xe8] sm:$0xff] %v9541
      %9578 = vst [vmem:[%s433 + $0xf0] sm:$0xff] %v9542
      %9579 = vst [vmem:[%s433 + $0xf8] sm:$0xff] %v9543
      %9580 = vst [vmem:[%s433 + $0x100] sm:$0xff] %v9544
      %9581 = vst [vmem:[%s433 + $0x108] sm:$0xff] %v9545
      %9582 = vst [vmem:[%s433 + $0x110] sm:$0xff] %v9546
      %9583 = vst [vmem:[%s433 + $0x118] sm:$0xff] %v9547
      %v9584 = vld [vmem:[%s433] sm:$0xff]
      %v9585 = vld [vmem:[%s433 + $0x8] sm:$0xff]
      %v9586 = vld [vmem:[%s433 + $0x10] sm:$0xff]
      %v9587 = vld [vmem:[%s433 + $0x18] sm:$0xff]
      %v9588 = vld [vmem:[%s433 + $0x20] sm:$0xff]
      %v9589 = vld [vmem:[%s433 + $0x28] sm:$0xff]
      %v9590 = vld [vmem:[%s433 + $0x30] sm:$0xff]
      %v9591 = vld [vmem:[%s433 + $0x38] sm:$0xff]
      %v9592 = vld [vmem:[%s433 + $0x40] sm:$0xff]
      %v9593 = vld [vmem:[%s433 + $0x48] sm:$0xff]
      %v9594 = vld [vmem:[%s433 + $0x50] sm:$0xff]
      %v9595 = vld [vmem:[%s433 + $0x58] sm:$0xff]
      %v9596 = vld [vmem:[%s433 + $0x60] sm:$0xff]
      %v9597 = vld [vmem:[%s433 + $0x68] sm:$0xff]
      %v9598 = vld [vmem:[%s433 + $0x70] sm:$0xff]
      %v9599 = vld [vmem:[%s433 + $0x78] sm:$0xff]
      %v9600 = vld [vmem:[%s433 + $0x80] sm:$0xff]
      %v9601 = vld [vmem:[%s433 + $0x88] sm:$0xff]
      %v9602 = vld [vmem:[%s433 + $0x90] sm:$0xff]
      %v9603 = vld [vmem:[%s433 + $0x98] sm:$0xff]
      %v9604 = vld [vmem:[%s433 + $0xa0] sm:$0xff]
      %v9605 = vld [vmem:[%s433 + $0xa8] sm:$0xff]
      %v9606 = vld [vmem:[%s433 + $0xb0] sm:$0xff]
      %v9607 = vld [vmem:[%s433 + $0xb8] sm:$0xff]
      %v9608 = vld [vmem:[%s433 + $0xc0] sm:$0xff]
      %v9609 = vld [vmem:[%s433 + $0xc8] sm:$0xff]
      %v9610 = vld [vmem:[%s433 + $0xd0] sm:$0xff]
      %v9611 = vld [vmem:[%s433 + $0xd8] sm:$0xff]
      %v9612 = vld [vmem:[%s433 + $0xe0] sm:$0xff]
      %v9613 = vld [vmem:[%s433 + $0xe8] sm:$0xff]
      %v9614 = vld [vmem:[%s433 + $0xf0] sm:$0xff]
      %v9615 = vld [vmem:[%s433 + $0xf8] sm:$0xff]
      %v9616 = vld [vmem:[%s433 + $0x100] sm:$0xff]
      %v9617 = vld [vmem:[%s433 + $0x108] sm:$0xff]
      %v9618 = vld [vmem:[%s433 + $0x110] sm:$0xff]
      %v9619 = vld [vmem:[%s433 + $0x118] sm:$0xff]
      %v9620 = vld [vmem:[#allocation3 + $0x26] sm:$0xff]
      %v9621 = vld [vmem:[#allocation3 + $0x2e] sm:$0xff]
      %v9622 = vld [vmem:[#allocation3 + $0x36] sm:$0xff]
      %v9623 = vld [vmem:[#allocation3 + $0x3e] sm:$0xff]
      %v9624 = vld [vmem:[#allocation3 + $0x46] sm:$0xff]
      %v9625 = vld [vmem:[#allocation3 + $0x4e] sm:$0xff]
      %v9626 = vld [vmem:[#allocation3 + $0x56] sm:$0xff]
      %v9627 = vld [vmem:[#allocation3 + $0x5e] sm:$0xff]
      %v9628 = vld [vmem:[#allocation3 + $0x66] sm:$0xff]
      %v9629 = vld [vmem:[#allocation3 + $0x6e] sm:$0xff]
      %v9630 = vld [vmem:[#allocation3 + $0x76] sm:$0xff]
      %v9631 = vld [vmem:[#allocation3 + $0x7e] sm:$0xff]
      %v9632 = vld [vmem:[#allocation3 + $0x86] sm:$0xff]
      %v9633 = vld [vmem:[#allocation3 + $0x8e] sm:$0xff]
      %v9634 = vld [vmem:[#allocation3 + $0x96] sm:$0xff]
      %v9635 = vld [vmem:[#allocation3 + $0x9e] sm:$0xff]
      %v9636 = vld [vmem:[#allocation3 + $0xa6] sm:$0xff]
      %v9637 = vld [vmem:[#allocation3 + $0xae] sm:$0xff]
      %v9638 = vld [vmem:[#allocation3 + $0xb6] sm:$0xff]
      %v9639 = vld [vmem:[#allocation3 + $0xbe] sm:$0xff]
      %v9640 = vld [vmem:[#allocation3 + $0xc6] sm:$0xff]
      %v9641 = vld [vmem:[#allocation3 + $0xce] sm:$0xff]
      %v9642 = vld [vmem:[#allocation3 + $0xd6] sm:$0xff]
      %v9643 = vld [vmem:[#allocation3 + $0xde] sm:$0xff]
      %v9644 = vld [vmem:[#allocation3 + $0xe6] sm:$0xff]
      %v9645 = vld [vmem:[#allocation3 + $0xee] sm:$0xff]
      %v9646 = vld [vmem:[#allocation3 + $0xf6] sm:$0xff]
      %v9647 = vld [vmem:[#allocation3 + $0xfe] sm:$0xff]
      %v9648 = vld [vmem:[#allocation3 + $0x106] sm:$0xff]
      %v9649 = vld [vmem:[#allocation3 + $0x10e] sm:$0xff]
      %v9650 = vld [vmem:[#allocation3 + $0x116] sm:$0xff]
      %v9651 = vld [vmem:[#allocation3 + $0x11e] sm:$0xff]
      %v9652 = vld [vmem:[#allocation3 + $0x126] sm:$0xff]
      %v9653 = vld [vmem:[#allocation3 + $0x12e] sm:$0xff]
      %v9654 = vld [vmem:[#allocation3 + $0x136] sm:$0xff]
      %v9655 = vld [vmem:[#allocation3 + $0x13e] sm:$0xff]
      %s9656 = scalar_lea.vmem %s10, 1024
      %v9657 = vld [vmem:[%s9656] sm:$0xff]
      %v9658 = vld [vmem:[%s9656 + $0x8] sm:$0xff]
      %v9659 = vld [vmem:[%s9656 + $0x10] sm:$0xff]
      %v9660 = vld [vmem:[%s9656 + $0x18] sm:$0xff]
      %v9661 = vld [vmem:[%s9656 + $0x20] sm:$0xff]
      %v9662 = vld [vmem:[%s9656 + $0x28] sm:$0xff]
      %v9663 = vld [vmem:[%s9656 + $0x30] sm:$0xff]
      %v9664 = vld [vmem:[%s9656 + $0x38] sm:$0xff]
      %v9665 = vld [vmem:[%s9656 + $0x40] sm:$0xff]
      %v9666 = vld [vmem:[%s9656 + $0x48] sm:$0xff]
      %v9667 = vld [vmem:[%s9656 + $0x50] sm:$0xff]
      %v9668 = vld [vmem:[%s9656 + $0x58] sm:$0xff]
      %v9669 = vld [vmem:[%s9656 + $0x60] sm:$0xff]
      %v9670 = vld [vmem:[%s9656 + $0x68] sm:$0xff]
      %v9671 = vld [vmem:[%s9656 + $0x70] sm:$0xff]
      %v9672 = vld [vmem:[%s9656 + $0x78] sm:$0xff]
      %9673 = vmatprep.subr.mxu0 0.0
      %9674 = vmatpush1.msra.mxu0 %v9672
      %9675 = vmatprep.subr.mxu0 0.0
      %9676 = vmatpush1.msra.mxu0 %v9671
      %9677 = vmatprep.subr.mxu0 0.0
      %9678 = vmatpush1.msra.mxu0 %v9670
      %9679 = vmatprep.subr.mxu0 0.0
      %9680 = vmatpush1.msra.mxu0 %v9669
      %9681 = vmatprep.subr.mxu0 0.0
      %9682 = vmatpush1.msra.mxu0 %v9668
      %9683 = vmatprep.subr.mxu0 0.0
      %9684 = vmatpush1.msra.mxu0 %v9667
      %9685 = vmatprep.subr.mxu0 0.0
      %9686 = vmatpush1.msra.mxu0 %v9666
      %9687 = vmatprep.subr.mxu0 0.0
      %9688 = vmatpush1.msra.mxu0 %v9665
      %9689 = vmatprep.subr.mxu0 0.0
      %9690 = vmatpush1.msra.mxu0 %v9664
      %9691 = vmatprep.subr.mxu0 0.0
      %9692 = vmatpush1.msra.mxu0 %v9663
      %9693 = vmatprep.subr.mxu0 0.0
      %9694 = vmatpush1.msra.mxu0 %v9662
      %9695 = vmatprep.subr.mxu0 0.0
      %9696 = vmatpush1.msra.mxu0 %v9661
      %9697 = vmatprep.subr.mxu0 0.0
      %9698 = vmatpush1.msra.mxu0 %v9660
      %9699 = vmatprep.subr.mxu0 0.0
      %9700 = vmatpush1.msra.mxu0 %v9659
      %9701 = vmatprep.subr.mxu0 0.0
      %9702 = vmatpush1.msra.mxu0 %v9658
      %9703 = vmatprep.subr.mxu0 0.0
      %9704 = vmatpush1.msra.mxu0 %v9657
      %9705 = vmatprep.subr.mxu0 0.0
      %9706 = vmatpush2.msra.mxu0 0.0
      %9707 = vmatprep.subr.mxu0 0.0
      %9708 = vmatpush2.msra.mxu0 0.0
      %9709 = vmatprep.subr.mxu0 0.0
      %9710 = vmatpush2.msra.mxu0 0.0
      %9711 = vmatprep.subr.mxu0 0.0
      %9712 = vmatpush2.msra.mxu0 0.0
      %9713 = vmatprep.subr.mxu0 0.0
      %9714 = vmatpush2.msra.mxu0 0.0
      %9715 = vmatprep.subr.mxu0 0.0
      %9716 = vmatpush2.msra.mxu0 0.0
      %9717 = vmatprep.subr.mxu0 0.0
      %9718 = vmatpush2.msra.mxu0 0.0
      %9719 = vmatprep.subr.mxu0 0.0
      %9720 = vmatpush2.msra.mxu0 0.0
      %9721 = vmatprep.subr.mxu0 0.0
      %9722 = vmatpush2.msra.mxu0 0.0
      %9723 = vmatprep.subr.mxu0 0.0
      %9724 = vmatpush2.msra.mxu0 0.0
      %9725 = vmatprep.subr.mxu0 0.0
      %9726 = vmatpush2.msra.mxu0 0.0
      %9727 = vmatprep.subr.mxu0 0.0
      %9728 = vmatpush2.msra.mxu0 0.0
      %9729 = vmatprep.subr.mxu0 0.0
      %9730 = vmatpush2.msra.mxu0 0.0
      %9731 = vmatprep.subr.mxu0 0.0
      %9732 = vmatpush2.msra.mxu0 0.0
      %9733 = vmatprep.subr.mxu0 0.0
      %9734 = vmatpush2.msra.mxu0 0.0
      %9735 = vmatprep.subr.mxu0 0.0
      %9736 = vmatpush2.msra.mxu0 0.0
      %9737 = vmatprep.mubr.f32.mxu0 0.0
      %9738 = vmatmul.mubr.f32.gmra.mxu0 %v9620
      %v9739 = vpop.f32.mrf.mxu0
      %v9740 = vadd.f32 0.0, %v9739
      %v9741 = vpop.f32.mrf.mxu0
      %9742 = vmatprep.mubr.f32.mxu0 0.0
      %9743 = vmatmul.mubr.f32.gmra.mxu0 %v9621
      %v9744 = vpop.f32.mrf.mxu0
      %v9745 = vadd.f32 0.0, %v9744
      %v9746 = vpop.f32.mrf.mxu0
      %9747 = vmatprep.mubr.f32.mxu0 0.0
      %9748 = vmatmul.mubr.f32.gmra.mxu0 %v9622
      %v9749 = vpop.f32.mrf.mxu0
      %v9750 = vadd.f32 0.0, %v9749
      %v9751 = vpop.f32.mrf.mxu0
      %9752 = vmatprep.mubr.f32.mxu0 0.0
      %9753 = vmatmul.mubr.f32.gmra.mxu0 %v9623
      %v9754 = vpop.f32.mrf.mxu0
      %v9755 = vadd.f32 0.0, %v9754
      %v9756 = vpop.f32.mrf.mxu0
      %9757 = vmatprep.mubr.f32.mxu0 0.0
      %9758 = vmatmul.mubr.f32.gmra.mxu0 %v9624
      %v9759 = vpop.f32.mrf.mxu0
      %v9760 = vadd.f32 0.0, %v9759
      %v9761 = vpop.f32.mrf.mxu0
      %9762 = vmatprep.mubr.f32.mxu0 0.0
      %9763 = vmatmul.mubr.f32.gmra.mxu0 %v9625
      %v9764 = vpop.f32.mrf.mxu0
      %v9765 = vadd.f32 0.0, %v9764
      %v9766 = vpop.f32.mrf.mxu0
      %9767 = vmatprep.mubr.f32.mxu0 0.0
      %9768 = vmatmul.mubr.f32.gmra.mxu0 %v9626
      %v9769 = vpop.f32.mrf.mxu0
      %v9770 = vadd.f32 0.0, %v9769
      %v9771 = vpop.f32.mrf.mxu0
      %9772 = vmatprep.mubr.f32.mxu0 0.0
      %9773 = vmatmul.mubr.f32.gmra.mxu0 %v9627
      %v9774 = vpop.f32.mrf.mxu0
      %v9775 = vadd.f32 0.0, %v9774
      %v9776 = vpop.f32.mrf.mxu0
      %9777 = vmatprep.mubr.f32.mxu0 0.0
      %9778 = vmatmul.mubr.f32.gmra.mxu0 %v9628
      %v9779 = vpop.f32.mrf.mxu0
      %v9780 = vadd.f32 0.0, %v9779
      %v9781 = vpop.f32.mrf.mxu0
      %9782 = vmatprep.mubr.f32.mxu0 0.0
      %9783 = vmatmul.mubr.f32.gmra.mxu0 %v9629
      %v9784 = vpop.f32.mrf.mxu0
      %v9785 = vadd.f32 0.0, %v9784
      %v9786 = vpop.f32.mrf.mxu0
      %9787 = vmatprep.mubr.f32.mxu0 0.0
      %9788 = vmatmul.mubr.f32.gmra.mxu0 %v9630
      %v9789 = vpop.f32.mrf.mxu0
      %v9790 = vadd.f32 0.0, %v9789
      %v9791 = vpop.f32.mrf.mxu0
      %9792 = vmatprep.mubr.f32.mxu0 0.0
      %9793 = vmatmul.mubr.f32.gmra.mxu0 %v9631
      %v9794 = vpop.f32.mrf.mxu0
      %v9795 = vadd.f32 0.0, %v9794
      %v9796 = vpop.f32.mrf.mxu0
      %9797 = vmatprep.mubr.f32.mxu0 0.0
      %9798 = vmatmul.mubr.f32.gmra.mxu0 %v9632
      %v9799 = vpop.f32.mrf.mxu0
      %v9800 = vadd.f32 0.0, %v9799
      %v9801 = vpop.f32.mrf.mxu0
      %9802 = vmatprep.mubr.f32.mxu0 0.0
      %9803 = vmatmul.mubr.f32.gmra.mxu0 %v9633
      %v9804 = vpop.f32.mrf.mxu0
      %v9805 = vadd.f32 0.0, %v9804
      %v9806 = vpop.f32.mrf.mxu0
      %9807 = vmatprep.mubr.f32.mxu0 0.0
      %9808 = vmatmul.mubr.f32.gmra.mxu0 %v9634
      %v9809 = vpop.f32.mrf.mxu0
      %v9810 = vadd.f32 0.0, %v9809
      %v9811 = vpop.f32.mrf.mxu0
      %9812 = vmatprep.mubr.f32.mxu0 0.0
      %9813 = vmatmul.mubr.f32.gmra.mxu0 %v9635
      %v9814 = vpop.f32.mrf.mxu0
      %v9815 = vadd.f32 0.0, %v9814
      %v9816 = vpop.f32.mrf.mxu0
      %9817 = vmatprep.mubr.f32.mxu0 0.0
      %9818 = vmatmul.mubr.f32.gmra.mxu0 %v9636
      %v9819 = vpop.f32.mrf.mxu0
      %v9820 = vadd.f32 0.0, %v9819
      %v9821 = vpop.f32.mrf.mxu0
      %9822 = vmatprep.mubr.f32.mxu0 0.0
      %9823 = vmatmul.mubr.f32.gmra.mxu0 %v9637
      %v9824 = vpop.f32.mrf.mxu0
      %v9825 = vadd.f32 0.0, %v9824
      %v9826 = vpop.f32.mrf.mxu0
      %9827 = vmatprep.mubr.f32.mxu0 0.0
      %9828 = vmatmul.mubr.f32.gmra.mxu0 %v9638
      %v9829 = vpop.f32.mrf.mxu0
      %v9830 = vadd.f32 0.0, %v9829
      %v9831 = vpop.f32.mrf.mxu0
      %9832 = vmatprep.mubr.f32.mxu0 0.0
      %9833 = vmatmul.mubr.f32.gmra.mxu0 %v9639
      %v9834 = vpop.f32.mrf.mxu0
      %v9835 = vadd.f32 0.0, %v9834
      %v9836 = vpop.f32.mrf.mxu0
      %9837 = vmatprep.mubr.f32.mxu0 0.0
      %9838 = vmatmul.mubr.f32.gmra.mxu0 %v9640
      %v9839 = vpop.f32.mrf.mxu0
      %v9840 = vadd.f32 0.0, %v9839
      %v9841 = vpop.f32.mrf.mxu0
      %9842 = vmatprep.mubr.f32.mxu0 0.0
      %9843 = vmatmul.mubr.f32.gmra.mxu0 %v9641
      %v9844 = vpop.f32.mrf.mxu0
      %v9845 = vadd.f32 0.0, %v9844
      %v9846 = vpop.f32.mrf.mxu0
      %9847 = vmatprep.mubr.f32.mxu0 0.0
      %9848 = vmatmul.mubr.f32.gmra.mxu0 %v9642
      %v9849 = vpop.f32.mrf.mxu0
      %v9850 = vadd.f32 0.0, %v9849
      %v9851 = vpop.f32.mrf.mxu0
      %9852 = vmatprep.mubr.f32.mxu0 0.0
      %9853 = vmatmul.mubr.f32.gmra.mxu0 %v9643
      %v9854 = vpop.f32.mrf.mxu0
      %v9855 = vadd.f32 0.0, %v9854
      %v9856 = vpop.f32.mrf.mxu0
      %9857 = vmatprep.mubr.f32.mxu0 0.0
      %9858 = vmatmul.mubr.f32.gmra.mxu0 %v9644
      %v9859 = vpop.f32.mrf.mxu0
      %v9860 = vadd.f32 0.0, %v9859
      %v9861 = vpop.f32.mrf.mxu0
      %9862 = vmatprep.mubr.f32.mxu0 0.0
      %9863 = vmatmul.mubr.f32.gmra.mxu0 %v9645
      %v9864 = vpop.f32.mrf.mxu0
      %v9865 = vadd.f32 0.0, %v9864
      %v9866 = vpop.f32.mrf.mxu0
      %9867 = vmatprep.mubr.f32.mxu0 0.0
      %9868 = vmatmul.mubr.f32.gmra.mxu0 %v9646
      %v9869 = vpop.f32.mrf.mxu0
      %v9870 = vadd.f32 0.0, %v9869
      %v9871 = vpop.f32.mrf.mxu0
      %9872 = vmatprep.mubr.f32.mxu0 0.0
      %9873 = vmatmul.mubr.f32.gmra.mxu0 %v9647
      %v9874 = vpop.f32.mrf.mxu0
      %v9875 = vadd.f32 0.0, %v9874
      %v9876 = vpop.f32.mrf.mxu0
      %9877 = vmatprep.mubr.f32.mxu0 0.0
      %9878 = vmatmul.mubr.f32.gmra.mxu0 %v9648
      %v9879 = vpop.f32.mrf.mxu0
      %v9880 = vadd.f32 0.0, %v9879
      %v9881 = vpop.f32.mrf.mxu0
      %9882 = vmatprep.mubr.f32.mxu0 0.0
      %9883 = vmatmul.mubr.f32.gmra.mxu0 %v9649
      %v9884 = vpop.f32.mrf.mxu0
      %v9885 = vadd.f32 0.0, %v9884
      %v9886 = vpop.f32.mrf.mxu0
      %9887 = vmatprep.mubr.f32.mxu0 0.0
      %9888 = vmatmul.mubr.f32.gmra.mxu0 %v9650
      %v9889 = vpop.f32.mrf.mxu0
      %v9890 = vadd.f32 0.0, %v9889
      %v9891 = vpop.f32.mrf.mxu0
      %9892 = vmatprep.mubr.f32.mxu0 0.0
      %9893 = vmatmul.mubr.f32.gmra.mxu0 %v9651
      %v9894 = vpop.f32.mrf.mxu0
      %v9895 = vadd.f32 0.0, %v9894
      %v9896 = vpop.f32.mrf.mxu0
      %9897 = vmatprep.mubr.f32.mxu0 0.0
      %9898 = vmatmul.mubr.f32.gmra.mxu0 %v9652
      %v9899 = vpop.f32.mrf.mxu0
      %v9900 = vadd.f32 0.0, %v9899
      %v9901 = vpop.f32.mrf.mxu0
      %9902 = vmatprep.mubr.f32.mxu0 0.0
      %9903 = vmatmul.mubr.f32.gmra.mxu0 %v9653
      %v9904 = vpop.f32.mrf.mxu0
      %v9905 = vadd.f32 0.0, %v9904
      %v9906 = vpop.f32.mrf.mxu0
      %9907 = vmatprep.mubr.f32.mxu0 0.0
      %9908 = vmatmul.mubr.f32.gmra.mxu0 %v9654
      %v9909 = vpop.f32.mrf.mxu0
      %v9910 = vadd.f32 0.0, %v9909
      %v9911 = vpop.f32.mrf.mxu0
      %9912 = vmatprep.mubr.f32.mxu0 0.0
      %9913 = vmatmul.mubr.f32.gmra.mxu0 %v9655
      %v9914 = vpop.f32.mrf.mxu0
      %v9915 = vadd.f32 0.0, %v9914
      %v9916 = vpop.f32.mrf.mxu0
      %9917 = vdwg.mxu0
      %v9918 = vadd.f32 %v9584, %v9740
      %v9919 = vadd.f32 %v9585, %v9745
      %v9920 = vadd.f32 %v9586, %v9750
      %v9921 = vadd.f32 %v9587, %v9755
      %v9922 = vadd.f32 %v9588, %v9760
      %v9923 = vadd.f32 %v9589, %v9765
      %v9924 = vadd.f32 %v9590, %v9770
      %v9925 = vadd.f32 %v9591, %v9775
      %v9926 = vadd.f32 %v9592, %v9780
      %v9927 = vadd.f32 %v9593, %v9785
      %v9928 = vadd.f32 %v9594, %v9790
      %v9929 = vadd.f32 %v9595, %v9795
      %v9930 = vadd.f32 %v9596, %v9800
      %v9931 = vadd.f32 %v9597, %v9805
      %v9932 = vadd.f32 %v9598, %v9810
      %v9933 = vadd.f32 %v9599, %v9815
      %v9934 = vadd.f32 %v9600, %v9820
      %v9935 = vadd.f32 %v9601, %v9825
      %v9936 = vadd.f32 %v9602, %v9830
      %v9937 = vadd.f32 %v9603, %v9835
      %v9938 = vadd.f32 %v9604, %v9840
      %v9939 = vadd.f32 %v9605, %v9845
      %v9940 = vadd.f32 %v9606, %v9850
      %v9941 = vadd.f32 %v9607, %v9855
      %v9942 = vadd.f32 %v9608, %v9860
      %v9943 = vadd.f32 %v9609, %v9865
      %v9944 = vadd.f32 %v9610, %v9870
      %v9945 = vadd.f32 %v9611, %v9875
      %v9946 = vadd.f32 %v9612, %v9880
      %v9947 = vadd.f32 %v9613, %v9885
      %v9948 = vadd.f32 %v9614, %v9890
      %v9949 = vadd.f32 %v9615, %v9895
      %v9950 = vadd.f32 %v9616, %v9900
      %v9951 = vadd.f32 %v9617, %v9905
      %v9952 = vadd.f32 %v9618, %v9910
      %v9953 = vadd.f32 %v9619, %v9915
      %9954 = vst [vmem:[%s433] sm:$0xff] %v9918
      %9955 = vst [vmem:[%s433 + $0x8] sm:$0xff] %v9919
      %9956 = vst [vmem:[%s433 + $0x10] sm:$0xff] %v9920
      %9957 = vst [vmem:[%s433 + $0x18] sm:$0xff] %v9921
      %9958 = vst [vmem:[%s433 + $0x20] sm:$0xff] %v9922
      %9959 = vst [vmem:[%s433 + $0x28] sm:$0xff] %v9923
      %9960 = vst [vmem:[%s433 + $0x30] sm:$0xff] %v9924
      %9961 = vst [vmem:[%s433 + $0x38] sm:$0xff] %v9925
      %9962 = vst [vmem:[%s433 + $0x40] sm:$0xff] %v9926
      %9963 = vst [vmem:[%s433 + $0x48] sm:$0xff] %v9927
      %9964 = vst [vmem:[%s433 + $0x50] sm:$0xff] %v9928
      %9965 = vst [vmem:[%s433 + $0x58] sm:$0xff] %v9929
      %9966 = vst [vmem:[%s433 + $0x60] sm:$0xff] %v9930
      %9967 = vst [vmem:[%s433 + $0x68] sm:$0xff] %v9931
      %9968 = vst [vmem:[%s433 + $0x70] sm:$0xff] %v9932
      %9969 = vst [vmem:[%s433 + $0x78] sm:$0xff] %v9933
      %9970 = vst [vmem:[%s433 + $0x80] sm:$0xff] %v9934
      %9971 = vst [vmem:[%s433 + $0x88] sm:$0xff] %v9935
      %9972 = vst [vmem:[%s433 + $0x90] sm:$0xff] %v9936
      %9973 = vst [vmem:[%s433 + $0x98] sm:$0xff] %v9937
      %9974 = vst [vmem:[%s433 + $0xa0] sm:$0xff] %v9938
      %9975 = vst [vmem:[%s433 + $0xa8] sm:$0xff] %v9939
      %9976 = vst [vmem:[%s433 + $0xb0] sm:$0xff] %v9940
      %9977 = vst [vmem:[%s433 + $0xb8] sm:$0xff] %v9941
      %9978 = vst [vmem:[%s433 + $0xc0] sm:$0xff] %v9942
      %9979 = vst [vmem:[%s433 + $0xc8] sm:$0xff] %v9943
      %9980 = vst [vmem:[%s433 + $0xd0] sm:$0xff] %v9944
      %9981 = vst [vmem:[%s433 + $0xd8] sm:$0xff] %v9945
      %9982 = vst [vmem:[%s433 + $0xe0] sm:$0xff] %v9946
      %9983 = vst [vmem:[%s433 + $0xe8] sm:$0xff] %v9947
      %9984 = vst [vmem:[%s433 + $0xf0] sm:$0xff] %v9948
      %9985 = vst [vmem:[%s433 + $0xf8] sm:$0xff] %v9949
      %9986 = vst [vmem:[%s433 + $0x100] sm:$0xff] %v9950
      %9987 = vst [vmem:[%s433 + $0x108] sm:$0xff] %v9951
      %9988 = vst [vmem:[%s433 + $0x110] sm:$0xff] %v9952
      %9989 = vst [vmem:[%s433 + $0x118] sm:$0xff] %v9953
      %p9990 = scmp.lt.s32.totalorder %s23, 1
      %s9991 = scalar_select %p9990, %s23, 1
      %s9992 = smul.addr %s9991, 36
      %s9993 = smul.addr %s9992, 8
      %s9994 = scalar_lea.vmem %s12, %s9993
      // Predicated region
      $region69: #{pw_fcos_head_forward.1} parent=67 // pred_check
        %p9995 = pneg %p303
      $region70: #{pw_fcos_head_forward.1} parent=67 // pred_check_branch
        %9997 = sbr.rel (%p9995) target = $region72
      $region71: #{pw_fcos_head_forward.1} parent=67 // pred_region
        _
      $region72: #{pw_fcos_head_forward.1} parent=67 // pred_fallthru
        _
    $region68: #{pw_fcos_head_forward.1} parent=5 // pred_fallthru
      _
    %p9998 = scmp.le.s32.totalorder 2, %s18
    // Predicated region
    $region73: #{pw_fcos_head_forward.1} parent=5 // pred_check
      %p9999 = pneg %p9998
    $region74: #{pw_fcos_head_forward.1} parent=5 // pred_check_branch
      %10001 = sbr.rel (%p9999) target = $region76
    $region75: #{pw_fcos_head_forward.1} parent=5 // pred_region
      %s10002 = ssub.s32 %s18, 2
      // Predicated region
      $region77: #{pw_fcos_head_forward.1} parent=75 // pred_check
        %p10003 = pneg %p309
      $region78: #{pw_fcos_head_forward.1} parent=75 // pred_check_branch
        %10005 = sbr.rel (%p10003) target = $region80
      $region79: #{pw_fcos_head_forward.1} parent=75 // pred_region
        %p10006 = scmp.lt.s32.totalorder %s24, 1
        %s10007 = scalar_select %p10006, %s24, 1
        %s10008 = smul.addr %s10007, 36
        %s10009 = smul.addr %s10008, 8
        %s10010 = scalar_lea.vmem %s12, %s10009
      $region80: #{pw_fcos_head_forward.1} parent=75 // pred_fallthru
        _
    $region76: #{pw_fcos_head_forward.1} parent=5 // pred_fallthru
      _
  $region6: #{pw_fcos_head_forward.1} parent=0 // loop_footer
    %s22 = sadd.s32 1, %s18
  $region7: #{pw_fcos_head_forward.1} parent=0 // loop_footer_branch
    %17 = sbr.rel target = $region3
  $region8: #{pw_fcos_head_forward.1} parent=0 // loop_exit
    _

</llo_original>
